<compile_context>
chip_gen: v7x
topology: tpu7x:2x2x1
jax: 0.10.0
libtpu: 0.0.40
codegen_flags: <defaults>
</compile_context>

<pallas_src>
import functools

import jax
import jax.numpy as jnp
from jax.experimental import pallas as pl
from jax.experimental.pallas import tpu as pltpu

# Matmul operand dtype. f32 keeps parity with the PyTorch reference; set to
# jnp.bfloat16 (accumulation stays f32 via preferred_element_type) for 2-4x
# MXU throughput at realistic GPT-2 sizes.
MM_DTYPE = jnp.float32


# ----------------------------------------------------------------------------
# In-kernel helpers (traced inside the Pallas kernel)
# ----------------------------------------------------------------------------
def _mm(a, b):
    """x @ W with f32 accumulation (weights already stored as (in, out))."""
    return jnp.dot(a.astype(MM_DTYPE), b.astype(MM_DTYPE),
                   preferred_element_type=jnp.float32)


def _layernorm(x, w, b, eps=1e-5):
    mu = jnp.mean(x, axis=-1, keepdims=True)
    xc = x - mu
    var = jnp.mean(xc * xc, axis=-1, keepdims=True)
    return xc * jax.lax.rsqrt(var + eps) * w + b


def _mha(x2, in_w, in_b, out_w, out_b, *, num_heads, batch, seq):
    """PyTorch-style self-attention on a flattened (B*S, E) activation slab.

    Mirrors nn.MultiheadAttention(batch_first=True) with q=k=v=x and NO
    attn_mask (the reference module is bidirectional), dropout=0.
    """
    E = x2.shape[-1]
    Dh = E // num_heads
    scale = 1.0 / (Dh ** 0.5)

    qkv = _mm(x2, in_w) + in_b                      # (B*S, 3E)
    q = qkv[:, :E] * scale
    k = qkv[:, E:2 * E]
    v = qkv[:, 2 * E:]

    head_outs = []
    for h in range(num_heads):                      # static unroll; batched over B
        sl = slice(h * Dh, (h + 1) * Dh)
        qh = q[:, sl].reshape(batch, seq, Dh)
        kh = k[:, sl].reshape(batch, seq, Dh)
        vh = v[:, sl].reshape(batch, seq, Dh)
        s = jnp.einsum('bqd,bkd->bqk',
                       qh.astype(MM_DTYPE), kh.astype(MM_DTYPE),
                       preferred_element_type=jnp.float32)       # (B, S, S)
        s = s - jnp.max(s, axis=-1, keepdims=True)
        p = jnp.exp(s)
        p = p * pl.reciprocal(jnp.sum(p, axis=-1, keepdims=True), approx=True)
        oh = jnp.einsum('bqk,bkd->bqd',
                        p.astype(MM_DTYPE), vh.astype(MM_DTYPE),
                        preferred_element_type=jnp.float32)      # (B, S, Dh)
        head_outs.append(oh.reshape(batch * seq, Dh))
    attn = jnp.concatenate(head_outs, axis=-1)                   # (B*S, E)
    return _mm(attn, out_w) + out_b


# ----------------------------------------------------------------------------
# Fused Pallas kernel: all decoder layers + AttentionMapper head
# ----------------------------------------------------------------------------
def gpt2_kernel(x_ref,
                in_w_ref, in_b_ref, out_w_ref, out_b_ref,
                w1_ref, b1_ref, w2_ref, b2_ref,
                ln1_w_ref, ln1_b_ref, ln2_w_ref, ln2_b_ref,
                m_in_w_ref, m_in_b_ref, m_out_w_ref, m_out_b_ref,
                m_lin_w_ref, m_lin_b_ref,
                o_ref,
                *, num_heads, num_layers, batch, seq, output_size):
    E = x_ref.shape[-1]
    x = x_ref[...]                                  # (B*S, E)

    # ---- decoder stack (post-LN): x = LN1(x + MHA(x)); x = LN2(x + FFN(x)) ----
    for l in range(num_layers):                     # static unroll; weights stay in VMEM
        attn = _mha(x, in_w_ref[l], in_b_ref[l], out_w_ref[l], out_b_ref[l],
                    num_heads=num_heads, batch=batch, seq=seq)
        x = _layernorm(x + attn, ln1_w_ref[l], ln1_b_ref[l])
        h = jnp.maximum(_mm(x, w1_ref[l]) + b1_ref[l], 0.0)      # ReLU
        ffn = _mm(h, w2_ref[l]) + b2_ref[l]
        x = _layernorm(x + ffn, ln2_w_ref[l], ln2_b_ref[l])

    # ---- AttentionMapper head: MHA -> Linear(E, E*output_size) ----
    attn = _mha(x, m_in_w_ref[...], m_in_b_ref[...],
                m_out_w_ref[...], m_out_b_ref[...],
                num_heads=num_heads, batch=batch, seq=seq)
    mapped = _mm(attn, m_lin_w_ref[...]) + m_lin_b_ref[...]      # (B*S, E*out) lane-dense

    # view(B, S, output_size, E).permute(2, 0, 1, 3), emitted directly.
    for o in range(output_size):
        o_ref[o] = mapped[:, o * E:(o + 1) * E].reshape(batch, seq, E)


# ----------------------------------------------------------------------------
# Wrapper
# ----------------------------------------------------------------------------
def _pack_params(params):
    """One-time host-side transform: transpose every linear weight to
    (in_features, out_features) and stack per-layer tensors along a leading
    layer axis so a single fused kernel can consume them."""
    layers = params["layers"]

    def stack(name, transpose=False):
        return jnp.stack([lp[name].T if transpose else lp[name]
                          for lp in layers], axis=0)

    packed = (
        stack("in_w", True), stack("in_b"),
        stack("out_w", True), stack("out_b"),
        stack("w1", True), stack("b1"),
        stack("w2", True), stack("b2"),
        stack("ln1_w"), stack("ln1_b"),
        stack("ln2_w"), stack("ln2_b"),
    )
    m = params["mapper"]
    packed += (m["in_w"].T, m["in_b"], m["out_w"].T, m["out_b"],
               m["lin_w"].T, m["lin_b"])
    return packed


def gpt2_decoder_forward(x, params, num_heads, output_size=8):
    B, S, E = x.shape
    num_layers = len(params["layers"])
    packed = _pack_params(params)

    kernel = functools.partial(
        gpt2_kernel,
        num_heads=num_heads, num_layers=num_layers,
        batch=B, seq=S, output_size=output_size)

    # Single invocation (no grid): all weights + activations fit comfortably
    # in VMEM at these sizes; whole-array blocks, no per-step pipeline overhead.
    # TODO(synk): at real GPT-2 sizes (E=768, F=3072, S>=512) add contraction
    # tiling (grid over K/F and KV blocks) instead of whole-matrix blocks.
    return pl.pallas_call(
        kernel,
        out_shape=jax.ShapeDtypeStruct((output_size, B, S, E), jnp.float32),
        compiler_params=pltpu.CompilerParams(
            vmem_limit_bytes=32 * 1024 * 1024),
    )(x.reshape(B * S, E), *packed)


# ----------------------------------------------------------------------------
# Deterministic parameter initialization (synthetic, PyTorch weight convention)
# ----------------------------------------------------------------------------
def init_params(key, embed_dim, num_heads, num_layers, feedforward_dim,
                output_size=8):
    E, F = embed_dim, feedforward_dim

    def nrm(k, shape, scale=0.02):
        return (scale * jax.random.normal(k, shape)).astype(jnp.float32)

    layers = []
    for _ in range(num_layers):
        key, *ks = jax.random.split(key, 9)
        layers.append({
            "in_w":  nrm(ks[0], (3 * E, E)),
            "in_b":  nrm(ks[1], (1, 3 * E)),
            "out_w": nrm(ks[2], (E, E)),
            "out_b": nrm(ks[3], (1, E)),
            "w1":    nrm(ks[4], (F, E)),
            "b1":    nrm(ks[5], (1, F)),
            "w2":    nrm(ks[6], (E, F)),
            "b2":    nrm(ks[7], (1, E)),
            "ln1_w": jnp.ones((1, E), jnp.float32),
            "ln1_b": jnp.zeros((1, E), jnp.float32),
            "ln2_w": jnp.ones((1, E), jnp.float32),
            "ln2_b": jnp.zeros((1, E), jnp.float32),
        })

    key, *ks = jax.random.split(key, 7)
    mapper = {
        "in_w":  nrm(ks[0], (3 * E, E)),
        "in_b":  nrm(ks[1], (1, 3 * E)),
        "out_w": nrm(ks[2], (E, E)),
        "out_b": nrm(ks[3], (1, E)),
        "lin_w": nrm(ks[4], (E * output_size, E)),
        "lin_b": nrm(ks[5], (1, E * output_size)),
    }
    return {"layers": layers, "mapper": mapper}


# ----------------------------------------------------------------------------
if __name__ == "__main__":
    B, S = 2, 8
    embed_dim, num_heads, num_layers, feedforward_dim = 32, 4, 2, 64
    output_size = 8

    key = jax.random.PRNGKey(0)
    kx, kp = jax.random.split(key)
    x = jax.random.normal(kx, (B, S, embed_dim), dtype=jnp.float32)
    params = init_params(kp, embed_dim, num_heads, num_layers, feedforward_dim,
                         output_size)

    fwd = jax.jit(functools.partial(gpt2_decoder_forward,
                                    num_heads=num_heads,
                                    output_size=output_size))
    out = jax.block_until_ready(fwd(x, params))
    assert out.shape == (output_size, B, S, embed_dim), out.shape
    print("KERNEL_OK")
</pallas_src>

<mosaic_0001>
module attributes {stable_mosaic.version = 11 : i64} {
  func.func @gpt2_kernel(%arg0: memref<16x32xf32, #tpu.memory_space<vmem>>, %arg1: memref<2x32x96xf32, #tpu.memory_space<vmem>>, %arg2: memref<2x1x96xf32, #tpu.memory_space<vmem>>, %arg3: memref<2x32x32xf32, #tpu.memory_space<vmem>>, %arg4: memref<2x1x32xf32, #tpu.memory_space<vmem>>, %arg5: memref<2x32x64xf32, #tpu.memory_space<vmem>>, %arg6: memref<2x1x64xf32, #tpu.memory_space<vmem>>, %arg7: memref<2x64x32xf32, #tpu.memory_space<vmem>>, %arg8: memref<2x1x32xf32, #tpu.memory_space<vmem>>, %arg9: memref<2x1x32xf32, #tpu.memory_space<vmem>>, %arg10: memref<2x1x32xf32, #tpu.memory_space<vmem>>, %arg11: memref<2x1x32xf32, #tpu.memory_space<vmem>>, %arg12: memref<2x1x32xf32, #tpu.memory_space<vmem>>, %arg13: memref<32x96xf32, #tpu.memory_space<vmem>>, %arg14: memref<1x96xf32, #tpu.memory_space<vmem>>, %arg15: memref<32x32xf32, #tpu.memory_space<vmem>>, %arg16: memref<1x32xf32, #tpu.memory_space<vmem>>, %arg17: memref<32x256xf32, #tpu.memory_space<vmem>>, %arg18: memref<1x256xf32, #tpu.memory_space<vmem>>, %arg19: memref<8x2x8x32xf32, #tpu.memory_space<vmem>>) attributes {dimension_semantics = [], scalar_prefetch = 0 : i64, scratch_operands = 0 : i64, tpu.core_type = #tpu.core_type<tc>} {
    %c0 = arith.constant 0 : index
    %c0_0 = arith.constant 0 : index
    %0 = vector.load %arg0[%c0, %c0_0] : memref<16x32xf32, #tpu.memory_space<vmem>>, vector<16x32xf32>
    %c0_1 = arith.constant 0 : index
    %c0_2 = arith.constant 0 : index
    %c0_3 = arith.constant 0 : index
    %1 = vector.load %arg1[%c0_1, %c0_2, %c0_3] : memref<2x32x96xf32, #tpu.memory_space<vmem>>, vector<1x32x96xf32>
    %2 = vector.shape_cast %1 : vector<1x32x96xf32> to vector<32x96xf32>
    %c0_4 = arith.constant 0 : index
    %c0_5 = arith.constant 0 : index
    %c0_6 = arith.constant 0 : index
    %3 = vector.load %arg2[%c0_4, %c0_5, %c0_6] : memref<2x1x96xf32, #tpu.memory_space<vmem>>, vector<1x1x96xf32>
    %4 = vector.shape_cast %3 : vector<1x1x96xf32> to vector<1x96xf32>
    %c0_7 = arith.constant 0 : index
    %c0_8 = arith.constant 0 : index
    %c0_9 = arith.constant 0 : index
    %5 = vector.load %arg3[%c0_7, %c0_8, %c0_9] : memref<2x32x32xf32, #tpu.memory_space<vmem>>, vector<1x32x32xf32>
    %6 = vector.shape_cast %5 : vector<1x32x32xf32> to vector<32x32xf32>
    %c0_10 = arith.constant 0 : index
    %c0_11 = arith.constant 0 : index
    %c0_12 = arith.constant 0 : index
    %7 = vector.load %arg4[%c0_10, %c0_11, %c0_12] : memref<2x1x32xf32, #tpu.memory_space<vmem>>, vector<1x1x32xf32>
    %8 = vector.shape_cast %7 : vector<1x1x32xf32> to vector<1x32xf32>
    %cst = arith.constant dense<0.000000e+00> : vector<16x96xf32>
    %9 = tpu.matmul %0, %2, %cst {dimension_numbers = #tpu.dot_dimension_numbers<[1], [0], [0], [1], [0, 0, 1, 1], [], []>} : vector<16x32xf32>, vector<32x96xf32>, vector<16x96xf32> -> vector<16x96xf32>
    %10 = vector.broadcast %4 : vector<1x96xf32> to vector<16x96xf32>
    %11 = arith.addf %9, %10 : vector<16x96xf32>
    %12 = vector.extract_strided_slice %11 {offsets = [0, 0], sizes = [16, 32], strides = [1, 1]} : vector<16x96xf32> to vector<16x32xf32>
    %cst_13 = arith.constant 0.353553385 : f32
    %13 = vector.broadcast %cst_13 : f32 to vector<16x32xf32>
    %14 = arith.mulf %12, %13 : vector<16x32xf32>
    %15 = vector.extract_strided_slice %11 {offsets = [0, 32], sizes = [16, 32], strides = [1, 1]} : vector<16x96xf32> to vector<16x32xf32>
    %16 = vector.extract_strided_slice %11 {offsets = [0, 64], sizes = [16, 32], strides = [1, 1]} : vector<16x96xf32> to vector<16x32xf32>
    %17 = vector.extract_strided_slice %14 {offsets = [0, 0], sizes = [16, 8], strides = [1, 1]} : vector<16x32xf32> to vector<16x8xf32>
    %18 = vector.shape_cast %17 : vector<16x8xf32> to vector<2x8x8xf32>
    %19 = vector.extract_strided_slice %15 {offsets = [0, 0], sizes = [16, 8], strides = [1, 1]} : vector<16x32xf32> to vector<16x8xf32>
    %20 = vector.shape_cast %19 : vector<16x8xf32> to vector<2x8x8xf32>
    %21 = vector.extract_strided_slice %16 {offsets = [0, 0], sizes = [16, 8], strides = [1, 1]} : vector<16x32xf32> to vector<16x8xf32>
    %22 = vector.shape_cast %21 : vector<16x8xf32> to vector<2x8x8xf32>
    "tpu.trace_start"() <{level = 10 : i32, message = "bqd,bkd->bqk"}> : () -> ()
    %cst_14 = arith.constant dense<0.000000e+00> : vector<2x8x8xf32>
    %23 = tpu.matmul %18, %20, %cst_14 {dimension_numbers = #tpu.dot_dimension_numbers<[2], [2], [1], [1], [0, 0, 0, 1, 1, 1], [0], [0]>} : vector<2x8x8xf32>, vector<2x8x8xf32>, vector<2x8x8xf32> -> vector<2x8x8xf32>
    "tpu.trace_stop"() : () -> ()
    %cst_15 = arith.constant dense<0xFF800000> : vector<2x8xf32>
    %24 = vector.multi_reduction <maximumf>, %23, %cst_15 [2] : vector<2x8x8xf32> to vector<2x8xf32>
    %25 = vector.shape_cast %24 : vector<2x8xf32> to vector<2x8x1xf32>
    %26 = vector.broadcast %25 : vector<2x8x1xf32> to vector<2x8x8xf32>
    %27 = arith.subf %23, %26 : vector<2x8x8xf32>
    %28 = math.exp %27 : vector<2x8x8xf32>
    %cst_16 = arith.constant dense<0.000000e+00> : vector<2x8xf32>
    %29 = vector.multi_reduction <add>, %28, %cst_16 [2] : vector<2x8x8xf32> to vector<2x8xf32>
    %30 = vector.shape_cast %29 : vector<2x8xf32> to vector<2x8x1xf32>
    %31 = tpu.reciprocal %30 {approx = true} : vector<2x8x1xf32> -> vector<2x8x1xf32>
    %32 = vector.broadcast %31 : vector<2x8x1xf32> to vector<2x8x8xf32>
    %33 = arith.mulf %28, %32 : vector<2x8x8xf32>
    "tpu.trace_start"() <{level = 10 : i32, message = "bqk,bkd->bqd"}> : () -> ()
    %cst_17 = arith.constant dense<0.000000e+00> : vector<2x8x8xf32>
    %34 = tpu.matmul %33, %22, %cst_17 {dimension_numbers = #tpu.dot_dimension_numbers<[2], [1], [1], [2], [0, 0, 0, 1, 1, 2], [0], [0]>} : vector<2x8x8xf32>, vector<2x8x8xf32>, vector<2x8x8xf32> -> vector<2x8x8xf32>
    "tpu.trace_stop"() : () -> ()
    %35 = vector.shape_cast %34 : vector<2x8x8xf32> to vector<16x8xf32>
    %36 = vector.extract_strided_slice %14 {offsets = [0, 8], sizes = [16, 8], strides = [1, 1]} : vector<16x32xf32> to vector<16x8xf32>
    %37 = vector.shape_cast %36 : vector<16x8xf32> to vector<2x8x8xf32>
    %38 = vector.extract_strided_slice %15 {offsets = [0, 8], sizes = [16, 8], strides = [1, 1]} : vector<16x32xf32> to vector<16x8xf32>
    %39 = vector.shape_cast %38 : vector<16x8xf32> to vector<2x8x8xf32>
    %40 = vector.extract_strided_slice %16 {offsets = [0, 8], sizes = [16, 8], strides = [1, 1]} : vector<16x32xf32> to vector<16x8xf32>
    %41 = vector.shape_cast %40 : vector<16x8xf32> to vector<2x8x8xf32>
    "tpu.trace_start"() <{level = 10 : i32, message = "bqd,bkd->bqk"}> : () -> ()
    %cst_18 = arith.constant dense<0.000000e+00> : vector<2x8x8xf32>
    %42 = tpu.matmul %37, %39, %cst_18 {dimension_numbers = #tpu.dot_dimension_numbers<[2], [2], [1], [1], [0, 0, 0, 1, 1, 1], [0], [0]>} : vector<2x8x8xf32>, vector<2x8x8xf32>, vector<2x8x8xf32> -> vector<2x8x8xf32>
    "tpu.trace_stop"() : () -> ()
    %cst_19 = arith.constant dense<0xFF800000> : vector<2x8xf32>
    %43 = vector.multi_reduction <maximumf>, %42, %cst_19 [2] : vector<2x8x8xf32> to vector<2x8xf32>
    %44 = vector.shape_cast %43 : vector<2x8xf32> to vector<2x8x1xf32>
    %45 = vector.broadcast %44 : vector<2x8x1xf32> to vector<2x8x8xf32>
    %46 = arith.subf %42, %45 : vector<2x8x8xf32>
    %47 = math.exp %46 : vector<2x8x8xf32>
    %cst_20 = arith.constant dense<0.000000e+00> : vector<2x8xf32>
    %48 = vector.multi_reduction <add>, %47, %cst_20 [2] : vector<2x8x8xf32> to vector<2x8xf32>
    %49 = vector.shape_cast %48 : vector<2x8xf32> to vector<2x8x1xf32>
    %50 = tpu.reciprocal %49 {approx = true} : vector<2x8x1xf32> -> vector<2x8x1xf32>
    %51 = vector.broadcast %50 : vector<2x8x1xf32> to vector<2x8x8xf32>
    %52 = arith.mulf %47, %51 : vector<2x8x8xf32>
    "tpu.trace_start"() <{level = 10 : i32, message = "bqk,bkd->bqd"}> : () -> ()
    %cst_21 = arith.constant dense<0.000000e+00> : vector<2x8x8xf32>
    %53 = tpu.matmul %52, %41, %cst_21 {dimension_numbers = #tpu.dot_dimension_numbers<[2], [1], [1], [2], [0, 0, 0, 1, 1, 2], [0], [0]>} : vector<2x8x8xf32>, vector<2x8x8xf32>, vector<2x8x8xf32> -> vector<2x8x8xf32>
    "tpu.trace_stop"() : () -> ()
    %54 = vector.shape_cast %53 : vector<2x8x8xf32> to vector<16x8xf32>
    %55 = vector.extract_strided_slice %14 {offsets = [0, 16], sizes = [16, 8], strides = [1, 1]} : vector<16x32xf32> to vector<16x8xf32>
    %56 = vector.shape_cast %55 : vector<16x8xf32> to vector<2x8x8xf32>
    %57 = vector.extract_strided_slice %15 {offsets = [0, 16], sizes = [16, 8], strides = [1, 1]} : vector<16x32xf32> to vector<16x8xf32>
    %58 = vector.shape_cast %57 : vector<16x8xf32> to vector<2x8x8xf32>
    %59 = vector.extract_strided_slice %16 {offsets = [0, 16], sizes = [16, 8], strides = [1, 1]} : vector<16x32xf32> to vector<16x8xf32>
    %60 = vector.shape_cast %59 : vector<16x8xf32> to vector<2x8x8xf32>
    "tpu.trace_start"() <{level = 10 : i32, message = "bqd,bkd->bqk"}> : () -> ()
    %cst_22 = arith.constant dense<0.000000e+00> : vector<2x8x8xf32>
    %61 = tpu.matmul %56, %58, %cst_22 {dimension_numbers = #tpu.dot_dimension_numbers<[2], [2], [1], [1], [0, 0, 0, 1, 1, 1], [0], [0]>} : vector<2x8x8xf32>, vector<2x8x8xf32>, vector<2x8x8xf32> -> vector<2x8x8xf32>
    "tpu.trace_stop"() : () -> ()
    %cst_23 = arith.constant dense<0xFF800000> : vector<2x8xf32>
    %62 = vector.multi_reduction <maximumf>, %61, %cst_23 [2] : vector<2x8x8xf32> to vector<2x8xf32>
    %63 = vector.shape_cast %62 : vector<2x8xf32> to vector<2x8x1xf32>
    %64 = vector.broadcast %63 : vector<2x8x1xf32> to vector<2x8x8xf32>
    %65 = arith.subf %61, %64 : vector<2x8x8xf32>
    %66 = math.exp %65 : vector<2x8x8xf32>
    %cst_24 = arith.constant dense<0.000000e+00> : vector<2x8xf32>
    %67 = vector.multi_reduction <add>, %66, %cst_24 [2] : vector<2x8x8xf32> to vector<2x8xf32>
    %68 = vector.shape_cast %67 : vector<2x8xf32> to vector<2x8x1xf32>
    %69 = tpu.reciprocal %68 {approx = true} : vector<2x8x1xf32> -> vector<2x8x1xf32>
    %70 = vector.broadcast %69 : vector<2x8x1xf32> to vector<2x8x8xf32>
    %71 = arith.mulf %66, %70 : vector<2x8x8xf32>
    "tpu.trace_start"() <{level = 10 : i32, message = "bqk,bkd->bqd"}> : () -> ()
    %cst_25 = arith.constant dense<0.000000e+00> : vector<2x8x8xf32>
    %72 = tpu.matmul %71, %60, %cst_25 {dimension_numbers = #tpu.dot_dimension_numbers<[2], [1], [1], [2], [0, 0, 0, 1, 1, 2], [0], [0]>} : vector<2x8x8xf32>, vector<2x8x8xf32>, vector<2x8x8xf32> -> vector<2x8x8xf32>
    "tpu.trace_stop"() : () -> ()
    %73 = vector.shape_cast %72 : vector<2x8x8xf32> to vector<16x8xf32>
    %74 = vector.extract_strided_slice %14 {offsets = [0, 24], sizes = [16, 8], strides = [1, 1]} : vector<16x32xf32> to vector<16x8xf32>
    %75 = vector.shape_cast %74 : vector<16x8xf32> to vector<2x8x8xf32>
    %76 = vector.extract_strided_slice %15 {offsets = [0, 24], sizes = [16, 8], strides = [1, 1]} : vector<16x32xf32> to vector<16x8xf32>
    %77 = vector.shape_cast %76 : vector<16x8xf32> to vector<2x8x8xf32>
    %78 = vector.extract_strided_slice %16 {offsets = [0, 24], sizes = [16, 8], strides = [1, 1]} : vector<16x32xf32> to vector<16x8xf32>
    %79 = vector.shape_cast %78 : vector<16x8xf32> to vector<2x8x8xf32>
    "tpu.trace_start"() <{level = 10 : i32, message = "bqd,bkd->bqk"}> : () -> ()
    %cst_26 = arith.constant dense<0.000000e+00> : vector<2x8x8xf32>
    %80 = tpu.matmul %75, %77, %cst_26 {dimension_numbers = #tpu.dot_dimension_numbers<[2], [2], [1], [1], [0, 0, 0, 1, 1, 1], [0], [0]>} : vector<2x8x8xf32>, vector<2x8x8xf32>, vector<2x8x8xf32> -> vector<2x8x8xf32>
    "tpu.trace_stop"() : () -> ()
    %cst_27 = arith.constant dense<0xFF800000> : vector<2x8xf32>
    %81 = vector.multi_reduction <maximumf>, %80, %cst_27 [2] : vector<2x8x8xf32> to vector<2x8xf32>
    %82 = vector.shape_cast %81 : vector<2x8xf32> to vector<2x8x1xf32>
    %83 = vector.broadcast %82 : vector<2x8x1xf32> to vector<2x8x8xf32>
    %84 = arith.subf %80, %83 : vector<2x8x8xf32>
    %85 = math.exp %84 : vector<2x8x8xf32>
    %cst_28 = arith.constant dense<0.000000e+00> : vector<2x8xf32>
    %86 = vector.multi_reduction <add>, %85, %cst_28 [2] : vector<2x8x8xf32> to vector<2x8xf32>
    %87 = vector.shape_cast %86 : vector<2x8xf32> to vector<2x8x1xf32>
    %88 = tpu.reciprocal %87 {approx = true} : vector<2x8x1xf32> -> vector<2x8x1xf32>
    %89 = vector.broadcast %88 : vector<2x8x1xf32> to vector<2x8x8xf32>
    %90 = arith.mulf %85, %89 : vector<2x8x8xf32>
    "tpu.trace_start"() <{level = 10 : i32, message = "bqk,bkd->bqd"}> : () -> ()
    %cst_29 = arith.constant dense<0.000000e+00> : vector<2x8x8xf32>
    %91 = tpu.matmul %90, %79, %cst_29 {dimension_numbers = #tpu.dot_dimension_numbers<[2], [1], [1], [2], [0, 0, 0, 1, 1, 2], [0], [0]>} : vector<2x8x8xf32>, vector<2x8x8xf32>, vector<2x8x8xf32> -> vector<2x8x8xf32>
    "tpu.trace_stop"() : () -> ()
    %92 = vector.shape_cast %91 : vector<2x8x8xf32> to vector<16x8xf32>
    %93 = tpu.concatenate %35, %54, %73, %92 in 1 : vector<16x8xf32>, vector<16x8xf32>, vector<16x8xf32>, vector<16x8xf32> -> vector<16x32xf32>
    %cst_30 = arith.constant dense<0.000000e+00> : vector<16x32xf32>
    %94 = tpu.matmul %93, %6, %cst_30 {dimension_numbers = #tpu.dot_dimension_numbers<[1], [0], [0], [1], [0, 0, 1, 1], [], []>} : vector<16x32xf32>, vector<32x32xf32>, vector<16x32xf32> -> vector<16x32xf32>
    %95 = vector.broadcast %8 : vector<1x32xf32> to vector<16x32xf32>
    %96 = arith.addf %94, %95 : vector<16x32xf32>
    %97 = arith.addf %0, %96 : vector<16x32xf32>
    %c0_31 = arith.constant 0 : index
    %c0_32 = arith.constant 0 : index
    %c0_33 = arith.constant 0 : index
    %98 = vector.load %arg9[%c0_31, %c0_32, %c0_33] : memref<2x1x32xf32, #tpu.memory_space<vmem>>, vector<1x1x32xf32>
    %99 = vector.shape_cast %98 : vector<1x1x32xf32> to vector<1x32xf32>
    %c0_34 = arith.constant 0 : index
    %c0_35 = arith.constant 0 : index
    %c0_36 = arith.constant 0 : index
    %100 = vector.load %arg10[%c0_34, %c0_35, %c0_36] : memref<2x1x32xf32, #tpu.memory_space<vmem>>, vector<1x1x32xf32>
    %101 = vector.shape_cast %100 : vector<1x1x32xf32> to vector<1x32xf32>
    %cst_37 = arith.constant dense<0.000000e+00> : vector<16xf32>
    %102 = vector.multi_reduction <add>, %97, %cst_37 [1] : vector<16x32xf32> to vector<16xf32>
    %103 = vector.shape_cast %102 : vector<16xf32> to vector<16x1xf32>
    %cst_38 = arith.constant 3.200000e+01 : f32
    %104 = vector.broadcast %cst_38 : f32 to vector<16x1xf32>
    %105 = arith.divf %103, %104 : vector<16x1xf32>
    %106 = vector.broadcast %105 : vector<16x1xf32> to vector<16x32xf32>
    %107 = arith.subf %97, %106 : vector<16x32xf32>
    %108 = arith.mulf %107, %107 : vector<16x32xf32>
    %cst_39 = arith.constant dense<0.000000e+00> : vector<16xf32>
    %109 = vector.multi_reduction <add>, %108, %cst_39 [1] : vector<16x32xf32> to vector<16xf32>
    %110 = vector.shape_cast %109 : vector<16xf32> to vector<16x1xf32>
    %cst_40 = arith.constant 3.200000e+01 : f32
    %111 = vector.broadcast %cst_40 : f32 to vector<16x1xf32>
    %112 = arith.divf %110, %111 : vector<16x1xf32>
    %cst_41 = arith.constant 9.99999974E-6 : f32
    %113 = vector.broadcast %cst_41 : f32 to vector<16x1xf32>
    %114 = arith.addf %112, %113 : vector<16x1xf32>
    %115 = math.rsqrt %114 : vector<16x1xf32>
    %116 = vector.broadcast %115 : vector<16x1xf32> to vector<16x32xf32>
    %117 = arith.mulf %107, %116 : vector<16x32xf32>
    %118 = vector.broadcast %99 : vector<1x32xf32> to vector<16x32xf32>
    %119 = arith.mulf %117, %118 : vector<16x32xf32>
    %120 = vector.broadcast %101 : vector<1x32xf32> to vector<16x32xf32>
    %121 = arith.addf %119, %120 : vector<16x32xf32>
    %c0_42 = arith.constant 0 : index
    %c0_43 = arith.constant 0 : index
    %c0_44 = arith.constant 0 : index
    %122 = vector.load %arg5[%c0_42, %c0_43, %c0_44] : memref<2x32x64xf32, #tpu.memory_space<vmem>>, vector<1x32x64xf32>
    %123 = vector.shape_cast %122 : vector<1x32x64xf32> to vector<32x64xf32>
    %cst_45 = arith.constant dense<0.000000e+00> : vector<16x64xf32>
    %124 = tpu.matmul %121, %123, %cst_45 {dimension_numbers = #tpu.dot_dimension_numbers<[1], [0], [0], [1], [0, 0, 1, 1], [], []>} : vector<16x32xf32>, vector<32x64xf32>, vector<16x64xf32> -> vector<16x64xf32>
    %c0_46 = arith.constant 0 : index
    %c0_47 = arith.constant 0 : index
    %c0_48 = arith.constant 0 : index
    %125 = vector.load %arg6[%c0_46, %c0_47, %c0_48] : memref<2x1x64xf32, #tpu.memory_space<vmem>>, vector<1x1x64xf32>
    %126 = vector.shape_cast %125 : vector<1x1x64xf32> to vector<1x64xf32>
    %127 = vector.broadcast %126 : vector<1x64xf32> to vector<16x64xf32>
    %128 = arith.addf %124, %127 : vector<16x64xf32>
    %cst_49 = arith.constant 0.000000e+00 : f32
    %129 = vector.broadcast %cst_49 : f32 to vector<16x64xf32>
    %130 = arith.maximumf %128, %129 : vector<16x64xf32>
    %c0_50 = arith.constant 0 : index
    %c0_51 = arith.constant 0 : index
    %c0_52 = arith.constant 0 : index
    %131 = vector.load %arg7[%c0_50, %c0_51, %c0_52] : memref<2x64x32xf32, #tpu.memory_space<vmem>>, vector<1x64x32xf32>
    %132 = vector.shape_cast %131 : vector<1x64x32xf32> to vector<64x32xf32>
    %cst_53 = arith.constant dense<0.000000e+00> : vector<16x32xf32>
    %133 = tpu.matmul %130, %132, %cst_53 {dimension_numbers = #tpu.dot_dimension_numbers<[1], [0], [0], [1], [0, 0, 1, 1], [], []>} : vector<16x64xf32>, vector<64x32xf32>, vector<16x32xf32> -> vector<16x32xf32>
    %c0_54 = arith.constant 0 : index
    %c0_55 = arith.constant 0 : index
    %c0_56 = arith.constant 0 : index
    %134 = vector.load %arg8[%c0_54, %c0_55, %c0_56] : memref<2x1x32xf32, #tpu.memory_space<vmem>>, vector<1x1x32xf32>
    %135 = vector.shape_cast %134 : vector<1x1x32xf32> to vector<1x32xf32>
    %136 = vector.broadcast %135 : vector<1x32xf32> to vector<16x32xf32>
    %137 = arith.addf %133, %136 : vector<16x32xf32>
    %138 = arith.addf %121, %137 : vector<16x32xf32>
    %c0_57 = arith.constant 0 : index
    %c0_58 = arith.constant 0 : index
    %c0_59 = arith.constant 0 : index
    %139 = vector.load %arg11[%c0_57, %c0_58, %c0_59] : memref<2x1x32xf32, #tpu.memory_space<vmem>>, vector<1x1x32xf32>
    %140 = vector.shape_cast %139 : vector<1x1x32xf32> to vector<1x32xf32>
    %c0_60 = arith.constant 0 : index
    %c0_61 = arith.constant 0 : index
    %c0_62 = arith.constant 0 : index
    %141 = vector.load %arg12[%c0_60, %c0_61, %c0_62] : memref<2x1x32xf32, #tpu.memory_space<vmem>>, vector<1x1x32xf32>
    %142 = vector.shape_cast %141 : vector<1x1x32xf32> to vector<1x32xf32>
    %cst_63 = arith.constant dense<0.000000e+00> : vector<16xf32>
    %143 = vector.multi_reduction <add>, %138, %cst_63 [1] : vector<16x32xf32> to vector<16xf32>
    %144 = vector.shape_cast %143 : vector<16xf32> to vector<16x1xf32>
    %cst_64 = arith.constant 3.200000e+01 : f32
    %145 = vector.broadcast %cst_64 : f32 to vector<16x1xf32>
    %146 = arith.divf %144, %145 : vector<16x1xf32>
    %147 = vector.broadcast %146 : vector<16x1xf32> to vector<16x32xf32>
    %148 = arith.subf %138, %147 : vector<16x32xf32>
    %149 = arith.mulf %148, %148 : vector<16x32xf32>
    %cst_65 = arith.constant dense<0.000000e+00> : vector<16xf32>
    %150 = vector.multi_reduction <add>, %149, %cst_65 [1] : vector<16x32xf32> to vector<16xf32>
    %151 = vector.shape_cast %150 : vector<16xf32> to vector<16x1xf32>
    %cst_66 = arith.constant 3.200000e+01 : f32
    %152 = vector.broadcast %cst_66 : f32 to vector<16x1xf32>
    %153 = arith.divf %151, %152 : vector<16x1xf32>
    %cst_67 = arith.constant 9.99999974E-6 : f32
    %154 = vector.broadcast %cst_67 : f32 to vector<16x1xf32>
    %155 = arith.addf %153, %154 : vector<16x1xf32>
    %156 = math.rsqrt %155 : vector<16x1xf32>
    %157 = vector.broadcast %156 : vector<16x1xf32> to vector<16x32xf32>
    %158 = arith.mulf %148, %157 : vector<16x32xf32>
    %159 = vector.broadcast %140 : vector<1x32xf32> to vector<16x32xf32>
    %160 = arith.mulf %158, %159 : vector<16x32xf32>
    %161 = vector.broadcast %142 : vector<1x32xf32> to vector<16x32xf32>
    %162 = arith.addf %160, %161 : vector<16x32xf32>
    %c1 = arith.constant 1 : index
    %c0_68 = arith.constant 0 : index
    %c0_69 = arith.constant 0 : index
    %163 = vector.load %arg1[%c1, %c0_68, %c0_69] : memref<2x32x96xf32, #tpu.memory_space<vmem>>, vector<1x32x96xf32>
    %164 = vector.shape_cast %163 : vector<1x32x96xf32> to vector<32x96xf32>
    %c1_70 = arith.constant 1 : index
    %c0_71 = arith.constant 0 : index
    %c0_72 = arith.constant 0 : index
    %165 = vector.load %arg2[%c1_70, %c0_71, %c0_72] : memref<2x1x96xf32, #tpu.memory_space<vmem>>, vector<1x1x96xf32>
    %166 = vector.shape_cast %165 : vector<1x1x96xf32> to vector<1x96xf32>
    %c1_73 = arith.constant 1 : index
    %c0_74 = arith.constant 0 : index
    %c0_75 = arith.constant 0 : index
    %167 = vector.load %arg3[%c1_73, %c0_74, %c0_75] : memref<2x32x32xf32, #tpu.memory_space<vmem>>, vector<1x32x32xf32>
    %168 = vector.shape_cast %167 : vector<1x32x32xf32> to vector<32x32xf32>
    %c1_76 = arith.constant 1 : index
    %c0_77 = arith.constant 0 : index
    %c0_78 = arith.constant 0 : index
    %169 = vector.load %arg4[%c1_76, %c0_77, %c0_78] : memref<2x1x32xf32, #tpu.memory_space<vmem>>, vector<1x1x32xf32>
    %170 = vector.shape_cast %169 : vector<1x1x32xf32> to vector<1x32xf32>
    %cst_79 = arith.constant dense<0.000000e+00> : vector<16x96xf32>
    %171 = tpu.matmul %162, %164, %cst_79 {dimension_numbers = #tpu.dot_dimension_numbers<[1], [0], [0], [1], [0, 0, 1, 1], [], []>} : vector<16x32xf32>, vector<32x96xf32>, vector<16x96xf32> -> vector<16x96xf32>
    %172 = vector.broadcast %166 : vector<1x96xf32> to vector<16x96xf32>
    %173 = arith.addf %171, %172 : vector<16x96xf32>
    %174 = vector.extract_strided_slice %173 {offsets = [0, 0], sizes = [16, 32], strides = [1, 1]} : vector<16x96xf32> to vector<16x32xf32>
    %cst_80 = arith.constant 0.353553385 : f32
    %175 = vector.broadcast %cst_80 : f32 to vector<16x32xf32>
    %176 = arith.mulf %174, %175 : vector<16x32xf32>
    %177 = vector.extract_strided_slice %173 {offsets = [0, 32], sizes = [16, 32], strides = [1, 1]} : vector<16x96xf32> to vector<16x32xf32>
    %178 = vector.extract_strided_slice %173 {offsets = [0, 64], sizes = [16, 32], strides = [1, 1]} : vector<16x96xf32> to vector<16x32xf32>
    %179 = vector.extract_strided_slice %176 {offsets = [0, 0], sizes = [16, 8], strides = [1, 1]} : vector<16x32xf32> to vector<16x8xf32>
    %180 = vector.shape_cast %179 : vector<16x8xf32> to vector<2x8x8xf32>
    %181 = vector.extract_strided_slice %177 {offsets = [0, 0], sizes = [16, 8], strides = [1, 1]} : vector<16x32xf32> to vector<16x8xf32>
    %182 = vector.shape_cast %181 : vector<16x8xf32> to vector<2x8x8xf32>
    %183 = vector.extract_strided_slice %178 {offsets = [0, 0], sizes = [16, 8], strides = [1, 1]} : vector<16x32xf32> to vector<16x8xf32>
    %184 = vector.shape_cast %183 : vector<16x8xf32> to vector<2x8x8xf32>
    "tpu.trace_start"() <{level = 10 : i32, message = "bqd,bkd->bqk"}> : () -> ()
    %cst_81 = arith.constant dense<0.000000e+00> : vector<2x8x8xf32>
    %185 = tpu.matmul %180, %182, %cst_81 {dimension_numbers = #tpu.dot_dimension_numbers<[2], [2], [1], [1], [0, 0, 0, 1, 1, 1], [0], [0]>} : vector<2x8x8xf32>, vector<2x8x8xf32>, vector<2x8x8xf32> -> vector<2x8x8xf32>
    "tpu.trace_stop"() : () -> ()
    %cst_82 = arith.constant dense<0xFF800000> : vector<2x8xf32>
    %186 = vector.multi_reduction <maximumf>, %185, %cst_82 [2] : vector<2x8x8xf32> to vector<2x8xf32>
    %187 = vector.shape_cast %186 : vector<2x8xf32> to vector<2x8x1xf32>
    %188 = vector.broadcast %187 : vector<2x8x1xf32> to vector<2x8x8xf32>
    %189 = arith.subf %185, %188 : vector<2x8x8xf32>
    %190 = math.exp %189 : vector<2x8x8xf32>
    %cst_83 = arith.constant dense<0.000000e+00> : vector<2x8xf32>
    %191 = vector.multi_reduction <add>, %190, %cst_83 [2] : vector<2x8x8xf32> to vector<2x8xf32>
    %192 = vector.shape_cast %191 : vector<2x8xf32> to vector<2x8x1xf32>
    %193 = tpu.reciprocal %192 {approx = true} : vector<2x8x1xf32> -> vector<2x8x1xf32>
    %194 = vector.broadcast %193 : vector<2x8x1xf32> to vector<2x8x8xf32>
    %195 = arith.mulf %190, %194 : vector<2x8x8xf32>
    "tpu.trace_start"() <{level = 10 : i32, message = "bqk,bkd->bqd"}> : () -> ()
    %cst_84 = arith.constant dense<0.000000e+00> : vector<2x8x8xf32>
    %196 = tpu.matmul %195, %184, %cst_84 {dimension_numbers = #tpu.dot_dimension_numbers<[2], [1], [1], [2], [0, 0, 0, 1, 1, 2], [0], [0]>} : vector<2x8x8xf32>, vector<2x8x8xf32>, vector<2x8x8xf32> -> vector<2x8x8xf32>
    "tpu.trace_stop"() : () -> ()
    %197 = vector.shape_cast %196 : vector<2x8x8xf32> to vector<16x8xf32>
    %198 = vector.extract_strided_slice %176 {offsets = [0, 8], sizes = [16, 8], strides = [1, 1]} : vector<16x32xf32> to vector<16x8xf32>
    %199 = vector.shape_cast %198 : vector<16x8xf32> to vector<2x8x8xf32>
    %200 = vector.extract_strided_slice %177 {offsets = [0, 8], sizes = [16, 8], strides = [1, 1]} : vector<16x32xf32> to vector<16x8xf32>
    %201 = vector.shape_cast %200 : vector<16x8xf32> to vector<2x8x8xf32>
    %202 = vector.extract_strided_slice %178 {offsets = [0, 8], sizes = [16, 8], strides = [1, 1]} : vector<16x32xf32> to vector<16x8xf32>
    %203 = vector.shape_cast %202 : vector<16x8xf32> to vector<2x8x8xf32>
    "tpu.trace_start"() <{level = 10 : i32, message = "bqd,bkd->bqk"}> : () -> ()
    %cst_85 = arith.constant dense<0.000000e+00> : vector<2x8x8xf32>
    %204 = tpu.matmul %199, %201, %cst_85 {dimension_numbers = #tpu.dot_dimension_numbers<[2], [2], [1], [1], [0, 0, 0, 1, 1, 1], [0], [0]>} : vector<2x8x8xf32>, vector<2x8x8xf32>, vector<2x8x8xf32> -> vector<2x8x8xf32>
    "tpu.trace_stop"() : () -> ()
    %cst_86 = arith.constant dense<0xFF800000> : vector<2x8xf32>
    %205 = vector.multi_reduction <maximumf>, %204, %cst_86 [2] : vector<2x8x8xf32> to vector<2x8xf32>
    %206 = vector.shape_cast %205 : vector<2x8xf32> to vector<2x8x1xf32>
    %207 = vector.broadcast %206 : vector<2x8x1xf32> to vector<2x8x8xf32>
    %208 = arith.subf %204, %207 : vector<2x8x8xf32>
    %209 = math.exp %208 : vector<2x8x8xf32>
    %cst_87 = arith.constant dense<0.000000e+00> : vector<2x8xf32>
    %210 = vector.multi_reduction <add>, %209, %cst_87 [2] : vector<2x8x8xf32> to vector<2x8xf32>
    %211 = vector.shape_cast %210 : vector<2x8xf32> to vector<2x8x1xf32>
    %212 = tpu.reciprocal %211 {approx = true} : vector<2x8x1xf32> -> vector<2x8x1xf32>
    %213 = vector.broadcast %212 : vector<2x8x1xf32> to vector<2x8x8xf32>
    %214 = arith.mulf %209, %213 : vector<2x8x8xf32>
    "tpu.trace_start"() <{level = 10 : i32, message = "bqk,bkd->bqd"}> : () -> ()
    %cst_88 = arith.constant dense<0.000000e+00> : vector<2x8x8xf32>
    %215 = tpu.matmul %214, %203, %cst_88 {dimension_numbers = #tpu.dot_dimension_numbers<[2], [1], [1], [2], [0, 0, 0, 1, 1, 2], [0], [0]>} : vector<2x8x8xf32>, vector<2x8x8xf32>, vector<2x8x8xf32> -> vector<2x8x8xf32>
    "tpu.trace_stop"() : () -> ()
    %216 = vector.shape_cast %215 : vector<2x8x8xf32> to vector<16x8xf32>
    %217 = vector.extract_strided_slice %176 {offsets = [0, 16], sizes = [16, 8], strides = [1, 1]} : vector<16x32xf32> to vector<16x8xf32>
    %218 = vector.shape_cast %217 : vector<16x8xf32> to vector<2x8x8xf32>
    %219 = vector.extract_strided_slice %177 {offsets = [0, 16], sizes = [16, 8], strides = [1, 1]} : vector<16x32xf32> to vector<16x8xf32>
    %220 = vector.shape_cast %219 : vector<16x8xf32> to vector<2x8x8xf32>
    %221 = vector.extract_strided_slice %178 {offsets = [0, 16], sizes = [16, 8], strides = [1, 1]} : vector<16x32xf32> to vector<16x8xf32>
    %222 = vector.shape_cast %221 : vector<16x8xf32> to vector<2x8x8xf32>
    "tpu.trace_start"() <{level = 10 : i32, message = "bqd,bkd->bqk"}> : () -> ()
    %cst_89 = arith.constant dense<0.000000e+00> : vector<2x8x8xf32>
    %223 = tpu.matmul %218, %220, %cst_89 {dimension_numbers = #tpu.dot_dimension_numbers<[2], [2], [1], [1], [0, 0, 0, 1, 1, 1], [0], [0]>} : vector<2x8x8xf32>, vector<2x8x8xf32>, vector<2x8x8xf32> -> vector<2x8x8xf32>
    "tpu.trace_stop"() : () -> ()
    %cst_90 = arith.constant dense<0xFF800000> : vector<2x8xf32>
    %224 = vector.multi_reduction <maximumf>, %223, %cst_90 [2] : vector<2x8x8xf32> to vector<2x8xf32>
    %225 = vector.shape_cast %224 : vector<2x8xf32> to vector<2x8x1xf32>
    %226 = vector.broadcast %225 : vector<2x8x1xf32> to vector<2x8x8xf32>
    %227 = arith.subf %223, %226 : vector<2x8x8xf32>
    %228 = math.exp %227 : vector<2x8x8xf32>
    %cst_91 = arith.constant dense<0.000000e+00> : vector<2x8xf32>
    %229 = vector.multi_reduction <add>, %228, %cst_91 [2] : vector<2x8x8xf32> to vector<2x8xf32>
    %230 = vector.shape_cast %229 : vector<2x8xf32> to vector<2x8x1xf32>
    %231 = tpu.reciprocal %230 {approx = true} : vector<2x8x1xf32> -> vector<2x8x1xf32>
    %232 = vector.broadcast %231 : vector<2x8x1xf32> to vector<2x8x8xf32>
    %233 = arith.mulf %228, %232 : vector<2x8x8xf32>
    "tpu.trace_start"() <{level = 10 : i32, message = "bqk,bkd->bqd"}> : () -> ()
    %cst_92 = arith.constant dense<0.000000e+00> : vector<2x8x8xf32>
    %234 = tpu.matmul %233, %222, %cst_92 {dimension_numbers = #tpu.dot_dimension_numbers<[2], [1], [1], [2], [0, 0, 0, 1, 1, 2], [0], [0]>} : vector<2x8x8xf32>, vector<2x8x8xf32>, vector<2x8x8xf32> -> vector<2x8x8xf32>
    "tpu.trace_stop"() : () -> ()
    %235 = vector.shape_cast %234 : vector<2x8x8xf32> to vector<16x8xf32>
    %236 = vector.extract_strided_slice %176 {offsets = [0, 24], sizes = [16, 8], strides = [1, 1]} : vector<16x32xf32> to vector<16x8xf32>
    %237 = vector.shape_cast %236 : vector<16x8xf32> to vector<2x8x8xf32>
    %238 = vector.extract_strided_slice %177 {offsets = [0, 24], sizes = [16, 8], strides = [1, 1]} : vector<16x32xf32> to vector<16x8xf32>
    %239 = vector.shape_cast %238 : vector<16x8xf32> to vector<2x8x8xf32>
    %240 = vector.extract_strided_slice %178 {offsets = [0, 24], sizes = [16, 8], strides = [1, 1]} : vector<16x32xf32> to vector<16x8xf32>
    %241 = vector.shape_cast %240 : vector<16x8xf32> to vector<2x8x8xf32>
    "tpu.trace_start"() <{level = 10 : i32, message = "bqd,bkd->bqk"}> : () -> ()
    %cst_93 = arith.constant dense<0.000000e+00> : vector<2x8x8xf32>
    %242 = tpu.matmul %237, %239, %cst_93 {dimension_numbers = #tpu.dot_dimension_numbers<[2], [2], [1], [1], [0, 0, 0, 1, 1, 1], [0], [0]>} : vector<2x8x8xf32>, vector<2x8x8xf32>, vector<2x8x8xf32> -> vector<2x8x8xf32>
    "tpu.trace_stop"() : () -> ()
    %cst_94 = arith.constant dense<0xFF800000> : vector<2x8xf32>
    %243 = vector.multi_reduction <maximumf>, %242, %cst_94 [2] : vector<2x8x8xf32> to vector<2x8xf32>
    %244 = vector.shape_cast %243 : vector<2x8xf32> to vector<2x8x1xf32>
    %245 = vector.broadcast %244 : vector<2x8x1xf32> to vector<2x8x8xf32>
    %246 = arith.subf %242, %245 : vector<2x8x8xf32>
    %247 = math.exp %246 : vector<2x8x8xf32>
    %cst_95 = arith.constant dense<0.000000e+00> : vector<2x8xf32>
    %248 = vector.multi_reduction <add>, %247, %cst_95 [2] : vector<2x8x8xf32> to vector<2x8xf32>
    %249 = vector.shape_cast %248 : vector<2x8xf32> to vector<2x8x1xf32>
    %250 = tpu.reciprocal %249 {approx = true} : vector<2x8x1xf32> -> vector<2x8x1xf32>
    %251 = vector.broadcast %250 : vector<2x8x1xf32> to vector<2x8x8xf32>
    %252 = arith.mulf %247, %251 : vector<2x8x8xf32>
    "tpu.trace_start"() <{level = 10 : i32, message = "bqk,bkd->bqd"}> : () -> ()
    %cst_96 = arith.constant dense<0.000000e+00> : vector<2x8x8xf32>
    %253 = tpu.matmul %252, %241, %cst_96 {dimension_numbers = #tpu.dot_dimension_numbers<[2], [1], [1], [2], [0, 0, 0, 1, 1, 2], [0], [0]>} : vector<2x8x8xf32>, vector<2x8x8xf32>, vector<2x8x8xf32> -> vector<2x8x8xf32>
    "tpu.trace_stop"() : () -> ()
    %254 = vector.shape_cast %253 : vector<2x8x8xf32> to vector<16x8xf32>
    %255 = tpu.concatenate %197, %216, %235, %254 in 1 : vector<16x8xf32>, vector<16x8xf32>, vector<16x8xf32>, vector<16x8xf32> -> vector<16x32xf32>
    %cst_97 = arith.constant dense<0.000000e+00> : vector<16x32xf32>
    %256 = tpu.matmul %255, %168, %cst_97 {dimension_numbers = #tpu.dot_dimension_numbers<[1], [0], [0], [1], [0, 0, 1, 1], [], []>} : vector<16x32xf32>, vector<32x32xf32>, vector<16x32xf32> -> vector<16x32xf32>
    %257 = vector.broadcast %170 : vector<1x32xf32> to vector<16x32xf32>
    %258 = arith.addf %256, %257 : vector<16x32xf32>
    %259 = arith.addf %162, %258 : vector<16x32xf32>
    %c1_98 = arith.constant 1 : index
    %c0_99 = arith.constant 0 : index
    %c0_100 = arith.constant 0 : index
    %260 = vector.load %arg9[%c1_98, %c0_99, %c0_100] : memref<2x1x32xf32, #tpu.memory_space<vmem>>, vector<1x1x32xf32>
    %261 = vector.shape_cast %260 : vector<1x1x32xf32> to vector<1x32xf32>
    %c1_101 = arith.constant 1 : index
    %c0_102 = arith.constant 0 : index
    %c0_103 = arith.constant 0 : index
    %262 = vector.load %arg10[%c1_101, %c0_102, %c0_103] : memref<2x1x32xf32, #tpu.memory_space<vmem>>, vector<1x1x32xf32>
    %263 = vector.shape_cast %262 : vector<1x1x32xf32> to vector<1x32xf32>
    %cst_104 = arith.constant dense<0.000000e+00> : vector<16xf32>
    %264 = vector.multi_reduction <add>, %259, %cst_104 [1] : vector<16x32xf32> to vector<16xf32>
    %265 = vector.shape_cast %264 : vector<16xf32> to vector<16x1xf32>
    %cst_105 = arith.constant 3.200000e+01 : f32
    %266 = vector.broadcast %cst_105 : f32 to vector<16x1xf32>
    %267 = arith.divf %265, %266 : vector<16x1xf32>
    %268 = vector.broadcast %267 : vector<16x1xf32> to vector<16x32xf32>
    %269 = arith.subf %259, %268 : vector<16x32xf32>
    %270 = arith.mulf %269, %269 : vector<16x32xf32>
    %cst_106 = arith.constant dense<0.000000e+00> : vector<16xf32>
    %271 = vector.multi_reduction <add>, %270, %cst_106 [1] : vector<16x32xf32> to vector<16xf32>
    %272 = vector.shape_cast %271 : vector<16xf32> to vector<16x1xf32>
    %cst_107 = arith.constant 3.200000e+01 : f32
    %273 = vector.broadcast %cst_107 : f32 to vector<16x1xf32>
    %274 = arith.divf %272, %273 : vector<16x1xf32>
    %cst_108 = arith.constant 9.99999974E-6 : f32
    %275 = vector.broadcast %cst_108 : f32 to vector<16x1xf32>
    %276 = arith.addf %274, %275 : vector<16x1xf32>
    %277 = math.rsqrt %276 : vector<16x1xf32>
    %278 = vector.broadcast %277 : vector<16x1xf32> to vector<16x32xf32>
    %279 = arith.mulf %269, %278 : vector<16x32xf32>
    %280 = vector.broadcast %261 : vector<1x32xf32> to vector<16x32xf32>
    %281 = arith.mulf %279, %280 : vector<16x32xf32>
    %282 = vector.broadcast %263 : vector<1x32xf32> to vector<16x32xf32>
    %283 = arith.addf %281, %282 : vector<16x32xf32>
    %c1_109 = arith.constant 1 : index
    %c0_110 = arith.constant 0 : index
    %c0_111 = arith.constant 0 : index
    %284 = vector.load %arg5[%c1_109, %c0_110, %c0_111] : memref<2x32x64xf32, #tpu.memory_space<vmem>>, vector<1x32x64xf32>
    %285 = vector.shape_cast %284 : vector<1x32x64xf32> to vector<32x64xf32>
    %cst_112 = arith.constant dense<0.000000e+00> : vector<16x64xf32>
    %286 = tpu.matmul %283, %285, %cst_112 {dimension_numbers = #tpu.dot_dimension_numbers<[1], [0], [0], [1], [0, 0, 1, 1], [], []>} : vector<16x32xf32>, vector<32x64xf32>, vector<16x64xf32> -> vector<16x64xf32>
    %c1_113 = arith.constant 1 : index
    %c0_114 = arith.constant 0 : index
    %c0_115 = arith.constant 0 : index
    %287 = vector.load %arg6[%c1_113, %c0_114, %c0_115] : memref<2x1x64xf32, #tpu.memory_space<vmem>>, vector<1x1x64xf32>
    %288 = vector.shape_cast %287 : vector<1x1x64xf32> to vector<1x64xf32>
    %289 = vector.broadcast %288 : vector<1x64xf32> to vector<16x64xf32>
    %290 = arith.addf %286, %289 : vector<16x64xf32>
    %cst_116 = arith.constant 0.000000e+00 : f32
    %291 = vector.broadcast %cst_116 : f32 to vector<16x64xf32>
    %292 = arith.maximumf %290, %291 : vector<16x64xf32>
    %c1_117 = arith.constant 1 : index
    %c0_118 = arith.constant 0 : index
    %c0_119 = arith.constant 0 : index
    %293 = vector.load %arg7[%c1_117, %c0_118, %c0_119] : memref<2x64x32xf32, #tpu.memory_space<vmem>>, vector<1x64x32xf32>
    %294 = vector.shape_cast %293 : vector<1x64x32xf32> to vector<64x32xf32>
    %cst_120 = arith.constant dense<0.000000e+00> : vector<16x32xf32>
    %295 = tpu.matmul %292, %294, %cst_120 {dimension_numbers = #tpu.dot_dimension_numbers<[1], [0], [0], [1], [0, 0, 1, 1], [], []>} : vector<16x64xf32>, vector<64x32xf32>, vector<16x32xf32> -> vector<16x32xf32>
    %c1_121 = arith.constant 1 : index
    %c0_122 = arith.constant 0 : index
    %c0_123 = arith.constant 0 : index
    %296 = vector.load %arg8[%c1_121, %c0_122, %c0_123] : memref<2x1x32xf32, #tpu.memory_space<vmem>>, vector<1x1x32xf32>
    %297 = vector.shape_cast %296 : vector<1x1x32xf32> to vector<1x32xf32>
    %298 = vector.broadcast %297 : vector<1x32xf32> to vector<16x32xf32>
    %299 = arith.addf %295, %298 : vector<16x32xf32>
    %300 = arith.addf %283, %299 : vector<16x32xf32>
    %c1_124 = arith.constant 1 : index
    %c0_125 = arith.constant 0 : index
    %c0_126 = arith.constant 0 : index
    %301 = vector.load %arg11[%c1_124, %c0_125, %c0_126] : memref<2x1x32xf32, #tpu.memory_space<vmem>>, vector<1x1x32xf32>
    %302 = vector.shape_cast %301 : vector<1x1x32xf32> to vector<1x32xf32>
    %c1_127 = arith.constant 1 : index
    %c0_128 = arith.constant 0 : index
    %c0_129 = arith.constant 0 : index
    %303 = vector.load %arg12[%c1_127, %c0_128, %c0_129] : memref<2x1x32xf32, #tpu.memory_space<vmem>>, vector<1x1x32xf32>
    %304 = vector.shape_cast %303 : vector<1x1x32xf32> to vector<1x32xf32>
    %cst_130 = arith.constant dense<0.000000e+00> : vector<16xf32>
    %305 = vector.multi_reduction <add>, %300, %cst_130 [1] : vector<16x32xf32> to vector<16xf32>
    %306 = vector.shape_cast %305 : vector<16xf32> to vector<16x1xf32>
    %cst_131 = arith.constant 3.200000e+01 : f32
    %307 = vector.broadcast %cst_131 : f32 to vector<16x1xf32>
    %308 = arith.divf %306, %307 : vector<16x1xf32>
    %309 = vector.broadcast %308 : vector<16x1xf32> to vector<16x32xf32>
    %310 = arith.subf %300, %309 : vector<16x32xf32>
    %311 = arith.mulf %310, %310 : vector<16x32xf32>
    %cst_132 = arith.constant dense<0.000000e+00> : vector<16xf32>
    %312 = vector.multi_reduction <add>, %311, %cst_132 [1] : vector<16x32xf32> to vector<16xf32>
    %313 = vector.shape_cast %312 : vector<16xf32> to vector<16x1xf32>
    %cst_133 = arith.constant 3.200000e+01 : f32
    %314 = vector.broadcast %cst_133 : f32 to vector<16x1xf32>
    %315 = arith.divf %313, %314 : vector<16x1xf32>
    %cst_134 = arith.constant 9.99999974E-6 : f32
    %316 = vector.broadcast %cst_134 : f32 to vector<16x1xf32>
    %317 = arith.addf %315, %316 : vector<16x1xf32>
    %318 = math.rsqrt %317 : vector<16x1xf32>
    %319 = vector.broadcast %318 : vector<16x1xf32> to vector<16x32xf32>
    %320 = arith.mulf %310, %319 : vector<16x32xf32>
    %321 = vector.broadcast %302 : vector<1x32xf32> to vector<16x32xf32>
    %322 = arith.mulf %320, %321 : vector<16x32xf32>
    %323 = vector.broadcast %304 : vector<1x32xf32> to vector<16x32xf32>
    %324 = arith.addf %322, %323 : vector<16x32xf32>
    %c0_135 = arith.constant 0 : index
    %c0_136 = arith.constant 0 : index
    %325 = vector.load %arg13[%c0_135, %c0_136] : memref<32x96xf32, #tpu.memory_space<vmem>>, vector<32x96xf32>
    %c0_137 = arith.constant 0 : index
    %c0_138 = arith.constant 0 : index
    %326 = vector.load %arg14[%c0_137, %c0_138] : memref<1x96xf32, #tpu.memory_space<vmem>>, vector<1x96xf32>
    %c0_139 = arith.constant 0 : index
    %c0_140 = arith.constant 0 : index
    %327 = vector.load %arg15[%c0_139, %c0_140] : memref<32x32xf32, #tpu.memory_space<vmem>>, vector<32x32xf32>
    %c0_141 = arith.constant 0 : index
    %c0_142 = arith.constant 0 : index
    %328 = vector.load %arg16[%c0_141, %c0_142] : memref<1x32xf32, #tpu.memory_space<vmem>>, vector<1x32xf32>
    %cst_143 = arith.constant dense<0.000000e+00> : vector<16x96xf32>
    %329 = tpu.matmul %324, %325, %cst_143 {dimension_numbers = #tpu.dot_dimension_numbers<[1], [0], [0], [1], [0, 0, 1, 1], [], []>} : vector<16x32xf32>, vector<32x96xf32>, vector<16x96xf32> -> vector<16x96xf32>
    %330 = vector.broadcast %326 : vector<1x96xf32> to vector<16x96xf32>
    %331 = arith.addf %329, %330 : vector<16x96xf32>
    %332 = vector.extract_strided_slice %331 {offsets = [0, 0], sizes = [16, 32], strides = [1, 1]} : vector<16x96xf32> to vector<16x32xf32>
    %cst_144 = arith.constant 0.353553385 : f32
    %333 = vector.broadcast %cst_144 : f32 to vector<16x32xf32>
    %334 = arith.mulf %332, %333 : vector<16x32xf32>
    %335 = vector.extract_strided_slice %331 {offsets = [0, 32], sizes = [16, 32], strides = [1, 1]} : vector<16x96xf32> to vector<16x32xf32>
    %336 = vector.extract_strided_slice %331 {offsets = [0, 64], sizes = [16, 32], strides = [1, 1]} : vector<16x96xf32> to vector<16x32xf32>
    %337 = vector.extract_strided_slice %334 {offsets = [0, 0], sizes = [16, 8], strides = [1, 1]} : vector<16x32xf32> to vector<16x8xf32>
    %338 = vector.shape_cast %337 : vector<16x8xf32> to vector<2x8x8xf32>
    %339 = vector.extract_strided_slice %335 {offsets = [0, 0], sizes = [16, 8], strides = [1, 1]} : vector<16x32xf32> to vector<16x8xf32>
    %340 = vector.shape_cast %339 : vector<16x8xf32> to vector<2x8x8xf32>
    %341 = vector.extract_strided_slice %336 {offsets = [0, 0], sizes = [16, 8], strides = [1, 1]} : vector<16x32xf32> to vector<16x8xf32>
    %342 = vector.shape_cast %341 : vector<16x8xf32> to vector<2x8x8xf32>
    "tpu.trace_start"() <{level = 10 : i32, message = "bqd,bkd->bqk"}> : () -> ()
    %cst_145 = arith.constant dense<0.000000e+00> : vector<2x8x8xf32>
    %343 = tpu.matmul %338, %340, %cst_145 {dimension_numbers = #tpu.dot_dimension_numbers<[2], [2], [1], [1], [0, 0, 0, 1, 1, 1], [0], [0]>} : vector<2x8x8xf32>, vector<2x8x8xf32>, vector<2x8x8xf32> -> vector<2x8x8xf32>
    "tpu.trace_stop"() : () -> ()
    %cst_146 = arith.constant dense<0xFF800000> : vector<2x8xf32>
    %344 = vector.multi_reduction <maximumf>, %343, %cst_146 [2] : vector<2x8x8xf32> to vector<2x8xf32>
    %345 = vector.shape_cast %344 : vector<2x8xf32> to vector<2x8x1xf32>
    %346 = vector.broadcast %345 : vector<2x8x1xf32> to vector<2x8x8xf32>
    %347 = arith.subf %343, %346 : vector<2x8x8xf32>
    %348 = math.exp %347 : vector<2x8x8xf32>
    %cst_147 = arith.constant dense<0.000000e+00> : vector<2x8xf32>
    %349 = vector.multi_reduction <add>, %348, %cst_147 [2] : vector<2x8x8xf32> to vector<2x8xf32>
    %350 = vector.shape_cast %349 : vector<2x8xf32> to vector<2x8x1xf32>
    %351 = tpu.reciprocal %350 {approx = true} : vector<2x8x1xf32> -> vector<2x8x1xf32>
    %352 = vector.broadcast %351 : vector<2x8x1xf32> to vector<2x8x8xf32>
    %353 = arith.mulf %348, %352 : vector<2x8x8xf32>
    "tpu.trace_start"() <{level = 10 : i32, message = "bqk,bkd->bqd"}> : () -> ()
    %cst_148 = arith.constant dense<0.000000e+00> : vector<2x8x8xf32>
    %354 = tpu.matmul %353, %342, %cst_148 {dimension_numbers = #tpu.dot_dimension_numbers<[2], [1], [1], [2], [0, 0, 0, 1, 1, 2], [0], [0]>} : vector<2x8x8xf32>, vector<2x8x8xf32>, vector<2x8x8xf32> -> vector<2x8x8xf32>
    "tpu.trace_stop"() : () -> ()
    %355 = vector.shape_cast %354 : vector<2x8x8xf32> to vector<16x8xf32>
    %356 = vector.extract_strided_slice %334 {offsets = [0, 8], sizes = [16, 8], strides = [1, 1]} : vector<16x32xf32> to vector<16x8xf32>
    %357 = vector.shape_cast %356 : vector<16x8xf32> to vector<2x8x8xf32>
    %358 = vector.extract_strided_slice %335 {offsets = [0, 8], sizes = [16, 8], strides = [1, 1]} : vector<16x32xf32> to vector<16x8xf32>
    %359 = vector.shape_cast %358 : vector<16x8xf32> to vector<2x8x8xf32>
    %360 = vector.extract_strided_slice %336 {offsets = [0, 8], sizes = [16, 8], strides = [1, 1]} : vector<16x32xf32> to vector<16x8xf32>
    %361 = vector.shape_cast %360 : vector<16x8xf32> to vector<2x8x8xf32>
    "tpu.trace_start"() <{level = 10 : i32, message = "bqd,bkd->bqk"}> : () -> ()
    %cst_149 = arith.constant dense<0.000000e+00> : vector<2x8x8xf32>
    %362 = tpu.matmul %357, %359, %cst_149 {dimension_numbers = #tpu.dot_dimension_numbers<[2], [2], [1], [1], [0, 0, 0, 1, 1, 1], [0], [0]>} : vector<2x8x8xf32>, vector<2x8x8xf32>, vector<2x8x8xf32> -> vector<2x8x8xf32>
    "tpu.trace_stop"() : () -> ()
    %cst_150 = arith.constant dense<0xFF800000> : vector<2x8xf32>
    %363 = vector.multi_reduction <maximumf>, %362, %cst_150 [2] : vector<2x8x8xf32> to vector<2x8xf32>
    %364 = vector.shape_cast %363 : vector<2x8xf32> to vector<2x8x1xf32>
    %365 = vector.broadcast %364 : vector<2x8x1xf32> to vector<2x8x8xf32>
    %366 = arith.subf %362, %365 : vector<2x8x8xf32>
    %367 = math.exp %366 : vector<2x8x8xf32>
    %cst_151 = arith.constant dense<0.000000e+00> : vector<2x8xf32>
    %368 = vector.multi_reduction <add>, %367, %cst_151 [2] : vector<2x8x8xf32> to vector<2x8xf32>
    %369 = vector.shape_cast %368 : vector<2x8xf32> to vector<2x8x1xf32>
    %370 = tpu.reciprocal %369 {approx = true} : vector<2x8x1xf32> -> vector<2x8x1xf32>
    %371 = vector.broadcast %370 : vector<2x8x1xf32> to vector<2x8x8xf32>
    %372 = arith.mulf %367, %371 : vector<2x8x8xf32>
    "tpu.trace_start"() <{level = 10 : i32, message = "bqk,bkd->bqd"}> : () -> ()
    %cst_152 = arith.constant dense<0.000000e+00> : vector<2x8x8xf32>
    %373 = tpu.matmul %372, %361, %cst_152 {dimension_numbers = #tpu.dot_dimension_numbers<[2], [1], [1], [2], [0, 0, 0, 1, 1, 2], [0], [0]>} : vector<2x8x8xf32>, vector<2x8x8xf32>, vector<2x8x8xf32> -> vector<2x8x8xf32>
    "tpu.trace_stop"() : () -> ()
    %374 = vector.shape_cast %373 : vector<2x8x8xf32> to vector<16x8xf32>
    %375 = vector.extract_strided_slice %334 {offsets = [0, 16], sizes = [16, 8], strides = [1, 1]} : vector<16x32xf32> to vector<16x8xf32>
    %376 = vector.shape_cast %375 : vector<16x8xf32> to vector<2x8x8xf32>
    %377 = vector.extract_strided_slice %335 {offsets = [0, 16], sizes = [16, 8], strides = [1, 1]} : vector<16x32xf32> to vector<16x8xf32>
    %378 = vector.shape_cast %377 : vector<16x8xf32> to vector<2x8x8xf32>
    %379 = vector.extract_strided_slice %336 {offsets = [0, 16], sizes = [16, 8], strides = [1, 1]} : vector<16x32xf32> to vector<16x8xf32>
    %380 = vector.shape_cast %379 : vector<16x8xf32> to vector<2x8x8xf32>
    "tpu.trace_start"() <{level = 10 : i32, message = "bqd,bkd->bqk"}> : () -> ()
    %cst_153 = arith.constant dense<0.000000e+00> : vector<2x8x8xf32>
    %381 = tpu.matmul %376, %378, %cst_153 {dimension_numbers = #tpu.dot_dimension_numbers<[2], [2], [1], [1], [0, 0, 0, 1, 1, 1], [0], [0]>} : vector<2x8x8xf32>, vector<2x8x8xf32>, vector<2x8x8xf32> -> vector<2x8x8xf32>
    "tpu.trace_stop"() : () -> ()
    %cst_154 = arith.constant dense<0xFF800000> : vector<2x8xf32>
    %382 = vector.multi_reduction <maximumf>, %381, %cst_154 [2] : vector<2x8x8xf32> to vector<2x8xf32>
    %383 = vector.shape_cast %382 : vector<2x8xf32> to vector<2x8x1xf32>
    %384 = vector.broadcast %383 : vector<2x8x1xf32> to vector<2x8x8xf32>
    %385 = arith.subf %381, %384 : vector<2x8x8xf32>
    %386 = math.exp %385 : vector<2x8x8xf32>
    %cst_155 = arith.constant dense<0.000000e+00> : vector<2x8xf32>
    %387 = vector.multi_reduction <add>, %386, %cst_155 [2] : vector<2x8x8xf32> to vector<2x8xf32>
    %388 = vector.shape_cast %387 : vector<2x8xf32> to vector<2x8x1xf32>
    %389 = tpu.reciprocal %388 {approx = true} : vector<2x8x1xf32> -> vector<2x8x1xf32>
    %390 = vector.broadcast %389 : vector<2x8x1xf32> to vector<2x8x8xf32>
    %391 = arith.mulf %386, %390 : vector<2x8x8xf32>
    "tpu.trace_start"() <{level = 10 : i32, message = "bqk,bkd->bqd"}> : () -> ()
    %cst_156 = arith.constant dense<0.000000e+00> : vector<2x8x8xf32>
    %392 = tpu.matmul %391, %380, %cst_156 {dimension_numbers = #tpu.dot_dimension_numbers<[2], [1], [1], [2], [0, 0, 0, 1, 1, 2], [0], [0]>} : vector<2x8x8xf32>, vector<2x8x8xf32>, vector<2x8x8xf32> -> vector<2x8x8xf32>
    "tpu.trace_stop"() : () -> ()
    %393 = vector.shape_cast %392 : vector<2x8x8xf32> to vector<16x8xf32>
    %394 = vector.extract_strided_slice %334 {offsets = [0, 24], sizes = [16, 8], strides = [1, 1]} : vector<16x32xf32> to vector<16x8xf32>
    %395 = vector.shape_cast %394 : vector<16x8xf32> to vector<2x8x8xf32>
    %396 = vector.extract_strided_slice %335 {offsets = [0, 24], sizes = [16, 8], strides = [1, 1]} : vector<16x32xf32> to vector<16x8xf32>
    %397 = vector.shape_cast %396 : vector<16x8xf32> to vector<2x8x8xf32>
    %398 = vector.extract_strided_slice %336 {offsets = [0, 24], sizes = [16, 8], strides = [1, 1]} : vector<16x32xf32> to vector<16x8xf32>
    %399 = vector.shape_cast %398 : vector<16x8xf32> to vector<2x8x8xf32>
    "tpu.trace_start"() <{level = 10 : i32, message = "bqd,bkd->bqk"}> : () -> ()
    %cst_157 = arith.constant dense<0.000000e+00> : vector<2x8x8xf32>
    %400 = tpu.matmul %395, %397, %cst_157 {dimension_numbers = #tpu.dot_dimension_numbers<[2], [2], [1], [1], [0, 0, 0, 1, 1, 1], [0], [0]>} : vector<2x8x8xf32>, vector<2x8x8xf32>, vector<2x8x8xf32> -> vector<2x8x8xf32>
    "tpu.trace_stop"() : () -> ()
    %cst_158 = arith.constant dense<0xFF800000> : vector<2x8xf32>
    %401 = vector.multi_reduction <maximumf>, %400, %cst_158 [2] : vector<2x8x8xf32> to vector<2x8xf32>
    %402 = vector.shape_cast %401 : vector<2x8xf32> to vector<2x8x1xf32>
    %403 = vector.broadcast %402 : vector<2x8x1xf32> to vector<2x8x8xf32>
    %404 = arith.subf %400, %403 : vector<2x8x8xf32>
    %405 = math.exp %404 : vector<2x8x8xf32>
    %cst_159 = arith.constant dense<0.000000e+00> : vector<2x8xf32>
    %406 = vector.multi_reduction <add>, %405, %cst_159 [2] : vector<2x8x8xf32> to vector<2x8xf32>
    %407 = vector.shape_cast %406 : vector<2x8xf32> to vector<2x8x1xf32>
    %408 = tpu.reciprocal %407 {approx = true} : vector<2x8x1xf32> -> vector<2x8x1xf32>
    %409 = vector.broadcast %408 : vector<2x8x1xf32> to vector<2x8x8xf32>
    %410 = arith.mulf %405, %409 : vector<2x8x8xf32>
    "tpu.trace_start"() <{level = 10 : i32, message = "bqk,bkd->bqd"}> : () -> ()
    %cst_160 = arith.constant dense<0.000000e+00> : vector<2x8x8xf32>
    %411 = tpu.matmul %410, %399, %cst_160 {dimension_numbers = #tpu.dot_dimension_numbers<[2], [1], [1], [2], [0, 0, 0, 1, 1, 2], [0], [0]>} : vector<2x8x8xf32>, vector<2x8x8xf32>, vector<2x8x8xf32> -> vector<2x8x8xf32>
    "tpu.trace_stop"() : () -> ()
    %412 = vector.shape_cast %411 : vector<2x8x8xf32> to vector<16x8xf32>
    %413 = tpu.concatenate %355, %374, %393, %412 in 1 : vector<16x8xf32>, vector<16x8xf32>, vector<16x8xf32>, vector<16x8xf32> -> vector<16x32xf32>
    %cst_161 = arith.constant dense<0.000000e+00> : vector<16x32xf32>
    %414 = tpu.matmul %413, %327, %cst_161 {dimension_numbers = #tpu.dot_dimension_numbers<[1], [0], [0], [1], [0, 0, 1, 1], [], []>} : vector<16x32xf32>, vector<32x32xf32>, vector<16x32xf32> -> vector<16x32xf32>
    %415 = vector.broadcast %328 : vector<1x32xf32> to vector<16x32xf32>
    %416 = arith.addf %414, %415 : vector<16x32xf32>
    %c0_162 = arith.constant 0 : index
    %c0_163 = arith.constant 0 : index
    %417 = vector.load %arg17[%c0_162, %c0_163] : memref<32x256xf32, #tpu.memory_space<vmem>>, vector<32x256xf32>
    %cst_164 = arith.constant dense<0.000000e+00> : vector<16x256xf32>
    %418 = tpu.matmul %416, %417, %cst_164 {dimension_numbers = #tpu.dot_dimension_numbers<[1], [0], [0], [1], [0, 0, 1, 1], [], []>} : vector<16x32xf32>, vector<32x256xf32>, vector<16x256xf32> -> vector<16x256xf32>
    %c0_165 = arith.constant 0 : index
    %c0_166 = arith.constant 0 : index
    %419 = vector.load %arg18[%c0_165, %c0_166] : memref<1x256xf32, #tpu.memory_space<vmem>>, vector<1x256xf32>
    %420 = vector.broadcast %419 : vector<1x256xf32> to vector<16x256xf32>
    %421 = arith.addf %418, %420 : vector<16x256xf32>
    %422 = vector.extract_strided_slice %421 {offsets = [0, 0], sizes = [16, 32], strides = [1, 1]} : vector<16x256xf32> to vector<16x32xf32>
    %423 = vector.shape_cast %422 : vector<16x32xf32> to vector<2x8x32xf32>
    %c0_167 = arith.constant 0 : index
    %c0_168 = arith.constant 0 : index
    %c0_169 = arith.constant 0 : index
    %c0_170 = arith.constant 0 : index
    %424 = vector.load %arg19[%c0_167, %c0_168, %c0_169, %c0_170] : memref<8x2x8x32xf32, #tpu.memory_space<vmem>>, vector<1x2x8x32xf32>
    %425 = vector.shape_cast %424 : vector<1x2x8x32xf32> to vector<2x8x32xf32>
    %426 = vector.shape_cast %423 : vector<2x8x32xf32> to vector<1x2x8x32xf32>
    tpu.vector_store %arg19[%c0_167, %c0_168, %c0_169, %c0_170], %426 {strides = array<i32>} : memref<8x2x8x32xf32, #tpu.memory_space<vmem>>, vector<1x2x8x32xf32>,
    %427 = vector.extract_strided_slice %421 {offsets = [0, 32], sizes = [16, 32], strides = [1, 1]} : vector<16x256xf32> to vector<16x32xf32>
    %428 = vector.shape_cast %427 : vector<16x32xf32> to vector<2x8x32xf32>
    %c1_171 = arith.constant 1 : index
    %c0_172 = arith.constant 0 : index
    %c0_173 = arith.constant 0 : index
    %c0_174 = arith.constant 0 : index
    %429 = vector.load %arg19[%c1_171, %c0_172, %c0_173, %c0_174] : memref<8x2x8x32xf32, #tpu.memory_space<vmem>>, vector<1x2x8x32xf32>
    %430 = vector.shape_cast %429 : vector<1x2x8x32xf32> to vector<2x8x32xf32>
    %431 = vector.shape_cast %428 : vector<2x8x32xf32> to vector<1x2x8x32xf32>
    tpu.vector_store %arg19[%c1_171, %c0_172, %c0_173, %c0_174], %431 {strides = array<i32>} : memref<8x2x8x32xf32, #tpu.memory_space<vmem>>, vector<1x2x8x32xf32>,
    %432 = vector.extract_strided_slice %421 {offsets = [0, 64], sizes = [16, 32], strides = [1, 1]} : vector<16x256xf32> to vector<16x32xf32>
    %433 = vector.shape_cast %432 : vector<16x32xf32> to vector<2x8x32xf32>
    %c2 = arith.constant 2 : index
    %c0_175 = arith.constant 0 : index
    %c0_176 = arith.constant 0 : index
    %c0_177 = arith.constant 0 : index
    %434 = vector.load %arg19[%c2, %c0_175, %c0_176, %c0_177] : memref<8x2x8x32xf32, #tpu.memory_space<vmem>>, vector<1x2x8x32xf32>
    %435 = vector.shape_cast %434 : vector<1x2x8x32xf32> to vector<2x8x32xf32>
    %436 = vector.shape_cast %433 : vector<2x8x32xf32> to vector<1x2x8x32xf32>
    tpu.vector_store %arg19[%c2, %c0_175, %c0_176, %c0_177], %436 {strides = array<i32>} : memref<8x2x8x32xf32, #tpu.memory_space<vmem>>, vector<1x2x8x32xf32>,
    %437 = vector.extract_strided_slice %421 {offsets = [0, 96], sizes = [16, 32], strides = [1, 1]} : vector<16x256xf32> to vector<16x32xf32>
    %438 = vector.shape_cast %437 : vector<16x32xf32> to vector<2x8x32xf32>
    %c3 = arith.constant 3 : index
    %c0_178 = arith.constant 0 : index
    %c0_179 = arith.constant 0 : index
    %c0_180 = arith.constant 0 : index
    %439 = vector.load %arg19[%c3, %c0_178, %c0_179, %c0_180] : memref<8x2x8x32xf32, #tpu.memory_space<vmem>>, vector<1x2x8x32xf32>
    %440 = vector.shape_cast %439 : vector<1x2x8x32xf32> to vector<2x8x32xf32>
    %441 = vector.shape_cast %438 : vector<2x8x32xf32> to vector<1x2x8x32xf32>
    tpu.vector_store %arg19[%c3, %c0_178, %c0_179, %c0_180], %441 {strides = array<i32>} : memref<8x2x8x32xf32, #tpu.memory_space<vmem>>, vector<1x2x8x32xf32>,
    %442 = vector.extract_strided_slice %421 {offsets = [0, 128], sizes = [16, 32], strides = [1, 1]} : vector<16x256xf32> to vector<16x32xf32>
    %443 = vector.shape_cast %442 : vector<16x32xf32> to vector<2x8x32xf32>
    %c4 = arith.constant 4 : index
    %c0_181 = arith.constant 0 : index
    %c0_182 = arith.constant 0 : index
    %c0_183 = arith.constant 0 : index
    %444 = vector.load %arg19[%c4, %c0_181, %c0_182, %c0_183] : memref<8x2x8x32xf32, #tpu.memory_space<vmem>>, vector<1x2x8x32xf32>
    %445 = vector.shape_cast %444 : vector<1x2x8x32xf32> to vector<2x8x32xf32>
    %446 = vector.shape_cast %443 : vector<2x8x32xf32> to vector<1x2x8x32xf32>
    tpu.vector_store %arg19[%c4, %c0_181, %c0_182, %c0_183], %446 {strides = array<i32>} : memref<8x2x8x32xf32, #tpu.memory_space<vmem>>, vector<1x2x8x32xf32>,
    %447 = vector.extract_strided_slice %421 {offsets = [0, 160], sizes = [16, 32], strides = [1, 1]} : vector<16x256xf32> to vector<16x32xf32>
    %448 = vector.shape_cast %447 : vector<16x32xf32> to vector<2x8x32xf32>
    %c5 = arith.constant 5 : index
    %c0_184 = arith.constant 0 : index
    %c0_185 = arith.constant 0 : index
    %c0_186 = arith.constant 0 : index
    %449 = vector.load %arg19[%c5, %c0_184, %c0_185, %c0_186] : memref<8x2x8x32xf32, #tpu.memory_space<vmem>>, vector<1x2x8x32xf32>
    %450 = vector.shape_cast %449 : vector<1x2x8x32xf32> to vector<2x8x32xf32>
    %451 = vector.shape_cast %448 : vector<2x8x32xf32> to vector<1x2x8x32xf32>
    tpu.vector_store %arg19[%c5, %c0_184, %c0_185, %c0_186], %451 {strides = array<i32>} : memref<8x2x8x32xf32, #tpu.memory_space<vmem>>, vector<1x2x8x32xf32>,
    %452 = vector.extract_strided_slice %421 {offsets = [0, 192], sizes = [16, 32], strides = [1, 1]} : vector<16x256xf32> to vector<16x32xf32>
    %453 = vector.shape_cast %452 : vector<16x32xf32> to vector<2x8x32xf32>
    %c6 = arith.constant 6 : index
    %c0_187 = arith.constant 0 : index
    %c0_188 = arith.constant 0 : index
    %c0_189 = arith.constant 0 : index
    %454 = vector.load %arg19[%c6, %c0_187, %c0_188, %c0_189] : memref<8x2x8x32xf32, #tpu.memory_space<vmem>>, vector<1x2x8x32xf32>
    %455 = vector.shape_cast %454 : vector<1x2x8x32xf32> to vector<2x8x32xf32>
    %456 = vector.shape_cast %453 : vector<2x8x32xf32> to vector<1x2x8x32xf32>
    tpu.vector_store %arg19[%c6, %c0_187, %c0_188, %c0_189], %456 {strides = array<i32>} : memref<8x2x8x32xf32, #tpu.memory_space<vmem>>, vector<1x2x8x32xf32>,
    %457 = vector.extract_strided_slice %421 {offsets = [0, 224], sizes = [16, 32], strides = [1, 1]} : vector<16x256xf32> to vector<16x32xf32>
    %458 = vector.shape_cast %457 : vector<16x32xf32> to vector<2x8x32xf32>
    %c7 = arith.constant 7 : index
    %c0_190 = arith.constant 0 : index
    %c0_191 = arith.constant 0 : index
    %c0_192 = arith.constant 0 : index
    %459 = vector.load %arg19[%c7, %c0_190, %c0_191, %c0_192] : memref<8x2x8x32xf32, #tpu.memory_space<vmem>>, vector<1x2x8x32xf32>
    %460 = vector.shape_cast %459 : vector<1x2x8x32xf32> to vector<2x8x32xf32>
    %461 = vector.shape_cast %458 : vector<2x8x32xf32> to vector<1x2x8x32xf32>
    tpu.vector_store %arg19[%c7, %c0_190, %c0_191, %c0_192], %461 {strides = array<i32>} : memref<8x2x8x32xf32, #tpu.memory_space<vmem>>, vector<1x2x8x32xf32>,
    return
  }
}

</mosaic_0001>

<llo_original>
// kernel: gpt2_decoder_forward.1
$region0: #{gpt2_decoder_forward.1}
  #allocation0 [shape = 'u32[]', space=smem, size = 0x4, offset = 0x4, fixed_abs, tag = 'smem constant byte address 0x4 - core index']
  #allocation1 [shape = 'u32[144,128]{1,0:T(1,128)}', space=vmem, size = 0x12000, scoped, tag = 'internal scratch']
  %s0 = inlined_call_operand.vmem [shape: f32[16,32], index: 0, kind: input, shape index: {}]
  %s1 = inlined_call_operand.vmem [shape: f32[2,32,96], index: 1, kind: input, shape index: {}]
  %s2 = inlined_call_operand.vmem [shape: f32[2,1,96], index: 2, kind: input, shape index: {}]
  %s3 = inlined_call_operand.vmem [shape: f32[2,32,32], index: 3, kind: input, shape index: {}]
  %s4 = inlined_call_operand.vmem [shape: f32[2,1,32], index: 4, kind: input, shape index: {}]
  %s5 = inlined_call_operand.vmem [shape: f32[2,32,64], index: 5, kind: input, shape index: {}]
  %s6 = inlined_call_operand.vmem [shape: f32[2,1,64], index: 6, kind: input, shape index: {}]
  %s7 = inlined_call_operand.vmem [shape: f32[2,64,32], index: 7, kind: input, shape index: {}]
  %s8 = inlined_call_operand.vmem [shape: f32[2,1,32], index: 8, kind: input, shape index: {}]
  %s9 = inlined_call_operand.vmem [shape: f32[2,1,32], index: 9, kind: input, shape index: {}]
  %s10 = inlined_call_operand.vmem [shape: f32[2,1,32], index: 10, kind: input, shape index: {}]
  %s11 = inlined_call_operand.vmem [shape: f32[2,1,32], index: 11, kind: input, shape index: {}]
  %s12 = inlined_call_operand.vmem [shape: f32[2,1,32], index: 12, kind: input, shape index: {}]
  %s13 = inlined_call_operand.vmem [shape: f32[32,96], index: 13, kind: input, shape index: {}]
  %s14 = inlined_call_operand.vmem [shape: f32[1,96], index: 14, kind: input, shape index: {}]
  %s15 = inlined_call_operand.vmem [shape: f32[32,32], index: 15, kind: input, shape index: {}]
  %s16 = inlined_call_operand.vmem [shape: f32[1,32], index: 16, kind: input, shape index: {}]
  %s17 = inlined_call_operand.vmem [shape: f32[32,256], index: 17, kind: input, shape index: {}]
  %s18 = inlined_call_operand.vmem [shape: f32[1,256], index: 18, kind: input, shape index: {}]
  %s19 = inlined_call_operand.hbm [shape: f32[8,2,8,32], index: 19, kind: output, shape index: {}]
  %s20 = sld [smem:[#allocation0]]
  $region86: #{gpt2_decoder_forward.1} parent=0
    _
  %s22 = ssub.s32 1, %s20
  %s23 = scalar_select 0, %s22, %s20
  $region1: #{gpt2_decoder_forward.1} parent=0
    #allocation2 [shape = 'u8[65536]{0}', space=vmem, size = 0x10000, scoped, tag = 'output window, operand 0, single buffered']
    #allocation3 [shape = 's32[1]{0}', space=sflag, size = 0x4, scoped, tag = 'scoped memory for gpt2_decoder_forward.1']
    %24 = vsyncpa [#allocation3], 0
    // Predicated region
    $region2: #{gpt2_decoder_forward.1} parent=1 // pred_check
      _
    $region3: #{gpt2_decoder_forward.1} parent=1 // pred_check_branch
      %26 = sbr.rel (0) target = $region5
    $region4: #{gpt2_decoder_forward.1} parent=1 // pred_region
      _
    $region5: #{gpt2_decoder_forward.1} parent=1 // pred_fallthru
      _
    // Predicated region
    $region6: #{gpt2_decoder_forward.1} parent=1 // pred_check
      _
    $region7: #{gpt2_decoder_forward.1} parent=1 // pred_check_branch
      %28 = sbr.rel (0) target = $region9
    $region8: #{gpt2_decoder_forward.1} parent=1 // pred_region
      _
    $region9: #{gpt2_decoder_forward.1} parent=1 // pred_fallthru
      _
    // Predicated region
    $region10: #{gpt2_decoder_forward.1} parent=1 // pred_check
      _
    $region11: #{gpt2_decoder_forward.1} parent=1 // pred_check_branch
      %30 = sbr.rel (0) target = $region13
    $region12: #{gpt2_decoder_forward.1} parent=1 // pred_region
      _
    $region13: #{gpt2_decoder_forward.1} parent=1 // pred_fallthru
      _
    // Predicated region
    $region14: #{gpt2_decoder_forward.1} parent=1 // pred_check
      _
    $region15: #{gpt2_decoder_forward.1} parent=1 // pred_check_branch
      %32 = sbr.rel (0) target = $region17
    $region16: #{gpt2_decoder_forward.1} parent=1 // pred_region
      _
    $region17: #{gpt2_decoder_forward.1} parent=1 // pred_fallthru
      _
    // Predicated region
    $region18: #{gpt2_decoder_forward.1} parent=1 // pred_check
      _
    $region19: #{gpt2_decoder_forward.1} parent=1 // pred_check_branch
      %34 = sbr.rel (0) target = $region21
    $region20: #{gpt2_decoder_forward.1} parent=1 // pred_region
      _
    $region21: #{gpt2_decoder_forward.1} parent=1 // pred_fallthru
      _
    // Predicated region
    $region22: #{gpt2_decoder_forward.1} parent=1 // pred_check
      _
    $region23: #{gpt2_decoder_forward.1} parent=1 // pred_check_branch
      %36 = sbr.rel (0) target = $region25
    $region24: #{gpt2_decoder_forward.1} parent=1 // pred_region
      _
    $region25: #{gpt2_decoder_forward.1} parent=1 // pred_fallthru
      _
    // Predicated region
    $region26: #{gpt2_decoder_forward.1} parent=1 // pred_check
      _
    $region27: #{gpt2_decoder_forward.1} parent=1 // pred_check_branch
      %38 = sbr.rel (0) target = $region29
    $region28: #{gpt2_decoder_forward.1} parent=1 // pred_region
      _
    $region29: #{gpt2_decoder_forward.1} parent=1 // pred_fallthru
      _
    // Predicated region
    $region30: #{gpt2_decoder_forward.1} parent=1 // pred_check
      _
    $region31: #{gpt2_decoder_forward.1} parent=1 // pred_check_branch
      %40 = sbr.rel (0) target = $region33
    $region32: #{gpt2_decoder_forward.1} parent=1 // pred_region
      _
    $region33: #{gpt2_decoder_forward.1} parent=1 // pred_fallthru
      _
    // Predicated region
    $region34: #{gpt2_decoder_forward.1} parent=1 // pred_check
      _
    $region35: #{gpt2_decoder_forward.1} parent=1 // pred_check_branch
      %42 = sbr.rel (0) target = $region37
    $region36: #{gpt2_decoder_forward.1} parent=1 // pred_region
      _
    $region37: #{gpt2_decoder_forward.1} parent=1 // pred_fallthru
      _
    // Predicated region
    $region38: #{gpt2_decoder_forward.1} parent=1 // pred_check
      _
    $region39: #{gpt2_decoder_forward.1} parent=1 // pred_check_branch
      %44 = sbr.rel (0) target = $region41
    $region40: #{gpt2_decoder_forward.1} parent=1 // pred_region
      _
    $region41: #{gpt2_decoder_forward.1} parent=1 // pred_fallthru
      _
    // Predicated region
    $region42: #{gpt2_decoder_forward.1} parent=1 // pred_check
      _
    $region43: #{gpt2_decoder_forward.1} parent=1 // pred_check_branch
      %46 = sbr.rel (0) target = $region45
    $region44: #{gpt2_decoder_forward.1} parent=1 // pred_region
      _
    $region45: #{gpt2_decoder_forward.1} parent=1 // pred_fallthru
      _
    // Predicated region
    $region46: #{gpt2_decoder_forward.1} parent=1 // pred_check
      _
    $region47: #{gpt2_decoder_forward.1} parent=1 // pred_check_branch
      %48 = sbr.rel (0) target = $region49
    $region48: #{gpt2_decoder_forward.1} parent=1 // pred_region
      _
    $region49: #{gpt2_decoder_forward.1} parent=1 // pred_fallthru
      _
    // Predicated region
    $region50: #{gpt2_decoder_forward.1} parent=1 // pred_check
      _
    $region51: #{gpt2_decoder_forward.1} parent=1 // pred_check_branch
      %50 = sbr.rel (0) target = $region53
    $region52: #{gpt2_decoder_forward.1} parent=1 // pred_region
      _
    $region53: #{gpt2_decoder_forward.1} parent=1 // pred_fallthru
      _
    // Predicated region
    $region54: #{gpt2_decoder_forward.1} parent=1 // pred_check
      _
    $region55: #{gpt2_decoder_forward.1} parent=1 // pred_check_branch
      %52 = sbr.rel (0) target = $region57
    $region56: #{gpt2_decoder_forward.1} parent=1 // pred_region
      _
    $region57: #{gpt2_decoder_forward.1} parent=1 // pred_fallthru
      _
    // Predicated region
    $region58: #{gpt2_decoder_forward.1} parent=1 // pred_check
      _
    $region59: #{gpt2_decoder_forward.1} parent=1 // pred_check_branch
      %54 = sbr.rel (0) target = $region61
    $region60: #{gpt2_decoder_forward.1} parent=1 // pred_region
      _
    $region61: #{gpt2_decoder_forward.1} parent=1 // pred_fallthru
      _
    // Predicated region
    $region62: #{gpt2_decoder_forward.1} parent=1 // pred_check
      _
    $region63: #{gpt2_decoder_forward.1} parent=1 // pred_check_branch
      %56 = sbr.rel (0) target = $region65
    $region64: #{gpt2_decoder_forward.1} parent=1 // pred_region
      _
    $region65: #{gpt2_decoder_forward.1} parent=1 // pred_fallthru
      _
    // Predicated region
    $region66: #{gpt2_decoder_forward.1} parent=1 // pred_check
      _
    $region67: #{gpt2_decoder_forward.1} parent=1 // pred_check_branch
      %58 = sbr.rel (0) target = $region69
    $region68: #{gpt2_decoder_forward.1} parent=1 // pred_region
      _
    $region69: #{gpt2_decoder_forward.1} parent=1 // pred_fallthru
      _
    // Predicated region
    $region70: #{gpt2_decoder_forward.1} parent=1 // pred_check
      _
    $region71: #{gpt2_decoder_forward.1} parent=1 // pred_check_branch
      %60 = sbr.rel (0) target = $region73
    $region72: #{gpt2_decoder_forward.1} parent=1 // pred_region
      _
    $region73: #{gpt2_decoder_forward.1} parent=1 // pred_fallthru
      _
    // Predicated region
    $region74: #{gpt2_decoder_forward.1} parent=1 // pred_check
      _
    $region75: #{gpt2_decoder_forward.1} parent=1 // pred_check_branch
      %62 = sbr.rel (0) target = $region77
    $region76: #{gpt2_decoder_forward.1} parent=1 // pred_region
      _
    $region77: #{gpt2_decoder_forward.1} parent=1 // pred_fallthru
      _
    %v63 = vld [vmem:[%s0] sm:$0xff]
    %v64 = vld [vmem:[%s0 + $0x8] sm:$0xff]
    %v65 = vld [vmem:[%s1] sm:$0xff]
    %v66 = vld [vmem:[%s1 + $0x8] sm:$0xff]
    %v67 = vld [vmem:[%s1 + $0x10] sm:$0xff]
    %v68 = vld [vmem:[%s1 + $0x18] sm:$0xff]
    %v69 = vld [vmem:[%s2] sm:$0x1]
    %v70 = vld [vmem:[%s3] sm:$0xff]
    %v71 = vld [vmem:[%s3 + $0x8] sm:$0xff]
    %v72 = vld [vmem:[%s3 + $0x10] sm:$0xff]
    %v73 = vld [vmem:[%s3 + $0x18] sm:$0xff]
    %v74 = vld [vmem:[%s4] sm:$0x1]
    %v76 = vlaneseq
    %v77 = vshrl.u32 %v76, 7
    %v78 = vsub.s32 0, %v77
    %v79 = vrot.slane %v69, %v78
    %vm81 = vcmask 261120
    %v83 = vsel %vm81, %v63, 0
    %v86 = vsel %vm81, %v64, 0
    %88 = vmatprep.subr.mxu0 0.0
    %89 = vmatpush1.msra.mxu0 %v65
    %90 = vmatprep.subr.mxu0 0.0
    %91 = vmatpush1.msra.mxu0 %v66
    %92 = vmatprep.subr.mxu0 0.0
    %93 = vmatpush1.msra.mxu0 %v67
    %94 = vmatprep.subr.mxu0 0.0
    %95 = vmatpush1.msra.mxu0 %v68
    %96 = vmatprep.subr.mxu0 0.0
    %97 = vmatpush1.msra.mxu0 0.0
    %98 = vmatprep.subr.mxu0 0.0
    %99 = vmatpush1.msra.mxu0 0.0
    %100 = vmatprep.subr.mxu0 0.0
    %101 = vmatpush1.msra.mxu0 0.0
    %102 = vmatprep.subr.mxu0 0.0
    %103 = vmatpush1.msra.mxu0 0.0
    %104 = vmatprep.subr.mxu0 0.0
    %105 = vmatpush1.msra.mxu0 0.0
    %106 = vmatprep.subr.mxu0 0.0
    %107 = vmatpush1.msra.mxu0 0.0
    %108 = vmatprep.subr.mxu0 0.0
    %109 = vmatpush1.msra.mxu0 0.0
    %110 = vmatprep.subr.mxu0 0.0
    %111 = vmatpush1.msra.mxu0 0.0
    %112 = vmatprep.subr.mxu0 0.0
    %113 = vmatpush1.msra.mxu0 0.0
    %114 = vmatprep.subr.mxu0 0.0
    %115 = vmatpush1.msra.mxu0 0.0
    %116 = vmatprep.subr.mxu0 0.0
    %117 = vmatpush1.msra.mxu0 0.0
    %118 = vmatprep.subr.mxu0 0.0
    %119 = vmatpush1.msra.mxu0 0.0
    %120 = vmatprep.subr.mxu0 0.0
    %121 = vmatpush1.msra.mxu0 0.0
    %122 = vmatprep.subr.mxu0 0.0
    %123 = vmatpush1.msra.mxu0 0.0
    %124 = vmatprep.subr.mxu0 0.0
    %125 = vmatpush1.msra.mxu0 0.0
    %126 = vmatprep.subr.mxu0 0.0
    %127 = vmatpush1.msra.mxu0 0.0
    %128 = vmatprep.subr.mxu0 0.0
    %129 = vmatpush1.msra.mxu0 0.0
    %130 = vmatprep.subr.mxu0 0.0
    %131 = vmatpush1.msra.mxu0 0.0
    %132 = vmatprep.subr.mxu0 0.0
    %133 = vmatpush1.msra.mxu0 0.0
    %134 = vmatprep.subr.mxu0 0.0
    %135 = vmatpush1.msra.mxu0 0.0
    %136 = vmatprep.subr.mxu0 0.0
    %137 = vmatpush1.msra.mxu0 0.0
    %138 = vmatprep.subr.mxu0 0.0
    %139 = vmatpush1.msra.mxu0 0.0
    %140 = vmatprep.subr.mxu0 0.0
    %141 = vmatpush1.msra.mxu0 0.0
    %142 = vmatprep.subr.mxu0 0.0
    %143 = vmatpush1.msra.mxu0 0.0
    %144 = vmatprep.subr.mxu0 0.0
    %145 = vmatpush1.msra.mxu0 0.0
    %146 = vmatprep.subr.mxu0 0.0
    %147 = vmatpush1.msra.mxu0 0.0
    %148 = vmatprep.subr.mxu0 0.0
    %149 = vmatpush1.msra.mxu0 0.0
    %150 = vmatprep.subr.mxu0 0.0
    %151 = vmatpush1.msra.mxu0 0.0
    %152 = vmatprep.mubr.f32.mxu0 0.0
    %153 = vmatmul.mubr.f32.gmra.mrb[0].mxu0 %v83
    %v154 = vpop.f32.mrb[0].mxu0
    %v155 = vadd.f32 %v79, %v154
    %v156 = vpop.f32.mrb[0].mxu0
    %157 = vmatprep.mubr.f32.mxu0 0.0
    %158 = vmatmul.mubr.f32.gmra.mrb[0].mxu0 %v86
    %v159 = vpop.f32.mrb[0].mxu0
    %v160 = vadd.f32 %v79, %v159
    %v161 = vpop.f32.mrb[0].mxu0
    %162 = vdwg.mxu0
    %v163 = vmul.f32 %v155, 0.35355338
    %v164 = vmul.f32 %v160, 0.35355338
    %166 = vrot.lane.b32.xlu0 %v155, 96
    %v167 = vpop.permute.xlu0 %166
    %vm168 = vcmask 64512
    %v170 = vsel %vm168, %v163, 0
    %v172 = vsel %vm168, %v167, 0
    %174 = vmatprep.subr.mxu0 0.0
    %175 = vmatpush1.xpose.msra.mxu0 %v172
    %176 = vmatprep.subr.mxu0 0.0
    %177 = vmatpush1.xpose.msra.mxu0 0.0
    %178 = vmatprep.subr.mxu0 0.0
    %179 = vmatpush1.xpose.msra.mxu0 0.0
    %180 = vmatprep.subr.mxu0 0.0
    %181 = vmatpush1.xpose.msra.mxu0 0.0
    %182 = vmatprep.subr.mxu0 0.0
    %183 = vmatpush1.xpose.msra.mxu0 0.0
    %184 = vmatprep.subr.mxu0 0.0
    %185 = vmatpush1.xpose.msra.mxu0 0.0
    %186 = vmatprep.subr.mxu0 0.0
    %187 = vmatpush1.xpose.msra.mxu0 0.0
    %188 = vmatprep.subr.mxu0 0.0
    %189 = vmatpush1.xpose.msra.mxu0 0.0
    %190 = vmatprep.subr.mxu0 0.0
    %191 = vmatpush1.xpose.msra.mxu0 0.0
    %192 = vmatprep.subr.mxu0 0.0
    %193 = vmatpush1.xpose.msra.mxu0 0.0
    %194 = vmatprep.subr.mxu0 0.0
    %195 = vmatpush1.xpose.msra.mxu0 0.0
    %196 = vmatprep.subr.mxu0 0.0
    %197 = vmatpush1.xpose.msra.mxu0 0.0
    %198 = vmatprep.subr.mxu0 0.0
    %199 = vmatpush1.xpose.msra.mxu0 0.0
    %200 = vmatprep.subr.mxu0 0.0
    %201 = vmatpush1.xpose.msra.mxu0 0.0
    %202 = vmatprep.subr.mxu0 0.0
    %203 = vmatpush1.xpose.msra.mxu0 0.0
    %204 = vmatprep.subr.mxu0 0.0
    %205 = vmatpush1.xpose.msra.mxu0 0.0
    %206 = vmatprep.subr.mxu0 0.0
    %207 = vmatpush1.xpose.msra.mxu0 0.0
    %208 = vmatprep.subr.mxu0 0.0
    %209 = vmatpush1.xpose.msra.mxu0 0.0
    %210 = vmatprep.subr.mxu0 0.0
    %211 = vmatpush1.xpose.msra.mxu0 0.0
    %212 = vmatprep.subr.mxu0 0.0
    %213 = vmatpush1.xpose.msra.mxu0 0.0
    %214 = vmatprep.subr.mxu0 0.0
    %215 = vmatpush1.xpose.msra.mxu0 0.0
    %216 = vmatprep.subr.mxu0 0.0
    %217 = vmatpush1.xpose.msra.mxu0 0.0
    %218 = vmatprep.subr.mxu0 0.0
    %219 = vmatpush1.xpose.msra.mxu0 0.0
    %220 = vmatprep.subr.mxu0 0.0
    %221 = vmatpush1.xpose.msra.mxu0 0.0
    %222 = vmatprep.subr.mxu0 0.0
    %223 = vmatpush1.xpose.msra.mxu0 0.0
    %224 = vmatprep.subr.mxu0 0.0
    %225 = vmatpush1.xpose.msra.mxu0 0.0
    %226 = vmatprep.subr.mxu0 0.0
    %227 = vmatpush1.xpose.msra.mxu0 0.0
    %228 = vmatprep.subr.mxu0 0.0
    %229 = vmatpush1.xpose.msra.mxu0 0.0
    %230 = vmatprep.subr.mxu0 0.0
    %231 = vmatpush1.xpose.msra.mxu0 0.0
    %232 = vmatprep.subr.mxu0 0.0
    %233 = vmatpush1.xpose.msra.mxu0 0.0
    %234 = vmatprep.subr.mxu0 0.0
    %235 = vmatpush1.xpose.msra.mxu0 0.0
    %236 = vmatprep.subr.mxu0 0.0
    %237 = vmatpush1.xpose.msra.mxu0 0.0
    %238 = vmatprep.mubr.f32.mxu0 0.0
    %239 = vmatmul.mubr.f32.gmra.mrb[0].mxu0 %v170
    %v240 = vpop.f32.mrb[0].mxu0
    %v241 = vadd.f32 0.0, %v240
    %v242 = vpop.f32.mrb[0].mxu0
    %243 = vdwg.mxu0
    %245 = vrot.lane.b32.xlu0 %v160, 96
    %v246 = vpop.permute.xlu0 %245
    %v248 = vsel %vm168, %v164, 0
    %v250 = vsel %vm168, %v246, 0
    %252 = vmatprep.subr.mxu0 0.0
    %253 = vmatpush1.xpose.msra.mxu0 %v250
    %254 = vmatprep.subr.mxu0 0.0
    %255 = vmatpush1.xpose.msra.mxu0 0.0
    %256 = vmatprep.subr.mxu0 0.0
    %257 = vmatpush1.xpose.msra.mxu0 0.0
    %258 = vmatprep.subr.mxu0 0.0
    %259 = vmatpush1.xpose.msra.mxu0 0.0
    %260 = vmatprep.subr.mxu0 0.0
    %261 = vmatpush1.xpose.msra.mxu0 0.0
    %262 = vmatprep.subr.mxu0 0.0
    %263 = vmatpush1.xpose.msra.mxu0 0.0
    %264 = vmatprep.subr.mxu0 0.0
    %265 = vmatpush1.xpose.msra.mxu0 0.0
    %266 = vmatprep.subr.mxu0 0.0
    %267 = vmatpush1.xpose.msra.mxu0 0.0
    %268 = vmatprep.subr.mxu0 0.0
    %269 = vmatpush1.xpose.msra.mxu0 0.0
    %270 = vmatprep.subr.mxu0 0.0
    %271 = vmatpush1.xpose.msra.mxu0 0.0
    %272 = vmatprep.subr.mxu0 0.0
    %273 = vmatpush1.xpose.msra.mxu0 0.0
    %274 = vmatprep.subr.mxu0 0.0
    %275 = vmatpush1.xpose.msra.mxu0 0.0
    %276 = vmatprep.subr.mxu0 0.0
    %277 = vmatpush1.xpose.msra.mxu0 0.0
    %278 = vmatprep.subr.mxu0 0.0
    %279 = vmatpush1.xpose.msra.mxu0 0.0
    %280 = vmatprep.subr.mxu0 0.0
    %281 = vmatpush1.xpose.msra.mxu0 0.0
    %282 = vmatprep.subr.mxu0 0.0
    %283 = vmatpush1.xpose.msra.mxu0 0.0
    %284 = vmatprep.subr.mxu0 0.0
    %285 = vmatpush1.xpose.msra.mxu0 0.0
    %286 = vmatprep.subr.mxu0 0.0
    %287 = vmatpush1.xpose.msra.mxu0 0.0
    %288 = vmatprep.subr.mxu0 0.0
    %289 = vmatpush1.xpose.msra.mxu0 0.0
    %290 = vmatprep.subr.mxu0 0.0
    %291 = vmatpush1.xpose.msra.mxu0 0.0
    %292 = vmatprep.subr.mxu0 0.0
    %293 = vmatpush1.xpose.msra.mxu0 0.0
    %294 = vmatprep.subr.mxu0 0.0
    %295 = vmatpush1.xpose.msra.mxu0 0.0
    %296 = vmatprep.subr.mxu0 0.0
    %297 = vmatpush1.xpose.msra.mxu0 0.0
    %298 = vmatprep.subr.mxu0 0.0
    %299 = vmatpush1.xpose.msra.mxu0 0.0
    %300 = vmatprep.subr.mxu0 0.0
    %301 = vmatpush1.xpose.msra.mxu0 0.0
    %302 = vmatprep.subr.mxu0 0.0
    %303 = vmatpush1.xpose.msra.mxu0 0.0
    %304 = vmatprep.subr.mxu0 0.0
    %305 = vmatpush1.xpose.msra.mxu0 0.0
    %306 = vmatprep.subr.mxu0 0.0
    %307 = vmatpush1.xpose.msra.mxu0 0.0
    %308 = vmatprep.subr.mxu0 0.0
    %309 = vmatpush1.xpose.msra.mxu0 0.0
    %310 = vmatprep.subr.mxu0 0.0
    %311 = vmatpush1.xpose.msra.mxu0 0.0
    %312 = vmatprep.subr.mxu0 0.0
    %313 = vmatpush1.xpose.msra.mxu0 0.0
    %314 = vmatprep.subr.mxu0 0.0
    %315 = vmatpush1.xpose.msra.mxu0 0.0
    %316 = vmatprep.mubr.f32.mxu0 0.0
    %317 = vmatmul.mubr.f32.gmra.mrb[0].mxu0 %v248
    %v318 = vpop.f32.mrb[0].mxu0
    %v319 = vadd.f32 0.0, %v318
    %v320 = vpop.f32.mrb[0].mxu0
    %321 = vdwg.mxu0
    %v322 = vsel %vm168, %v241, -inf
    %323 = vmax.xlane.f32.xlu0 %v322
    %v324 = vpop.xlane.xlu0 %323
    %v325 = vsel %vm168, %v319, -inf
    %326 = vmax.xlane.f32.xlu0 %v325
    %v327 = vpop.xlane.xlu0 %326
    %v328 = vsub.f32 %v241, %v324
    %v329 = vsub.f32 %v319, %v327
    %v330 = vmul.f32 %v328, 1.442695
    %v331 = vpow.pop %v330
    %v332 = vmul.f32 %v329, 1.442695
    %v333 = vpow.pop %v332
    %v334 = vsel %vm168, %v331, 0.0
    %335 = vadd.xlane.f32.xlu0 %v334
    %v336 = vpop.xlane.xlu0 %335
    %v337 = vsel %vm168, %v333, 0.0
    %338 = vadd.xlane.f32.xlu0 %v337
    %v339 = vpop.xlane.xlu0 %338
    %v340 = vrcp.pop %v336
    %v341 = vrcp.pop %v339
    %v342 = vmul.f32 %v331, %v340
    %v343 = vmul.f32 %v333, %v341
    %344 = vrot.lane.b32.xlu0 %v155, 64
    %v345 = vpop.permute.xlu0 %344
    %v348 = vsel %vm168, %v342, 0
    %350 = vmatprep.subr.mxu0 0.0
    %351 = vmatpush1.msra.mxu0 %v345
    %352 = vmatprep.subr.mxu0 0.0
    %353 = vmatpush1.msra.mxu0 0.0
    %354 = vmatprep.subr.mxu0 0.0
    %355 = vmatpush1.msra.mxu0 0.0
    %356 = vmatprep.subr.mxu0 0.0
    %357 = vmatpush1.msra.mxu0 0.0
    %358 = vmatprep.subr.mxu0 0.0
    %359 = vmatpush1.msra.mxu0 0.0
    %360 = vmatprep.subr.mxu0 0.0
    %361 = vmatpush1.msra.mxu0 0.0
    %362 = vmatprep.subr.mxu0 0.0
    %363 = vmatpush1.msra.mxu0 0.0
    %364 = vmatprep.subr.mxu0 0.0
    %365 = vmatpush1.msra.mxu0 0.0
    %366 = vmatprep.subr.mxu0 0.0
    %367 = vmatpush1.msra.mxu0 0.0
    %368 = vmatprep.subr.mxu0 0.0
    %369 = vmatpush1.msra.mxu0 0.0
    %370 = vmatprep.subr.mxu0 0.0
    %371 = vmatpush1.msra.mxu0 0.0
    %372 = vmatprep.subr.mxu0 0.0
    %373 = vmatpush1.msra.mxu0 0.0
    %374 = vmatprep.subr.mxu0 0.0
    %375 = vmatpush1.msra.mxu0 0.0
    %376 = vmatprep.subr.mxu0 0.0
    %377 = vmatpush1.msra.mxu0 0.0
    %378 = vmatprep.subr.mxu0 0.0
    %379 = vmatpush1.msra.mxu0 0.0
    %380 = vmatprep.subr.mxu0 0.0
    %381 = vmatpush1.msra.mxu0 0.0
    %382 = vmatprep.subr.mxu0 0.0
    %383 = vmatpush1.msra.mxu0 0.0
    %384 = vmatprep.subr.mxu0 0.0
    %385 = vmatpush1.msra.mxu0 0.0
    %386 = vmatprep.subr.mxu0 0.0
    %387 = vmatpush1.msra.mxu0 0.0
    %388 = vmatprep.subr.mxu0 0.0
    %389 = vmatpush1.msra.mxu0 0.0
    %390 = vmatprep.subr.mxu0 0.0
    %391 = vmatpush1.msra.mxu0 0.0
    %392 = vmatprep.subr.mxu0 0.0
    %393 = vmatpush1.msra.mxu0 0.0
    %394 = vmatprep.subr.mxu0 0.0
    %395 = vmatpush1.msra.mxu0 0.0
    %396 = vmatprep.subr.mxu0 0.0
    %397 = vmatpush1.msra.mxu0 0.0
    %398 = vmatprep.subr.mxu0 0.0
    %399 = vmatpush1.msra.mxu0 0.0
    %400 = vmatprep.subr.mxu0 0.0
    %401 = vmatpush1.msra.mxu0 0.0
    %402 = vmatprep.subr.mxu0 0.0
    %403 = vmatpush1.msra.mxu0 0.0
    %404 = vmatprep.subr.mxu0 0.0
    %405 = vmatpush1.msra.mxu0 0.0
    %406 = vmatprep.subr.mxu0 0.0
    %407 = vmatpush1.msra.mxu0 0.0
    %408 = vmatprep.subr.mxu0 0.0
    %409 = vmatpush1.msra.mxu0 0.0
    %410 = vmatprep.subr.mxu0 0.0
    %411 = vmatpush1.msra.mxu0 0.0
    %412 = vmatprep.subr.mxu0 0.0
    %413 = vmatpush1.msra.mxu0 0.0
    %414 = vmatprep.mubr.f32.mxu0 0.0
    %415 = vmatmul.mubr.f32.gmra.mrb[0].mxu0 %v348
    %v416 = vpop.f32.mrb[0].mxu0
    %v417 = vadd.f32 0.0, %v416
    %v418 = vpop.f32.mrb[0].mxu0
    %419 = vdwg.mxu0
    %420 = vrot.lane.b32.xlu0 %v160, 64
    %v421 = vpop.permute.xlu0 %420
    %v424 = vsel %vm168, %v343, 0
    %426 = vmatprep.subr.mxu0 0.0
    %427 = vmatpush1.msra.mxu0 %v421
    %428 = vmatprep.subr.mxu0 0.0
    %429 = vmatpush1.msra.mxu0 0.0
    %430 = vmatprep.subr.mxu0 0.0
    %431 = vmatpush1.msra.mxu0 0.0
    %432 = vmatprep.subr.mxu0 0.0
    %433 = vmatpush1.msra.mxu0 0.0
    %434 = vmatprep.subr.mxu0 0.0
    %435 = vmatpush1.msra.mxu0 0.0
    %436 = vmatprep.subr.mxu0 0.0
    %437 = vmatpush1.msra.mxu0 0.0
    %438 = vmatprep.subr.mxu0 0.0
    %439 = vmatpush1.msra.mxu0 0.0
    %440 = vmatprep.subr.mxu0 0.0
    %441 = vmatpush1.msra.mxu0 0.0
    %442 = vmatprep.subr.mxu0 0.0
    %443 = vmatpush1.msra.mxu0 0.0
    %444 = vmatprep.subr.mxu0 0.0
    %445 = vmatpush1.msra.mxu0 0.0
    %446 = vmatprep.subr.mxu0 0.0
    %447 = vmatpush1.msra.mxu0 0.0
    %448 = vmatprep.subr.mxu0 0.0
    %449 = vmatpush1.msra.mxu0 0.0
    %450 = vmatprep.subr.mxu0 0.0
    %451 = vmatpush1.msra.mxu0 0.0
    %452 = vmatprep.subr.mxu0 0.0
    %453 = vmatpush1.msra.mxu0 0.0
    %454 = vmatprep.subr.mxu0 0.0
    %455 = vmatpush1.msra.mxu0 0.0
    %456 = vmatprep.subr.mxu0 0.0
    %457 = vmatpush1.msra.mxu0 0.0
    %458 = vmatprep.subr.mxu0 0.0
    %459 = vmatpush1.msra.mxu0 0.0
    %460 = vmatprep.subr.mxu0 0.0
    %461 = vmatpush1.msra.mxu0 0.0
    %462 = vmatprep.subr.mxu0 0.0
    %463 = vmatpush1.msra.mxu0 0.0
    %464 = vmatprep.subr.mxu0 0.0
    %465 = vmatpush1.msra.mxu0 0.0
    %466 = vmatprep.subr.mxu0 0.0
    %467 = vmatpush1.msra.mxu0 0.0
    %468 = vmatprep.subr.mxu0 0.0
    %469 = vmatpush1.msra.mxu0 0.0
    %470 = vmatprep.subr.mxu0 0.0
    %471 = vmatpush1.msra.mxu0 0.0
    %472 = vmatprep.subr.mxu0 0.0
    %473 = vmatpush1.msra.mxu0 0.0
    %474 = vmatprep.subr.mxu0 0.0
    %475 = vmatpush1.msra.mxu0 0.0
    %476 = vmatprep.subr.mxu0 0.0
    %477 = vmatpush1.msra.mxu0 0.0
    %478 = vmatprep.subr.mxu0 0.0
    %479 = vmatpush1.msra.mxu0 0.0
    %480 = vmatprep.subr.mxu0 0.0
    %481 = vmatpush1.msra.mxu0 0.0
    %482 = vmatprep.subr.mxu0 0.0
    %483 = vmatpush1.msra.mxu0 0.0
    %484 = vmatprep.subr.mxu0 0.0
    %485 = vmatpush1.msra.mxu0 0.0
    %486 = vmatprep.subr.mxu0 0.0
    %487 = vmatpush1.msra.mxu0 0.0
    %488 = vmatprep.subr.mxu0 0.0
    %489 = vmatpush1.msra.mxu0 0.0
    %490 = vmatprep.mubr.f32.mxu0 0.0
    %491 = vmatmul.mubr.f32.gmra.mrb[0].mxu0 %v424
    %v492 = vpop.f32.mrb[0].mxu0
    %v493 = vadd.f32 0.0, %v492
    %v494 = vpop.f32.mrb[0].mxu0
    %495 = vdwg.mxu0
    %496 = vrot.lane.b32.xlu0 %v163, 120
    %v497 = vpop.permute.xlu0 %496
    %498 = vrot.lane.b32.xlu0 %v155, 88
    %v499 = vpop.permute.xlu0 %498
    %v500 = vsel %vm168, %v497, 0
    %v502 = vsel %vm168, %v499, 0
    %504 = vmatprep.subr.mxu0 0.0
    %505 = vmatpush1.xpose.msra.mxu0 %v502
    %506 = vmatprep.subr.mxu0 0.0
    %507 = vmatpush1.xpose.msra.mxu0 0.0
    %508 = vmatprep.subr.mxu0 0.0
    %509 = vmatpush1.xpose.msra.mxu0 0.0
    %510 = vmatprep.subr.mxu0 0.0
    %511 = vmatpush1.xpose.msra.mxu0 0.0
    %512 = vmatprep.subr.mxu0 0.0
    %513 = vmatpush1.xpose.msra.mxu0 0.0
    %514 = vmatprep.subr.mxu0 0.0
    %515 = vmatpush1.xpose.msra.mxu0 0.0
    %516 = vmatprep.subr.mxu0 0.0
    %517 = vmatpush1.xpose.msra.mxu0 0.0
    %518 = vmatprep.subr.mxu0 0.0
    %519 = vmatpush1.xpose.msra.mxu0 0.0
    %520 = vmatprep.subr.mxu0 0.0
    %521 = vmatpush1.xpose.msra.mxu0 0.0
    %522 = vmatprep.subr.mxu0 0.0
    %523 = vmatpush1.xpose.msra.mxu0 0.0
    %524 = vmatprep.subr.mxu0 0.0
    %525 = vmatpush1.xpose.msra.mxu0 0.0
    %526 = vmatprep.subr.mxu0 0.0
    %527 = vmatpush1.xpose.msra.mxu0 0.0
    %528 = vmatprep.subr.mxu0 0.0
    %529 = vmatpush1.xpose.msra.mxu0 0.0
    %530 = vmatprep.subr.mxu0 0.0
    %531 = vmatpush1.xpose.msra.mxu0 0.0
    %532 = vmatprep.subr.mxu0 0.0
    %533 = vmatpush1.xpose.msra.mxu0 0.0
    %534 = vmatprep.subr.mxu0 0.0
    %535 = vmatpush1.xpose.msra.mxu0 0.0
    %536 = vmatprep.subr.mxu0 0.0
    %537 = vmatpush1.xpose.msra.mxu0 0.0
    %538 = vmatprep.subr.mxu0 0.0
    %539 = vmatpush1.xpose.msra.mxu0 0.0
    %540 = vmatprep.subr.mxu0 0.0
    %541 = vmatpush1.xpose.msra.mxu0 0.0
    %542 = vmatprep.subr.mxu0 0.0
    %543 = vmatpush1.xpose.msra.mxu0 0.0
    %544 = vmatprep.subr.mxu0 0.0
    %545 = vmatpush1.xpose.msra.mxu0 0.0
    %546 = vmatprep.subr.mxu0 0.0
    %547 = vmatpush1.xpose.msra.mxu0 0.0
    %548 = vmatprep.subr.mxu0 0.0
    %549 = vmatpush1.xpose.msra.mxu0 0.0
    %550 = vmatprep.subr.mxu0 0.0
    %551 = vmatpush1.xpose.msra.mxu0 0.0
    %552 = vmatprep.subr.mxu0 0.0
    %553 = vmatpush1.xpose.msra.mxu0 0.0
    %554 = vmatprep.subr.mxu0 0.0
    %555 = vmatpush1.xpose.msra.mxu0 0.0
    %556 = vmatprep.subr.mxu0 0.0
    %557 = vmatpush1.xpose.msra.mxu0 0.0
    %558 = vmatprep.subr.mxu0 0.0
    %559 = vmatpush1.xpose.msra.mxu0 0.0
    %560 = vmatprep.subr.mxu0 0.0
    %561 = vmatpush1.xpose.msra.mxu0 0.0
    %562 = vmatprep.subr.mxu0 0.0
    %563 = vmatpush1.xpose.msra.mxu0 0.0
    %564 = vmatprep.subr.mxu0 0.0
    %565 = vmatpush1.xpose.msra.mxu0 0.0
    %566 = vmatprep.subr.mxu0 0.0
    %567 = vmatpush1.xpose.msra.mxu0 0.0
    %568 = vmatprep.mubr.f32.mxu0 0.0
    %569 = vmatmul.mubr.f32.gmra.mrb[0].mxu0 %v500
    %v570 = vpop.f32.mrb[0].mxu0
    %v571 = vadd.f32 0.0, %v570
    %v572 = vpop.f32.mrb[0].mxu0
    %573 = vdwg.mxu0
    %574 = vrot.lane.b32.xlu0 %v164, 120
    %v575 = vpop.permute.xlu0 %574
    %576 = vrot.lane.b32.xlu0 %v160, 88
    %v577 = vpop.permute.xlu0 %576
    %v578 = vsel %vm168, %v575, 0
    %v580 = vsel %vm168, %v577, 0
    %582 = vmatprep.subr.mxu0 0.0
    %583 = vmatpush1.xpose.msra.mxu0 %v580
    %584 = vmatprep.subr.mxu0 0.0
    %585 = vmatpush1.xpose.msra.mxu0 0.0
    %586 = vmatprep.subr.mxu0 0.0
    %587 = vmatpush1.xpose.msra.mxu0 0.0
    %588 = vmatprep.subr.mxu0 0.0
    %589 = vmatpush1.xpose.msra.mxu0 0.0
    %590 = vmatprep.subr.mxu0 0.0
    %591 = vmatpush1.xpose.msra.mxu0 0.0
    %592 = vmatprep.subr.mxu0 0.0
    %593 = vmatpush1.xpose.msra.mxu0 0.0
    %594 = vmatprep.subr.mxu0 0.0
    %595 = vmatpush1.xpose.msra.mxu0 0.0
    %596 = vmatprep.subr.mxu0 0.0
    %597 = vmatpush1.xpose.msra.mxu0 0.0
    %598 = vmatprep.subr.mxu0 0.0
    %599 = vmatpush1.xpose.msra.mxu0 0.0
    %600 = vmatprep.subr.mxu0 0.0
    %601 = vmatpush1.xpose.msra.mxu0 0.0
    %602 = vmatprep.subr.mxu0 0.0
    %603 = vmatpush1.xpose.msra.mxu0 0.0
    %604 = vmatprep.subr.mxu0 0.0
    %605 = vmatpush1.xpose.msra.mxu0 0.0
    %606 = vmatprep.subr.mxu0 0.0
    %607 = vmatpush1.xpose.msra.mxu0 0.0
    %608 = vmatprep.subr.mxu0 0.0
    %609 = vmatpush1.xpose.msra.mxu0 0.0
    %610 = vmatprep.subr.mxu0 0.0
    %611 = vmatpush1.xpose.msra.mxu0 0.0
    %612 = vmatprep.subr.mxu0 0.0
    %613 = vmatpush1.xpose.msra.mxu0 0.0
    %614 = vmatprep.subr.mxu0 0.0
    %615 = vmatpush1.xpose.msra.mxu0 0.0
    %616 = vmatprep.subr.mxu0 0.0
    %617 = vmatpush1.xpose.msra.mxu0 0.0
    %618 = vmatprep.subr.mxu0 0.0
    %619 = vmatpush1.xpose.msra.mxu0 0.0
    %620 = vmatprep.subr.mxu0 0.0
    %621 = vmatpush1.xpose.msra.mxu0 0.0
    %622 = vmatprep.subr.mxu0 0.0
    %623 = vmatpush1.xpose.msra.mxu0 0.0
    %624 = vmatprep.subr.mxu0 0.0
    %625 = vmatpush1.xpose.msra.mxu0 0.0
    %626 = vmatprep.subr.mxu0 0.0
    %627 = vmatpush1.xpose.msra.mxu0 0.0
    %628 = vmatprep.subr.mxu0 0.0
    %629 = vmatpush1.xpose.msra.mxu0 0.0
    %630 = vmatprep.subr.mxu0 0.0
    %631 = vmatpush1.xpose.msra.mxu0 0.0
    %632 = vmatprep.subr.mxu0 0.0
    %633 = vmatpush1.xpose.msra.mxu0 0.0
    %634 = vmatprep.subr.mxu0 0.0
    %635 = vmatpush1.xpose.msra.mxu0 0.0
    %636 = vmatprep.subr.mxu0 0.0
    %637 = vmatpush1.xpose.msra.mxu0 0.0
    %638 = vmatprep.subr.mxu0 0.0
    %639 = vmatpush1.xpose.msra.mxu0 0.0
    %640 = vmatprep.subr.mxu0 0.0
    %641 = vmatpush1.xpose.msra.mxu0 0.0
    %642 = vmatprep.subr.mxu0 0.0
    %643 = vmatpush1.xpose.msra.mxu0 0.0
    %644 = vmatprep.subr.mxu0 0.0
    %645 = vmatpush1.xpose.msra.mxu0 0.0
    %646 = vmatprep.mubr.f32.mxu0 0.0
    %647 = vmatmul.mubr.f32.gmra.mrb[0].mxu0 %v578
    %v648 = vpop.f32.mrb[0].mxu0
    %v649 = vadd.f32 0.0, %v648
    %v650 = vpop.f32.mrb[0].mxu0
    %651 = vdwg.mxu0
    %v652 = vsel %vm168, %v571, -inf
    %653 = vmax.xlane.f32.xlu0 %v652
    %v654 = vpop.xlane.xlu0 %653
    %v655 = vsel %vm168, %v649, -inf
    %656 = vmax.xlane.f32.xlu0 %v655
    %v657 = vpop.xlane.xlu0 %656
    %v658 = vsub.f32 %v571, %v654
    %v659 = vsub.f32 %v649, %v657
    %v660 = vmul.f32 %v658, 1.442695
    %v661 = vpow.pop %v660
    %v662 = vmul.f32 %v659, 1.442695
    %v663 = vpow.pop %v662
    %v664 = vsel %vm168, %v661, 0.0
    %665 = vadd.xlane.f32.xlu0 %v664
    %v666 = vpop.xlane.xlu0 %665
    %v667 = vsel %vm168, %v663, 0.0
    %668 = vadd.xlane.f32.xlu0 %v667
    %v669 = vpop.xlane.xlu0 %668
    %v670 = vrcp.pop %v666
    %v671 = vrcp.pop %v669
    %v672 = vmul.f32 %v661, %v670
    %v673 = vmul.f32 %v663, %v671
    %674 = vrot.lane.b32.xlu0 %v155, 56
    %v675 = vpop.permute.xlu0 %674
    %v678 = vsel %vm168, %v672, 0
    %680 = vmatprep.subr.mxu0 0.0
    %681 = vmatpush1.msra.mxu0 %v675
    %682 = vmatprep.subr.mxu0 0.0
    %683 = vmatpush1.msra.mxu0 0.0
    %684 = vmatprep.subr.mxu0 0.0
    %685 = vmatpush1.msra.mxu0 0.0
    %686 = vmatprep.subr.mxu0 0.0
    %687 = vmatpush1.msra.mxu0 0.0
    %688 = vmatprep.subr.mxu0 0.0
    %689 = vmatpush1.msra.mxu0 0.0
    %690 = vmatprep.subr.mxu0 0.0
    %691 = vmatpush1.msra.mxu0 0.0
    %692 = vmatprep.subr.mxu0 0.0
    %693 = vmatpush1.msra.mxu0 0.0
    %694 = vmatprep.subr.mxu0 0.0
    %695 = vmatpush1.msra.mxu0 0.0
    %696 = vmatprep.subr.mxu0 0.0
    %697 = vmatpush1.msra.mxu0 0.0
    %698 = vmatprep.subr.mxu0 0.0
    %699 = vmatpush1.msra.mxu0 0.0
    %700 = vmatprep.subr.mxu0 0.0
    %701 = vmatpush1.msra.mxu0 0.0
    %702 = vmatprep.subr.mxu0 0.0
    %703 = vmatpush1.msra.mxu0 0.0
    %704 = vmatprep.subr.mxu0 0.0
    %705 = vmatpush1.msra.mxu0 0.0
    %706 = vmatprep.subr.mxu0 0.0
    %707 = vmatpush1.msra.mxu0 0.0
    %708 = vmatprep.subr.mxu0 0.0
    %709 = vmatpush1.msra.mxu0 0.0
    %710 = vmatprep.subr.mxu0 0.0
    %711 = vmatpush1.msra.mxu0 0.0
    %712 = vmatprep.subr.mxu0 0.0
    %713 = vmatpush1.msra.mxu0 0.0
    %714 = vmatprep.subr.mxu0 0.0
    %715 = vmatpush1.msra.mxu0 0.0
    %716 = vmatprep.subr.mxu0 0.0
    %717 = vmatpush1.msra.mxu0 0.0
    %718 = vmatprep.subr.mxu0 0.0
    %719 = vmatpush1.msra.mxu0 0.0
    %720 = vmatprep.subr.mxu0 0.0
    %721 = vmatpush1.msra.mxu0 0.0
    %722 = vmatprep.subr.mxu0 0.0
    %723 = vmatpush1.msra.mxu0 0.0
    %724 = vmatprep.subr.mxu0 0.0
    %725 = vmatpush1.msra.mxu0 0.0
    %726 = vmatprep.subr.mxu0 0.0
    %727 = vmatpush1.msra.mxu0 0.0
    %728 = vmatprep.subr.mxu0 0.0
    %729 = vmatpush1.msra.mxu0 0.0
    %730 = vmatprep.subr.mxu0 0.0
    %731 = vmatpush1.msra.mxu0 0.0
    %732 = vmatprep.subr.mxu0 0.0
    %733 = vmatpush1.msra.mxu0 0.0
    %734 = vmatprep.subr.mxu0 0.0
    %735 = vmatpush1.msra.mxu0 0.0
    %736 = vmatprep.subr.mxu0 0.0
    %737 = vmatpush1.msra.mxu0 0.0
    %738 = vmatprep.subr.mxu0 0.0
    %739 = vmatpush1.msra.mxu0 0.0
    %740 = vmatprep.subr.mxu0 0.0
    %741 = vmatpush1.msra.mxu0 0.0
    %742 = vmatprep.subr.mxu0 0.0
    %743 = vmatpush1.msra.mxu0 0.0
    %744 = vmatprep.mubr.f32.mxu0 0.0
    %745 = vmatmul.mubr.f32.gmra.mrb[0].mxu0 %v678
    %v746 = vpop.f32.mrb[0].mxu0
    %v747 = vadd.f32 0.0, %v746
    %v748 = vpop.f32.mrb[0].mxu0
    %749 = vdwg.mxu0
    %750 = vrot.lane.b32.xlu0 %v160, 56
    %v751 = vpop.permute.xlu0 %750
    %v754 = vsel %vm168, %v673, 0
    %756 = vmatprep.subr.mxu0 0.0
    %757 = vmatpush1.msra.mxu0 %v751
    %758 = vmatprep.subr.mxu0 0.0
    %759 = vmatpush1.msra.mxu0 0.0
    %760 = vmatprep.subr.mxu0 0.0
    %761 = vmatpush1.msra.mxu0 0.0
    %762 = vmatprep.subr.mxu0 0.0
    %763 = vmatpush1.msra.mxu0 0.0
    %764 = vmatprep.subr.mxu0 0.0
    %765 = vmatpush1.msra.mxu0 0.0
    %766 = vmatprep.subr.mxu0 0.0
    %767 = vmatpush1.msra.mxu0 0.0
    %768 = vmatprep.subr.mxu0 0.0
    %769 = vmatpush1.msra.mxu0 0.0
    %770 = vmatprep.subr.mxu0 0.0
    %771 = vmatpush1.msra.mxu0 0.0
    %772 = vmatprep.subr.mxu0 0.0
    %773 = vmatpush1.msra.mxu0 0.0
    %774 = vmatprep.subr.mxu0 0.0
    %775 = vmatpush1.msra.mxu0 0.0
    %776 = vmatprep.subr.mxu0 0.0
    %777 = vmatpush1.msra.mxu0 0.0
    %778 = vmatprep.subr.mxu0 0.0
    %779 = vmatpush1.msra.mxu0 0.0
    %780 = vmatprep.subr.mxu0 0.0
    %781 = vmatpush1.msra.mxu0 0.0
    %782 = vmatprep.subr.mxu0 0.0
    %783 = vmatpush1.msra.mxu0 0.0
    %784 = vmatprep.subr.mxu0 0.0
    %785 = vmatpush1.msra.mxu0 0.0
    %786 = vmatprep.subr.mxu0 0.0
    %787 = vmatpush1.msra.mxu0 0.0
    %788 = vmatprep.subr.mxu0 0.0
    %789 = vmatpush1.msra.mxu0 0.0
    %790 = vmatprep.subr.mxu0 0.0
    %791 = vmatpush1.msra.mxu0 0.0
    %792 = vmatprep.subr.mxu0 0.0
    %793 = vmatpush1.msra.mxu0 0.0
    %794 = vmatprep.subr.mxu0 0.0
    %795 = vmatpush1.msra.mxu0 0.0
    %796 = vmatprep.subr.mxu0 0.0
    %797 = vmatpush1.msra.mxu0 0.0
    %798 = vmatprep.subr.mxu0 0.0
    %799 = vmatpush1.msra.mxu0 0.0
    %800 = vmatprep.subr.mxu0 0.0
    %801 = vmatpush1.msra.mxu0 0.0
    %802 = vmatprep.subr.mxu0 0.0
    %803 = vmatpush1.msra.mxu0 0.0
    %804 = vmatprep.subr.mxu0 0.0
    %805 = vmatpush1.msra.mxu0 0.0
    %806 = vmatprep.subr.mxu0 0.0
    %807 = vmatpush1.msra.mxu0 0.0
    %808 = vmatprep.subr.mxu0 0.0
    %809 = vmatpush1.msra.mxu0 0.0
    %810 = vmatprep.subr.mxu0 0.0
    %811 = vmatpush1.msra.mxu0 0.0
    %812 = vmatprep.subr.mxu0 0.0
    %813 = vmatpush1.msra.mxu0 0.0
    %814 = vmatprep.subr.mxu0 0.0
    %815 = vmatpush1.msra.mxu0 0.0
    %816 = vmatprep.subr.mxu0 0.0
    %817 = vmatpush1.msra.mxu0 0.0
    %818 = vmatprep.subr.mxu0 0.0
    %819 = vmatpush1.msra.mxu0 0.0
    %820 = vmatprep.mubr.f32.mxu0 0.0
    %821 = vmatmul.mubr.f32.gmra.mrb[0].mxu0 %v754
    %v822 = vpop.f32.mrb[0].mxu0
    %v823 = vadd.f32 0.0, %v822
    %v824 = vpop.f32.mrb[0].mxu0
    %825 = vdwg.mxu0
    %826 = vrot.lane.b32.xlu0 %v163, 112
    %v827 = vpop.permute.xlu0 %826
    %828 = vrot.lane.b32.xlu0 %v155, 80
    %v829 = vpop.permute.xlu0 %828
    %v830 = vsel %vm168, %v827, 0
    %v832 = vsel %vm168, %v829, 0
    %834 = vmatprep.subr.mxu0 0.0
    %835 = vmatpush1.xpose.msra.mxu0 %v832
    %836 = vmatprep.subr.mxu0 0.0
    %837 = vmatpush1.xpose.msra.mxu0 0.0
    %838 = vmatprep.subr.mxu0 0.0
    %839 = vmatpush1.xpose.msra.mxu0 0.0
    %840 = vmatprep.subr.mxu0 0.0
    %841 = vmatpush1.xpose.msra.mxu0 0.0
    %842 = vmatprep.subr.mxu0 0.0
    %843 = vmatpush1.xpose.msra.mxu0 0.0
    %844 = vmatprep.subr.mxu0 0.0
    %845 = vmatpush1.xpose.msra.mxu0 0.0
    %846 = vmatprep.subr.mxu0 0.0
    %847 = vmatpush1.xpose.msra.mxu0 0.0
    %848 = vmatprep.subr.mxu0 0.0
    %849 = vmatpush1.xpose.msra.mxu0 0.0
    %850 = vmatprep.subr.mxu0 0.0
    %851 = vmatpush1.xpose.msra.mxu0 0.0
    %852 = vmatprep.subr.mxu0 0.0
    %853 = vmatpush1.xpose.msra.mxu0 0.0
    %854 = vmatprep.subr.mxu0 0.0
    %855 = vmatpush1.xpose.msra.mxu0 0.0
    %856 = vmatprep.subr.mxu0 0.0
    %857 = vmatpush1.xpose.msra.mxu0 0.0
    %858 = vmatprep.subr.mxu0 0.0
    %859 = vmatpush1.xpose.msra.mxu0 0.0
    %860 = vmatprep.subr.mxu0 0.0
    %861 = vmatpush1.xpose.msra.mxu0 0.0
    %862 = vmatprep.subr.mxu0 0.0
    %863 = vmatpush1.xpose.msra.mxu0 0.0
    %864 = vmatprep.subr.mxu0 0.0
    %865 = vmatpush1.xpose.msra.mxu0 0.0
    %866 = vmatprep.subr.mxu0 0.0
    %867 = vmatpush1.xpose.msra.mxu0 0.0
    %868 = vmatprep.subr.mxu0 0.0
    %869 = vmatpush1.xpose.msra.mxu0 0.0
    %870 = vmatprep.subr.mxu0 0.0
    %871 = vmatpush1.xpose.msra.mxu0 0.0
    %872 = vmatprep.subr.mxu0 0.0
    %873 = vmatpush1.xpose.msra.mxu0 0.0
    %874 = vmatprep.subr.mxu0 0.0
    %875 = vmatpush1.xpose.msra.mxu0 0.0
    %876 = vmatprep.subr.mxu0 0.0
    %877 = vmatpush1.xpose.msra.mxu0 0.0
    %878 = vmatprep.subr.mxu0 0.0
    %879 = vmatpush1.xpose.msra.mxu0 0.0
    %880 = vmatprep.subr.mxu0 0.0
    %881 = vmatpush1.xpose.msra.mxu0 0.0
    %882 = vmatprep.subr.mxu0 0.0
    %883 = vmatpush1.xpose.msra.mxu0 0.0
    %884 = vmatprep.subr.mxu0 0.0
    %885 = vmatpush1.xpose.msra.mxu0 0.0
    %886 = vmatprep.subr.mxu0 0.0
    %887 = vmatpush1.xpose.msra.mxu0 0.0
    %888 = vmatprep.subr.mxu0 0.0
    %889 = vmatpush1.xpose.msra.mxu0 0.0
    %890 = vmatprep.subr.mxu0 0.0
    %891 = vmatpush1.xpose.msra.mxu0 0.0
    %892 = vmatprep.subr.mxu0 0.0
    %893 = vmatpush1.xpose.msra.mxu0 0.0
    %894 = vmatprep.subr.mxu0 0.0
    %895 = vmatpush1.xpose.msra.mxu0 0.0
    %896 = vmatprep.subr.mxu0 0.0
    %897 = vmatpush1.xpose.msra.mxu0 0.0
    %898 = vmatprep.mubr.f32.mxu0 0.0
    %899 = vmatmul.mubr.f32.gmra.mrb[0].mxu0 %v830
    %v900 = vpop.f32.mrb[0].mxu0
    %v901 = vadd.f32 0.0, %v900
    %v902 = vpop.f32.mrb[0].mxu0
    %903 = vdwg.mxu0
    %904 = vrot.lane.b32.xlu0 %v164, 112
    %v905 = vpop.permute.xlu0 %904
    %906 = vrot.lane.b32.xlu0 %v160, 80
    %v907 = vpop.permute.xlu0 %906
    %v908 = vsel %vm168, %v905, 0
    %v910 = vsel %vm168, %v907, 0
    %912 = vmatprep.subr.mxu0 0.0
    %913 = vmatpush1.xpose.msra.mxu0 %v910
    %914 = vmatprep.subr.mxu0 0.0
    %915 = vmatpush1.xpose.msra.mxu0 0.0
    %916 = vmatprep.subr.mxu0 0.0
    %917 = vmatpush1.xpose.msra.mxu0 0.0
    %918 = vmatprep.subr.mxu0 0.0
    %919 = vmatpush1.xpose.msra.mxu0 0.0
    %920 = vmatprep.subr.mxu0 0.0
    %921 = vmatpush1.xpose.msra.mxu0 0.0
    %922 = vmatprep.subr.mxu0 0.0
    %923 = vmatpush1.xpose.msra.mxu0 0.0
    %924 = vmatprep.subr.mxu0 0.0
    %925 = vmatpush1.xpose.msra.mxu0 0.0
    %926 = vmatprep.subr.mxu0 0.0
    %927 = vmatpush1.xpose.msra.mxu0 0.0
    %928 = vmatprep.subr.mxu0 0.0
    %929 = vmatpush1.xpose.msra.mxu0 0.0
    %930 = vmatprep.subr.mxu0 0.0
    %931 = vmatpush1.xpose.msra.mxu0 0.0
    %932 = vmatprep.subr.mxu0 0.0
    %933 = vmatpush1.xpose.msra.mxu0 0.0
    %934 = vmatprep.subr.mxu0 0.0
    %935 = vmatpush1.xpose.msra.mxu0 0.0
    %936 = vmatprep.subr.mxu0 0.0
    %937 = vmatpush1.xpose.msra.mxu0 0.0
    %938 = vmatprep.subr.mxu0 0.0
    %939 = vmatpush1.xpose.msra.mxu0 0.0
    %940 = vmatprep.subr.mxu0 0.0
    %941 = vmatpush1.xpose.msra.mxu0 0.0
    %942 = vmatprep.subr.mxu0 0.0
    %943 = vmatpush1.xpose.msra.mxu0 0.0
    %944 = vmatprep.subr.mxu0 0.0
    %945 = vmatpush1.xpose.msra.mxu0 0.0
    %946 = vmatprep.subr.mxu0 0.0
    %947 = vmatpush1.xpose.msra.mxu0 0.0
    %948 = vmatprep.subr.mxu0 0.0
    %949 = vmatpush1.xpose.msra.mxu0 0.0
    %950 = vmatprep.subr.mxu0 0.0
    %951 = vmatpush1.xpose.msra.mxu0 0.0
    %952 = vmatprep.subr.mxu0 0.0
    %953 = vmatpush1.xpose.msra.mxu0 0.0
    %954 = vmatprep.subr.mxu0 0.0
    %955 = vmatpush1.xpose.msra.mxu0 0.0
    %956 = vmatprep.subr.mxu0 0.0
    %957 = vmatpush1.xpose.msra.mxu0 0.0
    %958 = vmatprep.subr.mxu0 0.0
    %959 = vmatpush1.xpose.msra.mxu0 0.0
    %960 = vmatprep.subr.mxu0 0.0
    %961 = vmatpush1.xpose.msra.mxu0 0.0
    %962 = vmatprep.subr.mxu0 0.0
    %963 = vmatpush1.xpose.msra.mxu0 0.0
    %964 = vmatprep.subr.mxu0 0.0
    %965 = vmatpush1.xpose.msra.mxu0 0.0
    %966 = vmatprep.subr.mxu0 0.0
    %967 = vmatpush1.xpose.msra.mxu0 0.0
    %968 = vmatprep.subr.mxu0 0.0
    %969 = vmatpush1.xpose.msra.mxu0 0.0
    %970 = vmatprep.subr.mxu0 0.0
    %971 = vmatpush1.xpose.msra.mxu0 0.0
    %972 = vmatprep.subr.mxu0 0.0
    %973 = vmatpush1.xpose.msra.mxu0 0.0
    %974 = vmatprep.subr.mxu0 0.0
    %975 = vmatpush1.xpose.msra.mxu0 0.0
    %976 = vmatprep.mubr.f32.mxu0 0.0
    %977 = vmatmul.mubr.f32.gmra.mrb[0].mxu0 %v908
    %v978 = vpop.f32.mrb[0].mxu0
    %v979 = vadd.f32 0.0, %v978
    %v980 = vpop.f32.mrb[0].mxu0
    %981 = vdwg.mxu0
    %v982 = vsel %vm168, %v901, -inf
    %983 = vmax.xlane.f32.xlu0 %v982
    %v984 = vpop.xlane.xlu0 %983
    %v985 = vsel %vm168, %v979, -inf
    %986 = vmax.xlane.f32.xlu0 %v985
    %v987 = vpop.xlane.xlu0 %986
    %v988 = vsub.f32 %v901, %v984
    %v989 = vsub.f32 %v979, %v987
    %v990 = vmul.f32 %v988, 1.442695
    %v991 = vpow.pop %v990
    %v992 = vmul.f32 %v989, 1.442695
    %v993 = vpow.pop %v992
    %v994 = vsel %vm168, %v991, 0.0
    %995 = vadd.xlane.f32.xlu0 %v994
    %v996 = vpop.xlane.xlu0 %995
    %v997 = vsel %vm168, %v993, 0.0
    %998 = vadd.xlane.f32.xlu0 %v997
    %v999 = vpop.xlane.xlu0 %998
    %v1000 = vrcp.pop %v996
    %v1001 = vrcp.pop %v999
    %v1002 = vmul.f32 %v991, %v1000
    %v1003 = vmul.f32 %v993, %v1001
    %1004 = vrot.lane.b32.xlu0 %v155, 48
    %v1005 = vpop.permute.xlu0 %1004
    %v1008 = vsel %vm168, %v1002, 0
    %1010 = vmatprep.subr.mxu0 0.0
    %1011 = vmatpush1.msra.mxu0 %v1005
    %1012 = vmatprep.subr.mxu0 0.0
    %1013 = vmatpush1.msra.mxu0 0.0
    %1014 = vmatprep.subr.mxu0 0.0
    %1015 = vmatpush1.msra.mxu0 0.0
    %1016 = vmatprep.subr.mxu0 0.0
    %1017 = vmatpush1.msra.mxu0 0.0
    %1018 = vmatprep.subr.mxu0 0.0
    %1019 = vmatpush1.msra.mxu0 0.0
    %1020 = vmatprep.subr.mxu0 0.0
    %1021 = vmatpush1.msra.mxu0 0.0
    %1022 = vmatprep.subr.mxu0 0.0
    %1023 = vmatpush1.msra.mxu0 0.0
    %1024 = vmatprep.subr.mxu0 0.0
    %1025 = vmatpush1.msra.mxu0 0.0
    %1026 = vmatprep.subr.mxu0 0.0
    %1027 = vmatpush1.msra.mxu0 0.0
    %1028 = vmatprep.subr.mxu0 0.0
    %1029 = vmatpush1.msra.mxu0 0.0
    %1030 = vmatprep.subr.mxu0 0.0
    %1031 = vmatpush1.msra.mxu0 0.0
    %1032 = vmatprep.subr.mxu0 0.0
    %1033 = vmatpush1.msra.mxu0 0.0
    %1034 = vmatprep.subr.mxu0 0.0
    %1035 = vmatpush1.msra.mxu0 0.0
    %1036 = vmatprep.subr.mxu0 0.0
    %1037 = vmatpush1.msra.mxu0 0.0
    %1038 = vmatprep.subr.mxu0 0.0
    %1039 = vmatpush1.msra.mxu0 0.0
    %1040 = vmatprep.subr.mxu0 0.0
    %1041 = vmatpush1.msra.mxu0 0.0
    %1042 = vmatprep.subr.mxu0 0.0
    %1043 = vmatpush1.msra.mxu0 0.0
    %1044 = vmatprep.subr.mxu0 0.0
    %1045 = vmatpush1.msra.mxu0 0.0
    %1046 = vmatprep.subr.mxu0 0.0
    %1047 = vmatpush1.msra.mxu0 0.0
    %1048 = vmatprep.subr.mxu0 0.0
    %1049 = vmatpush1.msra.mxu0 0.0
    %1050 = vmatprep.subr.mxu0 0.0
    %1051 = vmatpush1.msra.mxu0 0.0
    %1052 = vmatprep.subr.mxu0 0.0
    %1053 = vmatpush1.msra.mxu0 0.0
    %1054 = vmatprep.subr.mxu0 0.0
    %1055 = vmatpush1.msra.mxu0 0.0
    %1056 = vmatprep.subr.mxu0 0.0
    %1057 = vmatpush1.msra.mxu0 0.0
    %1058 = vmatprep.subr.mxu0 0.0
    %1059 = vmatpush1.msra.mxu0 0.0
    %1060 = vmatprep.subr.mxu0 0.0
    %1061 = vmatpush1.msra.mxu0 0.0
    %1062 = vmatprep.subr.mxu0 0.0
    %1063 = vmatpush1.msra.mxu0 0.0
    %1064 = vmatprep.subr.mxu0 0.0
    %1065 = vmatpush1.msra.mxu0 0.0
    %1066 = vmatprep.subr.mxu0 0.0
    %1067 = vmatpush1.msra.mxu0 0.0
    %1068 = vmatprep.subr.mxu0 0.0
    %1069 = vmatpush1.msra.mxu0 0.0
    %1070 = vmatprep.subr.mxu0 0.0
    %1071 = vmatpush1.msra.mxu0 0.0
    %1072 = vmatprep.subr.mxu0 0.0
    %1073 = vmatpush1.msra.mxu0 0.0
    %1074 = vmatprep.mubr.f32.mxu0 0.0
    %1075 = vmatmul.mubr.f32.gmra.mrb[0].mxu0 %v1008
    %v1076 = vpop.f32.mrb[0].mxu0
    %v1077 = vadd.f32 0.0, %v1076
    %v1078 = vpop.f32.mrb[0].mxu0
    %1079 = vdwg.mxu0
    %1080 = vrot.lane.b32.xlu0 %v160, 48
    %v1081 = vpop.permute.xlu0 %1080
    %v1084 = vsel %vm168, %v1003, 0
    %1086 = vmatprep.subr.mxu0 0.0
    %1087 = vmatpush1.msra.mxu0 %v1081
    %1088 = vmatprep.subr.mxu0 0.0
    %1089 = vmatpush1.msra.mxu0 0.0
    %1090 = vmatprep.subr.mxu0 0.0
    %1091 = vmatpush1.msra.mxu0 0.0
    %1092 = vmatprep.subr.mxu0 0.0
    %1093 = vmatpush1.msra.mxu0 0.0
    %1094 = vmatprep.subr.mxu0 0.0
    %1095 = vmatpush1.msra.mxu0 0.0
    %1096 = vmatprep.subr.mxu0 0.0
    %1097 = vmatpush1.msra.mxu0 0.0
    %1098 = vmatprep.subr.mxu0 0.0
    %1099 = vmatpush1.msra.mxu0 0.0
    %1100 = vmatprep.subr.mxu0 0.0
    %1101 = vmatpush1.msra.mxu0 0.0
    %1102 = vmatprep.subr.mxu0 0.0
    %1103 = vmatpush1.msra.mxu0 0.0
    %1104 = vmatprep.subr.mxu0 0.0
    %1105 = vmatpush1.msra.mxu0 0.0
    %1106 = vmatprep.subr.mxu0 0.0
    %1107 = vmatpush1.msra.mxu0 0.0
    %1108 = vmatprep.subr.mxu0 0.0
    %1109 = vmatpush1.msra.mxu0 0.0
    %1110 = vmatprep.subr.mxu0 0.0
    %1111 = vmatpush1.msra.mxu0 0.0
    %1112 = vmatprep.subr.mxu0 0.0
    %1113 = vmatpush1.msra.mxu0 0.0
    %1114 = vmatprep.subr.mxu0 0.0
    %1115 = vmatpush1.msra.mxu0 0.0
    %1116 = vmatprep.subr.mxu0 0.0
    %1117 = vmatpush1.msra.mxu0 0.0
    %1118 = vmatprep.subr.mxu0 0.0
    %1119 = vmatpush1.msra.mxu0 0.0
    %1120 = vmatprep.subr.mxu0 0.0
    %1121 = vmatpush1.msra.mxu0 0.0
    %1122 = vmatprep.subr.mxu0 0.0
    %1123 = vmatpush1.msra.mxu0 0.0
    %1124 = vmatprep.subr.mxu0 0.0
    %1125 = vmatpush1.msra.mxu0 0.0
    %1126 = vmatprep.subr.mxu0 0.0
    %1127 = vmatpush1.msra.mxu0 0.0
    %1128 = vmatprep.subr.mxu0 0.0
    %1129 = vmatpush1.msra.mxu0 0.0
    %1130 = vmatprep.subr.mxu0 0.0
    %1131 = vmatpush1.msra.mxu0 0.0
    %1132 = vmatprep.subr.mxu0 0.0
    %1133 = vmatpush1.msra.mxu0 0.0
    %1134 = vmatprep.subr.mxu0 0.0
    %1135 = vmatpush1.msra.mxu0 0.0
    %1136 = vmatprep.subr.mxu0 0.0
    %1137 = vmatpush1.msra.mxu0 0.0
    %1138 = vmatprep.subr.mxu0 0.0
    %1139 = vmatpush1.msra.mxu0 0.0
    %1140 = vmatprep.subr.mxu0 0.0
    %1141 = vmatpush1.msra.mxu0 0.0
    %1142 = vmatprep.subr.mxu0 0.0
    %1143 = vmatpush1.msra.mxu0 0.0
    %1144 = vmatprep.subr.mxu0 0.0
    %1145 = vmatpush1.msra.mxu0 0.0
    %1146 = vmatprep.subr.mxu0 0.0
    %1147 = vmatpush1.msra.mxu0 0.0
    %1148 = vmatprep.subr.mxu0 0.0
    %1149 = vmatpush1.msra.mxu0 0.0
    %1150 = vmatprep.mubr.f32.mxu0 0.0
    %1151 = vmatmul.mubr.f32.gmra.mrb[0].mxu0 %v1084
    %v1152 = vpop.f32.mrb[0].mxu0
    %v1153 = vadd.f32 0.0, %v1152
    %v1154 = vpop.f32.mrb[0].mxu0
    %1155 = vdwg.mxu0
    %1156 = vrot.lane.b32.xlu0 %v163, 104
    %v1157 = vpop.permute.xlu0 %1156
    %1158 = vrot.lane.b32.xlu0 %v155, 72
    %v1159 = vpop.permute.xlu0 %1158
    %v1160 = vsel %vm168, %v1157, 0
    %v1162 = vsel %vm168, %v1159, 0
    %1164 = vmatprep.subr.mxu0 0.0
    %1165 = vmatpush1.xpose.msra.mxu0 %v1162
    %1166 = vmatprep.subr.mxu0 0.0
    %1167 = vmatpush1.xpose.msra.mxu0 0.0
    %1168 = vmatprep.subr.mxu0 0.0
    %1169 = vmatpush1.xpose.msra.mxu0 0.0
    %1170 = vmatprep.subr.mxu0 0.0
    %1171 = vmatpush1.xpose.msra.mxu0 0.0
    %1172 = vmatprep.subr.mxu0 0.0
    %1173 = vmatpush1.xpose.msra.mxu0 0.0
    %1174 = vmatprep.subr.mxu0 0.0
    %1175 = vmatpush1.xpose.msra.mxu0 0.0
    %1176 = vmatprep.subr.mxu0 0.0
    %1177 = vmatpush1.xpose.msra.mxu0 0.0
    %1178 = vmatprep.subr.mxu0 0.0
    %1179 = vmatpush1.xpose.msra.mxu0 0.0
    %1180 = vmatprep.subr.mxu0 0.0
    %1181 = vmatpush1.xpose.msra.mxu0 0.0
    %1182 = vmatprep.subr.mxu0 0.0
    %1183 = vmatpush1.xpose.msra.mxu0 0.0
    %1184 = vmatprep.subr.mxu0 0.0
    %1185 = vmatpush1.xpose.msra.mxu0 0.0
    %1186 = vmatprep.subr.mxu0 0.0
    %1187 = vmatpush1.xpose.msra.mxu0 0.0
    %1188 = vmatprep.subr.mxu0 0.0
    %1189 = vmatpush1.xpose.msra.mxu0 0.0
    %1190 = vmatprep.subr.mxu0 0.0
    %1191 = vmatpush1.xpose.msra.mxu0 0.0
    %1192 = vmatprep.subr.mxu0 0.0
    %1193 = vmatpush1.xpose.msra.mxu0 0.0
    %1194 = vmatprep.subr.mxu0 0.0
    %1195 = vmatpush1.xpose.msra.mxu0 0.0
    %1196 = vmatprep.subr.mxu0 0.0
    %1197 = vmatpush1.xpose.msra.mxu0 0.0
    %1198 = vmatprep.subr.mxu0 0.0
    %1199 = vmatpush1.xpose.msra.mxu0 0.0
    %1200 = vmatprep.subr.mxu0 0.0
    %1201 = vmatpush1.xpose.msra.mxu0 0.0
    %1202 = vmatprep.subr.mxu0 0.0
    %1203 = vmatpush1.xpose.msra.mxu0 0.0
    %1204 = vmatprep.subr.mxu0 0.0
    %1205 = vmatpush1.xpose.msra.mxu0 0.0
    %1206 = vmatprep.subr.mxu0 0.0
    %1207 = vmatpush1.xpose.msra.mxu0 0.0
    %1208 = vmatprep.subr.mxu0 0.0
    %1209 = vmatpush1.xpose.msra.mxu0 0.0
    %1210 = vmatprep.subr.mxu0 0.0
    %1211 = vmatpush1.xpose.msra.mxu0 0.0
    %1212 = vmatprep.subr.mxu0 0.0
    %1213 = vmatpush1.xpose.msra.mxu0 0.0
    %1214 = vmatprep.subr.mxu0 0.0
    %1215 = vmatpush1.xpose.msra.mxu0 0.0
    %1216 = vmatprep.subr.mxu0 0.0
    %1217 = vmatpush1.xpose.msra.mxu0 0.0
    %1218 = vmatprep.subr.mxu0 0.0
    %1219 = vmatpush1.xpose.msra.mxu0 0.0
    %1220 = vmatprep.subr.mxu0 0.0
    %1221 = vmatpush1.xpose.msra.mxu0 0.0
    %1222 = vmatprep.subr.mxu0 0.0
    %1223 = vmatpush1.xpose.msra.mxu0 0.0
    %1224 = vmatprep.subr.mxu0 0.0
    %1225 = vmatpush1.xpose.msra.mxu0 0.0
    %1226 = vmatprep.subr.mxu0 0.0
    %1227 = vmatpush1.xpose.msra.mxu0 0.0
    %1228 = vmatprep.mubr.f32.mxu0 0.0
    %1229 = vmatmul.mubr.f32.gmra.mrb[0].mxu0 %v1160
    %v1230 = vpop.f32.mrb[0].mxu0
    %v1231 = vadd.f32 0.0, %v1230
    %v1232 = vpop.f32.mrb[0].mxu0
    %1233 = vdwg.mxu0
    %1234 = vrot.lane.b32.xlu0 %v164, 104
    %v1235 = vpop.permute.xlu0 %1234
    %1236 = vrot.lane.b32.xlu0 %v160, 72
    %v1237 = vpop.permute.xlu0 %1236
    %v1238 = vsel %vm168, %v1235, 0
    %v1240 = vsel %vm168, %v1237, 0
    %1242 = vmatprep.subr.mxu0 0.0
    %1243 = vmatpush1.xpose.msra.mxu0 %v1240
    %1244 = vmatprep.subr.mxu0 0.0
    %1245 = vmatpush1.xpose.msra.mxu0 0.0
    %1246 = vmatprep.subr.mxu0 0.0
    %1247 = vmatpush1.xpose.msra.mxu0 0.0
    %1248 = vmatprep.subr.mxu0 0.0
    %1249 = vmatpush1.xpose.msra.mxu0 0.0
    %1250 = vmatprep.subr.mxu0 0.0
    %1251 = vmatpush1.xpose.msra.mxu0 0.0
    %1252 = vmatprep.subr.mxu0 0.0
    %1253 = vmatpush1.xpose.msra.mxu0 0.0
    %1254 = vmatprep.subr.mxu0 0.0
    %1255 = vmatpush1.xpose.msra.mxu0 0.0
    %1256 = vmatprep.subr.mxu0 0.0
    %1257 = vmatpush1.xpose.msra.mxu0 0.0
    %1258 = vmatprep.subr.mxu0 0.0
    %1259 = vmatpush1.xpose.msra.mxu0 0.0
    %1260 = vmatprep.subr.mxu0 0.0
    %1261 = vmatpush1.xpose.msra.mxu0 0.0
    %1262 = vmatprep.subr.mxu0 0.0
    %1263 = vmatpush1.xpose.msra.mxu0 0.0
    %1264 = vmatprep.subr.mxu0 0.0
    %1265 = vmatpush1.xpose.msra.mxu0 0.0
    %1266 = vmatprep.subr.mxu0 0.0
    %1267 = vmatpush1.xpose.msra.mxu0 0.0
    %1268 = vmatprep.subr.mxu0 0.0
    %1269 = vmatpush1.xpose.msra.mxu0 0.0
    %1270 = vmatprep.subr.mxu0 0.0
    %1271 = vmatpush1.xpose.msra.mxu0 0.0
    %1272 = vmatprep.subr.mxu0 0.0
    %1273 = vmatpush1.xpose.msra.mxu0 0.0
    %1274 = vmatprep.subr.mxu0 0.0
    %1275 = vmatpush1.xpose.msra.mxu0 0.0
    %1276 = vmatprep.subr.mxu0 0.0
    %1277 = vmatpush1.xpose.msra.mxu0 0.0
    %1278 = vmatprep.subr.mxu0 0.0
    %1279 = vmatpush1.xpose.msra.mxu0 0.0
    %1280 = vmatprep.subr.mxu0 0.0
    %1281 = vmatpush1.xpose.msra.mxu0 0.0
    %1282 = vmatprep.subr.mxu0 0.0
    %1283 = vmatpush1.xpose.msra.mxu0 0.0
    %1284 = vmatprep.subr.mxu0 0.0
    %1285 = vmatpush1.xpose.msra.mxu0 0.0
    %1286 = vmatprep.subr.mxu0 0.0
    %1287 = vmatpush1.xpose.msra.mxu0 0.0
    %1288 = vmatprep.subr.mxu0 0.0
    %1289 = vmatpush1.xpose.msra.mxu0 0.0
    %1290 = vmatprep.subr.mxu0 0.0
    %1291 = vmatpush1.xpose.msra.mxu0 0.0
    %1292 = vmatprep.subr.mxu0 0.0
    %1293 = vmatpush1.xpose.msra.mxu0 0.0
    %1294 = vmatprep.subr.mxu0 0.0
    %1295 = vmatpush1.xpose.msra.mxu0 0.0
    %1296 = vmatprep.subr.mxu0 0.0
    %1297 = vmatpush1.xpose.msra.mxu0 0.0
    %1298 = vmatprep.subr.mxu0 0.0
    %1299 = vmatpush1.xpose.msra.mxu0 0.0
    %1300 = vmatprep.subr.mxu0 0.0
    %1301 = vmatpush1.xpose.msra.mxu0 0.0
    %1302 = vmatprep.subr.mxu0 0.0
    %1303 = vmatpush1.xpose.msra.mxu0 0.0
    %1304 = vmatprep.subr.mxu0 0.0
    %1305 = vmatpush1.xpose.msra.mxu0 0.0
    %1306 = vmatprep.mubr.f32.mxu0 0.0
    %1307 = vmatmul.mubr.f32.gmra.mrb[0].mxu0 %v1238
    %v1308 = vpop.f32.mrb[0].mxu0
    %v1309 = vadd.f32 0.0, %v1308
    %v1310 = vpop.f32.mrb[0].mxu0
    %1311 = vdwg.mxu0
    %v1312 = vsel %vm168, %v1231, -inf
    %1313 = vmax.xlane.f32.xlu0 %v1312
    %v1314 = vpop.xlane.xlu0 %1313
    %v1315 = vsel %vm168, %v1309, -inf
    %1316 = vmax.xlane.f32.xlu0 %v1315
    %v1317 = vpop.xlane.xlu0 %1316
    %v1318 = vsub.f32 %v1231, %v1314
    %v1319 = vsub.f32 %v1309, %v1317
    %v1320 = vmul.f32 %v1318, 1.442695
    %v1321 = vpow.pop %v1320
    %v1322 = vmul.f32 %v1319, 1.442695
    %v1323 = vpow.pop %v1322
    %v1324 = vsel %vm168, %v1321, 0.0
    %1325 = vadd.xlane.f32.xlu0 %v1324
    %v1326 = vpop.xlane.xlu0 %1325
    %v1327 = vsel %vm168, %v1323, 0.0
    %1328 = vadd.xlane.f32.xlu0 %v1327
    %v1329 = vpop.xlane.xlu0 %1328
    %v1330 = vrcp.pop %v1326
    %v1331 = vrcp.pop %v1329
    %v1332 = vmul.f32 %v1321, %v1330
    %v1333 = vmul.f32 %v1323, %v1331
    %1334 = vrot.lane.b32.xlu0 %v155, 40
    %v1335 = vpop.permute.xlu0 %1334
    %v1338 = vsel %vm168, %v1332, 0
    %1340 = vmatprep.subr.mxu0 0.0
    %1341 = vmatpush1.msra.mxu0 %v1335
    %1342 = vmatprep.subr.mxu0 0.0
    %1343 = vmatpush1.msra.mxu0 0.0
    %1344 = vmatprep.subr.mxu0 0.0
    %1345 = vmatpush1.msra.mxu0 0.0
    %1346 = vmatprep.subr.mxu0 0.0
    %1347 = vmatpush1.msra.mxu0 0.0
    %1348 = vmatprep.subr.mxu0 0.0
    %1349 = vmatpush1.msra.mxu0 0.0
    %1350 = vmatprep.subr.mxu0 0.0
    %1351 = vmatpush1.msra.mxu0 0.0
    %1352 = vmatprep.subr.mxu0 0.0
    %1353 = vmatpush1.msra.mxu0 0.0
    %1354 = vmatprep.subr.mxu0 0.0
    %1355 = vmatpush1.msra.mxu0 0.0
    %1356 = vmatprep.subr.mxu0 0.0
    %1357 = vmatpush1.msra.mxu0 0.0
    %1358 = vmatprep.subr.mxu0 0.0
    %1359 = vmatpush1.msra.mxu0 0.0
    %1360 = vmatprep.subr.mxu0 0.0
    %1361 = vmatpush1.msra.mxu0 0.0
    %1362 = vmatprep.subr.mxu0 0.0
    %1363 = vmatpush1.msra.mxu0 0.0
    %1364 = vmatprep.subr.mxu0 0.0
    %1365 = vmatpush1.msra.mxu0 0.0
    %1366 = vmatprep.subr.mxu0 0.0
    %1367 = vmatpush1.msra.mxu0 0.0
    %1368 = vmatprep.subr.mxu0 0.0
    %1369 = vmatpush1.msra.mxu0 0.0
    %1370 = vmatprep.subr.mxu0 0.0
    %1371 = vmatpush1.msra.mxu0 0.0
    %1372 = vmatprep.subr.mxu0 0.0
    %1373 = vmatpush1.msra.mxu0 0.0
    %1374 = vmatprep.subr.mxu0 0.0
    %1375 = vmatpush1.msra.mxu0 0.0
    %1376 = vmatprep.subr.mxu0 0.0
    %1377 = vmatpush1.msra.mxu0 0.0
    %1378 = vmatprep.subr.mxu0 0.0
    %1379 = vmatpush1.msra.mxu0 0.0
    %1380 = vmatprep.subr.mxu0 0.0
    %1381 = vmatpush1.msra.mxu0 0.0
    %1382 = vmatprep.subr.mxu0 0.0
    %1383 = vmatpush1.msra.mxu0 0.0
    %1384 = vmatprep.subr.mxu0 0.0
    %1385 = vmatpush1.msra.mxu0 0.0
    %1386 = vmatprep.subr.mxu0 0.0
    %1387 = vmatpush1.msra.mxu0 0.0
    %1388 = vmatprep.subr.mxu0 0.0
    %1389 = vmatpush1.msra.mxu0 0.0
    %1390 = vmatprep.subr.mxu0 0.0
    %1391 = vmatpush1.msra.mxu0 0.0
    %1392 = vmatprep.subr.mxu0 0.0
    %1393 = vmatpush1.msra.mxu0 0.0
    %1394 = vmatprep.subr.mxu0 0.0
    %1395 = vmatpush1.msra.mxu0 0.0
    %1396 = vmatprep.subr.mxu0 0.0
    %1397 = vmatpush1.msra.mxu0 0.0
    %1398 = vmatprep.subr.mxu0 0.0
    %1399 = vmatpush1.msra.mxu0 0.0
    %1400 = vmatprep.subr.mxu0 0.0
    %1401 = vmatpush1.msra.mxu0 0.0
    %1402 = vmatprep.subr.mxu0 0.0
    %1403 = vmatpush1.msra.mxu0 0.0
    %1404 = vmatprep.mubr.f32.mxu0 0.0
    %1405 = vmatmul.mubr.f32.gmra.mrb[0].mxu0 %v1338
    %v1406 = vpop.f32.mrb[0].mxu0
    %v1407 = vadd.f32 0.0, %v1406
    %v1408 = vpop.f32.mrb[0].mxu0
    %1409 = vdwg.mxu0
    %1410 = vrot.lane.b32.xlu0 %v160, 40
    %v1411 = vpop.permute.xlu0 %1410
    %v1414 = vsel %vm168, %v1333, 0
    %1416 = vmatprep.subr.mxu0 0.0
    %1417 = vmatpush1.msra.mxu0 %v1411
    %1418 = vmatprep.subr.mxu0 0.0
    %1419 = vmatpush1.msra.mxu0 0.0
    %1420 = vmatprep.subr.mxu0 0.0
    %1421 = vmatpush1.msra.mxu0 0.0
    %1422 = vmatprep.subr.mxu0 0.0
    %1423 = vmatpush1.msra.mxu0 0.0
    %1424 = vmatprep.subr.mxu0 0.0
    %1425 = vmatpush1.msra.mxu0 0.0
    %1426 = vmatprep.subr.mxu0 0.0
    %1427 = vmatpush1.msra.mxu0 0.0
    %1428 = vmatprep.subr.mxu0 0.0
    %1429 = vmatpush1.msra.mxu0 0.0
    %1430 = vmatprep.subr.mxu0 0.0
    %1431 = vmatpush1.msra.mxu0 0.0
    %1432 = vmatprep.subr.mxu0 0.0
    %1433 = vmatpush1.msra.mxu0 0.0
    %1434 = vmatprep.subr.mxu0 0.0
    %1435 = vmatpush1.msra.mxu0 0.0
    %1436 = vmatprep.subr.mxu0 0.0
    %1437 = vmatpush1.msra.mxu0 0.0
    %1438 = vmatprep.subr.mxu0 0.0
    %1439 = vmatpush1.msra.mxu0 0.0
    %1440 = vmatprep.subr.mxu0 0.0
    %1441 = vmatpush1.msra.mxu0 0.0
    %1442 = vmatprep.subr.mxu0 0.0
    %1443 = vmatpush1.msra.mxu0 0.0
    %1444 = vmatprep.subr.mxu0 0.0
    %1445 = vmatpush1.msra.mxu0 0.0
    %1446 = vmatprep.subr.mxu0 0.0
    %1447 = vmatpush1.msra.mxu0 0.0
    %1448 = vmatprep.subr.mxu0 0.0
    %1449 = vmatpush1.msra.mxu0 0.0
    %1450 = vmatprep.subr.mxu0 0.0
    %1451 = vmatpush1.msra.mxu0 0.0
    %1452 = vmatprep.subr.mxu0 0.0
    %1453 = vmatpush1.msra.mxu0 0.0
    %1454 = vmatprep.subr.mxu0 0.0
    %1455 = vmatpush1.msra.mxu0 0.0
    %1456 = vmatprep.subr.mxu0 0.0
    %1457 = vmatpush1.msra.mxu0 0.0
    %1458 = vmatprep.subr.mxu0 0.0
    %1459 = vmatpush1.msra.mxu0 0.0
    %1460 = vmatprep.subr.mxu0 0.0
    %1461 = vmatpush1.msra.mxu0 0.0
    %1462 = vmatprep.subr.mxu0 0.0
    %1463 = vmatpush1.msra.mxu0 0.0
    %1464 = vmatprep.subr.mxu0 0.0
    %1465 = vmatpush1.msra.mxu0 0.0
    %1466 = vmatprep.subr.mxu0 0.0
    %1467 = vmatpush1.msra.mxu0 0.0
    %1468 = vmatprep.subr.mxu0 0.0
    %1469 = vmatpush1.msra.mxu0 0.0
    %1470 = vmatprep.subr.mxu0 0.0
    %1471 = vmatpush1.msra.mxu0 0.0
    %1472 = vmatprep.subr.mxu0 0.0
    %1473 = vmatpush1.msra.mxu0 0.0
    %1474 = vmatprep.subr.mxu0 0.0
    %1475 = vmatpush1.msra.mxu0 0.0
    %1476 = vmatprep.subr.mxu0 0.0
    %1477 = vmatpush1.msra.mxu0 0.0
    %1478 = vmatprep.subr.mxu0 0.0
    %1479 = vmatpush1.msra.mxu0 0.0
    %1480 = vmatprep.mubr.f32.mxu0 0.0
    %1481 = vmatmul.mubr.f32.gmra.mrb[0].mxu0 %v1414
    %v1482 = vpop.f32.mrb[0].mxu0
    %v1483 = vadd.f32 0.0, %v1482
    %v1484 = vpop.f32.mrb[0].mxu0
    %1485 = vdwg.mxu0
    %1488 = vrot.lane.b32.xlu0 %v747, 8
    %v1489 = vpop.permute.xlu0 %1488
    %1490 = vrot.lane.b32.xlu0 %v823, 8
    %v1491 = vpop.permute.xlu0 %1490
    %1496 = vrot.lane.b32.xlu0 %v1077, 16
    %v1497 = vpop.permute.xlu0 %1496
    %1498 = vrot.lane.b32.xlu0 %v1153, 16
    %v1499 = vpop.permute.xlu0 %1498
    %1504 = vrot.lane.b32.xlu0 %v1407, 24
    %v1505 = vpop.permute.xlu0 %1504
    %1506 = vrot.lane.b32.xlu0 %v1483, 24
    %v1507 = vpop.permute.xlu0 %1506
    %v1510 = vsel %vm168, %v417, %v1489
    %v1511 = vsel %vm168, %v493, %v1491
    %vm1512 = vcmask 130048
    %v1513 = vsel %vm1512, %v1510, %v1497
    %v1514 = vsel %vm1512, %v1511, %v1499
    %vm1515 = vcmask 195584
    %v1516 = vsel %vm1515, %v1513, %v1505
    %v1517 = vsel %vm1515, %v1514, %v1507
    %v1519 = vlaneseq
    %v1520 = vshrl.u32 %v1519, 7
    %v1521 = vsub.s32 0, %v1520
    %v1522 = vrot.slane %v74, %v1521
    %v1525 = vsel %vm81, %v1516, 0
    %v1528 = vsel %vm81, %v1517, 0
    %1530 = vmatprep.subr.mxu0 0.0
    %1531 = vmatpush1.msra.mxu0 %v70
    %1532 = vmatprep.subr.mxu0 0.0
    %1533 = vmatpush1.msra.mxu0 %v71
    %1534 = vmatprep.subr.mxu0 0.0
    %1535 = vmatpush1.msra.mxu0 %v72
    %1536 = vmatprep.subr.mxu0 0.0
    %1537 = vmatpush1.msra.mxu0 %v73
    %1538 = vmatprep.subr.mxu0 0.0
    %1539 = vmatpush1.msra.mxu0 0.0
    %1540 = vmatprep.subr.mxu0 0.0
    %1541 = vmatpush1.msra.mxu0 0.0
    %1542 = vmatprep.subr.mxu0 0.0
    %1543 = vmatpush1.msra.mxu0 0.0
    %1544 = vmatprep.subr.mxu0 0.0
    %1545 = vmatpush1.msra.mxu0 0.0
    %1546 = vmatprep.subr.mxu0 0.0
    %1547 = vmatpush1.msra.mxu0 0.0
    %1548 = vmatprep.subr.mxu0 0.0
    %1549 = vmatpush1.msra.mxu0 0.0
    %1550 = vmatprep.subr.mxu0 0.0
    %1551 = vmatpush1.msra.mxu0 0.0
    %1552 = vmatprep.subr.mxu0 0.0
    %1553 = vmatpush1.msra.mxu0 0.0
    %1554 = vmatprep.subr.mxu0 0.0
    %1555 = vmatpush1.msra.mxu0 0.0
    %1556 = vmatprep.subr.mxu0 0.0
    %1557 = vmatpush1.msra.mxu0 0.0
    %1558 = vmatprep.subr.mxu0 0.0
    %1559 = vmatpush1.msra.mxu0 0.0
    %1560 = vmatprep.subr.mxu0 0.0
    %1561 = vmatpush1.msra.mxu0 0.0
    %1562 = vmatprep.subr.mxu0 0.0
    %1563 = vmatpush1.msra.mxu0 0.0
    %1564 = vmatprep.subr.mxu0 0.0
    %1565 = vmatpush1.msra.mxu0 0.0
    %1566 = vmatprep.subr.mxu0 0.0
    %1567 = vmatpush1.msra.mxu0 0.0
    %1568 = vmatprep.subr.mxu0 0.0
    %1569 = vmatpush1.msra.mxu0 0.0
    %1570 = vmatprep.subr.mxu0 0.0
    %1571 = vmatpush1.msra.mxu0 0.0
    %1572 = vmatprep.subr.mxu0 0.0
    %1573 = vmatpush1.msra.mxu0 0.0
    %1574 = vmatprep.subr.mxu0 0.0
    %1575 = vmatpush1.msra.mxu0 0.0
    %1576 = vmatprep.subr.mxu0 0.0
    %1577 = vmatpush1.msra.mxu0 0.0
    %1578 = vmatprep.subr.mxu0 0.0
    %1579 = vmatpush1.msra.mxu0 0.0
    %1580 = vmatprep.subr.mxu0 0.0
    %1581 = vmatpush1.msra.mxu0 0.0
    %1582 = vmatprep.subr.mxu0 0.0
    %1583 = vmatpush1.msra.mxu0 0.0
    %1584 = vmatprep.subr.mxu0 0.0
    %1585 = vmatpush1.msra.mxu0 0.0
    %1586 = vmatprep.subr.mxu0 0.0
    %1587 = vmatpush1.msra.mxu0 0.0
    %1588 = vmatprep.subr.mxu0 0.0
    %1589 = vmatpush1.msra.mxu0 0.0
    %1590 = vmatprep.subr.mxu0 0.0
    %1591 = vmatpush1.msra.mxu0 0.0
    %1592 = vmatprep.subr.mxu0 0.0
    %1593 = vmatpush1.msra.mxu0 0.0
    %1594 = vmatprep.mubr.f32.mxu0 0.0
    %1595 = vmatmul.mubr.f32.gmra.mrb[0].mxu0 %v1525
    %v1596 = vpop.f32.mrb[0].mxu0
    %v1597 = vadd.f32 %v1522, %v1596
    %v1598 = vpop.f32.mrb[0].mxu0
    %1599 = vmatprep.mubr.f32.mxu0 0.0
    %1600 = vmatmul.mubr.f32.gmra.mrb[0].mxu0 %v1528
    %v1601 = vpop.f32.mrb[0].mxu0
    %v1602 = vadd.f32 %v1522, %v1601
    %v1603 = vpop.f32.mrb[0].mxu0
    %1604 = vdwg.mxu0
    %v1605 = vadd.f32 %v63, %v1597
    %v1606 = vadd.f32 %v64, %v1602
    %v1607 = vld [vmem:[%s9] sm:$0x1]
    %v1608 = vld [vmem:[%s10] sm:$0x1]
    %v1609 = vsel %vm81, %v1605, 0.0
    %1610 = vadd.xlane.f32.xlu0 %v1609
    %v1611 = vpop.xlane.xlu0 %1610
    %v1612 = vsel %vm81, %v1606, 0.0
    %1613 = vadd.xlane.f32.xlu0 %v1612
    %v1614 = vpop.xlane.xlu0 %1613
    %v1615 = vrcp.pop 32.0
    %v1616 = vmul.f32 %v1611, %v1615
    %v1617 = vmul.f32 %v1614, %v1615
    %v1618 = vsub.f32 %v1605, %v1616
    %v1619 = vsub.f32 %v1606, %v1617
    %v1620 = vmul.f32 %v1618, %v1618
    %v1621 = vmul.f32 %v1619, %v1619
    %v1622 = vsel %vm81, %v1620, 0.0
    %1623 = vadd.xlane.f32.xlu0 %v1622
    %v1624 = vpop.xlane.xlu0 %1623
    %v1625 = vsel %vm81, %v1621, 0.0
    %1626 = vadd.xlane.f32.xlu0 %v1625
    %v1627 = vpop.xlane.xlu0 %1626
    %v1628 = vmul.f32 %v1624, %v1615
    %v1629 = vmul.f32 %v1627, %v1615
    %v1630 = vadd.f32 %v1628, 1e-05
    %v1631 = vadd.f32 %v1629, 1e-05
    %v1632 = vrsqrt.pop %v1630
    %v1633 = vrsqrt.pop %v1631
    %v1634 = vmul.f32 %v1618, %v1632
    %v1635 = vmul.f32 %v1619, %v1633
    %v1637 = vlaneseq
    %v1638 = vshrl.u32 %v1637, 7
    %v1639 = vsub.s32 0, %v1638
    %v1640 = vrot.slane %v1607, %v1639
    %v1642 = vmul.f32 %v1634, %v1640
    %v1643 = vmul.f32 %v1635, %v1640
    %v1645 = vlaneseq
    %v1646 = vshrl.u32 %v1645, 7
    %v1647 = vsub.s32 0, %v1646
    %v1648 = vrot.slane %v1608, %v1647
    %v1650 = vadd.f32 %v1642, %v1648
    %v1651 = vadd.f32 %v1643, %v1648
    %v1652 = vld [vmem:[%s5] sm:$0xff]
    %v1653 = vld [vmem:[%s5 + $0x8] sm:$0xff]
    %v1654 = vld [vmem:[%s5 + $0x10] sm:$0xff]
    %v1655 = vld [vmem:[%s5 + $0x18] sm:$0xff]
    %v1656 = vld [vmem:[%s6] sm:$0x1]
    %v1658 = vlaneseq
    %v1659 = vshrl.u32 %v1658, 7
    %v1660 = vsub.s32 0, %v1659
    %v1661 = vrot.slane %v1656, %v1660
    %v1664 = vsel %vm81, %v1650, 0
    %v1667 = vsel %vm81, %v1651, 0
    %1669 = vmatprep.subr.mxu0 0.0
    %1670 = vmatpush1.msra.mxu0 %v1652
    %1671 = vmatprep.subr.mxu0 0.0
    %1672 = vmatpush1.msra.mxu0 %v1653
    %1673 = vmatprep.subr.mxu0 0.0
    %1674 = vmatpush1.msra.mxu0 %v1654
    %1675 = vmatprep.subr.mxu0 0.0
    %1676 = vmatpush1.msra.mxu0 %v1655
    %1677 = vmatprep.subr.mxu0 0.0
    %1678 = vmatpush1.msra.mxu0 0.0
    %1679 = vmatprep.subr.mxu0 0.0
    %1680 = vmatpush1.msra.mxu0 0.0
    %1681 = vmatprep.subr.mxu0 0.0
    %1682 = vmatpush1.msra.mxu0 0.0
    %1683 = vmatprep.subr.mxu0 0.0
    %1684 = vmatpush1.msra.mxu0 0.0
    %1685 = vmatprep.subr.mxu0 0.0
    %1686 = vmatpush1.msra.mxu0 0.0
    %1687 = vmatprep.subr.mxu0 0.0
    %1688 = vmatpush1.msra.mxu0 0.0
    %1689 = vmatprep.subr.mxu0 0.0
    %1690 = vmatpush1.msra.mxu0 0.0
    %1691 = vmatprep.subr.mxu0 0.0
    %1692 = vmatpush1.msra.mxu0 0.0
    %1693 = vmatprep.subr.mxu0 0.0
    %1694 = vmatpush1.msra.mxu0 0.0
    %1695 = vmatprep.subr.mxu0 0.0
    %1696 = vmatpush1.msra.mxu0 0.0
    %1697 = vmatprep.subr.mxu0 0.0
    %1698 = vmatpush1.msra.mxu0 0.0
    %1699 = vmatprep.subr.mxu0 0.0
    %1700 = vmatpush1.msra.mxu0 0.0
    %1701 = vmatprep.subr.mxu0 0.0
    %1702 = vmatpush1.msra.mxu0 0.0
    %1703 = vmatprep.subr.mxu0 0.0
    %1704 = vmatpush1.msra.mxu0 0.0
    %1705 = vmatprep.subr.mxu0 0.0
    %1706 = vmatpush1.msra.mxu0 0.0
    %1707 = vmatprep.subr.mxu0 0.0
    %1708 = vmatpush1.msra.mxu0 0.0
    %1709 = vmatprep.subr.mxu0 0.0
    %1710 = vmatpush1.msra.mxu0 0.0
    %1711 = vmatprep.subr.mxu0 0.0
    %1712 = vmatpush1.msra.mxu0 0.0
    %1713 = vmatprep.subr.mxu0 0.0
    %1714 = vmatpush1.msra.mxu0 0.0
    %1715 = vmatprep.subr.mxu0 0.0
    %1716 = vmatpush1.msra.mxu0 0.0
    %1717 = vmatprep.subr.mxu0 0.0
    %1718 = vmatpush1.msra.mxu0 0.0
    %1719 = vmatprep.subr.mxu0 0.0
    %1720 = vmatpush1.msra.mxu0 0.0
    %1721 = vmatprep.subr.mxu0 0.0
    %1722 = vmatpush1.msra.mxu0 0.0
    %1723 = vmatprep.subr.mxu0 0.0
    %1724 = vmatpush1.msra.mxu0 0.0
    %1725 = vmatprep.subr.mxu0 0.0
    %1726 = vmatpush1.msra.mxu0 0.0
    %1727 = vmatprep.subr.mxu0 0.0
    %1728 = vmatpush1.msra.mxu0 0.0
    %1729 = vmatprep.subr.mxu0 0.0
    %1730 = vmatpush1.msra.mxu0 0.0
    %1731 = vmatprep.subr.mxu0 0.0
    %1732 = vmatpush1.msra.mxu0 0.0
    %1733 = vmatprep.mubr.f32.mxu0 0.0
    %1734 = vmatmul.mubr.f32.gmra.mrb[0].mxu0 %v1664
    %v1735 = vpop.f32.mrb[0].mxu0
    %v1736 = vadd.f32 %v1661, %v1735
    %v1737 = vpop.f32.mrb[0].mxu0
    %1738 = vmatprep.mubr.f32.mxu0 0.0
    %1739 = vmatmul.mubr.f32.gmra.mrb[0].mxu0 %v1667
    %v1740 = vpop.f32.mrb[0].mxu0
    %v1741 = vadd.f32 %v1661, %v1740
    %v1742 = vpop.f32.mrb[0].mxu0
    %1743 = vdwg.mxu0
    %v1744 = vmax.f32 %v1736, 0.0
    %v1745 = vmax.f32 %v1741, 0.0
    %v1746 = vld [vmem:[%s7] sm:$0xff]
    %v1747 = vld [vmem:[%s7 + $0x8] sm:$0xff]
    %v1748 = vld [vmem:[%s7 + $0x10] sm:$0xff]
    %v1749 = vld [vmem:[%s7 + $0x18] sm:$0xff]
    %v1750 = vld [vmem:[%s7 + $0x20] sm:$0xff]
    %v1751 = vld [vmem:[%s7 + $0x28] sm:$0xff]
    %v1752 = vld [vmem:[%s7 + $0x30] sm:$0xff]
    %v1753 = vld [vmem:[%s7 + $0x38] sm:$0xff]
    %v1754 = vld [vmem:[%s8] sm:$0x1]
    %v1756 = vlaneseq
    %v1757 = vshrl.u32 %v1756, 7
    %v1758 = vsub.s32 0, %v1757
    %v1759 = vrot.slane %v1754, %v1758
    %vm1761 = vcmask 523264
    %v1763 = vsel %vm1761, %v1744, 0
    %v1766 = vsel %vm1761, %v1745, 0
    %1768 = vmatprep.subr.mxu0 0.0
    %1769 = vmatpush1.msra.mxu0 %v1746
    %1770 = vmatprep.subr.mxu0 0.0
    %1771 = vmatpush1.msra.mxu0 %v1747
    %1772 = vmatprep.subr.mxu0 0.0
    %1773 = vmatpush1.msra.mxu0 %v1748
    %1774 = vmatprep.subr.mxu0 0.0
    %1775 = vmatpush1.msra.mxu0 %v1749
    %1776 = vmatprep.subr.mxu0 0.0
    %1777 = vmatpush1.msra.mxu0 %v1750
    %1778 = vmatprep.subr.mxu0 0.0
    %1779 = vmatpush1.msra.mxu0 %v1751
    %1780 = vmatprep.subr.mxu0 0.0
    %1781 = vmatpush1.msra.mxu0 %v1752
    %1782 = vmatprep.subr.mxu0 0.0
    %1783 = vmatpush1.msra.mxu0 %v1753
    %1784 = vmatprep.subr.mxu0 0.0
    %1785 = vmatpush1.msra.mxu0 0.0
    %1786 = vmatprep.subr.mxu0 0.0
    %1787 = vmatpush1.msra.mxu0 0.0
    %1788 = vmatprep.subr.mxu0 0.0
    %1789 = vmatpush1.msra.mxu0 0.0
    %1790 = vmatprep.subr.mxu0 0.0
    %1791 = vmatpush1.msra.mxu0 0.0
    %1792 = vmatprep.subr.mxu0 0.0
    %1793 = vmatpush1.msra.mxu0 0.0
    %1794 = vmatprep.subr.mxu0 0.0
    %1795 = vmatpush1.msra.mxu0 0.0
    %1796 = vmatprep.subr.mxu0 0.0
    %1797 = vmatpush1.msra.mxu0 0.0
    %1798 = vmatprep.subr.mxu0 0.0
    %1799 = vmatpush1.msra.mxu0 0.0
    %1800 = vmatprep.subr.mxu0 0.0
    %1801 = vmatpush1.msra.mxu0 0.0
    %1802 = vmatprep.subr.mxu0 0.0
    %1803 = vmatpush1.msra.mxu0 0.0
    %1804 = vmatprep.subr.mxu0 0.0
    %1805 = vmatpush1.msra.mxu0 0.0
    %1806 = vmatprep.subr.mxu0 0.0
    %1807 = vmatpush1.msra.mxu0 0.0
    %1808 = vmatprep.subr.mxu0 0.0
    %1809 = vmatpush1.msra.mxu0 0.0
    %1810 = vmatprep.subr.mxu0 0.0
    %1811 = vmatpush1.msra.mxu0 0.0
    %1812 = vmatprep.subr.mxu0 0.0
    %1813 = vmatpush1.msra.mxu0 0.0
    %1814 = vmatprep.subr.mxu0 0.0
    %1815 = vmatpush1.msra.mxu0 0.0
    %1816 = vmatprep.subr.mxu0 0.0
    %1817 = vmatpush1.msra.mxu0 0.0
    %1818 = vmatprep.subr.mxu0 0.0
    %1819 = vmatpush1.msra.mxu0 0.0
    %1820 = vmatprep.subr.mxu0 0.0
    %1821 = vmatpush1.msra.mxu0 0.0
    %1822 = vmatprep.subr.mxu0 0.0
    %1823 = vmatpush1.msra.mxu0 0.0
    %1824 = vmatprep.subr.mxu0 0.0
    %1825 = vmatpush1.msra.mxu0 0.0
    %1826 = vmatprep.subr.mxu0 0.0
    %1827 = vmatpush1.msra.mxu0 0.0
    %1828 = vmatprep.subr.mxu0 0.0
    %1829 = vmatpush1.msra.mxu0 0.0
    %1830 = vmatprep.subr.mxu0 0.0
    %1831 = vmatpush1.msra.mxu0 0.0
    %1832 = vmatprep.mubr.f32.mxu0 0.0
    %1833 = vmatmul.mubr.f32.gmra.mrb[0].mxu0 %v1763
    %v1834 = vpop.f32.mrb[0].mxu0
    %v1835 = vadd.f32 %v1759, %v1834
    %v1836 = vpop.f32.mrb[0].mxu0
    %1837 = vmatprep.mubr.f32.mxu0 0.0
    %1838 = vmatmul.mubr.f32.gmra.mrb[0].mxu0 %v1766
    %v1839 = vpop.f32.mrb[0].mxu0
    %v1840 = vadd.f32 %v1759, %v1839
    %v1841 = vpop.f32.mrb[0].mxu0
    %1842 = vdwg.mxu0
    %v1843 = vadd.f32 %v1650, %v1835
    %v1844 = vadd.f32 %v1651, %v1840
    %v1845 = vld [vmem:[%s11] sm:$0x1]
    %v1846 = vld [vmem:[%s12] sm:$0x1]
    %v1847 = vsel %vm81, %v1843, 0.0
    %1848 = vadd.xlane.f32.xlu0 %v1847
    %v1849 = vpop.xlane.xlu0 %1848
    %v1850 = vsel %vm81, %v1844, 0.0
    %1851 = vadd.xlane.f32.xlu0 %v1850
    %v1852 = vpop.xlane.xlu0 %1851
    %v1853 = vmul.f32 %v1849, %v1615
    %v1854 = vmul.f32 %v1852, %v1615
    %v1855 = vsub.f32 %v1843, %v1853
    %v1856 = vsub.f32 %v1844, %v1854
    %v1857 = vmul.f32 %v1855, %v1855
    %v1858 = vmul.f32 %v1856, %v1856
    %v1859 = vsel %vm81, %v1857, 0.0
    %1860 = vadd.xlane.f32.xlu0 %v1859
    %v1861 = vpop.xlane.xlu0 %1860
    %v1862 = vsel %vm81, %v1858, 0.0
    %1863 = vadd.xlane.f32.xlu0 %v1862
    %v1864 = vpop.xlane.xlu0 %1863
    %v1865 = vmul.f32 %v1861, %v1615
    %v1866 = vmul.f32 %v1864, %v1615
    %v1867 = vadd.f32 %v1865, 1e-05
    %v1868 = vadd.f32 %v1866, 1e-05
    %v1869 = vrsqrt.pop %v1867
    %v1870 = vrsqrt.pop %v1868
    %v1871 = vmul.f32 %v1855, %v1869
    %v1872 = vmul.f32 %v1856, %v1870
    %v1874 = vlaneseq
    %v1875 = vshrl.u32 %v1874, 7
    %v1876 = vsub.s32 0, %v1875
    %v1877 = vrot.slane %v1845, %v1876
    %v1879 = vmul.f32 %v1871, %v1877
    %v1880 = vmul.f32 %v1872, %v1877
    %v1882 = vlaneseq
    %v1883 = vshrl.u32 %v1882, 7
    %v1884 = vsub.s32 0, %v1883
    %v1885 = vrot.slane %v1846, %v1884
    %v1887 = vadd.f32 %v1879, %v1885
    %v1888 = vadd.f32 %v1880, %v1885
    %s1889 = scalar_lea.vmem %s1, 32
    %v1890 = vld [vmem:[%s1889] sm:$0xff]
    %v1891 = vld [vmem:[%s1889 + $0x8] sm:$0xff]
    %v1892 = vld [vmem:[%s1889 + $0x10] sm:$0xff]
    %v1893 = vld [vmem:[%s1889 + $0x18] sm:$0xff]
    %s1894 = scalar_lea.vmem %s2, 1
    %v1895 = vld [vmem:[%s1894] sm:$0x1]
    %s1896 = scalar_lea.vmem %s3, 32
    %v1897 = vld [vmem:[%s1896] sm:$0xff]
    %v1898 = vld [vmem:[%s1896 + $0x8] sm:$0xff]
    %v1899 = vld [vmem:[%s1896 + $0x10] sm:$0xff]
    %v1900 = vld [vmem:[%s1896 + $0x18] sm:$0xff]
    %s1901 = scalar_lea.vmem %s4, 1
    %v1902 = vld [vmem:[%s1901] sm:$0x1]
    %v1904 = vlaneseq
    %v1905 = vshrl.u32 %v1904, 7
    %v1906 = vsub.s32 0, %v1905
    %v1907 = vrot.slane %v1895, %v1906
    %v1910 = vsel %vm81, %v1887, 0
    %v1913 = vsel %vm81, %v1888, 0
    %1915 = vmatprep.subr.mxu0 0.0
    %1916 = vmatpush1.msra.mxu0 %v1890
    %1917 = vmatprep.subr.mxu0 0.0
    %1918 = vmatpush1.msra.mxu0 %v1891
    %1919 = vmatprep.subr.mxu0 0.0
    %1920 = vmatpush1.msra.mxu0 %v1892
    %1921 = vmatprep.subr.mxu0 0.0
    %1922 = vmatpush1.msra.mxu0 %v1893
    %1923 = vmatprep.subr.mxu0 0.0
    %1924 = vmatpush1.msra.mxu0 0.0
    %1925 = vmatprep.subr.mxu0 0.0
    %1926 = vmatpush1.msra.mxu0 0.0
    %1927 = vmatprep.subr.mxu0 0.0
    %1928 = vmatpush1.msra.mxu0 0.0
    %1929 = vmatprep.subr.mxu0 0.0
    %1930 = vmatpush1.msra.mxu0 0.0
    %1931 = vmatprep.subr.mxu0 0.0
    %1932 = vmatpush1.msra.mxu0 0.0
    %1933 = vmatprep.subr.mxu0 0.0
    %1934 = vmatpush1.msra.mxu0 0.0
    %1935 = vmatprep.subr.mxu0 0.0
    %1936 = vmatpush1.msra.mxu0 0.0
    %1937 = vmatprep.subr.mxu0 0.0
    %1938 = vmatpush1.msra.mxu0 0.0
    %1939 = vmatprep.subr.mxu0 0.0
    %1940 = vmatpush1.msra.mxu0 0.0
    %1941 = vmatprep.subr.mxu0 0.0
    %1942 = vmatpush1.msra.mxu0 0.0
    %1943 = vmatprep.subr.mxu0 0.0
    %1944 = vmatpush1.msra.mxu0 0.0
    %1945 = vmatprep.subr.mxu0 0.0
    %1946 = vmatpush1.msra.mxu0 0.0
    %1947 = vmatprep.subr.mxu0 0.0
    %1948 = vmatpush1.msra.mxu0 0.0
    %1949 = vmatprep.subr.mxu0 0.0
    %1950 = vmatpush1.msra.mxu0 0.0
    %1951 = vmatprep.subr.mxu0 0.0
    %1952 = vmatpush1.msra.mxu0 0.0
    %1953 = vmatprep.subr.mxu0 0.0
    %1954 = vmatpush1.msra.mxu0 0.0
    %1955 = vmatprep.subr.mxu0 0.0
    %1956 = vmatpush1.msra.mxu0 0.0
    %1957 = vmatprep.subr.mxu0 0.0
    %1958 = vmatpush1.msra.mxu0 0.0
    %1959 = vmatprep.subr.mxu0 0.0
    %1960 = vmatpush1.msra.mxu0 0.0
    %1961 = vmatprep.subr.mxu0 0.0
    %1962 = vmatpush1.msra.mxu0 0.0
    %1963 = vmatprep.subr.mxu0 0.0
    %1964 = vmatpush1.msra.mxu0 0.0
    %1965 = vmatprep.subr.mxu0 0.0
    %1966 = vmatpush1.msra.mxu0 0.0
    %1967 = vmatprep.subr.mxu0 0.0
    %1968 = vmatpush1.msra.mxu0 0.0
    %1969 = vmatprep.subr.mxu0 0.0
    %1970 = vmatpush1.msra.mxu0 0.0
    %1971 = vmatprep.subr.mxu0 0.0
    %1972 = vmatpush1.msra.mxu0 0.0
    %1973 = vmatprep.subr.mxu0 0.0
    %1974 = vmatpush1.msra.mxu0 0.0
    %1975 = vmatprep.subr.mxu0 0.0
    %1976 = vmatpush1.msra.mxu0 0.0
    %1977 = vmatprep.subr.mxu0 0.0
    %1978 = vmatpush1.msra.mxu0 0.0
    %1979 = vmatprep.mubr.f32.mxu0 0.0
    %1980 = vmatmul.mubr.f32.gmra.mrb[0].mxu0 %v1910
    %v1981 = vpop.f32.mrb[0].mxu0
    %v1982 = vadd.f32 %v1907, %v1981
    %v1983 = vpop.f32.mrb[0].mxu0
    %1984 = vmatprep.mubr.f32.mxu0 0.0
    %1985 = vmatmul.mubr.f32.gmra.mrb[0].mxu0 %v1913
    %v1986 = vpop.f32.mrb[0].mxu0
    %v1987 = vadd.f32 %v1907, %v1986
    %v1988 = vpop.f32.mrb[0].mxu0
    %1989 = vdwg.mxu0
    %v1990 = vmul.f32 %v1982, 0.35355338
    %v1991 = vmul.f32 %v1987, 0.35355338
    %1993 = vrot.lane.b32.xlu0 %v1982, 96
    %v1994 = vpop.permute.xlu0 %1993
    %v1996 = vsel %vm168, %v1990, 0
    %v1998 = vsel %vm168, %v1994, 0
    %2000 = vmatprep.subr.mxu0 0.0
    %2001 = vmatpush1.xpose.msra.mxu0 %v1998
    %2002 = vmatprep.subr.mxu0 0.0
    %2003 = vmatpush1.xpose.msra.mxu0 0.0
    %2004 = vmatprep.subr.mxu0 0.0
    %2005 = vmatpush1.xpose.msra.mxu0 0.0
    %2006 = vmatprep.subr.mxu0 0.0
    %2007 = vmatpush1.xpose.msra.mxu0 0.0
    %2008 = vmatprep.subr.mxu0 0.0
    %2009 = vmatpush1.xpose.msra.mxu0 0.0
    %2010 = vmatprep.subr.mxu0 0.0
    %2011 = vmatpush1.xpose.msra.mxu0 0.0
    %2012 = vmatprep.subr.mxu0 0.0
    %2013 = vmatpush1.xpose.msra.mxu0 0.0
    %2014 = vmatprep.subr.mxu0 0.0
    %2015 = vmatpush1.xpose.msra.mxu0 0.0
    %2016 = vmatprep.subr.mxu0 0.0
    %2017 = vmatpush1.xpose.msra.mxu0 0.0
    %2018 = vmatprep.subr.mxu0 0.0
    %2019 = vmatpush1.xpose.msra.mxu0 0.0
    %2020 = vmatprep.subr.mxu0 0.0
    %2021 = vmatpush1.xpose.msra.mxu0 0.0
    %2022 = vmatprep.subr.mxu0 0.0
    %2023 = vmatpush1.xpose.msra.mxu0 0.0
    %2024 = vmatprep.subr.mxu0 0.0
    %2025 = vmatpush1.xpose.msra.mxu0 0.0
    %2026 = vmatprep.subr.mxu0 0.0
    %2027 = vmatpush1.xpose.msra.mxu0 0.0
    %2028 = vmatprep.subr.mxu0 0.0
    %2029 = vmatpush1.xpose.msra.mxu0 0.0
    %2030 = vmatprep.subr.mxu0 0.0
    %2031 = vmatpush1.xpose.msra.mxu0 0.0
    %2032 = vmatprep.subr.mxu0 0.0
    %2033 = vmatpush1.xpose.msra.mxu0 0.0
    %2034 = vmatprep.subr.mxu0 0.0
    %2035 = vmatpush1.xpose.msra.mxu0 0.0
    %2036 = vmatprep.subr.mxu0 0.0
    %2037 = vmatpush1.xpose.msra.mxu0 0.0
    %2038 = vmatprep.subr.mxu0 0.0
    %2039 = vmatpush1.xpose.msra.mxu0 0.0
    %2040 = vmatprep.subr.mxu0 0.0
    %2041 = vmatpush1.xpose.msra.mxu0 0.0
    %2042 = vmatprep.subr.mxu0 0.0
    %2043 = vmatpush1.xpose.msra.mxu0 0.0
    %2044 = vmatprep.subr.mxu0 0.0
    %2045 = vmatpush1.xpose.msra.mxu0 0.0
    %2046 = vmatprep.subr.mxu0 0.0
    %2047 = vmatpush1.xpose.msra.mxu0 0.0
    %2048 = vmatprep.subr.mxu0 0.0
    %2049 = vmatpush1.xpose.msra.mxu0 0.0
    %2050 = vmatprep.subr.mxu0 0.0
    %2051 = vmatpush1.xpose.msra.mxu0 0.0
    %2052 = vmatprep.subr.mxu0 0.0
    %2053 = vmatpush1.xpose.msra.mxu0 0.0
    %2054 = vmatprep.subr.mxu0 0.0
    %2055 = vmatpush1.xpose.msra.mxu0 0.0
    %2056 = vmatprep.subr.mxu0 0.0
    %2057 = vmatpush1.xpose.msra.mxu0 0.0
    %2058 = vmatprep.subr.mxu0 0.0
    %2059 = vmatpush1.xpose.msra.mxu0 0.0
    %2060 = vmatprep.subr.mxu0 0.0
    %2061 = vmatpush1.xpose.msra.mxu0 0.0
    %2062 = vmatprep.subr.mxu0 0.0
    %2063 = vmatpush1.xpose.msra.mxu0 0.0
    %2064 = vmatprep.mubr.f32.mxu0 0.0
    %2065 = vmatmul.mubr.f32.gmra.mrb[0].mxu0 %v1996
    %v2066 = vpop.f32.mrb[0].mxu0
    %v2067 = vadd.f32 0.0, %v2066
    %v2068 = vpop.f32.mrb[0].mxu0
    %2069 = vdwg.mxu0
    %2071 = vrot.lane.b32.xlu0 %v1987, 96
    %v2072 = vpop.permute.xlu0 %2071
    %v2074 = vsel %vm168, %v1991, 0
    %v2076 = vsel %vm168, %v2072, 0
    %2078 = vmatprep.subr.mxu0 0.0
    %2079 = vmatpush1.xpose.msra.mxu0 %v2076
    %2080 = vmatprep.subr.mxu0 0.0
    %2081 = vmatpush1.xpose.msra.mxu0 0.0
    %2082 = vmatprep.subr.mxu0 0.0
    %2083 = vmatpush1.xpose.msra.mxu0 0.0
    %2084 = vmatprep.subr.mxu0 0.0
    %2085 = vmatpush1.xpose.msra.mxu0 0.0
    %2086 = vmatprep.subr.mxu0 0.0
    %2087 = vmatpush1.xpose.msra.mxu0 0.0
    %2088 = vmatprep.subr.mxu0 0.0
    %2089 = vmatpush1.xpose.msra.mxu0 0.0
    %2090 = vmatprep.subr.mxu0 0.0
    %2091 = vmatpush1.xpose.msra.mxu0 0.0
    %2092 = vmatprep.subr.mxu0 0.0
    %2093 = vmatpush1.xpose.msra.mxu0 0.0
    %2094 = vmatprep.subr.mxu0 0.0
    %2095 = vmatpush1.xpose.msra.mxu0 0.0
    %2096 = vmatprep.subr.mxu0 0.0
    %2097 = vmatpush1.xpose.msra.mxu0 0.0
    %2098 = vmatprep.subr.mxu0 0.0
    %2099 = vmatpush1.xpose.msra.mxu0 0.0
    %2100 = vmatprep.subr.mxu0 0.0
    %2101 = vmatpush1.xpose.msra.mxu0 0.0
    %2102 = vmatprep.subr.mxu0 0.0
    %2103 = vmatpush1.xpose.msra.mxu0 0.0
    %2104 = vmatprep.subr.mxu0 0.0
    %2105 = vmatpush1.xpose.msra.mxu0 0.0
    %2106 = vmatprep.subr.mxu0 0.0
    %2107 = vmatpush1.xpose.msra.mxu0 0.0
    %2108 = vmatprep.subr.mxu0 0.0
    %2109 = vmatpush1.xpose.msra.mxu0 0.0
    %2110 = vmatprep.subr.mxu0 0.0
    %2111 = vmatpush1.xpose.msra.mxu0 0.0
    %2112 = vmatprep.subr.mxu0 0.0
    %2113 = vmatpush1.xpose.msra.mxu0 0.0
    %2114 = vmatprep.subr.mxu0 0.0
    %2115 = vmatpush1.xpose.msra.mxu0 0.0
    %2116 = vmatprep.subr.mxu0 0.0
    %2117 = vmatpush1.xpose.msra.mxu0 0.0
    %2118 = vmatprep.subr.mxu0 0.0
    %2119 = vmatpush1.xpose.msra.mxu0 0.0
    %2120 = vmatprep.subr.mxu0 0.0
    %2121 = vmatpush1.xpose.msra.mxu0 0.0
    %2122 = vmatprep.subr.mxu0 0.0
    %2123 = vmatpush1.xpose.msra.mxu0 0.0
    %2124 = vmatprep.subr.mxu0 0.0
    %2125 = vmatpush1.xpose.msra.mxu0 0.0
    %2126 = vmatprep.subr.mxu0 0.0
    %2127 = vmatpush1.xpose.msra.mxu0 0.0
    %2128 = vmatprep.subr.mxu0 0.0
    %2129 = vmatpush1.xpose.msra.mxu0 0.0
    %2130 = vmatprep.subr.mxu0 0.0
    %2131 = vmatpush1.xpose.msra.mxu0 0.0
    %2132 = vmatprep.subr.mxu0 0.0
    %2133 = vmatpush1.xpose.msra.mxu0 0.0
    %2134 = vmatprep.subr.mxu0 0.0
    %2135 = vmatpush1.xpose.msra.mxu0 0.0
    %2136 = vmatprep.subr.mxu0 0.0
    %2137 = vmatpush1.xpose.msra.mxu0 0.0
    %2138 = vmatprep.subr.mxu0 0.0
    %2139 = vmatpush1.xpose.msra.mxu0 0.0
    %2140 = vmatprep.subr.mxu0 0.0
    %2141 = vmatpush1.xpose.msra.mxu0 0.0
    %2142 = vmatprep.mubr.f32.mxu0 0.0
    %2143 = vmatmul.mubr.f32.gmra.mrb[0].mxu0 %v2074
    %v2144 = vpop.f32.mrb[0].mxu0
    %v2145 = vadd.f32 0.0, %v2144
    %v2146 = vpop.f32.mrb[0].mxu0
    %2147 = vdwg.mxu0
    %v2148 = vsel %vm168, %v2067, -inf
    %2149 = vmax.xlane.f32.xlu0 %v2148
    %v2150 = vpop.xlane.xlu0 %2149
    %v2151 = vsel %vm168, %v2145, -inf
    %2152 = vmax.xlane.f32.xlu0 %v2151
    %v2153 = vpop.xlane.xlu0 %2152
    %v2154 = vsub.f32 %v2067, %v2150
    %v2155 = vsub.f32 %v2145, %v2153
    %v2156 = vmul.f32 %v2154, 1.442695
    %v2157 = vpow.pop %v2156
    %v2158 = vmul.f32 %v2155, 1.442695
    %v2159 = vpow.pop %v2158
    %v2160 = vsel %vm168, %v2157, 0.0
    %2161 = vadd.xlane.f32.xlu0 %v2160
    %v2162 = vpop.xlane.xlu0 %2161
    %v2163 = vsel %vm168, %v2159, 0.0
    %2164 = vadd.xlane.f32.xlu0 %v2163
    %v2165 = vpop.xlane.xlu0 %2164
    %v2166 = vrcp.pop %v2162
    %v2167 = vrcp.pop %v2165
    %v2168 = vmul.f32 %v2157, %v2166
    %v2169 = vmul.f32 %v2159, %v2167
    %2170 = vrot.lane.b32.xlu0 %v1982, 64
    %v2171 = vpop.permute.xlu0 %2170
    %v2174 = vsel %vm168, %v2168, 0
    %2176 = vmatprep.subr.mxu0 0.0
    %2177 = vmatpush1.msra.mxu0 %v2171
    %2178 = vmatprep.subr.mxu0 0.0
    %2179 = vmatpush1.msra.mxu0 0.0
    %2180 = vmatprep.subr.mxu0 0.0
    %2181 = vmatpush1.msra.mxu0 0.0
    %2182 = vmatprep.subr.mxu0 0.0
    %2183 = vmatpush1.msra.mxu0 0.0
    %2184 = vmatprep.subr.mxu0 0.0
    %2185 = vmatpush1.msra.mxu0 0.0
    %2186 = vmatprep.subr.mxu0 0.0
    %2187 = vmatpush1.msra.mxu0 0.0
    %2188 = vmatprep.subr.mxu0 0.0
    %2189 = vmatpush1.msra.mxu0 0.0
    %2190 = vmatprep.subr.mxu0 0.0
    %2191 = vmatpush1.msra.mxu0 0.0
    %2192 = vmatprep.subr.mxu0 0.0
    %2193 = vmatpush1.msra.mxu0 0.0
    %2194 = vmatprep.subr.mxu0 0.0
    %2195 = vmatpush1.msra.mxu0 0.0
    %2196 = vmatprep.subr.mxu0 0.0
    %2197 = vmatpush1.msra.mxu0 0.0
    %2198 = vmatprep.subr.mxu0 0.0
    %2199 = vmatpush1.msra.mxu0 0.0
    %2200 = vmatprep.subr.mxu0 0.0
    %2201 = vmatpush1.msra.mxu0 0.0
    %2202 = vmatprep.subr.mxu0 0.0
    %2203 = vmatpush1.msra.mxu0 0.0
    %2204 = vmatprep.subr.mxu0 0.0
    %2205 = vmatpush1.msra.mxu0 0.0
    %2206 = vmatprep.subr.mxu0 0.0
    %2207 = vmatpush1.msra.mxu0 0.0
    %2208 = vmatprep.subr.mxu0 0.0
    %2209 = vmatpush1.msra.mxu0 0.0
    %2210 = vmatprep.subr.mxu0 0.0
    %2211 = vmatpush1.msra.mxu0 0.0
    %2212 = vmatprep.subr.mxu0 0.0
    %2213 = vmatpush1.msra.mxu0 0.0
    %2214 = vmatprep.subr.mxu0 0.0
    %2215 = vmatpush1.msra.mxu0 0.0
    %2216 = vmatprep.subr.mxu0 0.0
    %2217 = vmatpush1.msra.mxu0 0.0
    %2218 = vmatprep.subr.mxu0 0.0
    %2219 = vmatpush1.msra.mxu0 0.0
    %2220 = vmatprep.subr.mxu0 0.0
    %2221 = vmatpush1.msra.mxu0 0.0
    %2222 = vmatprep.subr.mxu0 0.0
    %2223 = vmatpush1.msra.mxu0 0.0
    %2224 = vmatprep.subr.mxu0 0.0
    %2225 = vmatpush1.msra.mxu0 0.0
    %2226 = vmatprep.subr.mxu0 0.0
    %2227 = vmatpush1.msra.mxu0 0.0
    %2228 = vmatprep.subr.mxu0 0.0
    %2229 = vmatpush1.msra.mxu0 0.0
    %2230 = vmatprep.subr.mxu0 0.0
    %2231 = vmatpush1.msra.mxu0 0.0
    %2232 = vmatprep.subr.mxu0 0.0
    %2233 = vmatpush1.msra.mxu0 0.0
    %2234 = vmatprep.subr.mxu0 0.0
    %2235 = vmatpush1.msra.mxu0 0.0
    %2236 = vmatprep.subr.mxu0 0.0
    %2237 = vmatpush1.msra.mxu0 0.0
    %2238 = vmatprep.subr.mxu0 0.0
    %2239 = vmatpush1.msra.mxu0 0.0
    %2240 = vmatprep.mubr.f32.mxu0 0.0
    %2241 = vmatmul.mubr.f32.gmra.mrb[0].mxu0 %v2174
    %v2242 = vpop.f32.mrb[0].mxu0
    %v2243 = vadd.f32 0.0, %v2242
    %v2244 = vpop.f32.mrb[0].mxu0
    %2245 = vdwg.mxu0
    %2246 = vrot.lane.b32.xlu0 %v1987, 64
    %v2247 = vpop.permute.xlu0 %2246
    %v2250 = vsel %vm168, %v2169, 0
    %2252 = vmatprep.subr.mxu0 0.0
    %2253 = vmatpush1.msra.mxu0 %v2247
    %2254 = vmatprep.subr.mxu0 0.0
    %2255 = vmatpush1.msra.mxu0 0.0
    %2256 = vmatprep.subr.mxu0 0.0
    %2257 = vmatpush1.msra.mxu0 0.0
    %2258 = vmatprep.subr.mxu0 0.0
    %2259 = vmatpush1.msra.mxu0 0.0
    %2260 = vmatprep.subr.mxu0 0.0
    %2261 = vmatpush1.msra.mxu0 0.0
    %2262 = vmatprep.subr.mxu0 0.0
    %2263 = vmatpush1.msra.mxu0 0.0
    %2264 = vmatprep.subr.mxu0 0.0
    %2265 = vmatpush1.msra.mxu0 0.0
    %2266 = vmatprep.subr.mxu0 0.0
    %2267 = vmatpush1.msra.mxu0 0.0
    %2268 = vmatprep.subr.mxu0 0.0
    %2269 = vmatpush1.msra.mxu0 0.0
    %2270 = vmatprep.subr.mxu0 0.0
    %2271 = vmatpush1.msra.mxu0 0.0
    %2272 = vmatprep.subr.mxu0 0.0
    %2273 = vmatpush1.msra.mxu0 0.0
    %2274 = vmatprep.subr.mxu0 0.0
    %2275 = vmatpush1.msra.mxu0 0.0
    %2276 = vmatprep.subr.mxu0 0.0
    %2277 = vmatpush1.msra.mxu0 0.0
    %2278 = vmatprep.subr.mxu0 0.0
    %2279 = vmatpush1.msra.mxu0 0.0
    %2280 = vmatprep.subr.mxu0 0.0
    %2281 = vmatpush1.msra.mxu0 0.0
    %2282 = vmatprep.subr.mxu0 0.0
    %2283 = vmatpush1.msra.mxu0 0.0
    %2284 = vmatprep.subr.mxu0 0.0
    %2285 = vmatpush1.msra.mxu0 0.0
    %2286 = vmatprep.subr.mxu0 0.0
    %2287 = vmatpush1.msra.mxu0 0.0
    %2288 = vmatprep.subr.mxu0 0.0
    %2289 = vmatpush1.msra.mxu0 0.0
    %2290 = vmatprep.subr.mxu0 0.0
    %2291 = vmatpush1.msra.mxu0 0.0
    %2292 = vmatprep.subr.mxu0 0.0
    %2293 = vmatpush1.msra.mxu0 0.0
    %2294 = vmatprep.subr.mxu0 0.0
    %2295 = vmatpush1.msra.mxu0 0.0
    %2296 = vmatprep.subr.mxu0 0.0
    %2297 = vmatpush1.msra.mxu0 0.0
    %2298 = vmatprep.subr.mxu0 0.0
    %2299 = vmatpush1.msra.mxu0 0.0
    %2300 = vmatprep.subr.mxu0 0.0
    %2301 = vmatpush1.msra.mxu0 0.0
    %2302 = vmatprep.subr.mxu0 0.0
    %2303 = vmatpush1.msra.mxu0 0.0
    %2304 = vmatprep.subr.mxu0 0.0
    %2305 = vmatpush1.msra.mxu0 0.0
    %2306 = vmatprep.subr.mxu0 0.0
    %2307 = vmatpush1.msra.mxu0 0.0
    %2308 = vmatprep.subr.mxu0 0.0
    %2309 = vmatpush1.msra.mxu0 0.0
    %2310 = vmatprep.subr.mxu0 0.0
    %2311 = vmatpush1.msra.mxu0 0.0
    %2312 = vmatprep.subr.mxu0 0.0
    %2313 = vmatpush1.msra.mxu0 0.0
    %2314 = vmatprep.subr.mxu0 0.0
    %2315 = vmatpush1.msra.mxu0 0.0
    %2316 = vmatprep.mubr.f32.mxu0 0.0
    %2317 = vmatmul.mubr.f32.gmra.mrb[0].mxu0 %v2250
    %v2318 = vpop.f32.mrb[0].mxu0
    %v2319 = vadd.f32 0.0, %v2318
    %v2320 = vpop.f32.mrb[0].mxu0
    %2321 = vdwg.mxu0
    %2322 = vrot.lane.b32.xlu0 %v1990, 120
    %v2323 = vpop.permute.xlu0 %2322
    %2324 = vrot.lane.b32.xlu0 %v1982, 88
    %v2325 = vpop.permute.xlu0 %2324
    %v2326 = vsel %vm168, %v2323, 0
    %v2328 = vsel %vm168, %v2325, 0
    %2330 = vmatprep.subr.mxu0 0.0
    %2331 = vmatpush1.xpose.msra.mxu0 %v2328
    %2332 = vmatprep.subr.mxu0 0.0
    %2333 = vmatpush1.xpose.msra.mxu0 0.0
    %2334 = vmatprep.subr.mxu0 0.0
    %2335 = vmatpush1.xpose.msra.mxu0 0.0
    %2336 = vmatprep.subr.mxu0 0.0
    %2337 = vmatpush1.xpose.msra.mxu0 0.0
    %2338 = vmatprep.subr.mxu0 0.0
    %2339 = vmatpush1.xpose.msra.mxu0 0.0
    %2340 = vmatprep.subr.mxu0 0.0
    %2341 = vmatpush1.xpose.msra.mxu0 0.0
    %2342 = vmatprep.subr.mxu0 0.0
    %2343 = vmatpush1.xpose.msra.mxu0 0.0
    %2344 = vmatprep.subr.mxu0 0.0
    %2345 = vmatpush1.xpose.msra.mxu0 0.0
    %2346 = vmatprep.subr.mxu0 0.0
    %2347 = vmatpush1.xpose.msra.mxu0 0.0
    %2348 = vmatprep.subr.mxu0 0.0
    %2349 = vmatpush1.xpose.msra.mxu0 0.0
    %2350 = vmatprep.subr.mxu0 0.0
    %2351 = vmatpush1.xpose.msra.mxu0 0.0
    %2352 = vmatprep.subr.mxu0 0.0
    %2353 = vmatpush1.xpose.msra.mxu0 0.0
    %2354 = vmatprep.subr.mxu0 0.0
    %2355 = vmatpush1.xpose.msra.mxu0 0.0
    %2356 = vmatprep.subr.mxu0 0.0
    %2357 = vmatpush1.xpose.msra.mxu0 0.0
    %2358 = vmatprep.subr.mxu0 0.0
    %2359 = vmatpush1.xpose.msra.mxu0 0.0
    %2360 = vmatprep.subr.mxu0 0.0
    %2361 = vmatpush1.xpose.msra.mxu0 0.0
    %2362 = vmatprep.subr.mxu0 0.0
    %2363 = vmatpush1.xpose.msra.mxu0 0.0
    %2364 = vmatprep.subr.mxu0 0.0
    %2365 = vmatpush1.xpose.msra.mxu0 0.0
    %2366 = vmatprep.subr.mxu0 0.0
    %2367 = vmatpush1.xpose.msra.mxu0 0.0
    %2368 = vmatprep.subr.mxu0 0.0
    %2369 = vmatpush1.xpose.msra.mxu0 0.0
    %2370 = vmatprep.subr.mxu0 0.0
    %2371 = vmatpush1.xpose.msra.mxu0 0.0
    %2372 = vmatprep.subr.mxu0 0.0
    %2373 = vmatpush1.xpose.msra.mxu0 0.0
    %2374 = vmatprep.subr.mxu0 0.0
    %2375 = vmatpush1.xpose.msra.mxu0 0.0
    %2376 = vmatprep.subr.mxu0 0.0
    %2377 = vmatpush1.xpose.msra.mxu0 0.0
    %2378 = vmatprep.subr.mxu0 0.0
    %2379 = vmatpush1.xpose.msra.mxu0 0.0
    %2380 = vmatprep.subr.mxu0 0.0
    %2381 = vmatpush1.xpose.msra.mxu0 0.0
    %2382 = vmatprep.subr.mxu0 0.0
    %2383 = vmatpush1.xpose.msra.mxu0 0.0
    %2384 = vmatprep.subr.mxu0 0.0
    %2385 = vmatpush1.xpose.msra.mxu0 0.0
    %2386 = vmatprep.subr.mxu0 0.0
    %2387 = vmatpush1.xpose.msra.mxu0 0.0
    %2388 = vmatprep.subr.mxu0 0.0
    %2389 = vmatpush1.xpose.msra.mxu0 0.0
    %2390 = vmatprep.subr.mxu0 0.0
    %2391 = vmatpush1.xpose.msra.mxu0 0.0
    %2392 = vmatprep.subr.mxu0 0.0
    %2393 = vmatpush1.xpose.msra.mxu0 0.0
    %2394 = vmatprep.mubr.f32.mxu0 0.0
    %2395 = vmatmul.mubr.f32.gmra.mrb[0].mxu0 %v2326
    %v2396 = vpop.f32.mrb[0].mxu0
    %v2397 = vadd.f32 0.0, %v2396
    %v2398 = vpop.f32.mrb[0].mxu0
    %2399 = vdwg.mxu0
    %2400 = vrot.lane.b32.xlu0 %v1991, 120
    %v2401 = vpop.permute.xlu0 %2400
    %2402 = vrot.lane.b32.xlu0 %v1987, 88
    %v2403 = vpop.permute.xlu0 %2402
    %v2404 = vsel %vm168, %v2401, 0
    %v2406 = vsel %vm168, %v2403, 0
    %2408 = vmatprep.subr.mxu0 0.0
    %2409 = vmatpush1.xpose.msra.mxu0 %v2406
    %2410 = vmatprep.subr.mxu0 0.0
    %2411 = vmatpush1.xpose.msra.mxu0 0.0
    %2412 = vmatprep.subr.mxu0 0.0
    %2413 = vmatpush1.xpose.msra.mxu0 0.0
    %2414 = vmatprep.subr.mxu0 0.0
    %2415 = vmatpush1.xpose.msra.mxu0 0.0
    %2416 = vmatprep.subr.mxu0 0.0
    %2417 = vmatpush1.xpose.msra.mxu0 0.0
    %2418 = vmatprep.subr.mxu0 0.0
    %2419 = vmatpush1.xpose.msra.mxu0 0.0
    %2420 = vmatprep.subr.mxu0 0.0
    %2421 = vmatpush1.xpose.msra.mxu0 0.0
    %2422 = vmatprep.subr.mxu0 0.0
    %2423 = vmatpush1.xpose.msra.mxu0 0.0
    %2424 = vmatprep.subr.mxu0 0.0
    %2425 = vmatpush1.xpose.msra.mxu0 0.0
    %2426 = vmatprep.subr.mxu0 0.0
    %2427 = vmatpush1.xpose.msra.mxu0 0.0
    %2428 = vmatprep.subr.mxu0 0.0
    %2429 = vmatpush1.xpose.msra.mxu0 0.0
    %2430 = vmatprep.subr.mxu0 0.0
    %2431 = vmatpush1.xpose.msra.mxu0 0.0
    %2432 = vmatprep.subr.mxu0 0.0
    %2433 = vmatpush1.xpose.msra.mxu0 0.0
    %2434 = vmatprep.subr.mxu0 0.0
    %2435 = vmatpush1.xpose.msra.mxu0 0.0
    %2436 = vmatprep.subr.mxu0 0.0
    %2437 = vmatpush1.xpose.msra.mxu0 0.0
    %2438 = vmatprep.subr.mxu0 0.0
    %2439 = vmatpush1.xpose.msra.mxu0 0.0
    %2440 = vmatprep.subr.mxu0 0.0
    %2441 = vmatpush1.xpose.msra.mxu0 0.0
    %2442 = vmatprep.subr.mxu0 0.0
    %2443 = vmatpush1.xpose.msra.mxu0 0.0
    %2444 = vmatprep.subr.mxu0 0.0
    %2445 = vmatpush1.xpose.msra.mxu0 0.0
    %2446 = vmatprep.subr.mxu0 0.0
    %2447 = vmatpush1.xpose.msra.mxu0 0.0
    %2448 = vmatprep.subr.mxu0 0.0
    %2449 = vmatpush1.xpose.msra.mxu0 0.0
    %2450 = vmatprep.subr.mxu0 0.0
    %2451 = vmatpush1.xpose.msra.mxu0 0.0
    %2452 = vmatprep.subr.mxu0 0.0
    %2453 = vmatpush1.xpose.msra.mxu0 0.0
    %2454 = vmatprep.subr.mxu0 0.0
    %2455 = vmatpush1.xpose.msra.mxu0 0.0
    %2456 = vmatprep.subr.mxu0 0.0
    %2457 = vmatpush1.xpose.msra.mxu0 0.0
    %2458 = vmatprep.subr.mxu0 0.0
    %2459 = vmatpush1.xpose.msra.mxu0 0.0
    %2460 = vmatprep.subr.mxu0 0.0
    %2461 = vmatpush1.xpose.msra.mxu0 0.0
    %2462 = vmatprep.subr.mxu0 0.0
    %2463 = vmatpush1.xpose.msra.mxu0 0.0
    %2464 = vmatprep.subr.mxu0 0.0
    %2465 = vmatpush1.xpose.msra.mxu0 0.0
    %2466 = vmatprep.subr.mxu0 0.0
    %2467 = vmatpush1.xpose.msra.mxu0 0.0
    %2468 = vmatprep.subr.mxu0 0.0
    %2469 = vmatpush1.xpose.msra.mxu0 0.0
    %2470 = vmatprep.subr.mxu0 0.0
    %2471 = vmatpush1.xpose.msra.mxu0 0.0
    %2472 = vmatprep.mubr.f32.mxu0 0.0
    %2473 = vmatmul.mubr.f32.gmra.mrb[0].mxu0 %v2404
    %v2474 = vpop.f32.mrb[0].mxu0
    %v2475 = vadd.f32 0.0, %v2474
    %v2476 = vpop.f32.mrb[0].mxu0
    %2477 = vdwg.mxu0
    %v2478 = vsel %vm168, %v2397, -inf
    %2479 = vmax.xlane.f32.xlu0 %v2478
    %v2480 = vpop.xlane.xlu0 %2479
    %v2481 = vsel %vm168, %v2475, -inf
    %2482 = vmax.xlane.f32.xlu0 %v2481
    %v2483 = vpop.xlane.xlu0 %2482
    %v2484 = vsub.f32 %v2397, %v2480
    %v2485 = vsub.f32 %v2475, %v2483
    %v2486 = vmul.f32 %v2484, 1.442695
    %v2487 = vpow.pop %v2486
    %v2488 = vmul.f32 %v2485, 1.442695
    %v2489 = vpow.pop %v2488
    %v2490 = vsel %vm168, %v2487, 0.0
    %2491 = vadd.xlane.f32.xlu0 %v2490
    %v2492 = vpop.xlane.xlu0 %2491
    %v2493 = vsel %vm168, %v2489, 0.0
    %2494 = vadd.xlane.f32.xlu0 %v2493
    %v2495 = vpop.xlane.xlu0 %2494
    %v2496 = vrcp.pop %v2492
    %v2497 = vrcp.pop %v2495
    %v2498 = vmul.f32 %v2487, %v2496
    %v2499 = vmul.f32 %v2489, %v2497
    %2500 = vrot.lane.b32.xlu0 %v1982, 56
    %v2501 = vpop.permute.xlu0 %2500
    %v2504 = vsel %vm168, %v2498, 0
    %2506 = vmatprep.subr.mxu0 0.0
    %2507 = vmatpush1.msra.mxu0 %v2501
    %2508 = vmatprep.subr.mxu0 0.0
    %2509 = vmatpush1.msra.mxu0 0.0
    %2510 = vmatprep.subr.mxu0 0.0
    %2511 = vmatpush1.msra.mxu0 0.0
    %2512 = vmatprep.subr.mxu0 0.0
    %2513 = vmatpush1.msra.mxu0 0.0
    %2514 = vmatprep.subr.mxu0 0.0
    %2515 = vmatpush1.msra.mxu0 0.0
    %2516 = vmatprep.subr.mxu0 0.0
    %2517 = vmatpush1.msra.mxu0 0.0
    %2518 = vmatprep.subr.mxu0 0.0
    %2519 = vmatpush1.msra.mxu0 0.0
    %2520 = vmatprep.subr.mxu0 0.0
    %2521 = vmatpush1.msra.mxu0 0.0
    %2522 = vmatprep.subr.mxu0 0.0
    %2523 = vmatpush1.msra.mxu0 0.0
    %2524 = vmatprep.subr.mxu0 0.0
    %2525 = vmatpush1.msra.mxu0 0.0
    %2526 = vmatprep.subr.mxu0 0.0
    %2527 = vmatpush1.msra.mxu0 0.0
    %2528 = vmatprep.subr.mxu0 0.0
    %2529 = vmatpush1.msra.mxu0 0.0
    %2530 = vmatprep.subr.mxu0 0.0
    %2531 = vmatpush1.msra.mxu0 0.0
    %2532 = vmatprep.subr.mxu0 0.0
    %2533 = vmatpush1.msra.mxu0 0.0
    %2534 = vmatprep.subr.mxu0 0.0
    %2535 = vmatpush1.msra.mxu0 0.0
    %2536 = vmatprep.subr.mxu0 0.0
    %2537 = vmatpush1.msra.mxu0 0.0
    %2538 = vmatprep.subr.mxu0 0.0
    %2539 = vmatpush1.msra.mxu0 0.0
    %2540 = vmatprep.subr.mxu0 0.0
    %2541 = vmatpush1.msra.mxu0 0.0
    %2542 = vmatprep.subr.mxu0 0.0
    %2543 = vmatpush1.msra.mxu0 0.0
    %2544 = vmatprep.subr.mxu0 0.0
    %2545 = vmatpush1.msra.mxu0 0.0
    %2546 = vmatprep.subr.mxu0 0.0
    %2547 = vmatpush1.msra.mxu0 0.0
    %2548 = vmatprep.subr.mxu0 0.0
    %2549 = vmatpush1.msra.mxu0 0.0
    %2550 = vmatprep.subr.mxu0 0.0
    %2551 = vmatpush1.msra.mxu0 0.0
    %2552 = vmatprep.subr.mxu0 0.0
    %2553 = vmatpush1.msra.mxu0 0.0
    %2554 = vmatprep.subr.mxu0 0.0
    %2555 = vmatpush1.msra.mxu0 0.0
    %2556 = vmatprep.subr.mxu0 0.0
    %2557 = vmatpush1.msra.mxu0 0.0
    %2558 = vmatprep.subr.mxu0 0.0
    %2559 = vmatpush1.msra.mxu0 0.0
    %2560 = vmatprep.subr.mxu0 0.0
    %2561 = vmatpush1.msra.mxu0 0.0
    %2562 = vmatprep.subr.mxu0 0.0
    %2563 = vmatpush1.msra.mxu0 0.0
    %2564 = vmatprep.subr.mxu0 0.0
    %2565 = vmatpush1.msra.mxu0 0.0
    %2566 = vmatprep.subr.mxu0 0.0
    %2567 = vmatpush1.msra.mxu0 0.0
    %2568 = vmatprep.subr.mxu0 0.0
    %2569 = vmatpush1.msra.mxu0 0.0
    %2570 = vmatprep.mubr.f32.mxu0 0.0
    %2571 = vmatmul.mubr.f32.gmra.mrb[0].mxu0 %v2504
    %v2572 = vpop.f32.mrb[0].mxu0
    %v2573 = vadd.f32 0.0, %v2572
    %v2574 = vpop.f32.mrb[0].mxu0
    %2575 = vdwg.mxu0
    %2576 = vrot.lane.b32.xlu0 %v1987, 56
    %v2577 = vpop.permute.xlu0 %2576
    %v2580 = vsel %vm168, %v2499, 0
    %2582 = vmatprep.subr.mxu0 0.0
    %2583 = vmatpush1.msra.mxu0 %v2577
    %2584 = vmatprep.subr.mxu0 0.0
    %2585 = vmatpush1.msra.mxu0 0.0
    %2586 = vmatprep.subr.mxu0 0.0
    %2587 = vmatpush1.msra.mxu0 0.0
    %2588 = vmatprep.subr.mxu0 0.0
    %2589 = vmatpush1.msra.mxu0 0.0
    %2590 = vmatprep.subr.mxu0 0.0
    %2591 = vmatpush1.msra.mxu0 0.0
    %2592 = vmatprep.subr.mxu0 0.0
    %2593 = vmatpush1.msra.mxu0 0.0
    %2594 = vmatprep.subr.mxu0 0.0
    %2595 = vmatpush1.msra.mxu0 0.0
    %2596 = vmatprep.subr.mxu0 0.0
    %2597 = vmatpush1.msra.mxu0 0.0
    %2598 = vmatprep.subr.mxu0 0.0
    %2599 = vmatpush1.msra.mxu0 0.0
    %2600 = vmatprep.subr.mxu0 0.0
    %2601 = vmatpush1.msra.mxu0 0.0
    %2602 = vmatprep.subr.mxu0 0.0
    %2603 = vmatpush1.msra.mxu0 0.0
    %2604 = vmatprep.subr.mxu0 0.0
    %2605 = vmatpush1.msra.mxu0 0.0
    %2606 = vmatprep.subr.mxu0 0.0
    %2607 = vmatpush1.msra.mxu0 0.0
    %2608 = vmatprep.subr.mxu0 0.0
    %2609 = vmatpush1.msra.mxu0 0.0
    %2610 = vmatprep.subr.mxu0 0.0
    %2611 = vmatpush1.msra.mxu0 0.0
    %2612 = vmatprep.subr.mxu0 0.0
    %2613 = vmatpush1.msra.mxu0 0.0
    %2614 = vmatprep.subr.mxu0 0.0
    %2615 = vmatpush1.msra.mxu0 0.0
    %2616 = vmatprep.subr.mxu0 0.0
    %2617 = vmatpush1.msra.mxu0 0.0
    %2618 = vmatprep.subr.mxu0 0.0
    %2619 = vmatpush1.msra.mxu0 0.0
    %2620 = vmatprep.subr.mxu0 0.0
    %2621 = vmatpush1.msra.mxu0 0.0
    %2622 = vmatprep.subr.mxu0 0.0
    %2623 = vmatpush1.msra.mxu0 0.0
    %2624 = vmatprep.subr.mxu0 0.0
    %2625 = vmatpush1.msra.mxu0 0.0
    %2626 = vmatprep.subr.mxu0 0.0
    %2627 = vmatpush1.msra.mxu0 0.0
    %2628 = vmatprep.subr.mxu0 0.0
    %2629 = vmatpush1.msra.mxu0 0.0
    %2630 = vmatprep.subr.mxu0 0.0
    %2631 = vmatpush1.msra.mxu0 0.0
    %2632 = vmatprep.subr.mxu0 0.0
    %2633 = vmatpush1.msra.mxu0 0.0
    %2634 = vmatprep.subr.mxu0 0.0
    %2635 = vmatpush1.msra.mxu0 0.0
    %2636 = vmatprep.subr.mxu0 0.0
    %2637 = vmatpush1.msra.mxu0 0.0
    %2638 = vmatprep.subr.mxu0 0.0
    %2639 = vmatpush1.msra.mxu0 0.0
    %2640 = vmatprep.subr.mxu0 0.0
    %2641 = vmatpush1.msra.mxu0 0.0
    %2642 = vmatprep.subr.mxu0 0.0
    %2643 = vmatpush1.msra.mxu0 0.0
    %2644 = vmatprep.subr.mxu0 0.0
    %2645 = vmatpush1.msra.mxu0 0.0
    %2646 = vmatprep.mubr.f32.mxu0 0.0
    %2647 = vmatmul.mubr.f32.gmra.mrb[0].mxu0 %v2580
    %v2648 = vpop.f32.mrb[0].mxu0
    %v2649 = vadd.f32 0.0, %v2648
    %v2650 = vpop.f32.mrb[0].mxu0
    %2651 = vdwg.mxu0
    %2652 = vrot.lane.b32.xlu0 %v1990, 112
    %v2653 = vpop.permute.xlu0 %2652
    %2654 = vrot.lane.b32.xlu0 %v1982, 80
    %v2655 = vpop.permute.xlu0 %2654
    %v2656 = vsel %vm168, %v2653, 0
    %v2658 = vsel %vm168, %v2655, 0
    %2660 = vmatprep.subr.mxu0 0.0
    %2661 = vmatpush1.xpose.msra.mxu0 %v2658
    %2662 = vmatprep.subr.mxu0 0.0
    %2663 = vmatpush1.xpose.msra.mxu0 0.0
    %2664 = vmatprep.subr.mxu0 0.0
    %2665 = vmatpush1.xpose.msra.mxu0 0.0
    %2666 = vmatprep.subr.mxu0 0.0
    %2667 = vmatpush1.xpose.msra.mxu0 0.0
    %2668 = vmatprep.subr.mxu0 0.0
    %2669 = vmatpush1.xpose.msra.mxu0 0.0
    %2670 = vmatprep.subr.mxu0 0.0
    %2671 = vmatpush1.xpose.msra.mxu0 0.0
    %2672 = vmatprep.subr.mxu0 0.0
    %2673 = vmatpush1.xpose.msra.mxu0 0.0
    %2674 = vmatprep.subr.mxu0 0.0
    %2675 = vmatpush1.xpose.msra.mxu0 0.0
    %2676 = vmatprep.subr.mxu0 0.0
    %2677 = vmatpush1.xpose.msra.mxu0 0.0
    %2678 = vmatprep.subr.mxu0 0.0
    %2679 = vmatpush1.xpose.msra.mxu0 0.0
    %2680 = vmatprep.subr.mxu0 0.0
    %2681 = vmatpush1.xpose.msra.mxu0 0.0
    %2682 = vmatprep.subr.mxu0 0.0
    %2683 = vmatpush1.xpose.msra.mxu0 0.0
    %2684 = vmatprep.subr.mxu0 0.0
    %2685 = vmatpush1.xpose.msra.mxu0 0.0
    %2686 = vmatprep.subr.mxu0 0.0
    %2687 = vmatpush1.xpose.msra.mxu0 0.0
    %2688 = vmatprep.subr.mxu0 0.0
    %2689 = vmatpush1.xpose.msra.mxu0 0.0
    %2690 = vmatprep.subr.mxu0 0.0
    %2691 = vmatpush1.xpose.msra.mxu0 0.0
    %2692 = vmatprep.subr.mxu0 0.0
    %2693 = vmatpush1.xpose.msra.mxu0 0.0
    %2694 = vmatprep.subr.mxu0 0.0
    %2695 = vmatpush1.xpose.msra.mxu0 0.0
    %2696 = vmatprep.subr.mxu0 0.0
    %2697 = vmatpush1.xpose.msra.mxu0 0.0
    %2698 = vmatprep.subr.mxu0 0.0
    %2699 = vmatpush1.xpose.msra.mxu0 0.0
    %2700 = vmatprep.subr.mxu0 0.0
    %2701 = vmatpush1.xpose.msra.mxu0 0.0
    %2702 = vmatprep.subr.mxu0 0.0
    %2703 = vmatpush1.xpose.msra.mxu0 0.0
    %2704 = vmatprep.subr.mxu0 0.0
    %2705 = vmatpush1.xpose.msra.mxu0 0.0
    %2706 = vmatprep.subr.mxu0 0.0
    %2707 = vmatpush1.xpose.msra.mxu0 0.0
    %2708 = vmatprep.subr.mxu0 0.0
    %2709 = vmatpush1.xpose.msra.mxu0 0.0
    %2710 = vmatprep.subr.mxu0 0.0
    %2711 = vmatpush1.xpose.msra.mxu0 0.0
    %2712 = vmatprep.subr.mxu0 0.0
    %2713 = vmatpush1.xpose.msra.mxu0 0.0
    %2714 = vmatprep.subr.mxu0 0.0
    %2715 = vmatpush1.xpose.msra.mxu0 0.0
    %2716 = vmatprep.subr.mxu0 0.0
    %2717 = vmatpush1.xpose.msra.mxu0 0.0
    %2718 = vmatprep.subr.mxu0 0.0
    %2719 = vmatpush1.xpose.msra.mxu0 0.0
    %2720 = vmatprep.subr.mxu0 0.0
    %2721 = vmatpush1.xpose.msra.mxu0 0.0
    %2722 = vmatprep.subr.mxu0 0.0
    %2723 = vmatpush1.xpose.msra.mxu0 0.0
    %2724 = vmatprep.mubr.f32.mxu0 0.0
    %2725 = vmatmul.mubr.f32.gmra.mrb[0].mxu0 %v2656
    %v2726 = vpop.f32.mrb[0].mxu0
    %v2727 = vadd.f32 0.0, %v2726
    %v2728 = vpop.f32.mrb[0].mxu0
    %2729 = vdwg.mxu0
    %2730 = vrot.lane.b32.xlu0 %v1991, 112
    %v2731 = vpop.permute.xlu0 %2730
    %2732 = vrot.lane.b32.xlu0 %v1987, 80
    %v2733 = vpop.permute.xlu0 %2732
    %v2734 = vsel %vm168, %v2731, 0
    %v2736 = vsel %vm168, %v2733, 0
    %2738 = vmatprep.subr.mxu0 0.0
    %2739 = vmatpush1.xpose.msra.mxu0 %v2736
    %2740 = vmatprep.subr.mxu0 0.0
    %2741 = vmatpush1.xpose.msra.mxu0 0.0
    %2742 = vmatprep.subr.mxu0 0.0
    %2743 = vmatpush1.xpose.msra.mxu0 0.0
    %2744 = vmatprep.subr.mxu0 0.0
    %2745 = vmatpush1.xpose.msra.mxu0 0.0
    %2746 = vmatprep.subr.mxu0 0.0
    %2747 = vmatpush1.xpose.msra.mxu0 0.0
    %2748 = vmatprep.subr.mxu0 0.0
    %2749 = vmatpush1.xpose.msra.mxu0 0.0
    %2750 = vmatprep.subr.mxu0 0.0
    %2751 = vmatpush1.xpose.msra.mxu0 0.0
    %2752 = vmatprep.subr.mxu0 0.0
    %2753 = vmatpush1.xpose.msra.mxu0 0.0
    %2754 = vmatprep.subr.mxu0 0.0
    %2755 = vmatpush1.xpose.msra.mxu0 0.0
    %2756 = vmatprep.subr.mxu0 0.0
    %2757 = vmatpush1.xpose.msra.mxu0 0.0
    %2758 = vmatprep.subr.mxu0 0.0
    %2759 = vmatpush1.xpose.msra.mxu0 0.0
    %2760 = vmatprep.subr.mxu0 0.0
    %2761 = vmatpush1.xpose.msra.mxu0 0.0
    %2762 = vmatprep.subr.mxu0 0.0
    %2763 = vmatpush1.xpose.msra.mxu0 0.0
    %2764 = vmatprep.subr.mxu0 0.0
    %2765 = vmatpush1.xpose.msra.mxu0 0.0
    %2766 = vmatprep.subr.mxu0 0.0
    %2767 = vmatpush1.xpose.msra.mxu0 0.0
    %2768 = vmatprep.subr.mxu0 0.0
    %2769 = vmatpush1.xpose.msra.mxu0 0.0
    %2770 = vmatprep.subr.mxu0 0.0
    %2771 = vmatpush1.xpose.msra.mxu0 0.0
    %2772 = vmatprep.subr.mxu0 0.0
    %2773 = vmatpush1.xpose.msra.mxu0 0.0
    %2774 = vmatprep.subr.mxu0 0.0
    %2775 = vmatpush1.xpose.msra.mxu0 0.0
    %2776 = vmatprep.subr.mxu0 0.0
    %2777 = vmatpush1.xpose.msra.mxu0 0.0
    %2778 = vmatprep.subr.mxu0 0.0
    %2779 = vmatpush1.xpose.msra.mxu0 0.0
    %2780 = vmatprep.subr.mxu0 0.0
    %2781 = vmatpush1.xpose.msra.mxu0 0.0
    %2782 = vmatprep.subr.mxu0 0.0
    %2783 = vmatpush1.xpose.msra.mxu0 0.0
    %2784 = vmatprep.subr.mxu0 0.0
    %2785 = vmatpush1.xpose.msra.mxu0 0.0
    %2786 = vmatprep.subr.mxu0 0.0
    %2787 = vmatpush1.xpose.msra.mxu0 0.0
    %2788 = vmatprep.subr.mxu0 0.0
    %2789 = vmatpush1.xpose.msra.mxu0 0.0
    %2790 = vmatprep.subr.mxu0 0.0
    %2791 = vmatpush1.xpose.msra.mxu0 0.0
    %2792 = vmatprep.subr.mxu0 0.0
    %2793 = vmatpush1.xpose.msra.mxu0 0.0
    %2794 = vmatprep.subr.mxu0 0.0
    %2795 = vmatpush1.xpose.msra.mxu0 0.0
    %2796 = vmatprep.subr.mxu0 0.0
    %2797 = vmatpush1.xpose.msra.mxu0 0.0
    %2798 = vmatprep.subr.mxu0 0.0
    %2799 = vmatpush1.xpose.msra.mxu0 0.0
    %2800 = vmatprep.subr.mxu0 0.0
    %2801 = vmatpush1.xpose.msra.mxu0 0.0
    %2802 = vmatprep.mubr.f32.mxu0 0.0
    %2803 = vmatmul.mubr.f32.gmra.mrb[0].mxu0 %v2734
    %v2804 = vpop.f32.mrb[0].mxu0
    %v2805 = vadd.f32 0.0, %v2804
    %v2806 = vpop.f32.mrb[0].mxu0
    %2807 = vdwg.mxu0
    %v2808 = vsel %vm168, %v2727, -inf
    %2809 = vmax.xlane.f32.xlu0 %v2808
    %v2810 = vpop.xlane.xlu0 %2809
    %v2811 = vsel %vm168, %v2805, -inf
    %2812 = vmax.xlane.f32.xlu0 %v2811
    %v2813 = vpop.xlane.xlu0 %2812
    %v2814 = vsub.f32 %v2727, %v2810
    %v2815 = vsub.f32 %v2805, %v2813
    %v2816 = vmul.f32 %v2814, 1.442695
    %v2817 = vpow.pop %v2816
    %v2818 = vmul.f32 %v2815, 1.442695
    %v2819 = vpow.pop %v2818
    %v2820 = vsel %vm168, %v2817, 0.0
    %2821 = vadd.xlane.f32.xlu0 %v2820
    %v2822 = vpop.xlane.xlu0 %2821
    %v2823 = vsel %vm168, %v2819, 0.0
    %2824 = vadd.xlane.f32.xlu0 %v2823
    %v2825 = vpop.xlane.xlu0 %2824
    %v2826 = vrcp.pop %v2822
    %v2827 = vrcp.pop %v2825
    %v2828 = vmul.f32 %v2817, %v2826
    %v2829 = vmul.f32 %v2819, %v2827
    %2830 = vrot.lane.b32.xlu0 %v1982, 48
    %v2831 = vpop.permute.xlu0 %2830
    %v2834 = vsel %vm168, %v2828, 0
    %2836 = vmatprep.subr.mxu0 0.0
    %2837 = vmatpush1.msra.mxu0 %v2831
    %2838 = vmatprep.subr.mxu0 0.0
    %2839 = vmatpush1.msra.mxu0 0.0
    %2840 = vmatprep.subr.mxu0 0.0
    %2841 = vmatpush1.msra.mxu0 0.0
    %2842 = vmatprep.subr.mxu0 0.0
    %2843 = vmatpush1.msra.mxu0 0.0
    %2844 = vmatprep.subr.mxu0 0.0
    %2845 = vmatpush1.msra.mxu0 0.0
    %2846 = vmatprep.subr.mxu0 0.0
    %2847 = vmatpush1.msra.mxu0 0.0
    %2848 = vmatprep.subr.mxu0 0.0
    %2849 = vmatpush1.msra.mxu0 0.0
    %2850 = vmatprep.subr.mxu0 0.0
    %2851 = vmatpush1.msra.mxu0 0.0
    %2852 = vmatprep.subr.mxu0 0.0
    %2853 = vmatpush1.msra.mxu0 0.0
    %2854 = vmatprep.subr.mxu0 0.0
    %2855 = vmatpush1.msra.mxu0 0.0
    %2856 = vmatprep.subr.mxu0 0.0
    %2857 = vmatpush1.msra.mxu0 0.0
    %2858 = vmatprep.subr.mxu0 0.0
    %2859 = vmatpush1.msra.mxu0 0.0
    %2860 = vmatprep.subr.mxu0 0.0
    %2861 = vmatpush1.msra.mxu0 0.0
    %2862 = vmatprep.subr.mxu0 0.0
    %2863 = vmatpush1.msra.mxu0 0.0
    %2864 = vmatprep.subr.mxu0 0.0
    %2865 = vmatpush1.msra.mxu0 0.0
    %2866 = vmatprep.subr.mxu0 0.0
    %2867 = vmatpush1.msra.mxu0 0.0
    %2868 = vmatprep.subr.mxu0 0.0
    %2869 = vmatpush1.msra.mxu0 0.0
    %2870 = vmatprep.subr.mxu0 0.0
    %2871 = vmatpush1.msra.mxu0 0.0
    %2872 = vmatprep.subr.mxu0 0.0
    %2873 = vmatpush1.msra.mxu0 0.0
    %2874 = vmatprep.subr.mxu0 0.0
    %2875 = vmatpush1.msra.mxu0 0.0
    %2876 = vmatprep.subr.mxu0 0.0
    %2877 = vmatpush1.msra.mxu0 0.0
    %2878 = vmatprep.subr.mxu0 0.0
    %2879 = vmatpush1.msra.mxu0 0.0
    %2880 = vmatprep.subr.mxu0 0.0
    %2881 = vmatpush1.msra.mxu0 0.0
    %2882 = vmatprep.subr.mxu0 0.0
    %2883 = vmatpush1.msra.mxu0 0.0
    %2884 = vmatprep.subr.mxu0 0.0
    %2885 = vmatpush1.msra.mxu0 0.0
    %2886 = vmatprep.subr.mxu0 0.0
    %2887 = vmatpush1.msra.mxu0 0.0
    %2888 = vmatprep.subr.mxu0 0.0
    %2889 = vmatpush1.msra.mxu0 0.0
    %2890 = vmatprep.subr.mxu0 0.0
    %2891 = vmatpush1.msra.mxu0 0.0
    %2892 = vmatprep.subr.mxu0 0.0
    %2893 = vmatpush1.msra.mxu0 0.0
    %2894 = vmatprep.subr.mxu0 0.0
    %2895 = vmatpush1.msra.mxu0 0.0
    %2896 = vmatprep.subr.mxu0 0.0
    %2897 = vmatpush1.msra.mxu0 0.0
    %2898 = vmatprep.subr.mxu0 0.0
    %2899 = vmatpush1.msra.mxu0 0.0
    %2900 = vmatprep.mubr.f32.mxu0 0.0
    %2901 = vmatmul.mubr.f32.gmra.mrb[0].mxu0 %v2834
    %v2902 = vpop.f32.mrb[0].mxu0
    %v2903 = vadd.f32 0.0, %v2902
    %v2904 = vpop.f32.mrb[0].mxu0
    %2905 = vdwg.mxu0
    %2906 = vrot.lane.b32.xlu0 %v1987, 48
    %v2907 = vpop.permute.xlu0 %2906
    %v2910 = vsel %vm168, %v2829, 0
    %2912 = vmatprep.subr.mxu0 0.0
    %2913 = vmatpush1.msra.mxu0 %v2907
    %2914 = vmatprep.subr.mxu0 0.0
    %2915 = vmatpush1.msra.mxu0 0.0
    %2916 = vmatprep.subr.mxu0 0.0
    %2917 = vmatpush1.msra.mxu0 0.0
    %2918 = vmatprep.subr.mxu0 0.0
    %2919 = vmatpush1.msra.mxu0 0.0
    %2920 = vmatprep.subr.mxu0 0.0
    %2921 = vmatpush1.msra.mxu0 0.0
    %2922 = vmatprep.subr.mxu0 0.0
    %2923 = vmatpush1.msra.mxu0 0.0
    %2924 = vmatprep.subr.mxu0 0.0
    %2925 = vmatpush1.msra.mxu0 0.0
    %2926 = vmatprep.subr.mxu0 0.0
    %2927 = vmatpush1.msra.mxu0 0.0
    %2928 = vmatprep.subr.mxu0 0.0
    %2929 = vmatpush1.msra.mxu0 0.0
    %2930 = vmatprep.subr.mxu0 0.0
    %2931 = vmatpush1.msra.mxu0 0.0
    %2932 = vmatprep.subr.mxu0 0.0
    %2933 = vmatpush1.msra.mxu0 0.0
    %2934 = vmatprep.subr.mxu0 0.0
    %2935 = vmatpush1.msra.mxu0 0.0
    %2936 = vmatprep.subr.mxu0 0.0
    %2937 = vmatpush1.msra.mxu0 0.0
    %2938 = vmatprep.subr.mxu0 0.0
    %2939 = vmatpush1.msra.mxu0 0.0
    %2940 = vmatprep.subr.mxu0 0.0
    %2941 = vmatpush1.msra.mxu0 0.0
    %2942 = vmatprep.subr.mxu0 0.0
    %2943 = vmatpush1.msra.mxu0 0.0
    %2944 = vmatprep.subr.mxu0 0.0
    %2945 = vmatpush1.msra.mxu0 0.0
    %2946 = vmatprep.subr.mxu0 0.0
    %2947 = vmatpush1.msra.mxu0 0.0
    %2948 = vmatprep.subr.mxu0 0.0
    %2949 = vmatpush1.msra.mxu0 0.0
    %2950 = vmatprep.subr.mxu0 0.0
    %2951 = vmatpush1.msra.mxu0 0.0
    %2952 = vmatprep.subr.mxu0 0.0
    %2953 = vmatpush1.msra.mxu0 0.0
    %2954 = vmatprep.subr.mxu0 0.0
    %2955 = vmatpush1.msra.mxu0 0.0
    %2956 = vmatprep.subr.mxu0 0.0
    %2957 = vmatpush1.msra.mxu0 0.0
    %2958 = vmatprep.subr.mxu0 0.0
    %2959 = vmatpush1.msra.mxu0 0.0
    %2960 = vmatprep.subr.mxu0 0.0
    %2961 = vmatpush1.msra.mxu0 0.0
    %2962 = vmatprep.subr.mxu0 0.0
    %2963 = vmatpush1.msra.mxu0 0.0
    %2964 = vmatprep.subr.mxu0 0.0
    %2965 = vmatpush1.msra.mxu0 0.0
    %2966 = vmatprep.subr.mxu0 0.0
    %2967 = vmatpush1.msra.mxu0 0.0
    %2968 = vmatprep.subr.mxu0 0.0
    %2969 = vmatpush1.msra.mxu0 0.0
    %2970 = vmatprep.subr.mxu0 0.0
    %2971 = vmatpush1.msra.mxu0 0.0
    %2972 = vmatprep.subr.mxu0 0.0
    %2973 = vmatpush1.msra.mxu0 0.0
    %2974 = vmatprep.subr.mxu0 0.0
    %2975 = vmatpush1.msra.mxu0 0.0
    %2976 = vmatprep.mubr.f32.mxu0 0.0
    %2977 = vmatmul.mubr.f32.gmra.mrb[0].mxu0 %v2910
    %v2978 = vpop.f32.mrb[0].mxu0
    %v2979 = vadd.f32 0.0, %v2978
    %v2980 = vpop.f32.mrb[0].mxu0
    %2981 = vdwg.mxu0
    %2982 = vrot.lane.b32.xlu0 %v1990, 104
    %v2983 = vpop.permute.xlu0 %2982
    %2984 = vrot.lane.b32.xlu0 %v1982, 72
    %v2985 = vpop.permute.xlu0 %2984
    %v2986 = vsel %vm168, %v2983, 0
    %v2988 = vsel %vm168, %v2985, 0
    %2990 = vmatprep.subr.mxu0 0.0
    %2991 = vmatpush1.xpose.msra.mxu0 %v2988
    %2992 = vmatprep.subr.mxu0 0.0
    %2993 = vmatpush1.xpose.msra.mxu0 0.0
    %2994 = vmatprep.subr.mxu0 0.0
    %2995 = vmatpush1.xpose.msra.mxu0 0.0
    %2996 = vmatprep.subr.mxu0 0.0
    %2997 = vmatpush1.xpose.msra.mxu0 0.0
    %2998 = vmatprep.subr.mxu0 0.0
    %2999 = vmatpush1.xpose.msra.mxu0 0.0
    %3000 = vmatprep.subr.mxu0 0.0
    %3001 = vmatpush1.xpose.msra.mxu0 0.0
    %3002 = vmatprep.subr.mxu0 0.0
    %3003 = vmatpush1.xpose.msra.mxu0 0.0
    %3004 = vmatprep.subr.mxu0 0.0
    %3005 = vmatpush1.xpose.msra.mxu0 0.0
    %3006 = vmatprep.subr.mxu0 0.0
    %3007 = vmatpush1.xpose.msra.mxu0 0.0
    %3008 = vmatprep.subr.mxu0 0.0
    %3009 = vmatpush1.xpose.msra.mxu0 0.0
    %3010 = vmatprep.subr.mxu0 0.0
    %3011 = vmatpush1.xpose.msra.mxu0 0.0
    %3012 = vmatprep.subr.mxu0 0.0
    %3013 = vmatpush1.xpose.msra.mxu0 0.0
    %3014 = vmatprep.subr.mxu0 0.0
    %3015 = vmatpush1.xpose.msra.mxu0 0.0
    %3016 = vmatprep.subr.mxu0 0.0
    %3017 = vmatpush1.xpose.msra.mxu0 0.0
    %3018 = vmatprep.subr.mxu0 0.0
    %3019 = vmatpush1.xpose.msra.mxu0 0.0
    %3020 = vmatprep.subr.mxu0 0.0
    %3021 = vmatpush1.xpose.msra.mxu0 0.0
    %3022 = vmatprep.subr.mxu0 0.0
    %3023 = vmatpush1.xpose.msra.mxu0 0.0
    %3024 = vmatprep.subr.mxu0 0.0
    %3025 = vmatpush1.xpose.msra.mxu0 0.0
    %3026 = vmatprep.subr.mxu0 0.0
    %3027 = vmatpush1.xpose.msra.mxu0 0.0
    %3028 = vmatprep.subr.mxu0 0.0
    %3029 = vmatpush1.xpose.msra.mxu0 0.0
    %3030 = vmatprep.subr.mxu0 0.0
    %3031 = vmatpush1.xpose.msra.mxu0 0.0
    %3032 = vmatprep.subr.mxu0 0.0
    %3033 = vmatpush1.xpose.msra.mxu0 0.0
    %3034 = vmatprep.subr.mxu0 0.0
    %3035 = vmatpush1.xpose.msra.mxu0 0.0
    %3036 = vmatprep.subr.mxu0 0.0
    %3037 = vmatpush1.xpose.msra.mxu0 0.0
    %3038 = vmatprep.subr.mxu0 0.0
    %3039 = vmatpush1.xpose.msra.mxu0 0.0
    %3040 = vmatprep.subr.mxu0 0.0
    %3041 = vmatpush1.xpose.msra.mxu0 0.0
    %3042 = vmatprep.subr.mxu0 0.0
    %3043 = vmatpush1.xpose.msra.mxu0 0.0
    %3044 = vmatprep.subr.mxu0 0.0
    %3045 = vmatpush1.xpose.msra.mxu0 0.0
    %3046 = vmatprep.subr.mxu0 0.0
    %3047 = vmatpush1.xpose.msra.mxu0 0.0
    %3048 = vmatprep.subr.mxu0 0.0
    %3049 = vmatpush1.xpose.msra.mxu0 0.0
    %3050 = vmatprep.subr.mxu0 0.0
    %3051 = vmatpush1.xpose.msra.mxu0 0.0
    %3052 = vmatprep.subr.mxu0 0.0
    %3053 = vmatpush1.xpose.msra.mxu0 0.0
    %3054 = vmatprep.mubr.f32.mxu0 0.0
    %3055 = vmatmul.mubr.f32.gmra.mrb[0].mxu0 %v2986
    %v3056 = vpop.f32.mrb[0].mxu0
    %v3057 = vadd.f32 0.0, %v3056
    %v3058 = vpop.f32.mrb[0].mxu0
    %3059 = vdwg.mxu0
    %3060 = vrot.lane.b32.xlu0 %v1991, 104
    %v3061 = vpop.permute.xlu0 %3060
    %3062 = vrot.lane.b32.xlu0 %v1987, 72
    %v3063 = vpop.permute.xlu0 %3062
    %v3064 = vsel %vm168, %v3061, 0
    %v3066 = vsel %vm168, %v3063, 0
    %3068 = vmatprep.subr.mxu0 0.0
    %3069 = vmatpush1.xpose.msra.mxu0 %v3066
    %3070 = vmatprep.subr.mxu0 0.0
    %3071 = vmatpush1.xpose.msra.mxu0 0.0
    %3072 = vmatprep.subr.mxu0 0.0
    %3073 = vmatpush1.xpose.msra.mxu0 0.0
    %3074 = vmatprep.subr.mxu0 0.0
    %3075 = vmatpush1.xpose.msra.mxu0 0.0
    %3076 = vmatprep.subr.mxu0 0.0
    %3077 = vmatpush1.xpose.msra.mxu0 0.0
    %3078 = vmatprep.subr.mxu0 0.0
    %3079 = vmatpush1.xpose.msra.mxu0 0.0
    %3080 = vmatprep.subr.mxu0 0.0
    %3081 = vmatpush1.xpose.msra.mxu0 0.0
    %3082 = vmatprep.subr.mxu0 0.0
    %3083 = vmatpush1.xpose.msra.mxu0 0.0
    %3084 = vmatprep.subr.mxu0 0.0
    %3085 = vmatpush1.xpose.msra.mxu0 0.0
    %3086 = vmatprep.subr.mxu0 0.0
    %3087 = vmatpush1.xpose.msra.mxu0 0.0
    %3088 = vmatprep.subr.mxu0 0.0
    %3089 = vmatpush1.xpose.msra.mxu0 0.0
    %3090 = vmatprep.subr.mxu0 0.0
    %3091 = vmatpush1.xpose.msra.mxu0 0.0
    %3092 = vmatprep.subr.mxu0 0.0
    %3093 = vmatpush1.xpose.msra.mxu0 0.0
    %3094 = vmatprep.subr.mxu0 0.0
    %3095 = vmatpush1.xpose.msra.mxu0 0.0
    %3096 = vmatprep.subr.mxu0 0.0
    %3097 = vmatpush1.xpose.msra.mxu0 0.0
    %3098 = vmatprep.subr.mxu0 0.0
    %3099 = vmatpush1.xpose.msra.mxu0 0.0
    %3100 = vmatprep.subr.mxu0 0.0
    %3101 = vmatpush1.xpose.msra.mxu0 0.0
    %3102 = vmatprep.subr.mxu0 0.0
    %3103 = vmatpush1.xpose.msra.mxu0 0.0
    %3104 = vmatprep.subr.mxu0 0.0
    %3105 = vmatpush1.xpose.msra.mxu0 0.0
    %3106 = vmatprep.subr.mxu0 0.0
    %3107 = vmatpush1.xpose.msra.mxu0 0.0
    %3108 = vmatprep.subr.mxu0 0.0
    %3109 = vmatpush1.xpose.msra.mxu0 0.0
    %3110 = vmatprep.subr.mxu0 0.0
    %3111 = vmatpush1.xpose.msra.mxu0 0.0
    %3112 = vmatprep.subr.mxu0 0.0
    %3113 = vmatpush1.xpose.msra.mxu0 0.0
    %3114 = vmatprep.subr.mxu0 0.0
    %3115 = vmatpush1.xpose.msra.mxu0 0.0
    %3116 = vmatprep.subr.mxu0 0.0
    %3117 = vmatpush1.xpose.msra.mxu0 0.0
    %3118 = vmatprep.subr.mxu0 0.0
    %3119 = vmatpush1.xpose.msra.mxu0 0.0
    %3120 = vmatprep.subr.mxu0 0.0
    %3121 = vmatpush1.xpose.msra.mxu0 0.0
    %3122 = vmatprep.subr.mxu0 0.0
    %3123 = vmatpush1.xpose.msra.mxu0 0.0
    %3124 = vmatprep.subr.mxu0 0.0
    %3125 = vmatpush1.xpose.msra.mxu0 0.0
    %3126 = vmatprep.subr.mxu0 0.0
    %3127 = vmatpush1.xpose.msra.mxu0 0.0
    %3128 = vmatprep.subr.mxu0 0.0
    %3129 = vmatpush1.xpose.msra.mxu0 0.0
    %3130 = vmatprep.subr.mxu0 0.0
    %3131 = vmatpush1.xpose.msra.mxu0 0.0
    %3132 = vmatprep.mubr.f32.mxu0 0.0
    %3133 = vmatmul.mubr.f32.gmra.mrb[0].mxu0 %v3064
    %v3134 = vpop.f32.mrb[0].mxu0
    %v3135 = vadd.f32 0.0, %v3134
    %v3136 = vpop.f32.mrb[0].mxu0
    %3137 = vdwg.mxu0
    %v3138 = vsel %vm168, %v3057, -inf
    %3139 = vmax.xlane.f32.xlu0 %v3138
    %v3140 = vpop.xlane.xlu0 %3139
    %v3141 = vsel %vm168, %v3135, -inf
    %3142 = vmax.xlane.f32.xlu0 %v3141
    %v3143 = vpop.xlane.xlu0 %3142
    %v3144 = vsub.f32 %v3057, %v3140
    %v3145 = vsub.f32 %v3135, %v3143
    %v3146 = vmul.f32 %v3144, 1.442695
    %v3147 = vpow.pop %v3146
    %v3148 = vmul.f32 %v3145, 1.442695
    %v3149 = vpow.pop %v3148
    %v3150 = vsel %vm168, %v3147, 0.0
    %3151 = vadd.xlane.f32.xlu0 %v3150
    %v3152 = vpop.xlane.xlu0 %3151
    %v3153 = vsel %vm168, %v3149, 0.0
    %3154 = vadd.xlane.f32.xlu0 %v3153
    %v3155 = vpop.xlane.xlu0 %3154
    %v3156 = vrcp.pop %v3152
    %v3157 = vrcp.pop %v3155
    %v3158 = vmul.f32 %v3147, %v3156
    %v3159 = vmul.f32 %v3149, %v3157
    %3160 = vrot.lane.b32.xlu0 %v1982, 40
    %v3161 = vpop.permute.xlu0 %3160
    %v3164 = vsel %vm168, %v3158, 0
    %3166 = vmatprep.subr.mxu0 0.0
    %3167 = vmatpush1.msra.mxu0 %v3161
    %3168 = vmatprep.subr.mxu0 0.0
    %3169 = vmatpush1.msra.mxu0 0.0
    %3170 = vmatprep.subr.mxu0 0.0
    %3171 = vmatpush1.msra.mxu0 0.0
    %3172 = vmatprep.subr.mxu0 0.0
    %3173 = vmatpush1.msra.mxu0 0.0
    %3174 = vmatprep.subr.mxu0 0.0
    %3175 = vmatpush1.msra.mxu0 0.0
    %3176 = vmatprep.subr.mxu0 0.0
    %3177 = vmatpush1.msra.mxu0 0.0
    %3178 = vmatprep.subr.mxu0 0.0
    %3179 = vmatpush1.msra.mxu0 0.0
    %3180 = vmatprep.subr.mxu0 0.0
    %3181 = vmatpush1.msra.mxu0 0.0
    %3182 = vmatprep.subr.mxu0 0.0
    %3183 = vmatpush1.msra.mxu0 0.0
    %3184 = vmatprep.subr.mxu0 0.0
    %3185 = vmatpush1.msra.mxu0 0.0
    %3186 = vmatprep.subr.mxu0 0.0
    %3187 = vmatpush1.msra.mxu0 0.0
    %3188 = vmatprep.subr.mxu0 0.0
    %3189 = vmatpush1.msra.mxu0 0.0
    %3190 = vmatprep.subr.mxu0 0.0
    %3191 = vmatpush1.msra.mxu0 0.0
    %3192 = vmatprep.subr.mxu0 0.0
    %3193 = vmatpush1.msra.mxu0 0.0
    %3194 = vmatprep.subr.mxu0 0.0
    %3195 = vmatpush1.msra.mxu0 0.0
    %3196 = vmatprep.subr.mxu0 0.0
    %3197 = vmatpush1.msra.mxu0 0.0
    %3198 = vmatprep.subr.mxu0 0.0
    %3199 = vmatpush1.msra.mxu0 0.0
    %3200 = vmatprep.subr.mxu0 0.0
    %3201 = vmatpush1.msra.mxu0 0.0
    %3202 = vmatprep.subr.mxu0 0.0
    %3203 = vmatpush1.msra.mxu0 0.0
    %3204 = vmatprep.subr.mxu0 0.0
    %3205 = vmatpush1.msra.mxu0 0.0
    %3206 = vmatprep.subr.mxu0 0.0
    %3207 = vmatpush1.msra.mxu0 0.0
    %3208 = vmatprep.subr.mxu0 0.0
    %3209 = vmatpush1.msra.mxu0 0.0
    %3210 = vmatprep.subr.mxu0 0.0
    %3211 = vmatpush1.msra.mxu0 0.0
    %3212 = vmatprep.subr.mxu0 0.0
    %3213 = vmatpush1.msra.mxu0 0.0
    %3214 = vmatprep.subr.mxu0 0.0
    %3215 = vmatpush1.msra.mxu0 0.0
    %3216 = vmatprep.subr.mxu0 0.0
    %3217 = vmatpush1.msra.mxu0 0.0
    %3218 = vmatprep.subr.mxu0 0.0
    %3219 = vmatpush1.msra.mxu0 0.0
    %3220 = vmatprep.subr.mxu0 0.0
    %3221 = vmatpush1.msra.mxu0 0.0
    %3222 = vmatprep.subr.mxu0 0.0
    %3223 = vmatpush1.msra.mxu0 0.0
    %3224 = vmatprep.subr.mxu0 0.0
    %3225 = vmatpush1.msra.mxu0 0.0
    %3226 = vmatprep.subr.mxu0 0.0
    %3227 = vmatpush1.msra.mxu0 0.0
    %3228 = vmatprep.subr.mxu0 0.0
    %3229 = vmatpush1.msra.mxu0 0.0
    %3230 = vmatprep.mubr.f32.mxu0 0.0
    %3231 = vmatmul.mubr.f32.gmra.mrb[0].mxu0 %v3164
    %v3232 = vpop.f32.mrb[0].mxu0
    %v3233 = vadd.f32 0.0, %v3232
    %v3234 = vpop.f32.mrb[0].mxu0
    %3235 = vdwg.mxu0
    %3236 = vrot.lane.b32.xlu0 %v1987, 40
    %v3237 = vpop.permute.xlu0 %3236
    %v3240 = vsel %vm168, %v3159, 0
    %3242 = vmatprep.subr.mxu0 0.0
    %3243 = vmatpush1.msra.mxu0 %v3237
    %3244 = vmatprep.subr.mxu0 0.0
    %3245 = vmatpush1.msra.mxu0 0.0
    %3246 = vmatprep.subr.mxu0 0.0
    %3247 = vmatpush1.msra.mxu0 0.0
    %3248 = vmatprep.subr.mxu0 0.0
    %3249 = vmatpush1.msra.mxu0 0.0
    %3250 = vmatprep.subr.mxu0 0.0
    %3251 = vmatpush1.msra.mxu0 0.0
    %3252 = vmatprep.subr.mxu0 0.0
    %3253 = vmatpush1.msra.mxu0 0.0
    %3254 = vmatprep.subr.mxu0 0.0
    %3255 = vmatpush1.msra.mxu0 0.0
    %3256 = vmatprep.subr.mxu0 0.0
    %3257 = vmatpush1.msra.mxu0 0.0
    %3258 = vmatprep.subr.mxu0 0.0
    %3259 = vmatpush1.msra.mxu0 0.0
    %3260 = vmatprep.subr.mxu0 0.0
    %3261 = vmatpush1.msra.mxu0 0.0
    %3262 = vmatprep.subr.mxu0 0.0
    %3263 = vmatpush1.msra.mxu0 0.0
    %3264 = vmatprep.subr.mxu0 0.0
    %3265 = vmatpush1.msra.mxu0 0.0
    %3266 = vmatprep.subr.mxu0 0.0
    %3267 = vmatpush1.msra.mxu0 0.0
    %3268 = vmatprep.subr.mxu0 0.0
    %3269 = vmatpush1.msra.mxu0 0.0
    %3270 = vmatprep.subr.mxu0 0.0
    %3271 = vmatpush1.msra.mxu0 0.0
    %3272 = vmatprep.subr.mxu0 0.0
    %3273 = vmatpush1.msra.mxu0 0.0
    %3274 = vmatprep.subr.mxu0 0.0
    %3275 = vmatpush1.msra.mxu0 0.0
    %3276 = vmatprep.subr.mxu0 0.0
    %3277 = vmatpush1.msra.mxu0 0.0
    %3278 = vmatprep.subr.mxu0 0.0
    %3279 = vmatpush1.msra.mxu0 0.0
    %3280 = vmatprep.subr.mxu0 0.0
    %3281 = vmatpush1.msra.mxu0 0.0
    %3282 = vmatprep.subr.mxu0 0.0
    %3283 = vmatpush1.msra.mxu0 0.0
    %3284 = vmatprep.subr.mxu0 0.0
    %3285 = vmatpush1.msra.mxu0 0.0
    %3286 = vmatprep.subr.mxu0 0.0
    %3287 = vmatpush1.msra.mxu0 0.0
    %3288 = vmatprep.subr.mxu0 0.0
    %3289 = vmatpush1.msra.mxu0 0.0
    %3290 = vmatprep.subr.mxu0 0.0
    %3291 = vmatpush1.msra.mxu0 0.0
    %3292 = vmatprep.subr.mxu0 0.0
    %3293 = vmatpush1.msra.mxu0 0.0
    %3294 = vmatprep.subr.mxu0 0.0
    %3295 = vmatpush1.msra.mxu0 0.0
    %3296 = vmatprep.subr.mxu0 0.0
    %3297 = vmatpush1.msra.mxu0 0.0
    %3298 = vmatprep.subr.mxu0 0.0
    %3299 = vmatpush1.msra.mxu0 0.0
    %3300 = vmatprep.subr.mxu0 0.0
    %3301 = vmatpush1.msra.mxu0 0.0
    %3302 = vmatprep.subr.mxu0 0.0
    %3303 = vmatpush1.msra.mxu0 0.0
    %3304 = vmatprep.subr.mxu0 0.0
    %3305 = vmatpush1.msra.mxu0 0.0
    %3306 = vmatprep.mubr.f32.mxu0 0.0
    %3307 = vmatmul.mubr.f32.gmra.mrb[0].mxu0 %v3240
    %v3308 = vpop.f32.mrb[0].mxu0
    %v3309 = vadd.f32 0.0, %v3308
    %v3310 = vpop.f32.mrb[0].mxu0
    %3311 = vdwg.mxu0
    %3314 = vrot.lane.b32.xlu0 %v2573, 8
    %v3315 = vpop.permute.xlu0 %3314
    %3316 = vrot.lane.b32.xlu0 %v2649, 8
    %v3317 = vpop.permute.xlu0 %3316
    %3322 = vrot.lane.b32.xlu0 %v2903, 16
    %v3323 = vpop.permute.xlu0 %3322
    %3324 = vrot.lane.b32.xlu0 %v2979, 16
    %v3325 = vpop.permute.xlu0 %3324
    %3330 = vrot.lane.b32.xlu0 %v3233, 24
    %v3331 = vpop.permute.xlu0 %3330
    %3332 = vrot.lane.b32.xlu0 %v3309, 24
    %v3333 = vpop.permute.xlu0 %3332
    %v3336 = vsel %vm168, %v2243, %v3315
    %v3337 = vsel %vm168, %v2319, %v3317
    %v3338 = vsel %vm1512, %v3336, %v3323
    %v3339 = vsel %vm1512, %v3337, %v3325
    %v3340 = vsel %vm1515, %v3338, %v3331
    %v3341 = vsel %vm1515, %v3339, %v3333
    %v3343 = vlaneseq
    %v3344 = vshrl.u32 %v3343, 7
    %v3345 = vsub.s32 0, %v3344
    %v3346 = vrot.slane %v1902, %v3345
    %v3349 = vsel %vm81, %v3340, 0
    %v3352 = vsel %vm81, %v3341, 0
    %3354 = vmatprep.subr.mxu0 0.0
    %3355 = vmatpush1.msra.mxu0 %v1897
    %3356 = vmatprep.subr.mxu0 0.0
    %3357 = vmatpush1.msra.mxu0 %v1898
    %3358 = vmatprep.subr.mxu0 0.0
    %3359 = vmatpush1.msra.mxu0 %v1899
    %3360 = vmatprep.subr.mxu0 0.0
    %3361 = vmatpush1.msra.mxu0 %v1900
    %3362 = vmatprep.subr.mxu0 0.0
    %3363 = vmatpush1.msra.mxu0 0.0
    %3364 = vmatprep.subr.mxu0 0.0
    %3365 = vmatpush1.msra.mxu0 0.0
    %3366 = vmatprep.subr.mxu0 0.0
    %3367 = vmatpush1.msra.mxu0 0.0
    %3368 = vmatprep.subr.mxu0 0.0
    %3369 = vmatpush1.msra.mxu0 0.0
    %3370 = vmatprep.subr.mxu0 0.0
    %3371 = vmatpush1.msra.mxu0 0.0
    %3372 = vmatprep.subr.mxu0 0.0
    %3373 = vmatpush1.msra.mxu0 0.0
    %3374 = vmatprep.subr.mxu0 0.0
    %3375 = vmatpush1.msra.mxu0 0.0
    %3376 = vmatprep.subr.mxu0 0.0
    %3377 = vmatpush1.msra.mxu0 0.0
    %3378 = vmatprep.subr.mxu0 0.0
    %3379 = vmatpush1.msra.mxu0 0.0
    %3380 = vmatprep.subr.mxu0 0.0
    %3381 = vmatpush1.msra.mxu0 0.0
    %3382 = vmatprep.subr.mxu0 0.0
    %3383 = vmatpush1.msra.mxu0 0.0
    %3384 = vmatprep.subr.mxu0 0.0
    %3385 = vmatpush1.msra.mxu0 0.0
    %3386 = vmatprep.subr.mxu0 0.0
    %3387 = vmatpush1.msra.mxu0 0.0
    %3388 = vmatprep.subr.mxu0 0.0
    %3389 = vmatpush1.msra.mxu0 0.0
    %3390 = vmatprep.subr.mxu0 0.0
    %3391 = vmatpush1.msra.mxu0 0.0
    %3392 = vmatprep.subr.mxu0 0.0
    %3393 = vmatpush1.msra.mxu0 0.0
    %3394 = vmatprep.subr.mxu0 0.0
    %3395 = vmatpush1.msra.mxu0 0.0
    %3396 = vmatprep.subr.mxu0 0.0
    %3397 = vmatpush1.msra.mxu0 0.0
    %3398 = vmatprep.subr.mxu0 0.0
    %3399 = vmatpush1.msra.mxu0 0.0
    %3400 = vmatprep.subr.mxu0 0.0
    %3401 = vmatpush1.msra.mxu0 0.0
    %3402 = vmatprep.subr.mxu0 0.0
    %3403 = vmatpush1.msra.mxu0 0.0
    %3404 = vmatprep.subr.mxu0 0.0
    %3405 = vmatpush1.msra.mxu0 0.0
    %3406 = vmatprep.subr.mxu0 0.0
    %3407 = vmatpush1.msra.mxu0 0.0
    %3408 = vmatprep.subr.mxu0 0.0
    %3409 = vmatpush1.msra.mxu0 0.0
    %3410 = vmatprep.subr.mxu0 0.0
    %3411 = vmatpush1.msra.mxu0 0.0
    %3412 = vmatprep.subr.mxu0 0.0
    %3413 = vmatpush1.msra.mxu0 0.0
    %3414 = vmatprep.subr.mxu0 0.0
    %3415 = vmatpush1.msra.mxu0 0.0
    %3416 = vmatprep.subr.mxu0 0.0
    %3417 = vmatpush1.msra.mxu0 0.0
    %3418 = vmatprep.mubr.f32.mxu0 0.0
    %3419 = vmatmul.mubr.f32.gmra.mrb[0].mxu0 %v3349
    %v3420 = vpop.f32.mrb[0].mxu0
    %v3421 = vadd.f32 %v3346, %v3420
    %v3422 = vpop.f32.mrb[0].mxu0
    %3423 = vmatprep.mubr.f32.mxu0 0.0
    %3424 = vmatmul.mubr.f32.gmra.mrb[0].mxu0 %v3352
    %v3425 = vpop.f32.mrb[0].mxu0
    %v3426 = vadd.f32 %v3346, %v3425
    %v3427 = vpop.f32.mrb[0].mxu0
    %3428 = vdwg.mxu0
    %v3429 = vadd.f32 %v1887, %v3421
    %v3430 = vadd.f32 %v1888, %v3426
    %s3431 = scalar_lea.vmem %s9, 1
    %v3432 = vld [vmem:[%s3431] sm:$0x1]
    %s3433 = scalar_lea.vmem %s10, 1
    %v3434 = vld [vmem:[%s3433] sm:$0x1]
    %v3435 = vsel %vm81, %v3429, 0.0
    %3436 = vadd.xlane.f32.xlu0 %v3435
    %v3437 = vpop.xlane.xlu0 %3436
    %v3438 = vsel %vm81, %v3430, 0.0
    %3439 = vadd.xlane.f32.xlu0 %v3438
    %v3440 = vpop.xlane.xlu0 %3439
    %v3441 = vmul.f32 %v3437, %v1615
    %v3442 = vmul.f32 %v3440, %v1615
    %v3443 = vsub.f32 %v3429, %v3441
    %v3444 = vsub.f32 %v3430, %v3442
    %v3445 = vmul.f32 %v3443, %v3443
    %v3446 = vmul.f32 %v3444, %v3444
    %v3447 = vsel %vm81, %v3445, 0.0
    %3448 = vadd.xlane.f32.xlu0 %v3447
    %v3449 = vpop.xlane.xlu0 %3448
    %v3450 = vsel %vm81, %v3446, 0.0
    %3451 = vadd.xlane.f32.xlu0 %v3450
    %v3452 = vpop.xlane.xlu0 %3451
    %v3453 = vmul.f32 %v3449, %v1615
    %v3454 = vmul.f32 %v3452, %v1615
    %v3455 = vadd.f32 %v3453, 1e-05
    %v3456 = vadd.f32 %v3454, 1e-05
    %v3457 = vrsqrt.pop %v3455
    %v3458 = vrsqrt.pop %v3456
    %v3459 = vmul.f32 %v3443, %v3457
    %v3460 = vmul.f32 %v3444, %v3458
    %v3462 = vlaneseq
    %v3463 = vshrl.u32 %v3462, 7
    %v3464 = vsub.s32 0, %v3463
    %v3465 = vrot.slane %v3432, %v3464
    %v3467 = vmul.f32 %v3459, %v3465
    %v3468 = vmul.f32 %v3460, %v3465
    %v3470 = vlaneseq
    %v3471 = vshrl.u32 %v3470, 7
    %v3472 = vsub.s32 0, %v3471
    %v3473 = vrot.slane %v3434, %v3472
    %v3475 = vadd.f32 %v3467, %v3473
    %v3476 = vadd.f32 %v3468, %v3473
    %s3477 = scalar_lea.vmem %s5, 32
    %v3478 = vld [vmem:[%s3477] sm:$0xff]
    %v3479 = vld [vmem:[%s3477 + $0x8] sm:$0xff]
    %v3480 = vld [vmem:[%s3477 + $0x10] sm:$0xff]
    %v3481 = vld [vmem:[%s3477 + $0x18] sm:$0xff]
    %s3482 = scalar_lea.vmem %s6, 1
    %v3483 = vld [vmem:[%s3482] sm:$0x1]
    %v3485 = vlaneseq
    %v3486 = vshrl.u32 %v3485, 7
    %v3487 = vsub.s32 0, %v3486
    %v3488 = vrot.slane %v3483, %v3487
    %v3491 = vsel %vm81, %v3475, 0
    %v3494 = vsel %vm81, %v3476, 0
    %3496 = vmatprep.subr.mxu0 0.0
    %3497 = vmatpush1.msra.mxu0 %v3478
    %3498 = vmatprep.subr.mxu0 0.0
    %3499 = vmatpush1.msra.mxu0 %v3479
    %3500 = vmatprep.subr.mxu0 0.0
    %3501 = vmatpush1.msra.mxu0 %v3480
    %3502 = vmatprep.subr.mxu0 0.0
    %3503 = vmatpush1.msra.mxu0 %v3481
    %3504 = vmatprep.subr.mxu0 0.0
    %3505 = vmatpush1.msra.mxu0 0.0
    %3506 = vmatprep.subr.mxu0 0.0
    %3507 = vmatpush1.msra.mxu0 0.0
    %3508 = vmatprep.subr.mxu0 0.0
    %3509 = vmatpush1.msra.mxu0 0.0
    %3510 = vmatprep.subr.mxu0 0.0
    %3511 = vmatpush1.msra.mxu0 0.0
    %3512 = vmatprep.subr.mxu0 0.0
    %3513 = vmatpush1.msra.mxu0 0.0
    %3514 = vmatprep.subr.mxu0 0.0
    %3515 = vmatpush1.msra.mxu0 0.0
    %3516 = vmatprep.subr.mxu0 0.0
    %3517 = vmatpush1.msra.mxu0 0.0
    %3518 = vmatprep.subr.mxu0 0.0
    %3519 = vmatpush1.msra.mxu0 0.0
    %3520 = vmatprep.subr.mxu0 0.0
    %3521 = vmatpush1.msra.mxu0 0.0
    %3522 = vmatprep.subr.mxu0 0.0
    %3523 = vmatpush1.msra.mxu0 0.0
    %3524 = vmatprep.subr.mxu0 0.0
    %3525 = vmatpush1.msra.mxu0 0.0
    %3526 = vmatprep.subr.mxu0 0.0
    %3527 = vmatpush1.msra.mxu0 0.0
    %3528 = vmatprep.subr.mxu0 0.0
    %3529 = vmatpush1.msra.mxu0 0.0
    %3530 = vmatprep.subr.mxu0 0.0
    %3531 = vmatpush1.msra.mxu0 0.0
    %3532 = vmatprep.subr.mxu0 0.0
    %3533 = vmatpush1.msra.mxu0 0.0
    %3534 = vmatprep.subr.mxu0 0.0
    %3535 = vmatpush1.msra.mxu0 0.0
    %3536 = vmatprep.subr.mxu0 0.0
    %3537 = vmatpush1.msra.mxu0 0.0
    %3538 = vmatprep.subr.mxu0 0.0
    %3539 = vmatpush1.msra.mxu0 0.0
    %3540 = vmatprep.subr.mxu0 0.0
    %3541 = vmatpush1.msra.mxu0 0.0
    %3542 = vmatprep.subr.mxu0 0.0
    %3543 = vmatpush1.msra.mxu0 0.0
    %3544 = vmatprep.subr.mxu0 0.0
    %3545 = vmatpush1.msra.mxu0 0.0
    %3546 = vmatprep.subr.mxu0 0.0
    %3547 = vmatpush1.msra.mxu0 0.0
    %3548 = vmatprep.subr.mxu0 0.0
    %3549 = vmatpush1.msra.mxu0 0.0
    %3550 = vmatprep.subr.mxu0 0.0
    %3551 = vmatpush1.msra.mxu0 0.0
    %3552 = vmatprep.subr.mxu0 0.0
    %3553 = vmatpush1.msra.mxu0 0.0
    %3554 = vmatprep.subr.mxu0 0.0
    %3555 = vmatpush1.msra.mxu0 0.0
    %3556 = vmatprep.subr.mxu0 0.0
    %3557 = vmatpush1.msra.mxu0 0.0
    %3558 = vmatprep.subr.mxu0 0.0
    %3559 = vmatpush1.msra.mxu0 0.0
    %3560 = vmatprep.mubr.f32.mxu0 0.0
    %3561 = vmatmul.mubr.f32.gmra.mrb[0].mxu0 %v3491
    %v3562 = vpop.f32.mrb[0].mxu0
    %v3563 = vadd.f32 %v3488, %v3562
    %v3564 = vpop.f32.mrb[0].mxu0
    %3565 = vmatprep.mubr.f32.mxu0 0.0
    %3566 = vmatmul.mubr.f32.gmra.mrb[0].mxu0 %v3494
    %v3567 = vpop.f32.mrb[0].mxu0
    %v3568 = vadd.f32 %v3488, %v3567
    %v3569 = vpop.f32.mrb[0].mxu0
    %3570 = vdwg.mxu0
    %v3571 = vmax.f32 %v3563, 0.0
    %v3572 = vmax.f32 %v3568, 0.0
    %s3573 = scalar_lea.vmem %s7, 64
    %v3574 = vld [vmem:[%s3573] sm:$0xff]
    %v3575 = vld [vmem:[%s3573 + $0x8] sm:$0xff]
    %v3576 = vld [vmem:[%s3573 + $0x10] sm:$0xff]
    %v3577 = vld [vmem:[%s3573 + $0x18] sm:$0xff]
    %v3578 = vld [vmem:[%s3573 + $0x20] sm:$0xff]
    %v3579 = vld [vmem:[%s3573 + $0x28] sm:$0xff]
    %v3580 = vld [vmem:[%s3573 + $0x30] sm:$0xff]
    %v3581 = vld [vmem:[%s3573 + $0x38] sm:$0xff]
    %s3582 = scalar_lea.vmem %s8, 1
    %v3583 = vld [vmem:[%s3582] sm:$0x1]
    %v3585 = vlaneseq
    %v3586 = vshrl.u32 %v3585, 7
    %v3587 = vsub.s32 0, %v3586
    %v3588 = vrot.slane %v3583, %v3587
    %v3591 = vsel %vm1761, %v3571, 0
    %v3594 = vsel %vm1761, %v3572, 0
    %3596 = vmatprep.subr.mxu0 0.0
    %3597 = vmatpush1.msra.mxu0 %v3574
    %3598 = vmatprep.subr.mxu0 0.0
    %3599 = vmatpush1.msra.mxu0 %v3575
    %3600 = vmatprep.subr.mxu0 0.0
    %3601 = vmatpush1.msra.mxu0 %v3576
    %3602 = vmatprep.subr.mxu0 0.0
    %3603 = vmatpush1.msra.mxu0 %v3577
    %3604 = vmatprep.subr.mxu0 0.0
    %3605 = vmatpush1.msra.mxu0 %v3578
    %3606 = vmatprep.subr.mxu0 0.0
    %3607 = vmatpush1.msra.mxu0 %v3579
    %3608 = vmatprep.subr.mxu0 0.0
    %3609 = vmatpush1.msra.mxu0 %v3580
    %3610 = vmatprep.subr.mxu0 0.0
    %3611 = vmatpush1.msra.mxu0 %v3581
    %3612 = vmatprep.subr.mxu0 0.0
    %3613 = vmatpush1.msra.mxu0 0.0
    %3614 = vmatprep.subr.mxu0 0.0
    %3615 = vmatpush1.msra.mxu0 0.0
    %3616 = vmatprep.subr.mxu0 0.0
    %3617 = vmatpush1.msra.mxu0 0.0
    %3618 = vmatprep.subr.mxu0 0.0
    %3619 = vmatpush1.msra.mxu0 0.0
    %3620 = vmatprep.subr.mxu0 0.0
    %3621 = vmatpush1.msra.mxu0 0.0
    %3622 = vmatprep.subr.mxu0 0.0
    %3623 = vmatpush1.msra.mxu0 0.0
    %3624 = vmatprep.subr.mxu0 0.0
    %3625 = vmatpush1.msra.mxu0 0.0
    %3626 = vmatprep.subr.mxu0 0.0
    %3627 = vmatpush1.msra.mxu0 0.0
    %3628 = vmatprep.subr.mxu0 0.0
    %3629 = vmatpush1.msra.mxu0 0.0
    %3630 = vmatprep.subr.mxu0 0.0
    %3631 = vmatpush1.msra.mxu0 0.0
    %3632 = vmatprep.subr.mxu0 0.0
    %3633 = vmatpush1.msra.mxu0 0.0
    %3634 = vmatprep.subr.mxu0 0.0
    %3635 = vmatpush1.msra.mxu0 0.0
    %3636 = vmatprep.subr.mxu0 0.0
    %3637 = vmatpush1.msra.mxu0 0.0
    %3638 = vmatprep.subr.mxu0 0.0
    %3639 = vmatpush1.msra.mxu0 0.0
    %3640 = vmatprep.subr.mxu0 0.0
    %3641 = vmatpush1.msra.mxu0 0.0
    %3642 = vmatprep.subr.mxu0 0.0
    %3643 = vmatpush1.msra.mxu0 0.0
    %3644 = vmatprep.subr.mxu0 0.0
    %3645 = vmatpush1.msra.mxu0 0.0
    %3646 = vmatprep.subr.mxu0 0.0
    %3647 = vmatpush1.msra.mxu0 0.0
    %3648 = vmatprep.subr.mxu0 0.0
    %3649 = vmatpush1.msra.mxu0 0.0
    %3650 = vmatprep.subr.mxu0 0.0
    %3651 = vmatpush1.msra.mxu0 0.0
    %3652 = vmatprep.subr.mxu0 0.0
    %3653 = vmatpush1.msra.mxu0 0.0
    %3654 = vmatprep.subr.mxu0 0.0
    %3655 = vmatpush1.msra.mxu0 0.0
    %3656 = vmatprep.subr.mxu0 0.0
    %3657 = vmatpush1.msra.mxu0 0.0
    %3658 = vmatprep.subr.mxu0 0.0
    %3659 = vmatpush1.msra.mxu0 0.0
    %3660 = vmatprep.mubr.f32.mxu0 0.0
    %3661 = vmatmul.mubr.f32.gmra.mrb[0].mxu0 %v3591
    %v3662 = vpop.f32.mrb[0].mxu0
    %v3663 = vadd.f32 %v3588, %v3662
    %v3664 = vpop.f32.mrb[0].mxu0
    %3665 = vmatprep.mubr.f32.mxu0 0.0
    %3666 = vmatmul.mubr.f32.gmra.mrb[0].mxu0 %v3594
    %v3667 = vpop.f32.mrb[0].mxu0
    %v3668 = vadd.f32 %v3588, %v3667
    %v3669 = vpop.f32.mrb[0].mxu0
    %3670 = vdwg.mxu0
    %v3671 = vadd.f32 %v3475, %v3663
    %v3672 = vadd.f32 %v3476, %v3668
    %s3673 = scalar_lea.vmem %s11, 1
    %v3674 = vld [vmem:[%s3673] sm:$0x1]
    %s3675 = scalar_lea.vmem %s12, 1
    %v3676 = vld [vmem:[%s3675] sm:$0x1]
    %v3677 = vsel %vm81, %v3671, 0.0
    %3678 = vadd.xlane.f32.xlu0 %v3677
    %v3679 = vpop.xlane.xlu0 %3678
    %v3680 = vsel %vm81, %v3672, 0.0
    %3681 = vadd.xlane.f32.xlu0 %v3680
    %v3682 = vpop.xlane.xlu0 %3681
    %v3683 = vmul.f32 %v3679, %v1615
    %v3684 = vmul.f32 %v3682, %v1615
    %v3685 = vsub.f32 %v3671, %v3683
    %v3686 = vsub.f32 %v3672, %v3684
    %v3687 = vmul.f32 %v3685, %v3685
    %v3688 = vmul.f32 %v3686, %v3686
    %v3689 = vsel %vm81, %v3687, 0.0
    %3690 = vadd.xlane.f32.xlu0 %v3689
    %v3691 = vpop.xlane.xlu0 %3690
    %v3692 = vsel %vm81, %v3688, 0.0
    %3693 = vadd.xlane.f32.xlu0 %v3692
    %v3694 = vpop.xlane.xlu0 %3693
    %v3695 = vmul.f32 %v3691, %v1615
    %v3696 = vmul.f32 %v3694, %v1615
    %v3697 = vadd.f32 %v3695, 1e-05
    %v3698 = vadd.f32 %v3696, 1e-05
    %v3699 = vrsqrt.pop %v3697
    %v3700 = vrsqrt.pop %v3698
    %v3701 = vmul.f32 %v3685, %v3699
    %v3702 = vmul.f32 %v3686, %v3700
    %v3704 = vlaneseq
    %v3705 = vshrl.u32 %v3704, 7
    %v3706 = vsub.s32 0, %v3705
    %v3707 = vrot.slane %v3674, %v3706
    %v3709 = vmul.f32 %v3701, %v3707
    %v3710 = vmul.f32 %v3702, %v3707
    %v3712 = vlaneseq
    %v3713 = vshrl.u32 %v3712, 7
    %v3714 = vsub.s32 0, %v3713
    %v3715 = vrot.slane %v3676, %v3714
    %v3717 = vadd.f32 %v3709, %v3715
    %v3718 = vadd.f32 %v3710, %v3715
    %v3719 = vld [vmem:[%s13] sm:$0xff]
    %v3720 = vld [vmem:[%s13 + $0x8] sm:$0xff]
    %v3721 = vld [vmem:[%s13 + $0x10] sm:$0xff]
    %v3722 = vld [vmem:[%s13 + $0x18] sm:$0xff]
    %v3723 = vld [vmem:[%s14] sm:$0x1]
    %v3724 = vld [vmem:[%s15] sm:$0xff]
    %v3725 = vld [vmem:[%s15 + $0x8] sm:$0xff]
    %v3726 = vld [vmem:[%s15 + $0x10] sm:$0xff]
    %v3727 = vld [vmem:[%s15 + $0x18] sm:$0xff]
    %v3728 = vld [vmem:[%s16] sm:$0x1]
    %v3730 = vlaneseq
    %v3731 = vshrl.u32 %v3730, 7
    %v3732 = vsub.s32 0, %v3731
    %v3733 = vrot.slane %v3723, %v3732
    %v3736 = vsel %vm81, %v3717, 0
    %v3739 = vsel %vm81, %v3718, 0
    %3741 = vmatprep.subr.mxu0 0.0
    %3742 = vmatpush1.msra.mxu0 %v3719
    %3743 = vmatprep.subr.mxu0 0.0
    %3744 = vmatpush1.msra.mxu0 %v3720
    %3745 = vmatprep.subr.mxu0 0.0
    %3746 = vmatpush1.msra.mxu0 %v3721
    %3747 = vmatprep.subr.mxu0 0.0
    %3748 = vmatpush1.msra.mxu0 %v3722
    %3749 = vmatprep.subr.mxu0 0.0
    %3750 = vmatpush1.msra.mxu0 0.0
    %3751 = vmatprep.subr.mxu0 0.0
    %3752 = vmatpush1.msra.mxu0 0.0
    %3753 = vmatprep.subr.mxu0 0.0
    %3754 = vmatpush1.msra.mxu0 0.0
    %3755 = vmatprep.subr.mxu0 0.0
    %3756 = vmatpush1.msra.mxu0 0.0
    %3757 = vmatprep.subr.mxu0 0.0
    %3758 = vmatpush1.msra.mxu0 0.0
    %3759 = vmatprep.subr.mxu0 0.0
    %3760 = vmatpush1.msra.mxu0 0.0
    %3761 = vmatprep.subr.mxu0 0.0
    %3762 = vmatpush1.msra.mxu0 0.0
    %3763 = vmatprep.subr.mxu0 0.0
    %3764 = vmatpush1.msra.mxu0 0.0
    %3765 = vmatprep.subr.mxu0 0.0
    %3766 = vmatpush1.msra.mxu0 0.0
    %3767 = vmatprep.subr.mxu0 0.0
    %3768 = vmatpush1.msra.mxu0 0.0
    %3769 = vmatprep.subr.mxu0 0.0
    %3770 = vmatpush1.msra.mxu0 0.0
    %3771 = vmatprep.subr.mxu0 0.0
    %3772 = vmatpush1.msra.mxu0 0.0
    %3773 = vmatprep.subr.mxu0 0.0
    %3774 = vmatpush1.msra.mxu0 0.0
    %3775 = vmatprep.subr.mxu0 0.0
    %3776 = vmatpush1.msra.mxu0 0.0
    %3777 = vmatprep.subr.mxu0 0.0
    %3778 = vmatpush1.msra.mxu0 0.0
    %3779 = vmatprep.subr.mxu0 0.0
    %3780 = vmatpush1.msra.mxu0 0.0
    %3781 = vmatprep.subr.mxu0 0.0
    %3782 = vmatpush1.msra.mxu0 0.0
    %3783 = vmatprep.subr.mxu0 0.0
    %3784 = vmatpush1.msra.mxu0 0.0
    %3785 = vmatprep.subr.mxu0 0.0
    %3786 = vmatpush1.msra.mxu0 0.0
    %3787 = vmatprep.subr.mxu0 0.0
    %3788 = vmatpush1.msra.mxu0 0.0
    %3789 = vmatprep.subr.mxu0 0.0
    %3790 = vmatpush1.msra.mxu0 0.0
    %3791 = vmatprep.subr.mxu0 0.0
    %3792 = vmatpush1.msra.mxu0 0.0
    %3793 = vmatprep.subr.mxu0 0.0
    %3794 = vmatpush1.msra.mxu0 0.0
    %3795 = vmatprep.subr.mxu0 0.0
    %3796 = vmatpush1.msra.mxu0 0.0
    %3797 = vmatprep.subr.mxu0 0.0
    %3798 = vmatpush1.msra.mxu0 0.0
    %3799 = vmatprep.subr.mxu0 0.0
    %3800 = vmatpush1.msra.mxu0 0.0
    %3801 = vmatprep.subr.mxu0 0.0
    %3802 = vmatpush1.msra.mxu0 0.0
    %3803 = vmatprep.subr.mxu0 0.0
    %3804 = vmatpush1.msra.mxu0 0.0
    %3805 = vmatprep.mubr.f32.mxu0 0.0
    %3806 = vmatmul.mubr.f32.gmra.mrb[0].mxu0 %v3736
    %v3807 = vpop.f32.mrb[0].mxu0
    %v3808 = vadd.f32 %v3733, %v3807
    %v3809 = vpop.f32.mrb[0].mxu0
    %3810 = vmatprep.mubr.f32.mxu0 0.0
    %3811 = vmatmul.mubr.f32.gmra.mrb[0].mxu0 %v3739
    %v3812 = vpop.f32.mrb[0].mxu0
    %v3813 = vadd.f32 %v3733, %v3812
    %v3814 = vpop.f32.mrb[0].mxu0
    %3815 = vdwg.mxu0
    %v3816 = vmul.f32 %v3808, 0.35355338
    %v3817 = vmul.f32 %v3813, 0.35355338
    %3819 = vrot.lane.b32.xlu0 %v3808, 96
    %v3820 = vpop.permute.xlu0 %3819
    %v3822 = vsel %vm168, %v3816, 0
    %v3824 = vsel %vm168, %v3820, 0
    %3826 = vmatprep.subr.mxu0 0.0
    %3827 = vmatpush1.xpose.msra.mxu0 %v3824
    %3828 = vmatprep.subr.mxu0 0.0
    %3829 = vmatpush1.xpose.msra.mxu0 0.0
    %3830 = vmatprep.subr.mxu0 0.0
    %3831 = vmatpush1.xpose.msra.mxu0 0.0
    %3832 = vmatprep.subr.mxu0 0.0
    %3833 = vmatpush1.xpose.msra.mxu0 0.0
    %3834 = vmatprep.subr.mxu0 0.0
    %3835 = vmatpush1.xpose.msra.mxu0 0.0
    %3836 = vmatprep.subr.mxu0 0.0
    %3837 = vmatpush1.xpose.msra.mxu0 0.0
    %3838 = vmatprep.subr.mxu0 0.0
    %3839 = vmatpush1.xpose.msra.mxu0 0.0
    %3840 = vmatprep.subr.mxu0 0.0
    %3841 = vmatpush1.xpose.msra.mxu0 0.0
    %3842 = vmatprep.subr.mxu0 0.0
    %3843 = vmatpush1.xpose.msra.mxu0 0.0
    %3844 = vmatprep.subr.mxu0 0.0
    %3845 = vmatpush1.xpose.msra.mxu0 0.0
    %3846 = vmatprep.subr.mxu0 0.0
    %3847 = vmatpush1.xpose.msra.mxu0 0.0
    %3848 = vmatprep.subr.mxu0 0.0
    %3849 = vmatpush1.xpose.msra.mxu0 0.0
    %3850 = vmatprep.subr.mxu0 0.0
    %3851 = vmatpush1.xpose.msra.mxu0 0.0
    %3852 = vmatprep.subr.mxu0 0.0
    %3853 = vmatpush1.xpose.msra.mxu0 0.0
    %3854 = vmatprep.subr.mxu0 0.0
    %3855 = vmatpush1.xpose.msra.mxu0 0.0
    %3856 = vmatprep.subr.mxu0 0.0
    %3857 = vmatpush1.xpose.msra.mxu0 0.0
    %3858 = vmatprep.subr.mxu0 0.0
    %3859 = vmatpush1.xpose.msra.mxu0 0.0
    %3860 = vmatprep.subr.mxu0 0.0
    %3861 = vmatpush1.xpose.msra.mxu0 0.0
    %3862 = vmatprep.subr.mxu0 0.0
    %3863 = vmatpush1.xpose.msra.mxu0 0.0
    %3864 = vmatprep.subr.mxu0 0.0
    %3865 = vmatpush1.xpose.msra.mxu0 0.0
    %3866 = vmatprep.subr.mxu0 0.0
    %3867 = vmatpush1.xpose.msra.mxu0 0.0
    %3868 = vmatprep.subr.mxu0 0.0
    %3869 = vmatpush1.xpose.msra.mxu0 0.0
    %3870 = vmatprep.subr.mxu0 0.0
    %3871 = vmatpush1.xpose.msra.mxu0 0.0
    %3872 = vmatprep.subr.mxu0 0.0
    %3873 = vmatpush1.xpose.msra.mxu0 0.0
    %3874 = vmatprep.subr.mxu0 0.0
    %3875 = vmatpush1.xpose.msra.mxu0 0.0
    %3876 = vmatprep.subr.mxu0 0.0
    %3877 = vmatpush1.xpose.msra.mxu0 0.0
    %3878 = vmatprep.subr.mxu0 0.0
    %3879 = vmatpush1.xpose.msra.mxu0 0.0
    %3880 = vmatprep.subr.mxu0 0.0
    %3881 = vmatpush1.xpose.msra.mxu0 0.0
    %3882 = vmatprep.subr.mxu0 0.0
    %3883 = vmatpush1.xpose.msra.mxu0 0.0
    %3884 = vmatprep.subr.mxu0 0.0
    %3885 = vmatpush1.xpose.msra.mxu0 0.0
    %3886 = vmatprep.subr.mxu0 0.0
    %3887 = vmatpush1.xpose.msra.mxu0 0.0
    %3888 = vmatprep.subr.mxu0 0.0
    %3889 = vmatpush1.xpose.msra.mxu0 0.0
    %3890 = vmatprep.mubr.f32.mxu0 0.0
    %3891 = vmatmul.mubr.f32.gmra.mrb[0].mxu0 %v3822
    %v3892 = vpop.f32.mrb[0].mxu0
    %v3893 = vadd.f32 0.0, %v3892
    %v3894 = vpop.f32.mrb[0].mxu0
    %3895 = vdwg.mxu0
    %3897 = vrot.lane.b32.xlu0 %v3813, 96
    %v3898 = vpop.permute.xlu0 %3897
    %v3900 = vsel %vm168, %v3817, 0
    %v3902 = vsel %vm168, %v3898, 0
    %3904 = vmatprep.subr.mxu0 0.0
    %3905 = vmatpush1.xpose.msra.mxu0 %v3902
    %3906 = vmatprep.subr.mxu0 0.0
    %3907 = vmatpush1.xpose.msra.mxu0 0.0
    %3908 = vmatprep.subr.mxu0 0.0
    %3909 = vmatpush1.xpose.msra.mxu0 0.0
    %3910 = vmatprep.subr.mxu0 0.0
    %3911 = vmatpush1.xpose.msra.mxu0 0.0
    %3912 = vmatprep.subr.mxu0 0.0
    %3913 = vmatpush1.xpose.msra.mxu0 0.0
    %3914 = vmatprep.subr.mxu0 0.0
    %3915 = vmatpush1.xpose.msra.mxu0 0.0
    %3916 = vmatprep.subr.mxu0 0.0
    %3917 = vmatpush1.xpose.msra.mxu0 0.0
    %3918 = vmatprep.subr.mxu0 0.0
    %3919 = vmatpush1.xpose.msra.mxu0 0.0
    %3920 = vmatprep.subr.mxu0 0.0
    %3921 = vmatpush1.xpose.msra.mxu0 0.0
    %3922 = vmatprep.subr.mxu0 0.0
    %3923 = vmatpush1.xpose.msra.mxu0 0.0
    %3924 = vmatprep.subr.mxu0 0.0
    %3925 = vmatpush1.xpose.msra.mxu0 0.0
    %3926 = vmatprep.subr.mxu0 0.0
    %3927 = vmatpush1.xpose.msra.mxu0 0.0
    %3928 = vmatprep.subr.mxu0 0.0
    %3929 = vmatpush1.xpose.msra.mxu0 0.0
    %3930 = vmatprep.subr.mxu0 0.0
    %3931 = vmatpush1.xpose.msra.mxu0 0.0
    %3932 = vmatprep.subr.mxu0 0.0
    %3933 = vmatpush1.xpose.msra.mxu0 0.0
    %3934 = vmatprep.subr.mxu0 0.0
    %3935 = vmatpush1.xpose.msra.mxu0 0.0
    %3936 = vmatprep.subr.mxu0 0.0
    %3937 = vmatpush1.xpose.msra.mxu0 0.0
    %3938 = vmatprep.subr.mxu0 0.0
    %3939 = vmatpush1.xpose.msra.mxu0 0.0
    %3940 = vmatprep.subr.mxu0 0.0
    %3941 = vmatpush1.xpose.msra.mxu0 0.0
    %3942 = vmatprep.subr.mxu0 0.0
    %3943 = vmatpush1.xpose.msra.mxu0 0.0
    %3944 = vmatprep.subr.mxu0 0.0
    %3945 = vmatpush1.xpose.msra.mxu0 0.0
    %3946 = vmatprep.subr.mxu0 0.0
    %3947 = vmatpush1.xpose.msra.mxu0 0.0
    %3948 = vmatprep.subr.mxu0 0.0
    %3949 = vmatpush1.xpose.msra.mxu0 0.0
    %3950 = vmatprep.subr.mxu0 0.0
    %3951 = vmatpush1.xpose.msra.mxu0 0.0
    %3952 = vmatprep.subr.mxu0 0.0
    %3953 = vmatpush1.xpose.msra.mxu0 0.0
    %3954 = vmatprep.subr.mxu0 0.0
    %3955 = vmatpush1.xpose.msra.mxu0 0.0
    %3956 = vmatprep.subr.mxu0 0.0
    %3957 = vmatpush1.xpose.msra.mxu0 0.0
    %3958 = vmatprep.subr.mxu0 0.0
    %3959 = vmatpush1.xpose.msra.mxu0 0.0
    %3960 = vmatprep.subr.mxu0 0.0
    %3961 = vmatpush1.xpose.msra.mxu0 0.0
    %3962 = vmatprep.subr.mxu0 0.0
    %3963 = vmatpush1.xpose.msra.mxu0 0.0
    %3964 = vmatprep.subr.mxu0 0.0
    %3965 = vmatpush1.xpose.msra.mxu0 0.0
    %3966 = vmatprep.subr.mxu0 0.0
    %3967 = vmatpush1.xpose.msra.mxu0 0.0
    %3968 = vmatprep.mubr.f32.mxu0 0.0
    %3969 = vmatmul.mubr.f32.gmra.mrb[0].mxu0 %v3900
    %v3970 = vpop.f32.mrb[0].mxu0
    %v3971 = vadd.f32 0.0, %v3970
    %v3972 = vpop.f32.mrb[0].mxu0
    %3973 = vdwg.mxu0
    %v3974 = vsel %vm168, %v3893, -inf
    %3975 = vmax.xlane.f32.xlu0 %v3974
    %v3976 = vpop.xlane.xlu0 %3975
    %v3977 = vsel %vm168, %v3971, -inf
    %3978 = vmax.xlane.f32.xlu0 %v3977
    %v3979 = vpop.xlane.xlu0 %3978
    %v3980 = vsub.f32 %v3893, %v3976
    %v3981 = vsub.f32 %v3971, %v3979
    %v3982 = vmul.f32 %v3980, 1.442695
    %v3983 = vpow.pop %v3982
    %v3984 = vmul.f32 %v3981, 1.442695
    %v3985 = vpow.pop %v3984
    %v3986 = vsel %vm168, %v3983, 0.0
    %3987 = vadd.xlane.f32.xlu0 %v3986
    %v3988 = vpop.xlane.xlu0 %3987
    %v3989 = vsel %vm168, %v3985, 0.0
    %3990 = vadd.xlane.f32.xlu0 %v3989
    %v3991 = vpop.xlane.xlu0 %3990
    %v3992 = vrcp.pop %v3988
    %v3993 = vrcp.pop %v3991
    %v3994 = vmul.f32 %v3983, %v3992
    %v3995 = vmul.f32 %v3985, %v3993
    %3996 = vrot.lane.b32.xlu0 %v3808, 64
    %v3997 = vpop.permute.xlu0 %3996
    %v4000 = vsel %vm168, %v3994, 0
    %4002 = vmatprep.subr.mxu0 0.0
    %4003 = vmatpush1.msra.mxu0 %v3997
    %4004 = vmatprep.subr.mxu0 0.0
    %4005 = vmatpush1.msra.mxu0 0.0
    %4006 = vmatprep.subr.mxu0 0.0
    %4007 = vmatpush1.msra.mxu0 0.0
    %4008 = vmatprep.subr.mxu0 0.0
    %4009 = vmatpush1.msra.mxu0 0.0
    %4010 = vmatprep.subr.mxu0 0.0
    %4011 = vmatpush1.msra.mxu0 0.0
    %4012 = vmatprep.subr.mxu0 0.0
    %4013 = vmatpush1.msra.mxu0 0.0
    %4014 = vmatprep.subr.mxu0 0.0
    %4015 = vmatpush1.msra.mxu0 0.0
    %4016 = vmatprep.subr.mxu0 0.0
    %4017 = vmatpush1.msra.mxu0 0.0
    %4018 = vmatprep.subr.mxu0 0.0
    %4019 = vmatpush1.msra.mxu0 0.0
    %4020 = vmatprep.subr.mxu0 0.0
    %4021 = vmatpush1.msra.mxu0 0.0
    %4022 = vmatprep.subr.mxu0 0.0
    %4023 = vmatpush1.msra.mxu0 0.0
    %4024 = vmatprep.subr.mxu0 0.0
    %4025 = vmatpush1.msra.mxu0 0.0
    %4026 = vmatprep.subr.mxu0 0.0
    %4027 = vmatpush1.msra.mxu0 0.0
    %4028 = vmatprep.subr.mxu0 0.0
    %4029 = vmatpush1.msra.mxu0 0.0
    %4030 = vmatprep.subr.mxu0 0.0
    %4031 = vmatpush1.msra.mxu0 0.0
    %4032 = vmatprep.subr.mxu0 0.0
    %4033 = vmatpush1.msra.mxu0 0.0
    %4034 = vmatprep.subr.mxu0 0.0
    %4035 = vmatpush1.msra.mxu0 0.0
    %4036 = vmatprep.subr.mxu0 0.0
    %4037 = vmatpush1.msra.mxu0 0.0
    %4038 = vmatprep.subr.mxu0 0.0
    %4039 = vmatpush1.msra.mxu0 0.0
    %4040 = vmatprep.subr.mxu0 0.0
    %4041 = vmatpush1.msra.mxu0 0.0
    %4042 = vmatprep.subr.mxu0 0.0
    %4043 = vmatpush1.msra.mxu0 0.0
    %4044 = vmatprep.subr.mxu0 0.0
    %4045 = vmatpush1.msra.mxu0 0.0
    %4046 = vmatprep.subr.mxu0 0.0
    %4047 = vmatpush1.msra.mxu0 0.0
    %4048 = vmatprep.subr.mxu0 0.0
    %4049 = vmatpush1.msra.mxu0 0.0
    %4050 = vmatprep.subr.mxu0 0.0
    %4051 = vmatpush1.msra.mxu0 0.0
    %4052 = vmatprep.subr.mxu0 0.0
    %4053 = vmatpush1.msra.mxu0 0.0
    %4054 = vmatprep.subr.mxu0 0.0
    %4055 = vmatpush1.msra.mxu0 0.0
    %4056 = vmatprep.subr.mxu0 0.0
    %4057 = vmatpush1.msra.mxu0 0.0
    %4058 = vmatprep.subr.mxu0 0.0
    %4059 = vmatpush1.msra.mxu0 0.0
    %4060 = vmatprep.subr.mxu0 0.0
    %4061 = vmatpush1.msra.mxu0 0.0
    %4062 = vmatprep.subr.mxu0 0.0
    %4063 = vmatpush1.msra.mxu0 0.0
    %4064 = vmatprep.subr.mxu0 0.0
    %4065 = vmatpush1.msra.mxu0 0.0
    %4066 = vmatprep.mubr.f32.mxu0 0.0
    %4067 = vmatmul.mubr.f32.gmra.mrb[0].mxu0 %v4000
    %v4068 = vpop.f32.mrb[0].mxu0
    %v4069 = vadd.f32 0.0, %v4068
    %v4070 = vpop.f32.mrb[0].mxu0
    %4071 = vdwg.mxu0
    %4072 = vrot.lane.b32.xlu0 %v3813, 64
    %v4073 = vpop.permute.xlu0 %4072
    %v4076 = vsel %vm168, %v3995, 0
    %4078 = vmatprep.subr.mxu0 0.0
    %4079 = vmatpush1.msra.mxu0 %v4073
    %4080 = vmatprep.subr.mxu0 0.0
    %4081 = vmatpush1.msra.mxu0 0.0
    %4082 = vmatprep.subr.mxu0 0.0
    %4083 = vmatpush1.msra.mxu0 0.0
    %4084 = vmatprep.subr.mxu0 0.0
    %4085 = vmatpush1.msra.mxu0 0.0
    %4086 = vmatprep.subr.mxu0 0.0
    %4087 = vmatpush1.msra.mxu0 0.0
    %4088 = vmatprep.subr.mxu0 0.0
    %4089 = vmatpush1.msra.mxu0 0.0
    %4090 = vmatprep.subr.mxu0 0.0
    %4091 = vmatpush1.msra.mxu0 0.0
    %4092 = vmatprep.subr.mxu0 0.0
    %4093 = vmatpush1.msra.mxu0 0.0
    %4094 = vmatprep.subr.mxu0 0.0
    %4095 = vmatpush1.msra.mxu0 0.0
    %4096 = vmatprep.subr.mxu0 0.0
    %4097 = vmatpush1.msra.mxu0 0.0
    %4098 = vmatprep.subr.mxu0 0.0
    %4099 = vmatpush1.msra.mxu0 0.0
    %4100 = vmatprep.subr.mxu0 0.0
    %4101 = vmatpush1.msra.mxu0 0.0
    %4102 = vmatprep.subr.mxu0 0.0
    %4103 = vmatpush1.msra.mxu0 0.0
    %4104 = vmatprep.subr.mxu0 0.0
    %4105 = vmatpush1.msra.mxu0 0.0
    %4106 = vmatprep.subr.mxu0 0.0
    %4107 = vmatpush1.msra.mxu0 0.0
    %4108 = vmatprep.subr.mxu0 0.0
    %4109 = vmatpush1.msra.mxu0 0.0
    %4110 = vmatprep.subr.mxu0 0.0
    %4111 = vmatpush1.msra.mxu0 0.0
    %4112 = vmatprep.subr.mxu0 0.0
    %4113 = vmatpush1.msra.mxu0 0.0
    %4114 = vmatprep.subr.mxu0 0.0
    %4115 = vmatpush1.msra.mxu0 0.0
    %4116 = vmatprep.subr.mxu0 0.0
    %4117 = vmatpush1.msra.mxu0 0.0
    %4118 = vmatprep.subr.mxu0 0.0
    %4119 = vmatpush1.msra.mxu0 0.0
    %4120 = vmatprep.subr.mxu0 0.0
    %4121 = vmatpush1.msra.mxu0 0.0
    %4122 = vmatprep.subr.mxu0 0.0
    %4123 = vmatpush1.msra.mxu0 0.0
    %4124 = vmatprep.subr.mxu0 0.0
    %4125 = vmatpush1.msra.mxu0 0.0
    %4126 = vmatprep.subr.mxu0 0.0
    %4127 = vmatpush1.msra.mxu0 0.0
    %4128 = vmatprep.subr.mxu0 0.0
    %4129 = vmatpush1.msra.mxu0 0.0
    %4130 = vmatprep.subr.mxu0 0.0
    %4131 = vmatpush1.msra.mxu0 0.0
    %4132 = vmatprep.subr.mxu0 0.0
    %4133 = vmatpush1.msra.mxu0 0.0
    %4134 = vmatprep.subr.mxu0 0.0
    %4135 = vmatpush1.msra.mxu0 0.0
    %4136 = vmatprep.subr.mxu0 0.0
    %4137 = vmatpush1.msra.mxu0 0.0
    %4138 = vmatprep.subr.mxu0 0.0
    %4139 = vmatpush1.msra.mxu0 0.0
    %4140 = vmatprep.subr.mxu0 0.0
    %4141 = vmatpush1.msra.mxu0 0.0
    %4142 = vmatprep.mubr.f32.mxu0 0.0
    %4143 = vmatmul.mubr.f32.gmra.mrb[0].mxu0 %v4076
    %v4144 = vpop.f32.mrb[0].mxu0
    %v4145 = vadd.f32 0.0, %v4144
    %v4146 = vpop.f32.mrb[0].mxu0
    %4147 = vdwg.mxu0
    %4148 = vrot.lane.b32.xlu0 %v3816, 120
    %v4149 = vpop.permute.xlu0 %4148
    %4150 = vrot.lane.b32.xlu0 %v3808, 88
    %v4151 = vpop.permute.xlu0 %4150
    %v4152 = vsel %vm168, %v4149, 0
    %v4154 = vsel %vm168, %v4151, 0
    %4156 = vmatprep.subr.mxu0 0.0
    %4157 = vmatpush1.xpose.msra.mxu0 %v4154
    %4158 = vmatprep.subr.mxu0 0.0
    %4159 = vmatpush1.xpose.msra.mxu0 0.0
    %4160 = vmatprep.subr.mxu0 0.0
    %4161 = vmatpush1.xpose.msra.mxu0 0.0
    %4162 = vmatprep.subr.mxu0 0.0
    %4163 = vmatpush1.xpose.msra.mxu0 0.0
    %4164 = vmatprep.subr.mxu0 0.0
    %4165 = vmatpush1.xpose.msra.mxu0 0.0
    %4166 = vmatprep.subr.mxu0 0.0
    %4167 = vmatpush1.xpose.msra.mxu0 0.0
    %4168 = vmatprep.subr.mxu0 0.0
    %4169 = vmatpush1.xpose.msra.mxu0 0.0
    %4170 = vmatprep.subr.mxu0 0.0
    %4171 = vmatpush1.xpose.msra.mxu0 0.0
    %4172 = vmatprep.subr.mxu0 0.0
    %4173 = vmatpush1.xpose.msra.mxu0 0.0
    %4174 = vmatprep.subr.mxu0 0.0
    %4175 = vmatpush1.xpose.msra.mxu0 0.0
    %4176 = vmatprep.subr.mxu0 0.0
    %4177 = vmatpush1.xpose.msra.mxu0 0.0
    %4178 = vmatprep.subr.mxu0 0.0
    %4179 = vmatpush1.xpose.msra.mxu0 0.0
    %4180 = vmatprep.subr.mxu0 0.0
    %4181 = vmatpush1.xpose.msra.mxu0 0.0
    %4182 = vmatprep.subr.mxu0 0.0
    %4183 = vmatpush1.xpose.msra.mxu0 0.0
    %4184 = vmatprep.subr.mxu0 0.0
    %4185 = vmatpush1.xpose.msra.mxu0 0.0
    %4186 = vmatprep.subr.mxu0 0.0
    %4187 = vmatpush1.xpose.msra.mxu0 0.0
    %4188 = vmatprep.subr.mxu0 0.0
    %4189 = vmatpush1.xpose.msra.mxu0 0.0
    %4190 = vmatprep.subr.mxu0 0.0
    %4191 = vmatpush1.xpose.msra.mxu0 0.0
    %4192 = vmatprep.subr.mxu0 0.0
    %4193 = vmatpush1.xpose.msra.mxu0 0.0
    %4194 = vmatprep.subr.mxu0 0.0
    %4195 = vmatpush1.xpose.msra.mxu0 0.0
    %4196 = vmatprep.subr.mxu0 0.0
    %4197 = vmatpush1.xpose.msra.mxu0 0.0
    %4198 = vmatprep.subr.mxu0 0.0
    %4199 = vmatpush1.xpose.msra.mxu0 0.0
    %4200 = vmatprep.subr.mxu0 0.0
    %4201 = vmatpush1.xpose.msra.mxu0 0.0
    %4202 = vmatprep.subr.mxu0 0.0
    %4203 = vmatpush1.xpose.msra.mxu0 0.0
    %4204 = vmatprep.subr.mxu0 0.0
    %4205 = vmatpush1.xpose.msra.mxu0 0.0
    %4206 = vmatprep.subr.mxu0 0.0
    %4207 = vmatpush1.xpose.msra.mxu0 0.0
    %4208 = vmatprep.subr.mxu0 0.0
    %4209 = vmatpush1.xpose.msra.mxu0 0.0
    %4210 = vmatprep.subr.mxu0 0.0
    %4211 = vmatpush1.xpose.msra.mxu0 0.0
    %4212 = vmatprep.subr.mxu0 0.0
    %4213 = vmatpush1.xpose.msra.mxu0 0.0
    %4214 = vmatprep.subr.mxu0 0.0
    %4215 = vmatpush1.xpose.msra.mxu0 0.0
    %4216 = vmatprep.subr.mxu0 0.0
    %4217 = vmatpush1.xpose.msra.mxu0 0.0
    %4218 = vmatprep.subr.mxu0 0.0
    %4219 = vmatpush1.xpose.msra.mxu0 0.0
    %4220 = vmatprep.mubr.f32.mxu0 0.0
    %4221 = vmatmul.mubr.f32.gmra.mrb[0].mxu0 %v4152
    %v4222 = vpop.f32.mrb[0].mxu0
    %v4223 = vadd.f32 0.0, %v4222
    %v4224 = vpop.f32.mrb[0].mxu0
    %4225 = vdwg.mxu0
    %4226 = vrot.lane.b32.xlu0 %v3817, 120
    %v4227 = vpop.permute.xlu0 %4226
    %4228 = vrot.lane.b32.xlu0 %v3813, 88
    %v4229 = vpop.permute.xlu0 %4228
    %v4230 = vsel %vm168, %v4227, 0
    %v4232 = vsel %vm168, %v4229, 0
    %4234 = vmatprep.subr.mxu0 0.0
    %4235 = vmatpush1.xpose.msra.mxu0 %v4232
    %4236 = vmatprep.subr.mxu0 0.0
    %4237 = vmatpush1.xpose.msra.mxu0 0.0
    %4238 = vmatprep.subr.mxu0 0.0
    %4239 = vmatpush1.xpose.msra.mxu0 0.0
    %4240 = vmatprep.subr.mxu0 0.0
    %4241 = vmatpush1.xpose.msra.mxu0 0.0
    %4242 = vmatprep.subr.mxu0 0.0
    %4243 = vmatpush1.xpose.msra.mxu0 0.0
    %4244 = vmatprep.subr.mxu0 0.0
    %4245 = vmatpush1.xpose.msra.mxu0 0.0
    %4246 = vmatprep.subr.mxu0 0.0
    %4247 = vmatpush1.xpose.msra.mxu0 0.0
    %4248 = vmatprep.subr.mxu0 0.0
    %4249 = vmatpush1.xpose.msra.mxu0 0.0
    %4250 = vmatprep.subr.mxu0 0.0
    %4251 = vmatpush1.xpose.msra.mxu0 0.0
    %4252 = vmatprep.subr.mxu0 0.0
    %4253 = vmatpush1.xpose.msra.mxu0 0.0
    %4254 = vmatprep.subr.mxu0 0.0
    %4255 = vmatpush1.xpose.msra.mxu0 0.0
    %4256 = vmatprep.subr.mxu0 0.0
    %4257 = vmatpush1.xpose.msra.mxu0 0.0
    %4258 = vmatprep.subr.mxu0 0.0
    %4259 = vmatpush1.xpose.msra.mxu0 0.0
    %4260 = vmatprep.subr.mxu0 0.0
    %4261 = vmatpush1.xpose.msra.mxu0 0.0
    %4262 = vmatprep.subr.mxu0 0.0
    %4263 = vmatpush1.xpose.msra.mxu0 0.0
    %4264 = vmatprep.subr.mxu0 0.0
    %4265 = vmatpush1.xpose.msra.mxu0 0.0
    %4266 = vmatprep.subr.mxu0 0.0
    %4267 = vmatpush1.xpose.msra.mxu0 0.0
    %4268 = vmatprep.subr.mxu0 0.0
    %4269 = vmatpush1.xpose.msra.mxu0 0.0
    %4270 = vmatprep.subr.mxu0 0.0
    %4271 = vmatpush1.xpose.msra.mxu0 0.0
    %4272 = vmatprep.subr.mxu0 0.0
    %4273 = vmatpush1.xpose.msra.mxu0 0.0
    %4274 = vmatprep.subr.mxu0 0.0
    %4275 = vmatpush1.xpose.msra.mxu0 0.0
    %4276 = vmatprep.subr.mxu0 0.0
    %4277 = vmatpush1.xpose.msra.mxu0 0.0
    %4278 = vmatprep.subr.mxu0 0.0
    %4279 = vmatpush1.xpose.msra.mxu0 0.0
    %4280 = vmatprep.subr.mxu0 0.0
    %4281 = vmatpush1.xpose.msra.mxu0 0.0
    %4282 = vmatprep.subr.mxu0 0.0
    %4283 = vmatpush1.xpose.msra.mxu0 0.0
    %4284 = vmatprep.subr.mxu0 0.0
    %4285 = vmatpush1.xpose.msra.mxu0 0.0
    %4286 = vmatprep.subr.mxu0 0.0
    %4287 = vmatpush1.xpose.msra.mxu0 0.0
    %4288 = vmatprep.subr.mxu0 0.0
    %4289 = vmatpush1.xpose.msra.mxu0 0.0
    %4290 = vmatprep.subr.mxu0 0.0
    %4291 = vmatpush1.xpose.msra.mxu0 0.0
    %4292 = vmatprep.subr.mxu0 0.0
    %4293 = vmatpush1.xpose.msra.mxu0 0.0
    %4294 = vmatprep.subr.mxu0 0.0
    %4295 = vmatpush1.xpose.msra.mxu0 0.0
    %4296 = vmatprep.subr.mxu0 0.0
    %4297 = vmatpush1.xpose.msra.mxu0 0.0
    %4298 = vmatprep.mubr.f32.mxu0 0.0
    %4299 = vmatmul.mubr.f32.gmra.mrb[0].mxu0 %v4230
    %v4300 = vpop.f32.mrb[0].mxu0
    %v4301 = vadd.f32 0.0, %v4300
    %v4302 = vpop.f32.mrb[0].mxu0
    %4303 = vdwg.mxu0
    %v4304 = vsel %vm168, %v4223, -inf
    %4305 = vmax.xlane.f32.xlu0 %v4304
    %v4306 = vpop.xlane.xlu0 %4305
    %v4307 = vsel %vm168, %v4301, -inf
    %4308 = vmax.xlane.f32.xlu0 %v4307
    %v4309 = vpop.xlane.xlu0 %4308
    %v4310 = vsub.f32 %v4223, %v4306
    %v4311 = vsub.f32 %v4301, %v4309
    %v4312 = vmul.f32 %v4310, 1.442695
    %v4313 = vpow.pop %v4312
    %v4314 = vmul.f32 %v4311, 1.442695
    %v4315 = vpow.pop %v4314
    %v4316 = vsel %vm168, %v4313, 0.0
    %4317 = vadd.xlane.f32.xlu0 %v4316
    %v4318 = vpop.xlane.xlu0 %4317
    %v4319 = vsel %vm168, %v4315, 0.0
    %4320 = vadd.xlane.f32.xlu0 %v4319
    %v4321 = vpop.xlane.xlu0 %4320
    %v4322 = vrcp.pop %v4318
    %v4323 = vrcp.pop %v4321
    %v4324 = vmul.f32 %v4313, %v4322
    %v4325 = vmul.f32 %v4315, %v4323
    %4326 = vrot.lane.b32.xlu0 %v3808, 56
    %v4327 = vpop.permute.xlu0 %4326
    %v4330 = vsel %vm168, %v4324, 0
    %4332 = vmatprep.subr.mxu0 0.0
    %4333 = vmatpush1.msra.mxu0 %v4327
    %4334 = vmatprep.subr.mxu0 0.0
    %4335 = vmatpush1.msra.mxu0 0.0
    %4336 = vmatprep.subr.mxu0 0.0
    %4337 = vmatpush1.msra.mxu0 0.0
    %4338 = vmatprep.subr.mxu0 0.0
    %4339 = vmatpush1.msra.mxu0 0.0
    %4340 = vmatprep.subr.mxu0 0.0
    %4341 = vmatpush1.msra.mxu0 0.0
    %4342 = vmatprep.subr.mxu0 0.0
    %4343 = vmatpush1.msra.mxu0 0.0
    %4344 = vmatprep.subr.mxu0 0.0
    %4345 = vmatpush1.msra.mxu0 0.0
    %4346 = vmatprep.subr.mxu0 0.0
    %4347 = vmatpush1.msra.mxu0 0.0
    %4348 = vmatprep.subr.mxu0 0.0
    %4349 = vmatpush1.msra.mxu0 0.0
    %4350 = vmatprep.subr.mxu0 0.0
    %4351 = vmatpush1.msra.mxu0 0.0
    %4352 = vmatprep.subr.mxu0 0.0
    %4353 = vmatpush1.msra.mxu0 0.0
    %4354 = vmatprep.subr.mxu0 0.0
    %4355 = vmatpush1.msra.mxu0 0.0
    %4356 = vmatprep.subr.mxu0 0.0
    %4357 = vmatpush1.msra.mxu0 0.0
    %4358 = vmatprep.subr.mxu0 0.0
    %4359 = vmatpush1.msra.mxu0 0.0
    %4360 = vmatprep.subr.mxu0 0.0
    %4361 = vmatpush1.msra.mxu0 0.0
    %4362 = vmatprep.subr.mxu0 0.0
    %4363 = vmatpush1.msra.mxu0 0.0
    %4364 = vmatprep.subr.mxu0 0.0
    %4365 = vmatpush1.msra.mxu0 0.0
    %4366 = vmatprep.subr.mxu0 0.0
    %4367 = vmatpush1.msra.mxu0 0.0
    %4368 = vmatprep.subr.mxu0 0.0
    %4369 = vmatpush1.msra.mxu0 0.0
    %4370 = vmatprep.subr.mxu0 0.0
    %4371 = vmatpush1.msra.mxu0 0.0
    %4372 = vmatprep.subr.mxu0 0.0
    %4373 = vmatpush1.msra.mxu0 0.0
    %4374 = vmatprep.subr.mxu0 0.0
    %4375 = vmatpush1.msra.mxu0 0.0
    %4376 = vmatprep.subr.mxu0 0.0
    %4377 = vmatpush1.msra.mxu0 0.0
    %4378 = vmatprep.subr.mxu0 0.0
    %4379 = vmatpush1.msra.mxu0 0.0
    %4380 = vmatprep.subr.mxu0 0.0
    %4381 = vmatpush1.msra.mxu0 0.0
    %4382 = vmatprep.subr.mxu0 0.0
    %4383 = vmatpush1.msra.mxu0 0.0
    %4384 = vmatprep.subr.mxu0 0.0
    %4385 = vmatpush1.msra.mxu0 0.0
    %4386 = vmatprep.subr.mxu0 0.0
    %4387 = vmatpush1.msra.mxu0 0.0
    %4388 = vmatprep.subr.mxu0 0.0
    %4389 = vmatpush1.msra.mxu0 0.0
    %4390 = vmatprep.subr.mxu0 0.0
    %4391 = vmatpush1.msra.mxu0 0.0
    %4392 = vmatprep.subr.mxu0 0.0
    %4393 = vmatpush1.msra.mxu0 0.0
    %4394 = vmatprep.subr.mxu0 0.0
    %4395 = vmatpush1.msra.mxu0 0.0
    %4396 = vmatprep.mubr.f32.mxu0 0.0
    %4397 = vmatmul.mubr.f32.gmra.mrb[0].mxu0 %v4330
    %v4398 = vpop.f32.mrb[0].mxu0
    %v4399 = vadd.f32 0.0, %v4398
    %v4400 = vpop.f32.mrb[0].mxu0
    %4401 = vdwg.mxu0
    %4402 = vrot.lane.b32.xlu0 %v3813, 56
    %v4403 = vpop.permute.xlu0 %4402
    %v4406 = vsel %vm168, %v4325, 0
    %4408 = vmatprep.subr.mxu0 0.0
    %4409 = vmatpush1.msra.mxu0 %v4403
    %4410 = vmatprep.subr.mxu0 0.0
    %4411 = vmatpush1.msra.mxu0 0.0
    %4412 = vmatprep.subr.mxu0 0.0
    %4413 = vmatpush1.msra.mxu0 0.0
    %4414 = vmatprep.subr.mxu0 0.0
    %4415 = vmatpush1.msra.mxu0 0.0
    %4416 = vmatprep.subr.mxu0 0.0
    %4417 = vmatpush1.msra.mxu0 0.0
    %4418 = vmatprep.subr.mxu0 0.0
    %4419 = vmatpush1.msra.mxu0 0.0
    %4420 = vmatprep.subr.mxu0 0.0
    %4421 = vmatpush1.msra.mxu0 0.0
    %4422 = vmatprep.subr.mxu0 0.0
    %4423 = vmatpush1.msra.mxu0 0.0
    %4424 = vmatprep.subr.mxu0 0.0
    %4425 = vmatpush1.msra.mxu0 0.0
    %4426 = vmatprep.subr.mxu0 0.0
    %4427 = vmatpush1.msra.mxu0 0.0
    %4428 = vmatprep.subr.mxu0 0.0
    %4429 = vmatpush1.msra.mxu0 0.0
    %4430 = vmatprep.subr.mxu0 0.0
    %4431 = vmatpush1.msra.mxu0 0.0
    %4432 = vmatprep.subr.mxu0 0.0
    %4433 = vmatpush1.msra.mxu0 0.0
    %4434 = vmatprep.subr.mxu0 0.0
    %4435 = vmatpush1.msra.mxu0 0.0
    %4436 = vmatprep.subr.mxu0 0.0
    %4437 = vmatpush1.msra.mxu0 0.0
    %4438 = vmatprep.subr.mxu0 0.0
    %4439 = vmatpush1.msra.mxu0 0.0
    %4440 = vmatprep.subr.mxu0 0.0
    %4441 = vmatpush1.msra.mxu0 0.0
    %4442 = vmatprep.subr.mxu0 0.0
    %4443 = vmatpush1.msra.mxu0 0.0
    %4444 = vmatprep.subr.mxu0 0.0
    %4445 = vmatpush1.msra.mxu0 0.0
    %4446 = vmatprep.subr.mxu0 0.0
    %4447 = vmatpush1.msra.mxu0 0.0
    %4448 = vmatprep.subr.mxu0 0.0
    %4449 = vmatpush1.msra.mxu0 0.0
    %4450 = vmatprep.subr.mxu0 0.0
    %4451 = vmatpush1.msra.mxu0 0.0
    %4452 = vmatprep.subr.mxu0 0.0
    %4453 = vmatpush1.msra.mxu0 0.0
    %4454 = vmatprep.subr.mxu0 0.0
    %4455 = vmatpush1.msra.mxu0 0.0
    %4456 = vmatprep.subr.mxu0 0.0
    %4457 = vmatpush1.msra.mxu0 0.0
    %4458 = vmatprep.subr.mxu0 0.0
    %4459 = vmatpush1.msra.mxu0 0.0
    %4460 = vmatprep.subr.mxu0 0.0
    %4461 = vmatpush1.msra.mxu0 0.0
    %4462 = vmatprep.subr.mxu0 0.0
    %4463 = vmatpush1.msra.mxu0 0.0
    %4464 = vmatprep.subr.mxu0 0.0
    %4465 = vmatpush1.msra.mxu0 0.0
    %4466 = vmatprep.subr.mxu0 0.0
    %4467 = vmatpush1.msra.mxu0 0.0
    %4468 = vmatprep.subr.mxu0 0.0
    %4469 = vmatpush1.msra.mxu0 0.0
    %4470 = vmatprep.subr.mxu0 0.0
    %4471 = vmatpush1.msra.mxu0 0.0
    %4472 = vmatprep.mubr.f32.mxu0 0.0
    %4473 = vmatmul.mubr.f32.gmra.mrb[0].mxu0 %v4406
    %v4474 = vpop.f32.mrb[0].mxu0
    %v4475 = vadd.f32 0.0, %v4474
    %v4476 = vpop.f32.mrb[0].mxu0
    %4477 = vdwg.mxu0
    %4478 = vrot.lane.b32.xlu0 %v3816, 112
    %v4479 = vpop.permute.xlu0 %4478
    %4480 = vrot.lane.b32.xlu0 %v3808, 80
    %v4481 = vpop.permute.xlu0 %4480
    %v4482 = vsel %vm168, %v4479, 0
    %v4484 = vsel %vm168, %v4481, 0
    %4486 = vmatprep.subr.mxu0 0.0
    %4487 = vmatpush1.xpose.msra.mxu0 %v4484
    %4488 = vmatprep.subr.mxu0 0.0
    %4489 = vmatpush1.xpose.msra.mxu0 0.0
    %4490 = vmatprep.subr.mxu0 0.0
    %4491 = vmatpush1.xpose.msra.mxu0 0.0
    %4492 = vmatprep.subr.mxu0 0.0
    %4493 = vmatpush1.xpose.msra.mxu0 0.0
    %4494 = vmatprep.subr.mxu0 0.0
    %4495 = vmatpush1.xpose.msra.mxu0 0.0
    %4496 = vmatprep.subr.mxu0 0.0
    %4497 = vmatpush1.xpose.msra.mxu0 0.0
    %4498 = vmatprep.subr.mxu0 0.0
    %4499 = vmatpush1.xpose.msra.mxu0 0.0
    %4500 = vmatprep.subr.mxu0 0.0
    %4501 = vmatpush1.xpose.msra.mxu0 0.0
    %4502 = vmatprep.subr.mxu0 0.0
    %4503 = vmatpush1.xpose.msra.mxu0 0.0
    %4504 = vmatprep.subr.mxu0 0.0
    %4505 = vmatpush1.xpose.msra.mxu0 0.0
    %4506 = vmatprep.subr.mxu0 0.0
    %4507 = vmatpush1.xpose.msra.mxu0 0.0
    %4508 = vmatprep.subr.mxu0 0.0
    %4509 = vmatpush1.xpose.msra.mxu0 0.0
    %4510 = vmatprep.subr.mxu0 0.0
    %4511 = vmatpush1.xpose.msra.mxu0 0.0
    %4512 = vmatprep.subr.mxu0 0.0
    %4513 = vmatpush1.xpose.msra.mxu0 0.0
    %4514 = vmatprep.subr.mxu0 0.0
    %4515 = vmatpush1.xpose.msra.mxu0 0.0
    %4516 = vmatprep.subr.mxu0 0.0
    %4517 = vmatpush1.xpose.msra.mxu0 0.0
    %4518 = vmatprep.subr.mxu0 0.0
    %4519 = vmatpush1.xpose.msra.mxu0 0.0
    %4520 = vmatprep.subr.mxu0 0.0
    %4521 = vmatpush1.xpose.msra.mxu0 0.0
    %4522 = vmatprep.subr.mxu0 0.0
    %4523 = vmatpush1.xpose.msra.mxu0 0.0
    %4524 = vmatprep.subr.mxu0 0.0
    %4525 = vmatpush1.xpose.msra.mxu0 0.0
    %4526 = vmatprep.subr.mxu0 0.0
    %4527 = vmatpush1.xpose.msra.mxu0 0.0
    %4528 = vmatprep.subr.mxu0 0.0
    %4529 = vmatpush1.xpose.msra.mxu0 0.0
    %4530 = vmatprep.subr.mxu0 0.0
    %4531 = vmatpush1.xpose.msra.mxu0 0.0
    %4532 = vmatprep.subr.mxu0 0.0
    %4533 = vmatpush1.xpose.msra.mxu0 0.0
    %4534 = vmatprep.subr.mxu0 0.0
    %4535 = vmatpush1.xpose.msra.mxu0 0.0
    %4536 = vmatprep.subr.mxu0 0.0
    %4537 = vmatpush1.xpose.msra.mxu0 0.0
    %4538 = vmatprep.subr.mxu0 0.0
    %4539 = vmatpush1.xpose.msra.mxu0 0.0
    %4540 = vmatprep.subr.mxu0 0.0
    %4541 = vmatpush1.xpose.msra.mxu0 0.0
    %4542 = vmatprep.subr.mxu0 0.0
    %4543 = vmatpush1.xpose.msra.mxu0 0.0
    %4544 = vmatprep.subr.mxu0 0.0
    %4545 = vmatpush1.xpose.msra.mxu0 0.0
    %4546 = vmatprep.subr.mxu0 0.0
    %4547 = vmatpush1.xpose.msra.mxu0 0.0
    %4548 = vmatprep.subr.mxu0 0.0
    %4549 = vmatpush1.xpose.msra.mxu0 0.0
    %4550 = vmatprep.mubr.f32.mxu0 0.0
    %4551 = vmatmul.mubr.f32.gmra.mrb[0].mxu0 %v4482
    %v4552 = vpop.f32.mrb[0].mxu0
    %v4553 = vadd.f32 0.0, %v4552
    %v4554 = vpop.f32.mrb[0].mxu0
    %4555 = vdwg.mxu0
    %4556 = vrot.lane.b32.xlu0 %v3817, 112
    %v4557 = vpop.permute.xlu0 %4556
    %4558 = vrot.lane.b32.xlu0 %v3813, 80
    %v4559 = vpop.permute.xlu0 %4558
    %v4560 = vsel %vm168, %v4557, 0
    %v4562 = vsel %vm168, %v4559, 0
    %4564 = vmatprep.subr.mxu0 0.0
    %4565 = vmatpush1.xpose.msra.mxu0 %v4562
    %4566 = vmatprep.subr.mxu0 0.0
    %4567 = vmatpush1.xpose.msra.mxu0 0.0
    %4568 = vmatprep.subr.mxu0 0.0
    %4569 = vmatpush1.xpose.msra.mxu0 0.0
    %4570 = vmatprep.subr.mxu0 0.0
    %4571 = vmatpush1.xpose.msra.mxu0 0.0
    %4572 = vmatprep.subr.mxu0 0.0
    %4573 = vmatpush1.xpose.msra.mxu0 0.0
    %4574 = vmatprep.subr.mxu0 0.0
    %4575 = vmatpush1.xpose.msra.mxu0 0.0
    %4576 = vmatprep.subr.mxu0 0.0
    %4577 = vmatpush1.xpose.msra.mxu0 0.0
    %4578 = vmatprep.subr.mxu0 0.0
    %4579 = vmatpush1.xpose.msra.mxu0 0.0
    %4580 = vmatprep.subr.mxu0 0.0
    %4581 = vmatpush1.xpose.msra.mxu0 0.0
    %4582 = vmatprep.subr.mxu0 0.0
    %4583 = vmatpush1.xpose.msra.mxu0 0.0
    %4584 = vmatprep.subr.mxu0 0.0
    %4585 = vmatpush1.xpose.msra.mxu0 0.0
    %4586 = vmatprep.subr.mxu0 0.0
    %4587 = vmatpush1.xpose.msra.mxu0 0.0
    %4588 = vmatprep.subr.mxu0 0.0
    %4589 = vmatpush1.xpose.msra.mxu0 0.0
    %4590 = vmatprep.subr.mxu0 0.0
    %4591 = vmatpush1.xpose.msra.mxu0 0.0
    %4592 = vmatprep.subr.mxu0 0.0
    %4593 = vmatpush1.xpose.msra.mxu0 0.0
    %4594 = vmatprep.subr.mxu0 0.0
    %4595 = vmatpush1.xpose.msra.mxu0 0.0
    %4596 = vmatprep.subr.mxu0 0.0
    %4597 = vmatpush1.xpose.msra.mxu0 0.0
    %4598 = vmatprep.subr.mxu0 0.0
    %4599 = vmatpush1.xpose.msra.mxu0 0.0
    %4600 = vmatprep.subr.mxu0 0.0
    %4601 = vmatpush1.xpose.msra.mxu0 0.0
    %4602 = vmatprep.subr.mxu0 0.0
    %4603 = vmatpush1.xpose.msra.mxu0 0.0
    %4604 = vmatprep.subr.mxu0 0.0
    %4605 = vmatpush1.xpose.msra.mxu0 0.0
    %4606 = vmatprep.subr.mxu0 0.0
    %4607 = vmatpush1.xpose.msra.mxu0 0.0
    %4608 = vmatprep.subr.mxu0 0.0
    %4609 = vmatpush1.xpose.msra.mxu0 0.0
    %4610 = vmatprep.subr.mxu0 0.0
    %4611 = vmatpush1.xpose.msra.mxu0 0.0
    %4612 = vmatprep.subr.mxu0 0.0
    %4613 = vmatpush1.xpose.msra.mxu0 0.0
    %4614 = vmatprep.subr.mxu0 0.0
    %4615 = vmatpush1.xpose.msra.mxu0 0.0
    %4616 = vmatprep.subr.mxu0 0.0
    %4617 = vmatpush1.xpose.msra.mxu0 0.0
    %4618 = vmatprep.subr.mxu0 0.0
    %4619 = vmatpush1.xpose.msra.mxu0 0.0
    %4620 = vmatprep.subr.mxu0 0.0
    %4621 = vmatpush1.xpose.msra.mxu0 0.0
    %4622 = vmatprep.subr.mxu0 0.0
    %4623 = vmatpush1.xpose.msra.mxu0 0.0
    %4624 = vmatprep.subr.mxu0 0.0
    %4625 = vmatpush1.xpose.msra.mxu0 0.0
    %4626 = vmatprep.subr.mxu0 0.0
    %4627 = vmatpush1.xpose.msra.mxu0 0.0
    %4628 = vmatprep.mubr.f32.mxu0 0.0
    %4629 = vmatmul.mubr.f32.gmra.mrb[0].mxu0 %v4560
    %v4630 = vpop.f32.mrb[0].mxu0
    %v4631 = vadd.f32 0.0, %v4630
    %v4632 = vpop.f32.mrb[0].mxu0
    %4633 = vdwg.mxu0
    %v4634 = vsel %vm168, %v4553, -inf
    %4635 = vmax.xlane.f32.xlu0 %v4634
    %v4636 = vpop.xlane.xlu0 %4635
    %v4637 = vsel %vm168, %v4631, -inf
    %4638 = vmax.xlane.f32.xlu0 %v4637
    %v4639 = vpop.xlane.xlu0 %4638
    %v4640 = vsub.f32 %v4553, %v4636
    %v4641 = vsub.f32 %v4631, %v4639
    %v4642 = vmul.f32 %v4640, 1.442695
    %v4643 = vpow.pop %v4642
    %v4644 = vmul.f32 %v4641, 1.442695
    %v4645 = vpow.pop %v4644
    %v4646 = vsel %vm168, %v4643, 0.0
    %4647 = vadd.xlane.f32.xlu0 %v4646
    %v4648 = vpop.xlane.xlu0 %4647
    %v4649 = vsel %vm168, %v4645, 0.0
    %4650 = vadd.xlane.f32.xlu0 %v4649
    %v4651 = vpop.xlane.xlu0 %4650
    %v4652 = vrcp.pop %v4648
    %v4653 = vrcp.pop %v4651
    %v4654 = vmul.f32 %v4643, %v4652
    %v4655 = vmul.f32 %v4645, %v4653
    %4656 = vrot.lane.b32.xlu0 %v3808, 48
    %v4657 = vpop.permute.xlu0 %4656
    %v4660 = vsel %vm168, %v4654, 0
    %4662 = vmatprep.subr.mxu0 0.0
    %4663 = vmatpush1.msra.mxu0 %v4657
    %4664 = vmatprep.subr.mxu0 0.0
    %4665 = vmatpush1.msra.mxu0 0.0
    %4666 = vmatprep.subr.mxu0 0.0
    %4667 = vmatpush1.msra.mxu0 0.0
    %4668 = vmatprep.subr.mxu0 0.0
    %4669 = vmatpush1.msra.mxu0 0.0
    %4670 = vmatprep.subr.mxu0 0.0
    %4671 = vmatpush1.msra.mxu0 0.0
    %4672 = vmatprep.subr.mxu0 0.0
    %4673 = vmatpush1.msra.mxu0 0.0
    %4674 = vmatprep.subr.mxu0 0.0
    %4675 = vmatpush1.msra.mxu0 0.0
    %4676 = vmatprep.subr.mxu0 0.0
    %4677 = vmatpush1.msra.mxu0 0.0
    %4678 = vmatprep.subr.mxu0 0.0
    %4679 = vmatpush1.msra.mxu0 0.0
    %4680 = vmatprep.subr.mxu0 0.0
    %4681 = vmatpush1.msra.mxu0 0.0
    %4682 = vmatprep.subr.mxu0 0.0
    %4683 = vmatpush1.msra.mxu0 0.0
    %4684 = vmatprep.subr.mxu0 0.0
    %4685 = vmatpush1.msra.mxu0 0.0
    %4686 = vmatprep.subr.mxu0 0.0
    %4687 = vmatpush1.msra.mxu0 0.0
    %4688 = vmatprep.subr.mxu0 0.0
    %4689 = vmatpush1.msra.mxu0 0.0
    %4690 = vmatprep.subr.mxu0 0.0
    %4691 = vmatpush1.msra.mxu0 0.0
    %4692 = vmatprep.subr.mxu0 0.0
    %4693 = vmatpush1.msra.mxu0 0.0
    %4694 = vmatprep.subr.mxu0 0.0
    %4695 = vmatpush1.msra.mxu0 0.0
    %4696 = vmatprep.subr.mxu0 0.0
    %4697 = vmatpush1.msra.mxu0 0.0
    %4698 = vmatprep.subr.mxu0 0.0
    %4699 = vmatpush1.msra.mxu0 0.0
    %4700 = vmatprep.subr.mxu0 0.0
    %4701 = vmatpush1.msra.mxu0 0.0
    %4702 = vmatprep.subr.mxu0 0.0
    %4703 = vmatpush1.msra.mxu0 0.0
    %4704 = vmatprep.subr.mxu0 0.0
    %4705 = vmatpush1.msra.mxu0 0.0
    %4706 = vmatprep.subr.mxu0 0.0
    %4707 = vmatpush1.msra.mxu0 0.0
    %4708 = vmatprep.subr.mxu0 0.0
    %4709 = vmatpush1.msra.mxu0 0.0
    %4710 = vmatprep.subr.mxu0 0.0
    %4711 = vmatpush1.msra.mxu0 0.0
    %4712 = vmatprep.subr.mxu0 0.0
    %4713 = vmatpush1.msra.mxu0 0.0
    %4714 = vmatprep.subr.mxu0 0.0
    %4715 = vmatpush1.msra.mxu0 0.0
    %4716 = vmatprep.subr.mxu0 0.0
    %4717 = vmatpush1.msra.mxu0 0.0
    %4718 = vmatprep.subr.mxu0 0.0
    %4719 = vmatpush1.msra.mxu0 0.0
    %4720 = vmatprep.subr.mxu0 0.0
    %4721 = vmatpush1.msra.mxu0 0.0
    %4722 = vmatprep.subr.mxu0 0.0
    %4723 = vmatpush1.msra.mxu0 0.0
    %4724 = vmatprep.subr.mxu0 0.0
    %4725 = vmatpush1.msra.mxu0 0.0
    %4726 = vmatprep.mubr.f32.mxu0 0.0
    %4727 = vmatmul.mubr.f32.gmra.mrb[0].mxu0 %v4660
    %v4728 = vpop.f32.mrb[0].mxu0
    %v4729 = vadd.f32 0.0, %v4728
    %v4730 = vpop.f32.mrb[0].mxu0
    %4731 = vdwg.mxu0
    %4732 = vrot.lane.b32.xlu0 %v3813, 48
    %v4733 = vpop.permute.xlu0 %4732
    %v4736 = vsel %vm168, %v4655, 0
    %4738 = vmatprep.subr.mxu0 0.0
    %4739 = vmatpush1.msra.mxu0 %v4733
    %4740 = vmatprep.subr.mxu0 0.0
    %4741 = vmatpush1.msra.mxu0 0.0
    %4742 = vmatprep.subr.mxu0 0.0
    %4743 = vmatpush1.msra.mxu0 0.0
    %4744 = vmatprep.subr.mxu0 0.0
    %4745 = vmatpush1.msra.mxu0 0.0
    %4746 = vmatprep.subr.mxu0 0.0
    %4747 = vmatpush1.msra.mxu0 0.0
    %4748 = vmatprep.subr.mxu0 0.0
    %4749 = vmatpush1.msra.mxu0 0.0
    %4750 = vmatprep.subr.mxu0 0.0
    %4751 = vmatpush1.msra.mxu0 0.0
    %4752 = vmatprep.subr.mxu0 0.0
    %4753 = vmatpush1.msra.mxu0 0.0
    %4754 = vmatprep.subr.mxu0 0.0
    %4755 = vmatpush1.msra.mxu0 0.0
    %4756 = vmatprep.subr.mxu0 0.0
    %4757 = vmatpush1.msra.mxu0 0.0
    %4758 = vmatprep.subr.mxu0 0.0
    %4759 = vmatpush1.msra.mxu0 0.0
    %4760 = vmatprep.subr.mxu0 0.0
    %4761 = vmatpush1.msra.mxu0 0.0
    %4762 = vmatprep.subr.mxu0 0.0
    %4763 = vmatpush1.msra.mxu0 0.0
    %4764 = vmatprep.subr.mxu0 0.0
    %4765 = vmatpush1.msra.mxu0 0.0
    %4766 = vmatprep.subr.mxu0 0.0
    %4767 = vmatpush1.msra.mxu0 0.0
    %4768 = vmatprep.subr.mxu0 0.0
    %4769 = vmatpush1.msra.mxu0 0.0
    %4770 = vmatprep.subr.mxu0 0.0
    %4771 = vmatpush1.msra.mxu0 0.0
    %4772 = vmatprep.subr.mxu0 0.0
    %4773 = vmatpush1.msra.mxu0 0.0
    %4774 = vmatprep.subr.mxu0 0.0
    %4775 = vmatpush1.msra.mxu0 0.0
    %4776 = vmatprep.subr.mxu0 0.0
    %4777 = vmatpush1.msra.mxu0 0.0
    %4778 = vmatprep.subr.mxu0 0.0
    %4779 = vmatpush1.msra.mxu0 0.0
    %4780 = vmatprep.subr.mxu0 0.0
    %4781 = vmatpush1.msra.mxu0 0.0
    %4782 = vmatprep.subr.mxu0 0.0
    %4783 = vmatpush1.msra.mxu0 0.0
    %4784 = vmatprep.subr.mxu0 0.0
    %4785 = vmatpush1.msra.mxu0 0.0
    %4786 = vmatprep.subr.mxu0 0.0
    %4787 = vmatpush1.msra.mxu0 0.0
    %4788 = vmatprep.subr.mxu0 0.0
    %4789 = vmatpush1.msra.mxu0 0.0
    %4790 = vmatprep.subr.mxu0 0.0
    %4791 = vmatpush1.msra.mxu0 0.0
    %4792 = vmatprep.subr.mxu0 0.0
    %4793 = vmatpush1.msra.mxu0 0.0
    %4794 = vmatprep.subr.mxu0 0.0
    %4795 = vmatpush1.msra.mxu0 0.0
    %4796 = vmatprep.subr.mxu0 0.0
    %4797 = vmatpush1.msra.mxu0 0.0
    %4798 = vmatprep.subr.mxu0 0.0
    %4799 = vmatpush1.msra.mxu0 0.0
    %4800 = vmatprep.subr.mxu0 0.0
    %4801 = vmatpush1.msra.mxu0 0.0
    %4802 = vmatprep.mubr.f32.mxu0 0.0
    %4803 = vmatmul.mubr.f32.gmra.mrb[0].mxu0 %v4736
    %v4804 = vpop.f32.mrb[0].mxu0
    %v4805 = vadd.f32 0.0, %v4804
    %v4806 = vpop.f32.mrb[0].mxu0
    %4807 = vdwg.mxu0
    %4808 = vrot.lane.b32.xlu0 %v3816, 104
    %v4809 = vpop.permute.xlu0 %4808
    %4810 = vrot.lane.b32.xlu0 %v3808, 72
    %v4811 = vpop.permute.xlu0 %4810
    %v4812 = vsel %vm168, %v4809, 0
    %v4814 = vsel %vm168, %v4811, 0
    %4816 = vmatprep.subr.mxu0 0.0
    %4817 = vmatpush1.xpose.msra.mxu0 %v4814
    %4818 = vmatprep.subr.mxu0 0.0
    %4819 = vmatpush1.xpose.msra.mxu0 0.0
    %4820 = vmatprep.subr.mxu0 0.0
    %4821 = vmatpush1.xpose.msra.mxu0 0.0
    %4822 = vmatprep.subr.mxu0 0.0
    %4823 = vmatpush1.xpose.msra.mxu0 0.0
    %4824 = vmatprep.subr.mxu0 0.0
    %4825 = vmatpush1.xpose.msra.mxu0 0.0
    %4826 = vmatprep.subr.mxu0 0.0
    %4827 = vmatpush1.xpose.msra.mxu0 0.0
    %4828 = vmatprep.subr.mxu0 0.0
    %4829 = vmatpush1.xpose.msra.mxu0 0.0
    %4830 = vmatprep.subr.mxu0 0.0
    %4831 = vmatpush1.xpose.msra.mxu0 0.0
    %4832 = vmatprep.subr.mxu0 0.0
    %4833 = vmatpush1.xpose.msra.mxu0 0.0
    %4834 = vmatprep.subr.mxu0 0.0
    %4835 = vmatpush1.xpose.msra.mxu0 0.0
    %4836 = vmatprep.subr.mxu0 0.0
    %4837 = vmatpush1.xpose.msra.mxu0 0.0
    %4838 = vmatprep.subr.mxu0 0.0
    %4839 = vmatpush1.xpose.msra.mxu0 0.0
    %4840 = vmatprep.subr.mxu0 0.0
    %4841 = vmatpush1.xpose.msra.mxu0 0.0
    %4842 = vmatprep.subr.mxu0 0.0
    %4843 = vmatpush1.xpose.msra.mxu0 0.0
    %4844 = vmatprep.subr.mxu0 0.0
    %4845 = vmatpush1.xpose.msra.mxu0 0.0
    %4846 = vmatprep.subr.mxu0 0.0
    %4847 = vmatpush1.xpose.msra.mxu0 0.0
    %4848 = vmatprep.subr.mxu0 0.0
    %4849 = vmatpush1.xpose.msra.mxu0 0.0
    %4850 = vmatprep.subr.mxu0 0.0
    %4851 = vmatpush1.xpose.msra.mxu0 0.0
    %4852 = vmatprep.subr.mxu0 0.0
    %4853 = vmatpush1.xpose.msra.mxu0 0.0
    %4854 = vmatprep.subr.mxu0 0.0
    %4855 = vmatpush1.xpose.msra.mxu0 0.0
    %4856 = vmatprep.subr.mxu0 0.0
    %4857 = vmatpush1.xpose.msra.mxu0 0.0
    %4858 = vmatprep.subr.mxu0 0.0
    %4859 = vmatpush1.xpose.msra.mxu0 0.0
    %4860 = vmatprep.subr.mxu0 0.0
    %4861 = vmatpush1.xpose.msra.mxu0 0.0
    %4862 = vmatprep.subr.mxu0 0.0
    %4863 = vmatpush1.xpose.msra.mxu0 0.0
    %4864 = vmatprep.subr.mxu0 0.0
    %4865 = vmatpush1.xpose.msra.mxu0 0.0
    %4866 = vmatprep.subr.mxu0 0.0
    %4867 = vmatpush1.xpose.msra.mxu0 0.0
    %4868 = vmatprep.subr.mxu0 0.0
    %4869 = vmatpush1.xpose.msra.mxu0 0.0
    %4870 = vmatprep.subr.mxu0 0.0
    %4871 = vmatpush1.xpose.msra.mxu0 0.0
    %4872 = vmatprep.subr.mxu0 0.0
    %4873 = vmatpush1.xpose.msra.mxu0 0.0
    %4874 = vmatprep.subr.mxu0 0.0
    %4875 = vmatpush1.xpose.msra.mxu0 0.0
    %4876 = vmatprep.subr.mxu0 0.0
    %4877 = vmatpush1.xpose.msra.mxu0 0.0
    %4878 = vmatprep.subr.mxu0 0.0
    %4879 = vmatpush1.xpose.msra.mxu0 0.0
    %4880 = vmatprep.mubr.f32.mxu0 0.0
    %4881 = vmatmul.mubr.f32.gmra.mrb[0].mxu0 %v4812
    %v4882 = vpop.f32.mrb[0].mxu0
    %v4883 = vadd.f32 0.0, %v4882
    %v4884 = vpop.f32.mrb[0].mxu0
    %4885 = vdwg.mxu0
    %4886 = vrot.lane.b32.xlu0 %v3817, 104
    %v4887 = vpop.permute.xlu0 %4886
    %4888 = vrot.lane.b32.xlu0 %v3813, 72
    %v4889 = vpop.permute.xlu0 %4888
    %v4890 = vsel %vm168, %v4887, 0
    %v4892 = vsel %vm168, %v4889, 0
    %4894 = vmatprep.subr.mxu0 0.0
    %4895 = vmatpush1.xpose.msra.mxu0 %v4892
    %4896 = vmatprep.subr.mxu0 0.0
    %4897 = vmatpush1.xpose.msra.mxu0 0.0
    %4898 = vmatprep.subr.mxu0 0.0
    %4899 = vmatpush1.xpose.msra.mxu0 0.0
    %4900 = vmatprep.subr.mxu0 0.0
    %4901 = vmatpush1.xpose.msra.mxu0 0.0
    %4902 = vmatprep.subr.mxu0 0.0
    %4903 = vmatpush1.xpose.msra.mxu0 0.0
    %4904 = vmatprep.subr.mxu0 0.0
    %4905 = vmatpush1.xpose.msra.mxu0 0.0
    %4906 = vmatprep.subr.mxu0 0.0
    %4907 = vmatpush1.xpose.msra.mxu0 0.0
    %4908 = vmatprep.subr.mxu0 0.0
    %4909 = vmatpush1.xpose.msra.mxu0 0.0
    %4910 = vmatprep.subr.mxu0 0.0
    %4911 = vmatpush1.xpose.msra.mxu0 0.0
    %4912 = vmatprep.subr.mxu0 0.0
    %4913 = vmatpush1.xpose.msra.mxu0 0.0
    %4914 = vmatprep.subr.mxu0 0.0
    %4915 = vmatpush1.xpose.msra.mxu0 0.0
    %4916 = vmatprep.subr.mxu0 0.0
    %4917 = vmatpush1.xpose.msra.mxu0 0.0
    %4918 = vmatprep.subr.mxu0 0.0
    %4919 = vmatpush1.xpose.msra.mxu0 0.0
    %4920 = vmatprep.subr.mxu0 0.0
    %4921 = vmatpush1.xpose.msra.mxu0 0.0
    %4922 = vmatprep.subr.mxu0 0.0
    %4923 = vmatpush1.xpose.msra.mxu0 0.0
    %4924 = vmatprep.subr.mxu0 0.0
    %4925 = vmatpush1.xpose.msra.mxu0 0.0
    %4926 = vmatprep.subr.mxu0 0.0
    %4927 = vmatpush1.xpose.msra.mxu0 0.0
    %4928 = vmatprep.subr.mxu0 0.0
    %4929 = vmatpush1.xpose.msra.mxu0 0.0
    %4930 = vmatprep.subr.mxu0 0.0
    %4931 = vmatpush1.xpose.msra.mxu0 0.0
    %4932 = vmatprep.subr.mxu0 0.0
    %4933 = vmatpush1.xpose.msra.mxu0 0.0
    %4934 = vmatprep.subr.mxu0 0.0
    %4935 = vmatpush1.xpose.msra.mxu0 0.0
    %4936 = vmatprep.subr.mxu0 0.0
    %4937 = vmatpush1.xpose.msra.mxu0 0.0
    %4938 = vmatprep.subr.mxu0 0.0
    %4939 = vmatpush1.xpose.msra.mxu0 0.0
    %4940 = vmatprep.subr.mxu0 0.0
    %4941 = vmatpush1.xpose.msra.mxu0 0.0
    %4942 = vmatprep.subr.mxu0 0.0
    %4943 = vmatpush1.xpose.msra.mxu0 0.0
    %4944 = vmatprep.subr.mxu0 0.0
    %4945 = vmatpush1.xpose.msra.mxu0 0.0
    %4946 = vmatprep.subr.mxu0 0.0
    %4947 = vmatpush1.xpose.msra.mxu0 0.0
    %4948 = vmatprep.subr.mxu0 0.0
    %4949 = vmatpush1.xpose.msra.mxu0 0.0
    %4950 = vmatprep.subr.mxu0 0.0
    %4951 = vmatpush1.xpose.msra.mxu0 0.0
    %4952 = vmatprep.subr.mxu0 0.0
    %4953 = vmatpush1.xpose.msra.mxu0 0.0
    %4954 = vmatprep.subr.mxu0 0.0
    %4955 = vmatpush1.xpose.msra.mxu0 0.0
    %4956 = vmatprep.subr.mxu0 0.0
    %4957 = vmatpush1.xpose.msra.mxu0 0.0
    %4958 = vmatprep.mubr.f32.mxu0 0.0
    %4959 = vmatmul.mubr.f32.gmra.mrb[0].mxu0 %v4890
    %v4960 = vpop.f32.mrb[0].mxu0
    %v4961 = vadd.f32 0.0, %v4960
    %v4962 = vpop.f32.mrb[0].mxu0
    %4963 = vdwg.mxu0
    %v4964 = vsel %vm168, %v4883, -inf
    %4965 = vmax.xlane.f32.xlu0 %v4964
    %v4966 = vpop.xlane.xlu0 %4965
    %v4967 = vsel %vm168, %v4961, -inf
    %4968 = vmax.xlane.f32.xlu0 %v4967
    %v4969 = vpop.xlane.xlu0 %4968
    %v4970 = vsub.f32 %v4883, %v4966
    %v4971 = vsub.f32 %v4961, %v4969
    %v4972 = vmul.f32 %v4970, 1.442695
    %v4973 = vpow.pop %v4972
    %v4974 = vmul.f32 %v4971, 1.442695
    %v4975 = vpow.pop %v4974
    %v4976 = vsel %vm168, %v4973, 0.0
    %4977 = vadd.xlane.f32.xlu0 %v4976
    %v4978 = vpop.xlane.xlu0 %4977
    %v4979 = vsel %vm168, %v4975, 0.0
    %4980 = vadd.xlane.f32.xlu0 %v4979
    %v4981 = vpop.xlane.xlu0 %4980
    %v4982 = vrcp.pop %v4978
    %v4983 = vrcp.pop %v4981
    %v4984 = vmul.f32 %v4973, %v4982
    %v4985 = vmul.f32 %v4975, %v4983
    %4986 = vrot.lane.b32.xlu0 %v3808, 40
    %v4987 = vpop.permute.xlu0 %4986
    %v4990 = vsel %vm168, %v4984, 0
    %4992 = vmatprep.subr.mxu0 0.0
    %4993 = vmatpush1.msra.mxu0 %v4987
    %4994 = vmatprep.subr.mxu0 0.0
    %4995 = vmatpush1.msra.mxu0 0.0
    %4996 = vmatprep.subr.mxu0 0.0
    %4997 = vmatpush1.msra.mxu0 0.0
    %4998 = vmatprep.subr.mxu0 0.0
    %4999 = vmatpush1.msra.mxu0 0.0
    %5000 = vmatprep.subr.mxu0 0.0
    %5001 = vmatpush1.msra.mxu0 0.0
    %5002 = vmatprep.subr.mxu0 0.0
    %5003 = vmatpush1.msra.mxu0 0.0
    %5004 = vmatprep.subr.mxu0 0.0
    %5005 = vmatpush1.msra.mxu0 0.0
    %5006 = vmatprep.subr.mxu0 0.0
    %5007 = vmatpush1.msra.mxu0 0.0
    %5008 = vmatprep.subr.mxu0 0.0
    %5009 = vmatpush1.msra.mxu0 0.0
    %5010 = vmatprep.subr.mxu0 0.0
    %5011 = vmatpush1.msra.mxu0 0.0
    %5012 = vmatprep.subr.mxu0 0.0
    %5013 = vmatpush1.msra.mxu0 0.0
    %5014 = vmatprep.subr.mxu0 0.0
    %5015 = vmatpush1.msra.mxu0 0.0
    %5016 = vmatprep.subr.mxu0 0.0
    %5017 = vmatpush1.msra.mxu0 0.0
    %5018 = vmatprep.subr.mxu0 0.0
    %5019 = vmatpush1.msra.mxu0 0.0
    %5020 = vmatprep.subr.mxu0 0.0
    %5021 = vmatpush1.msra.mxu0 0.0
    %5022 = vmatprep.subr.mxu0 0.0
    %5023 = vmatpush1.msra.mxu0 0.0
    %5024 = vmatprep.subr.mxu0 0.0
    %5025 = vmatpush1.msra.mxu0 0.0
    %5026 = vmatprep.subr.mxu0 0.0
    %5027 = vmatpush1.msra.mxu0 0.0
    %5028 = vmatprep.subr.mxu0 0.0
    %5029 = vmatpush1.msra.mxu0 0.0
    %5030 = vmatprep.subr.mxu0 0.0
    %5031 = vmatpush1.msra.mxu0 0.0
    %5032 = vmatprep.subr.mxu0 0.0
    %5033 = vmatpush1.msra.mxu0 0.0
    %5034 = vmatprep.subr.mxu0 0.0
    %5035 = vmatpush1.msra.mxu0 0.0
    %5036 = vmatprep.subr.mxu0 0.0
    %5037 = vmatpush1.msra.mxu0 0.0
    %5038 = vmatprep.subr.mxu0 0.0
    %5039 = vmatpush1.msra.mxu0 0.0
    %5040 = vmatprep.subr.mxu0 0.0
    %5041 = vmatpush1.msra.mxu0 0.0
    %5042 = vmatprep.subr.mxu0 0.0
    %5043 = vmatpush1.msra.mxu0 0.0
    %5044 = vmatprep.subr.mxu0 0.0
    %5045 = vmatpush1.msra.mxu0 0.0
    %5046 = vmatprep.subr.mxu0 0.0
    %5047 = vmatpush1.msra.mxu0 0.0
    %5048 = vmatprep.subr.mxu0 0.0
    %5049 = vmatpush1.msra.mxu0 0.0
    %5050 = vmatprep.subr.mxu0 0.0
    %5051 = vmatpush1.msra.mxu0 0.0
    %5052 = vmatprep.subr.mxu0 0.0
    %5053 = vmatpush1.msra.mxu0 0.0
    %5054 = vmatprep.subr.mxu0 0.0
    %5055 = vmatpush1.msra.mxu0 0.0
    %5056 = vmatprep.mubr.f32.mxu0 0.0
    %5057 = vmatmul.mubr.f32.gmra.mrb[0].mxu0 %v4990
    %v5058 = vpop.f32.mrb[0].mxu0
    %v5059 = vadd.f32 0.0, %v5058
    %v5060 = vpop.f32.mrb[0].mxu0
    %5061 = vdwg.mxu0
    %5062 = vrot.lane.b32.xlu0 %v3813, 40
    %v5063 = vpop.permute.xlu0 %5062
    %v5066 = vsel %vm168, %v4985, 0
    %5068 = vmatprep.subr.mxu0 0.0
    %5069 = vmatpush1.msra.mxu0 %v5063
    %5070 = vmatprep.subr.mxu0 0.0
    %5071 = vmatpush1.msra.mxu0 0.0
    %5072 = vmatprep.subr.mxu0 0.0
    %5073 = vmatpush1.msra.mxu0 0.0
    %5074 = vmatprep.subr.mxu0 0.0
    %5075 = vmatpush1.msra.mxu0 0.0
    %5076 = vmatprep.subr.mxu0 0.0
    %5077 = vmatpush1.msra.mxu0 0.0
    %5078 = vmatprep.subr.mxu0 0.0
    %5079 = vmatpush1.msra.mxu0 0.0
    %5080 = vmatprep.subr.mxu0 0.0
    %5081 = vmatpush1.msra.mxu0 0.0
    %5082 = vmatprep.subr.mxu0 0.0
    %5083 = vmatpush1.msra.mxu0 0.0
    %5084 = vmatprep.subr.mxu0 0.0
    %5085 = vmatpush1.msra.mxu0 0.0
    %5086 = vmatprep.subr.mxu0 0.0
    %5087 = vmatpush1.msra.mxu0 0.0
    %5088 = vmatprep.subr.mxu0 0.0
    %5089 = vmatpush1.msra.mxu0 0.0
    %5090 = vmatprep.subr.mxu0 0.0
    %5091 = vmatpush1.msra.mxu0 0.0
    %5092 = vmatprep.subr.mxu0 0.0
    %5093 = vmatpush1.msra.mxu0 0.0
    %5094 = vmatprep.subr.mxu0 0.0
    %5095 = vmatpush1.msra.mxu0 0.0
    %5096 = vmatprep.subr.mxu0 0.0
    %5097 = vmatpush1.msra.mxu0 0.0
    %5098 = vmatprep.subr.mxu0 0.0
    %5099 = vmatpush1.msra.mxu0 0.0
    %5100 = vmatprep.subr.mxu0 0.0
    %5101 = vmatpush1.msra.mxu0 0.0
    %5102 = vmatprep.subr.mxu0 0.0
    %5103 = vmatpush1.msra.mxu0 0.0
    %5104 = vmatprep.subr.mxu0 0.0
    %5105 = vmatpush1.msra.mxu0 0.0
    %5106 = vmatprep.subr.mxu0 0.0
    %5107 = vmatpush1.msra.mxu0 0.0
    %5108 = vmatprep.subr.mxu0 0.0
    %5109 = vmatpush1.msra.mxu0 0.0
    %5110 = vmatprep.subr.mxu0 0.0
    %5111 = vmatpush1.msra.mxu0 0.0
    %5112 = vmatprep.subr.mxu0 0.0
    %5113 = vmatpush1.msra.mxu0 0.0
    %5114 = vmatprep.subr.mxu0 0.0
    %5115 = vmatpush1.msra.mxu0 0.0
    %5116 = vmatprep.subr.mxu0 0.0
    %5117 = vmatpush1.msra.mxu0 0.0
    %5118 = vmatprep.subr.mxu0 0.0
    %5119 = vmatpush1.msra.mxu0 0.0
    %5120 = vmatprep.subr.mxu0 0.0
    %5121 = vmatpush1.msra.mxu0 0.0
    %5122 = vmatprep.subr.mxu0 0.0
    %5123 = vmatpush1.msra.mxu0 0.0
    %5124 = vmatprep.subr.mxu0 0.0
    %5125 = vmatpush1.msra.mxu0 0.0
    %5126 = vmatprep.subr.mxu0 0.0
    %5127 = vmatpush1.msra.mxu0 0.0
    %5128 = vmatprep.subr.mxu0 0.0
    %5129 = vmatpush1.msra.mxu0 0.0
    %5130 = vmatprep.subr.mxu0 0.0
    %5131 = vmatpush1.msra.mxu0 0.0
    %5132 = vmatprep.mubr.f32.mxu0 0.0
    %5133 = vmatmul.mubr.f32.gmra.mrb[0].mxu0 %v5066
    %v5134 = vpop.f32.mrb[0].mxu0
    %v5135 = vadd.f32 0.0, %v5134
    %v5136 = vpop.f32.mrb[0].mxu0
    %5137 = vdwg.mxu0
    %5140 = vrot.lane.b32.xlu0 %v4399, 8
    %v5141 = vpop.permute.xlu0 %5140
    %5142 = vrot.lane.b32.xlu0 %v4475, 8
    %v5143 = vpop.permute.xlu0 %5142
    %5148 = vrot.lane.b32.xlu0 %v4729, 16
    %v5149 = vpop.permute.xlu0 %5148
    %5150 = vrot.lane.b32.xlu0 %v4805, 16
    %v5151 = vpop.permute.xlu0 %5150
    %5156 = vrot.lane.b32.xlu0 %v5059, 24
    %v5157 = vpop.permute.xlu0 %5156
    %5158 = vrot.lane.b32.xlu0 %v5135, 24
    %v5159 = vpop.permute.xlu0 %5158
    %v5162 = vsel %vm168, %v4069, %v5141
    %v5163 = vsel %vm168, %v4145, %v5143
    %v5164 = vsel %vm1512, %v5162, %v5149
    %v5165 = vsel %vm1512, %v5163, %v5151
    %v5166 = vsel %vm1515, %v5164, %v5157
    %v5167 = vsel %vm1515, %v5165, %v5159
    %v5169 = vlaneseq
    %v5170 = vshrl.u32 %v5169, 7
    %v5171 = vsub.s32 0, %v5170
    %v5172 = vrot.slane %v3728, %v5171
    %v5175 = vsel %vm81, %v5166, 0
    %v5178 = vsel %vm81, %v5167, 0
    %5180 = vmatprep.subr.mxu0 0.0
    %5181 = vmatpush1.msra.mxu0 %v3724
    %5182 = vmatprep.subr.mxu0 0.0
    %5183 = vmatpush1.msra.mxu0 %v3725
    %5184 = vmatprep.subr.mxu0 0.0
    %5185 = vmatpush1.msra.mxu0 %v3726
    %5186 = vmatprep.subr.mxu0 0.0
    %5187 = vmatpush1.msra.mxu0 %v3727
    %5188 = vmatprep.subr.mxu0 0.0
    %5189 = vmatpush1.msra.mxu0 0.0
    %5190 = vmatprep.subr.mxu0 0.0
    %5191 = vmatpush1.msra.mxu0 0.0
    %5192 = vmatprep.subr.mxu0 0.0
    %5193 = vmatpush1.msra.mxu0 0.0
    %5194 = vmatprep.subr.mxu0 0.0
    %5195 = vmatpush1.msra.mxu0 0.0
    %5196 = vmatprep.subr.mxu0 0.0
    %5197 = vmatpush1.msra.mxu0 0.0
    %5198 = vmatprep.subr.mxu0 0.0
    %5199 = vmatpush1.msra.mxu0 0.0
    %5200 = vmatprep.subr.mxu0 0.0
    %5201 = vmatpush1.msra.mxu0 0.0
    %5202 = vmatprep.subr.mxu0 0.0
    %5203 = vmatpush1.msra.mxu0 0.0
    %5204 = vmatprep.subr.mxu0 0.0
    %5205 = vmatpush1.msra.mxu0 0.0
    %5206 = vmatprep.subr.mxu0 0.0
    %5207 = vmatpush1.msra.mxu0 0.0
    %5208 = vmatprep.subr.mxu0 0.0
    %5209 = vmatpush1.msra.mxu0 0.0
    %5210 = vmatprep.subr.mxu0 0.0
    %5211 = vmatpush1.msra.mxu0 0.0
    %5212 = vmatprep.subr.mxu0 0.0
    %5213 = vmatpush1.msra.mxu0 0.0
    %5214 = vmatprep.subr.mxu0 0.0
    %5215 = vmatpush1.msra.mxu0 0.0
    %5216 = vmatprep.subr.mxu0 0.0
    %5217 = vmatpush1.msra.mxu0 0.0
    %5218 = vmatprep.subr.mxu0 0.0
    %5219 = vmatpush1.msra.mxu0 0.0
    %5220 = vmatprep.subr.mxu0 0.0
    %5221 = vmatpush1.msra.mxu0 0.0
    %5222 = vmatprep.subr.mxu0 0.0
    %5223 = vmatpush1.msra.mxu0 0.0
    %5224 = vmatprep.subr.mxu0 0.0
    %5225 = vmatpush1.msra.mxu0 0.0
    %5226 = vmatprep.subr.mxu0 0.0
    %5227 = vmatpush1.msra.mxu0 0.0
    %5228 = vmatprep.subr.mxu0 0.0
    %5229 = vmatpush1.msra.mxu0 0.0
    %5230 = vmatprep.subr.mxu0 0.0
    %5231 = vmatpush1.msra.mxu0 0.0
    %5232 = vmatprep.subr.mxu0 0.0
    %5233 = vmatpush1.msra.mxu0 0.0
    %5234 = vmatprep.subr.mxu0 0.0
    %5235 = vmatpush1.msra.mxu0 0.0
    %5236 = vmatprep.subr.mxu0 0.0
    %5237 = vmatpush1.msra.mxu0 0.0
    %5238 = vmatprep.subr.mxu0 0.0
    %5239 = vmatpush1.msra.mxu0 0.0
    %5240 = vmatprep.subr.mxu0 0.0
    %5241 = vmatpush1.msra.mxu0 0.0
    %5242 = vmatprep.subr.mxu0 0.0
    %5243 = vmatpush1.msra.mxu0 0.0
    %5244 = vmatprep.mubr.f32.mxu0 0.0
    %5245 = vmatmul.mubr.f32.gmra.mrb[0].mxu0 %v5175
    %v5246 = vpop.f32.mrb[0].mxu0
    %v5247 = vadd.f32 %v5172, %v5246
    %v5248 = vpop.f32.mrb[0].mxu0
    %5249 = vmatprep.mubr.f32.mxu0 0.0
    %5250 = vmatmul.mubr.f32.gmra.mrb[0].mxu0 %v5178
    %v5251 = vpop.f32.mrb[0].mxu0
    %v5252 = vadd.f32 %v5172, %v5251
    %v5253 = vpop.f32.mrb[0].mxu0
    %5254 = vdwg.mxu0
    %v5255 = vld [vmem:[%s17] sm:$0xff]
    %v5256 = vld [vmem:[%s17 + $0x8] sm:$0xff]
    %v5257 = vld [vmem:[%s17 + $0x10] sm:$0xff]
    %v5258 = vld [vmem:[%s17 + $0x18] sm:$0xff]
    %v5259 = vld [vmem:[%s17 + $0x20] sm:$0xff]
    %v5260 = vld [vmem:[%s17 + $0x28] sm:$0xff]
    %v5261 = vld [vmem:[%s17 + $0x30] sm:$0xff]
    %v5262 = vld [vmem:[%s17 + $0x38] sm:$0xff]
    %v5263 = vld [vmem:[%s18] sm:$0x3]
    %v5265 = vlaneseq
    %v5266 = vshrl.u32 %v5265, 7
    %v5267 = vsub.s32 0, %v5266
    %v5268 = vrot.slane %v5263, %v5267
    %v5269 = vlaneseq
    %v5270 = vshrl.u32 %v5269, 7
    %v5271 = vsub.s32 1, %v5270
    %v5272 = vrot.slane %v5263, %v5271
    %v5276 = vsel %vm81, %v5247, 0
    %v5279 = vsel %vm81, %v5252, 0
    %5281 = vmatprep.subr.mxu0 %v5256
    %5282 = vmatpush1.msra.mxu0 %v5255
    %5283 = vmatprep.subr.mxu0 %v5258
    %5284 = vmatpush1.msra.mxu0 %v5257
    %5285 = vmatprep.subr.mxu0 %v5260
    %5286 = vmatpush1.msra.mxu0 %v5259
    %5287 = vmatprep.subr.mxu0 %v5262
    %5288 = vmatpush1.msra.mxu0 %v5261
    %5289 = vmatprep.subr.mxu0 0.0
    %5290 = vmatpush1.msra.mxu0 0.0
    %5291 = vmatprep.subr.mxu0 0.0
    %5292 = vmatpush1.msra.mxu0 0.0
    %5293 = vmatprep.subr.mxu0 0.0
    %5294 = vmatpush1.msra.mxu0 0.0
    %5295 = vmatprep.subr.mxu0 0.0
    %5296 = vmatpush1.msra.mxu0 0.0
    %5297 = vmatprep.subr.mxu0 0.0
    %5298 = vmatpush1.msra.mxu0 0.0
    %5299 = vmatprep.subr.mxu0 0.0
    %5300 = vmatpush1.msra.mxu0 0.0
    %5301 = vmatprep.subr.mxu0 0.0
    %5302 = vmatpush1.msra.mxu0 0.0
    %5303 = vmatprep.subr.mxu0 0.0
    %5304 = vmatpush1.msra.mxu0 0.0
    %5305 = vmatprep.subr.mxu0 0.0
    %5306 = vmatpush1.msra.mxu0 0.0
    %5307 = vmatprep.subr.mxu0 0.0
    %5308 = vmatpush1.msra.mxu0 0.0
    %5309 = vmatprep.subr.mxu0 0.0
    %5310 = vmatpush1.msra.mxu0 0.0
    %5311 = vmatprep.subr.mxu0 0.0
    %5312 = vmatpush1.msra.mxu0 0.0
    %5313 = vmatprep.subr.mxu0 0.0
    %5314 = vmatpush1.msra.mxu0 0.0
    %5315 = vmatprep.subr.mxu0 0.0
    %5316 = vmatpush1.msra.mxu0 0.0
    %5317 = vmatprep.subr.mxu0 0.0
    %5318 = vmatpush1.msra.mxu0 0.0
    %5319 = vmatprep.subr.mxu0 0.0
    %5320 = vmatpush1.msra.mxu0 0.0
    %5321 = vmatprep.subr.mxu0 0.0
    %5322 = vmatpush1.msra.mxu0 0.0
    %5323 = vmatprep.subr.mxu0 0.0
    %5324 = vmatpush1.msra.mxu0 0.0
    %5325 = vmatprep.subr.mxu0 0.0
    %5326 = vmatpush1.msra.mxu0 0.0
    %5327 = vmatprep.subr.mxu0 0.0
    %5328 = vmatpush1.msra.mxu0 0.0
    %5329 = vmatprep.subr.mxu0 0.0
    %5330 = vmatpush1.msra.mxu0 0.0
    %5331 = vmatprep.subr.mxu0 0.0
    %5332 = vmatpush1.msra.mxu0 0.0
    %5333 = vmatprep.subr.mxu0 0.0
    %5334 = vmatpush1.msra.mxu0 0.0
    %5335 = vmatprep.subr.mxu0 0.0
    %5336 = vmatpush1.msra.mxu0 0.0
    %5337 = vmatprep.subr.mxu0 0.0
    %5338 = vmatpush1.msra.mxu0 0.0
    %5339 = vmatprep.subr.mxu0 0.0
    %5340 = vmatpush1.msra.mxu0 0.0
    %5341 = vmatprep.subr.mxu0 0.0
    %5342 = vmatpush1.msra.mxu0 0.0
    %5343 = vmatprep.subr.mxu0 0.0
    %5344 = vmatpush1.msra.mxu0 0.0
    %5345 = vmatprep.mubr.f32.mxu0 0.0
    %5346 = vmatmul.mubr.f32.gmra.mrb[0].mxu0 %v5276
    %v5347 = vpop.f32.mrb[0].mxu0
    %v5348 = vadd.f32 %v5268, %v5347
    %v5349 = vpop.f32.mrb[0].mxu0
    %v5350 = vadd.f32 %v5272, %v5349
    %5351 = vmatprep.mubr.f32.mxu0 0.0
    %5352 = vmatmul.mubr.f32.gmra.mrb[0].mxu0 %v5279
    %v5353 = vpop.f32.mrb[0].mxu0
    %v5354 = vadd.f32 %v5268, %v5353
    %v5355 = vpop.f32.mrb[0].mxu0
    %v5356 = vadd.f32 %v5272, %v5355
    %5357 = vdwg.mxu0
    %5358 = vst.msk [vmem:[#allocation2] sm:$0xff] %vm81, %v5348
    %5359 = vst.msk [vmem:[#allocation2 + $0x8] sm:$0xff] %vm81, %v5354
    %5362 = vrot.lane.b32.xlu0 %v5348, 96
    %v5363 = vpop.permute.xlu0 %5362
    %5364 = vrot.lane.b32.xlu0 %v5354, 96
    %v5365 = vpop.permute.xlu0 %5364
    %s5368 = scalar_lea.vmem [#allocation2], 16
    %5369 = vst.msk [vmem:[%s5368] sm:$0xff] %vm81, %v5363
    %5370 = vst.msk [vmem:[%s5368 + $0x8] sm:$0xff] %vm81, %v5365
    %5371 = vrot.lane.b32.xlu0 %v5348, 64
    %v5372 = vpop.permute.xlu0 %5371
    %5373 = vrot.lane.b32.xlu0 %v5354, 64
    %v5374 = vpop.permute.xlu0 %5373
    %s5377 = scalar_lea.vmem [#allocation2], 32
    %5378 = vst.msk [vmem:[%s5377] sm:$0xff] %vm81, %v5372
    %5379 = vst.msk [vmem:[%s5377 + $0x8] sm:$0xff] %vm81, %v5374
    %5380 = vrot.lane.b32.xlu0 %v5348, 32
    %v5381 = vpop.permute.xlu0 %5380
    %5382 = vrot.lane.b32.xlu0 %v5354, 32
    %v5383 = vpop.permute.xlu0 %5382
    %s5386 = scalar_lea.vmem [#allocation2], 48
    %5387 = vst.msk [vmem:[%s5386] sm:$0xff] %vm81, %v5381
    %5388 = vst.msk [vmem:[%s5386 + $0x8] sm:$0xff] %vm81, %v5383
    %s5389 = scalar_lea.vmem [#allocation2], 64
    %5390 = vst.msk [vmem:[%s5389] sm:$0xff] %vm81, %v5350
    %5391 = vst.msk [vmem:[%s5389 + $0x8] sm:$0xff] %vm81, %v5356
    %5394 = vrot.lane.b32.xlu0 %v5350, 96
    %v5395 = vpop.permute.xlu0 %5394
    %5396 = vrot.lane.b32.xlu0 %v5356, 96
    %v5397 = vpop.permute.xlu0 %5396
    %s5400 = scalar_lea.vmem [#allocation2], 80
    %5401 = vst.msk [vmem:[%s5400] sm:$0xff] %vm81, %v5395
    %5402 = vst.msk [vmem:[%s5400 + $0x8] sm:$0xff] %vm81, %v5397
    %5403 = vrot.lane.b32.xlu0 %v5350, 64
    %v5404 = vpop.permute.xlu0 %5403
    %5405 = vrot.lane.b32.xlu0 %v5356, 64
    %v5406 = vpop.permute.xlu0 %5405
    %s5409 = scalar_lea.vmem [#allocation2], 96
    %5410 = vst.msk [vmem:[%s5409] sm:$0xff] %vm81, %v5404
    %5411 = vst.msk [vmem:[%s5409 + $0x8] sm:$0xff] %vm81, %v5406
    %5412 = vrot.lane.b32.xlu0 %v5350, 32
    %v5413 = vpop.permute.xlu0 %5412
    %5414 = vrot.lane.b32.xlu0 %v5356, 32
    %v5415 = vpop.permute.xlu0 %5414
    %s5418 = scalar_lea.vmem [#allocation2], 112
    %5419 = vst.msk [vmem:[%s5418] sm:$0xff] %vm81, %v5413
    %5420 = vst.msk [vmem:[%s5418 + $0x8] sm:$0xff] %vm81, %v5415
    // Predicated region
    $region78: #{gpt2_decoder_forward.1} parent=1 // pred_check
      _
    $region79: #{gpt2_decoder_forward.1} parent=1 // pred_check_branch
      %5422 = sbr.rel (0) target = $region81
    $region80: #{gpt2_decoder_forward.1} parent=1 // pred_region
      %s5424 = ssub.s32 2048, 2048
      %5425 = vsyncadd [#allocation3], %s5424
      %s5426 = sshll.u32 [#allocation2], 4
      %s5427 = int_to_ptr.vmem [resolvable:$true] %s5426
      %5432 = dma.vmem_to_hbm [thread:$0]  %s5427, 2048, %s19, [#allocation3], 128, 128, 8
    $region81: #{gpt2_decoder_forward.1} parent=1 // pred_fallthru
      _
    // Predicated region
    $region82: #{gpt2_decoder_forward.1} parent=1 // pred_check
      _
    $region83: #{gpt2_decoder_forward.1} parent=1 // pred_check_branch
      %5434 = sbr.rel (0) target = $region85
    $region84: #{gpt2_decoder_forward.1} parent=1 // pred_region
      %5435 = dma.done [#allocation3], 2048
    $region85: #{gpt2_decoder_forward.1} parent=1 // pred_fallthru
      _
    %5436 = vsyncpa [#allocation3], 1

</llo_original>
